<compile_context>
chip_gen: v6e
topology: v6e:2x2x1
jax: 0.10.0
libtpu: 0.0.40
codegen_flags: <defaults>
</compile_context>

<pallas_src>
import math

import jax
import jax.numpy as jnp
from jax.experimental import pallas as pl
from jax.experimental.pallas import tpu as pltpu

# ----------------------- configuration (small, synthetic) -----------------------
S = 4            # inputs.size(0) : number of coarse positions
B = 2            # inputs.size(1) : batch
INPUT_DIM = 8
D_MODEL = 32
NHEAD = 4
HEAD_DIM = D_MODEL // NHEAD
DIM_FF = 64
NUM_LAYERS = 2
LENGTH = 16      # fine-grained output length
BLOCK_SIZE = 1000
HSCALE = LENGTH / S
NEG = -1e30      # large-negative fill (avoids inf-inf NaN risk)
LANE = 128       # TPU lane width; packing slab column count

N = S * B            # number of (coarse position, batch) windows
M = N * LENGTH       # rows fed to the batched matmuls (= 128)


# ------------------------------ in-kernel helpers --------------------------------
def _layer_norm(x, gamma, beta, eps=1e-5):
    mu = jnp.mean(x, axis=-1, keepdims=True)
    var = jnp.mean((x - mu) ** 2, axis=-1, keepdims=True)
    return (x - mu) * jax.lax.rsqrt(var + eps) * gamma + beta


def _softplus(x):
    # numerically stable softplus (log1p avoided for lowering safety)
    return jnp.maximum(x, 0.0) + jnp.log(1.0 + jnp.exp(-jnp.abs(x)))


# ------------------------------ weight-slab packing ------------------------------
class _SlabPacker:
    """Packs 2-D f32 tensors into one lane-dense (rows, 128) slab, 8-row aligned."""

    def __init__(self):
        self.blocks = []
        self.layout = {}
        self.row = 0

    def add(self, name, arr):
        arr = jnp.asarray(arr, jnp.float32)
        if arr.ndim == 1:
            arr = arr.reshape(1, -1)
        r, c = arr.shape
        assert c <= LANE, (name, arr.shape)
        rp = ((r + 7) // 8) * 8
        block = jnp.zeros((rp, LANE), jnp.float32).at[:r, :c].set(arr)
        self.blocks.append(block)
        self.layout[name] = (self.row, r, c)
        self.row += rp

    def finish(self):
        return jnp.concatenate(self.blocks, axis=0), dict(self.layout)


def pack_weights(params):
    """Pre-packs all weights + per-config constants into one VMEM-friendly slab."""
    lo = [max(0, int(i * HSCALE) - BLOCK_SIZE) for i in range(S)]
    hi = [min(LENGTH, int(i * HSCALE) + BLOCK_SIZE + 1) for i in range(S)]
    use_mask = not all(l == 0 and h == LENGTH for l, h in zip(lo, hi))

    # sinusoidal positional encoding over absolute fine positions
    pos = jnp.arange(LENGTH, dtype=jnp.float32)[:, None]
    div = jnp.exp(jnp.arange(0, INPUT_DIM, 2, dtype=jnp.float32)
                  * (-(math.log(10000.0) / INPUT_DIM)))
    pe = jnp.zeros((LENGTH, INPUT_DIM), jnp.float32)
    pe = pe.at[:, 0::2].set(jnp.sin(pos * div))
    pe = pe.at[:, 1::2].set(jnp.cos(pos * div))

    # squared distance (col - s*hscale)^2, stored as an (M, 1) per-row column
    srow = jnp.repeat(jnp.arange(S, dtype=jnp.float32), B)              # (N,)
    jcol = jnp.arange(LENGTH, dtype=jnp.float32)
    dist2 = (jcol[None, :] - srow[:, None] * HSCALE) ** 2               # (N, L)

    pk = _SlabPacker()
    pk.add("pe", pe)
    pk.add("dist2c", dist2.reshape(M, 1))
    if use_mask:
        cols = jnp.arange(LENGTH)
        mask_s = jnp.stack([(cols >= lo[i]) & (cols < hi[i]) for i in range(S)])
        mask_n = jnp.repeat(mask_s, B, axis=0)                          # (N, L)
        hmask = jnp.where(mask_n, 0.0, NEG).astype(jnp.float32)
        pk.add("hmask", hmask)                  # key-mask bias for attention
        pk.add("hmaskc", hmask.reshape(M, 1))   # column form for hierarchy logits

    pk.add("in_w1", params["in_w1"]); pk.add("in_b1", params["in_b1"])
    pk.add("in_w2", params["in_w2"]); pk.add("in_b2", params["in_b2"])
    pk.add("k_w1", params["k_w1"]); pk.add("k_b1", params["k_b1"])
    pk.add("k_w2", params["k_w2"]); pk.add("k_b2", params["k_b2"])

    scale = 1.0 / math.sqrt(HEAD_DIM)
    for l, lp in enumerate(params["layers"]):
        p_ = f"L{l}_"
        # fused QKV projection; attention scale folded into the Q part
        wqkv = jnp.concatenate([lp["wq"] * scale, lp["wk"], lp["wv"]], axis=1)
        bqkv = jnp.concatenate([lp["bq"] * scale, lp["bk"], lp["bv"]], axis=1)
        pk.add(p_ + "wqkv", wqkv); pk.add(p_ + "bqkv", bqkv)
        pk.add(p_ + "wo", lp["wo"]); pk.add(p_ + "bo", lp["bo"])
        pk.add(p_ + "g1", lp["g1"]); pk.add(p_ + "be1", lp["be1"])
        pk.add(p_ + "wf1", lp["wf1"]); pk.add(p_ + "bf1", lp["bf1"])
        pk.add(p_ + "wf2", lp["wf2"]); pk.add(p_ + "bf2", lp["bf2"])
        pk.add(p_ + "g2", lp["g2"]); pk.add(p_ + "be2", lp["be2"])

    slab, layout = pk.finish()
    return slab, layout, use_mask


# ------------------------------- fused Pallas kernel -----------------------------
def _make_kernel(layout, use_mask):
    f32, bf16 = jnp.float32, jnp.bfloat16

    def _strata_kernel(inp_ref, w_ref, out_ref):
        def w(name):                        # f32 view of a packed tensor
            r0, r, c = layout[name]
            return w_ref[r0:r0 + r, 0:c]

        def wb(name):                       # bf16 copy for MXU operands
            return w(name).astype(bf16)

        inp = inp_ref[...]                                   # (N, INPUT_DIM)
        pe = w("pe")                                         # (LENGTH, INPUT_DIM)

        # ---- positional encoding + input_ff over all M = N*LENGTH rows -------
        x = (inp[:, None, :] + pe[None, :, :]).reshape(M, INPUT_DIM)
        h = jnp.maximum(
            jnp.dot(x.astype(bf16), wb("in_w1"), preferred_element_type=f32)
            + w("in_b1"), 0.0)
        x = jnp.dot(h.astype(bf16), wb("in_w2"), preferred_element_type=f32) + w("in_b2")

        if use_mask:
            attn_bias = w("hmask").reshape(N, 1, LENGTH)     # 0 inside / NEG outside

        # ---- transformer encoder stack (post-norm), windows batched over N ----
        for l in range(NUM_LAYERS):
            p_ = f"L{l}_"
            qkv = (jnp.dot(x.astype(bf16), wb(p_ + "wqkv"), preferred_element_type=f32)
                   + w(p_ + "bqkv"))                         # (M, 3*D_MODEL), q pre-scaled

            def heads(base):                # -> (NHEAD*N, LENGTH, HEAD_DIM) bf16
                hs = [qkv[:, base + hh * HEAD_DIM: base + (hh + 1) * HEAD_DIM]
                      .reshape(N, LENGTH, HEAD_DIM).astype(bf16)
                      for hh in range(NHEAD)]
                return jnp.concatenate(hs, axis=0)

            qh, kh, vh = heads(0), heads(D_MODEL), heads(2 * D_MODEL)
            s = jnp.einsum('bqd,bkd->bqk', qh, kh, preferred_element_type=f32)
            if use_mask:
                s = (s.reshape(NHEAD, N, LENGTH, LENGTH) + attn_bias
                     ).reshape(NHEAD * N, LENGTH, LENGTH)
            s = s - jnp.max(s, axis=-1, keepdims=True)
            pr = jnp.exp(s)
            pr = pr * pl.reciprocal(jnp.sum(pr, axis=-1, keepdims=True), approx=True)
            o = jnp.einsum('bqk,bkd->bqd', pr.astype(bf16), vh,
                           preferred_element_type=f32)       # (NHEAD*N, L, HEAD_DIM)
            attn = jnp.concatenate([o[hh * N:(hh + 1) * N] for hh in range(NHEAD)],
                                   axis=-1).reshape(M, D_MODEL)
            attn = (jnp.dot(attn.astype(bf16), wb(p_ + "wo"), preferred_element_type=f32)
                    + w(p_ + "bo"))
            x = _layer_norm(x + attn, w(p_ + "g1"), w(p_ + "be1"))

            fh = jnp.maximum(
                jnp.dot(x.astype(bf16), wb(p_ + "wf1"), preferred_element_type=f32)
                + w(p_ + "bf1"), 0.0)
            ff = (jnp.dot(fh.astype(bf16), wb(p_ + "wf2"), preferred_element_type=f32)
                  + w(p_ + "bf2"))
            x = _layer_norm(x + ff, w(p_ + "g2"), w(p_ + "be2"))

        # ---- kernel_ff: hierarchy-kernel parameters (never leave VMEM) --------
        kh_ = jnp.maximum(
            jnp.dot(inp.astype(bf16), wb("k_w1"), preferred_element_type=f32)
            + w("k_b1"), 0.0)
        kp = jnp.dot(kh_.astype(bf16), wb("k_w2"), preferred_element_type=f32) + w("k_b2")
        amp, wid = kp[:, 0:1], _softplus(kp[:, 1:2])          # (N, 1) each

        def to_col(v):                       # (N,1) -> per-row (M,1) column
            return jnp.broadcast_to(v[:, None, :], (N, LENGTH, 1)).reshape(M, 1)

        logit = to_col(amp) - to_col(wid) * w("dist2c")       # (M, 1)
        if use_mask:
            logit = logit + w("hmaskc")

        # ---- softmax over the coarse axis + weighted combine ------------------
        lg = logit.reshape(S, B * LENGTH, 1)
        ev = jnp.exp(lg - jnp.max(lg, axis=0, keepdims=True))
        wgt = ev * pl.reciprocal(jnp.sum(ev, axis=0, keepdims=True), approx=True)
        acc = jnp.sum(wgt * x.reshape(S, B * LENGTH, D_MODEL), axis=0)   # (B*L, D)

        # single store; row-major (LENGTH, B*D_MODEL) == (LENGTH, B, D_MODEL)
        out_ref[...] = jnp.concatenate(
            [acc[b * LENGTH:(b + 1) * LENGTH] for b in range(B)], axis=-1)

    return _strata_kernel


# ----------------------------- wrapper / glue ------------------------------------
def build_strata_forward(layout, use_mask):
    kernel = _make_kernel(layout, use_mask)
    vmem = pltpu.MemorySpace.VMEM

    @jax.jit
    def forward(inputs, wslab):
        """inputs: (S, B, INPUT_DIM) f32; wslab: packed weight slab -> (LENGTH, B, D_MODEL)."""
        inp_flat = inputs.reshape(N, INPUT_DIM).astype(jnp.float32)   # row n = s*B + b
        out = pl.pallas_call(
            kernel,
            out_shape=jax.ShapeDtypeStruct((LENGTH, B * D_MODEL), jnp.float32),
            in_specs=[pl.BlockSpec(memory_space=vmem),
                      pl.BlockSpec(memory_space=vmem)],
            out_specs=pl.BlockSpec(memory_space=vmem),
        )(inp_flat, wslab)
        # free reshape: memory layout is already (LENGTH, B, D_MODEL)
        return out.reshape(LENGTH, B, D_MODEL)

    return forward


# ------------------------------ parameter init -----------------------------------
def init_params(key):
    kit = iter(jax.random.split(key, 8 + NUM_LAYERS * 16))

    def xav(shape):
        lim = math.sqrt(6.0 / (shape[0] + shape[1]))
        return jax.random.uniform(next(kit), shape, jnp.float32, -lim, lim)

    def zeros(shape):
        return jnp.zeros(shape, jnp.float32)

    p = {
        "in_w1": xav((INPUT_DIM, DIM_FF)), "in_b1": zeros((1, DIM_FF)),
        "in_w2": xav((DIM_FF, D_MODEL)), "in_b2": zeros((1, D_MODEL)),
        "k_w1": xav((INPUT_DIM, DIM_FF)), "k_b1": zeros((1, DIM_FF)),
        "k_w2": xav((DIM_FF, 2)), "k_b2": zeros((1, 2)),
        "layers": [],
    }
    for _ in range(NUM_LAYERS):
        p["layers"].append({
            "wq": xav((D_MODEL, D_MODEL)), "bq": zeros((1, D_MODEL)),
            "wk": xav((D_MODEL, D_MODEL)), "bk": zeros((1, D_MODEL)),
            "wv": xav((D_MODEL, D_MODEL)), "bv": zeros((1, D_MODEL)),
            "wo": xav((D_MODEL, D_MODEL)), "bo": zeros((1, D_MODEL)),
            "g1": jnp.ones((1, D_MODEL), jnp.float32), "be1": zeros((1, D_MODEL)),
            "wf1": xav((D_MODEL, DIM_FF)), "bf1": zeros((1, DIM_FF)),
            "wf2": xav((DIM_FF, D_MODEL)), "bf2": zeros((1, D_MODEL)),
            "g2": jnp.ones((1, D_MODEL), jnp.float32), "be2": zeros((1, D_MODEL)),
        })
    return p


if __name__ == "__main__":
    key = jax.random.PRNGKey(0)
    pkey, xkey = jax.random.split(key)
    params = init_params(pkey)
    inputs = jax.random.normal(xkey, (S, B, INPUT_DIM), jnp.float32)

    # one-time host-side packing of weights/constants into a single slab
    wslab, layout, use_mask = pack_weights(params)
    forward = build_strata_forward(layout, use_mask)

    out = jax.block_until_ready(forward(inputs, wslab))

    assert out.shape == (LENGTH, B, D_MODEL), out.shape
    assert bool(jnp.all(jnp.isfinite(out)))
    print("KERNEL_OK")
</pallas_src>

<mosaic_0001>
module attributes {stable_mosaic.version = 11 : i64} {
  func.func @_strata_kernel(%arg0: memref<8x8xf32, #tpu.memory_space<vmem>>, %arg1: memref<768x128xf32, #tpu.memory_space<vmem>>, %arg2: memref<16x64xf32, #tpu.memory_space<vmem>>) attributes {dimension_semantics = [], scalar_prefetch = 0 : i64, scratch_operands = 0 : i64, tpu.core_type = #tpu.core_type<tc>} {
    %c0 = arith.constant 0 : index
    %c0_0 = arith.constant 0 : index
    %0 = vector.load %arg0[%c0, %c0_0] : memref<8x8xf32, #tpu.memory_space<vmem>>, vector<8x8xf32>
    %c0_1 = arith.constant 0 : index
    %c0_2 = arith.constant 0 : index
    %1 = vector.load %arg1[%c0_1, %c0_2] : memref<768x128xf32, #tpu.memory_space<vmem>>, vector<16x8xf32>
    %2 = vector.shape_cast %0 : vector<8x8xf32> to vector<8x1x8xf32>
    %3 = vector.shape_cast %1 : vector<16x8xf32> to vector<1x16x8xf32>
    %4 = vector.broadcast %2 : vector<8x1x8xf32> to vector<8x16x8xf32>
    %5 = vector.broadcast %3 : vector<1x16x8xf32> to vector<8x16x8xf32>
    %6 = arith.addf %4, %5 : vector<8x16x8xf32>
    %7 = vector.shape_cast %6 : vector<8x16x8xf32> to vector<128x8xf32>
    %8 = arith.truncf %7 : vector<128x8xf32> to vector<128x8xbf16>
    %c144 = arith.constant 144 : index
    %c0_3 = arith.constant 0 : index
    %9 = vector.load %arg1[%c144, %c0_3] : memref<768x128xf32, #tpu.memory_space<vmem>>, vector<8x64xf32>
    %10 = arith.truncf %9 : vector<8x64xf32> to vector<8x64xbf16>
    %cst = arith.constant dense<0.000000e+00> : vector<128x64xf32>
    %11 = tpu.matmul %8, %10, %cst {dimension_numbers = #tpu.dot_dimension_numbers<[1], [0], [0], [1], [0, 0, 1, 1], [], []>} : vector<128x8xbf16>, vector<8x64xbf16>, vector<128x64xf32> -> vector<128x64xf32>
    %c152 = arith.constant 152 : index
    %c0_4 = arith.constant 0 : index
    %12 = vector.load %arg1[%c152, %c0_4] : memref<768x128xf32, #tpu.memory_space<vmem>>, vector<1x64xf32>
    %13 = vector.broadcast %12 : vector<1x64xf32> to vector<128x64xf32>
    %14 = arith.addf %11, %13 : vector<128x64xf32>
    %cst_5 = arith.constant 0.000000e+00 : f32
    %15 = vector.broadcast %cst_5 : f32 to vector<128x64xf32>
    %16 = arith.maximumf %14, %15 : vector<128x64xf32>
    %17 = arith.truncf %16 : vector<128x64xf32> to vector<128x64xbf16>
    %c160 = arith.constant 160 : index
    %c0_6 = arith.constant 0 : index
    %18 = vector.load %arg1[%c160, %c0_6] : memref<768x128xf32, #tpu.memory_space<vmem>>, vector<64x32xf32>
    %19 = arith.truncf %18 : vector<64x32xf32> to vector<64x32xbf16>
    %cst_7 = arith.constant dense<0.000000e+00> : vector<128x32xf32>
    %20 = tpu.matmul %17, %19, %cst_7 {dimension_numbers = #tpu.dot_dimension_numbers<[1], [0], [0], [1], [0, 0, 1, 1], [], []>} : vector<128x64xbf16>, vector<64x32xbf16>, vector<128x32xf32> -> vector<128x32xf32>
    %c224 = arith.constant 224 : index
    %c0_8 = arith.constant 0 : index
    %21 = vector.load %arg1[%c224, %c0_8] : memref<768x128xf32, #tpu.memory_space<vmem>>, vector<1x32xf32>
    %22 = vector.broadcast %21 : vector<1x32xf32> to vector<128x32xf32>
    %23 = arith.addf %20, %22 : vector<128x32xf32>
    %24 = arith.truncf %23 : vector<128x32xf32> to vector<128x32xbf16>
    %c320 = arith.constant 320 : index
    %c0_9 = arith.constant 0 : index
    %25 = vector.load %arg1[%c320, %c0_9] : memref<768x128xf32, #tpu.memory_space<vmem>>, vector<32x96xf32>
    %26 = arith.truncf %25 : vector<32x96xf32> to vector<32x96xbf16>
    %cst_10 = arith.constant dense<0.000000e+00> : vector<128x96xf32>
    %27 = tpu.matmul %24, %26, %cst_10 {dimension_numbers = #tpu.dot_dimension_numbers<[1], [0], [0], [1], [0, 0, 1, 1], [], []>} : vector<128x32xbf16>, vector<32x96xbf16>, vector<128x96xf32> -> vector<128x96xf32>
    %c352 = arith.constant 352 : index
    %c0_11 = arith.constant 0 : index
    %28 = vector.load %arg1[%c352, %c0_11] : memref<768x128xf32, #tpu.memory_space<vmem>>, vector<1x96xf32>
    %29 = vector.broadcast %28 : vector<1x96xf32> to vector<128x96xf32>
    %30 = arith.addf %27, %29 : vector<128x96xf32>
    %31 = vector.extract_strided_slice %30 {offsets = [0, 0], sizes = [128, 8], strides = [1, 1]} : vector<128x96xf32> to vector<128x8xf32>
    %32 = vector.shape_cast %31 : vector<128x8xf32> to vector<8x16x8xf32>
    %33 = arith.truncf %32 : vector<8x16x8xf32> to vector<8x16x8xbf16>
    %34 = vector.extract_strided_slice %30 {offsets = [0, 8], sizes = [128, 8], strides = [1, 1]} : vector<128x96xf32> to vector<128x8xf32>
    %35 = vector.shape_cast %34 : vector<128x8xf32> to vector<8x16x8xf32>
    %36 = arith.truncf %35 : vector<8x16x8xf32> to vector<8x16x8xbf16>
    %37 = vector.extract_strided_slice %30 {offsets = [0, 16], sizes = [128, 8], strides = [1, 1]} : vector<128x96xf32> to vector<128x8xf32>
    %38 = vector.shape_cast %37 : vector<128x8xf32> to vector<8x16x8xf32>
    %39 = arith.truncf %38 : vector<8x16x8xf32> to vector<8x16x8xbf16>
    %40 = vector.extract_strided_slice %30 {offsets = [0, 24], sizes = [128, 8], strides = [1, 1]} : vector<128x96xf32> to vector<128x8xf32>
    %41 = vector.shape_cast %40 : vector<128x8xf32> to vector<8x16x8xf32>
    %42 = arith.truncf %41 : vector<8x16x8xf32> to vector<8x16x8xbf16>
    %43 = tpu.concatenate %33, %36, %39, %42 in 0 : vector<8x16x8xbf16>, vector<8x16x8xbf16>, vector<8x16x8xbf16>, vector<8x16x8xbf16> -> vector<32x16x8xbf16>
    %44 = vector.extract_strided_slice %30 {offsets = [0, 32], sizes = [128, 8], strides = [1, 1]} : vector<128x96xf32> to vector<128x8xf32>
    %45 = vector.shape_cast %44 : vector<128x8xf32> to vector<8x16x8xf32>
    %46 = arith.truncf %45 : vector<8x16x8xf32> to vector<8x16x8xbf16>
    %47 = vector.extract_strided_slice %30 {offsets = [0, 40], sizes = [128, 8], strides = [1, 1]} : vector<128x96xf32> to vector<128x8xf32>
    %48 = vector.shape_cast %47 : vector<128x8xf32> to vector<8x16x8xf32>
    %49 = arith.truncf %48 : vector<8x16x8xf32> to vector<8x16x8xbf16>
    %50 = vector.extract_strided_slice %30 {offsets = [0, 48], sizes = [128, 8], strides = [1, 1]} : vector<128x96xf32> to vector<128x8xf32>
    %51 = vector.shape_cast %50 : vector<128x8xf32> to vector<8x16x8xf32>
    %52 = arith.truncf %51 : vector<8x16x8xf32> to vector<8x16x8xbf16>
    %53 = vector.extract_strided_slice %30 {offsets = [0, 56], sizes = [128, 8], strides = [1, 1]} : vector<128x96xf32> to vector<128x8xf32>
    %54 = vector.shape_cast %53 : vector<128x8xf32> to vector<8x16x8xf32>
    %55 = arith.truncf %54 : vector<8x16x8xf32> to vector<8x16x8xbf16>
    %56 = tpu.concatenate %46, %49, %52, %55 in 0 : vector<8x16x8xbf16>, vector<8x16x8xbf16>, vector<8x16x8xbf16>, vector<8x16x8xbf16> -> vector<32x16x8xbf16>
    %57 = vector.extract_strided_slice %30 {offsets = [0, 64], sizes = [128, 8], strides = [1, 1]} : vector<128x96xf32> to vector<128x8xf32>
    %58 = vector.shape_cast %57 : vector<128x8xf32> to vector<8x16x8xf32>
    %59 = arith.truncf %58 : vector<8x16x8xf32> to vector<8x16x8xbf16>
    %60 = vector.extract_strided_slice %30 {offsets = [0, 72], sizes = [128, 8], strides = [1, 1]} : vector<128x96xf32> to vector<128x8xf32>
    %61 = vector.shape_cast %60 : vector<128x8xf32> to vector<8x16x8xf32>
    %62 = arith.truncf %61 : vector<8x16x8xf32> to vector<8x16x8xbf16>
    %63 = vector.extract_strided_slice %30 {offsets = [0, 80], sizes = [128, 8], strides = [1, 1]} : vector<128x96xf32> to vector<128x8xf32>
    %64 = vector.shape_cast %63 : vector<128x8xf32> to vector<8x16x8xf32>
    %65 = arith.truncf %64 : vector<8x16x8xf32> to vector<8x16x8xbf16>
    %66 = vector.extract_strided_slice %30 {offsets = [0, 88], sizes = [128, 8], strides = [1, 1]} : vector<128x96xf32> to vector<128x8xf32>
    %67 = vector.shape_cast %66 : vector<128x8xf32> to vector<8x16x8xf32>
    %68 = arith.truncf %67 : vector<8x16x8xf32> to vector<8x16x8xbf16>
    %69 = tpu.concatenate %59, %62, %65, %68 in 0 : vector<8x16x8xbf16>, vector<8x16x8xbf16>, vector<8x16x8xbf16>, vector<8x16x8xbf16> -> vector<32x16x8xbf16>
    "tpu.trace_start"() <{level = 10 : i32, message = "bqd,bkd->bqk"}> : () -> ()
    %cst_12 = arith.constant dense<0.000000e+00> : vector<32x16x16xf32>
    %70 = tpu.matmul %43, %56, %cst_12 {dimension_numbers = #tpu.dot_dimension_numbers<[2], [2], [1], [1], [0, 0, 0, 1, 1, 1], [0], [0]>} : vector<32x16x8xbf16>, vector<32x16x8xbf16>, vector<32x16x16xf32> -> vector<32x16x16xf32>
    "tpu.trace_stop"() : () -> ()
    %cst_13 = arith.constant dense<0xFF800000> : vector<32x16xf32>
    %71 = vector.multi_reduction <maximumf>, %70, %cst_13 [2] : vector<32x16x16xf32> to vector<32x16xf32>
    %72 = vector.shape_cast %71 : vector<32x16xf32> to vector<32x16x1xf32>
    %73 = vector.broadcast %72 : vector<32x16x1xf32> to vector<32x16x16xf32>
    %74 = arith.subf %70, %73 : vector<32x16x16xf32>
    %75 = math.exp %74 : vector<32x16x16xf32>
    %cst_14 = arith.constant dense<0.000000e+00> : vector<32x16xf32>
    %76 = vector.multi_reduction <add>, %75, %cst_14 [2] : vector<32x16x16xf32> to vector<32x16xf32>
    %77 = vector.shape_cast %76 : vector<32x16xf32> to vector<32x16x1xf32>
    %78 = tpu.reciprocal %77 {approx = true} : vector<32x16x1xf32> -> vector<32x16x1xf32>
    %79 = vector.broadcast %78 : vector<32x16x1xf32> to vector<32x16x16xf32>
    %80 = arith.mulf %75, %79 : vector<32x16x16xf32>
    %81 = arith.truncf %80 : vector<32x16x16xf32> to vector<32x16x16xbf16>
    "tpu.trace_start"() <{level = 10 : i32, message = "bqk,bkd->bqd"}> : () -> ()
    %cst_15 = arith.constant dense<0.000000e+00> : vector<32x16x8xf32>
    %82 = tpu.matmul %81, %69, %cst_15 {dimension_numbers = #tpu.dot_dimension_numbers<[2], [1], [1], [2], [0, 0, 0, 1, 1, 2], [0], [0]>} : vector<32x16x16xbf16>, vector<32x16x8xbf16>, vector<32x16x8xf32> -> vector<32x16x8xf32>
    "tpu.trace_stop"() : () -> ()
    %83 = vector.extract_strided_slice %82 {offsets = [0, 0, 0], sizes = [8, 16, 8], strides = [1, 1, 1]} : vector<32x16x8xf32> to vector<8x16x8xf32>
    %84 = vector.extract_strided_slice %82 {offsets = [8, 0, 0], sizes = [8, 16, 8], strides = [1, 1, 1]} : vector<32x16x8xf32> to vector<8x16x8xf32>
    %85 = vector.extract_strided_slice %82 {offsets = [16, 0, 0], sizes = [8, 16, 8], strides = [1, 1, 1]} : vector<32x16x8xf32> to vector<8x16x8xf32>
    %86 = vector.extract_strided_slice %82 {offsets = [24, 0, 0], sizes = [8, 16, 8], strides = [1, 1, 1]} : vector<32x16x8xf32> to vector<8x16x8xf32>
    %87 = tpu.concatenate %83, %84, %85, %86 in 2 : vector<8x16x8xf32>, vector<8x16x8xf32>, vector<8x16x8xf32>, vector<8x16x8xf32> -> vector<8x16x32xf32>
    %88 = vector.shape_cast %87 : vector<8x16x32xf32> to vector<128x32xf32>
    %89 = arith.truncf %88 : vector<128x32xf32> to vector<128x32xbf16>
    %c360 = arith.constant 360 : index
    %c0_16 = arith.constant 0 : index
    %90 = vector.load %arg1[%c360, %c0_16] : memref<768x128xf32, #tpu.memory_space<vmem>>, vector<32x32xf32>
    %91 = arith.truncf %90 : vector<32x32xf32> to vector<32x32xbf16>
    %cst_17 = arith.constant dense<0.000000e+00> : vector<128x32xf32>
    %92 = tpu.matmul %89, %91, %cst_17 {dimension_numbers = #tpu.dot_dimension_numbers<[1], [0], [0], [1], [0, 0, 1, 1], [], []>} : vector<128x32xbf16>, vector<32x32xbf16>, vector<128x32xf32> -> vector<128x32xf32>
    %c392 = arith.constant 392 : index
    %c0_18 = arith.constant 0 : index
    %93 = vector.load %arg1[%c392, %c0_18] : memref<768x128xf32, #tpu.memory_space<vmem>>, vector<1x32xf32>
    %94 = vector.broadcast %93 : vector<1x32xf32> to vector<128x32xf32>
    %95 = arith.addf %92, %94 : vector<128x32xf32>
    %96 = arith.addf %23, %95 : vector<128x32xf32>
    %c400 = arith.constant 400 : index
    %c0_19 = arith.constant 0 : index
    %97 = vector.load %arg1[%c400, %c0_19] : memref<768x128xf32, #tpu.memory_space<vmem>>, vector<1x32xf32>
    %c408 = arith.constant 408 : index
    %c0_20 = arith.constant 0 : index
    %98 = vector.load %arg1[%c408, %c0_20] : memref<768x128xf32, #tpu.memory_space<vmem>>, vector<1x32xf32>
    %cst_21 = arith.constant dense<0.000000e+00> : vector<128xf32>
    %99 = vector.multi_reduction <add>, %96, %cst_21 [1] : vector<128x32xf32> to vector<128xf32>
    %100 = vector.shape_cast %99 : vector<128xf32> to vector<128x1xf32>
    %cst_22 = arith.constant 3.200000e+01 : f32
    %101 = vector.broadcast %cst_22 : f32 to vector<128x1xf32>
    %102 = arith.divf %100, %101 : vector<128x1xf32>
    %103 = vector.broadcast %102 : vector<128x1xf32> to vector<128x32xf32>
    %104 = arith.subf %96, %103 : vector<128x32xf32>
    %105 = arith.mulf %104, %104 : vector<128x32xf32>
    %cst_23 = arith.constant dense<0.000000e+00> : vector<128xf32>
    %106 = vector.multi_reduction <add>, %105, %cst_23 [1] : vector<128x32xf32> to vector<128xf32>
    %107 = vector.shape_cast %106 : vector<128xf32> to vector<128x1xf32>
    %cst_24 = arith.constant 3.200000e+01 : f32
    %108 = vector.broadcast %cst_24 : f32 to vector<128x1xf32>
    %109 = arith.divf %107, %108 : vector<128x1xf32>
    %110 = vector.broadcast %102 : vector<128x1xf32> to vector<128x32xf32>
    %111 = arith.subf %96, %110 : vector<128x32xf32>
    %cst_25 = arith.constant 9.99999974E-6 : f32
    %112 = vector.broadcast %cst_25 : f32 to vector<128x1xf32>
    %113 = arith.addf %109, %112 : vector<128x1xf32>
    %114 = math.rsqrt %113 : vector<128x1xf32>
    %115 = vector.broadcast %114 : vector<128x1xf32> to vector<128x32xf32>
    %116 = arith.mulf %111, %115 : vector<128x32xf32>
    %117 = vector.broadcast %97 : vector<1x32xf32> to vector<128x32xf32>
    %118 = arith.mulf %116, %117 : vector<128x32xf32>
    %119 = vector.broadcast %98 : vector<1x32xf32> to vector<128x32xf32>
    %120 = arith.addf %118, %119 : vector<128x32xf32>
    %121 = arith.truncf %120 : vector<128x32xf32> to vector<128x32xbf16>
    %c416 = arith.constant 416 : index
    %c0_26 = arith.constant 0 : index
    %122 = vector.load %arg1[%c416, %c0_26] : memref<768x128xf32, #tpu.memory_space<vmem>>, vector<32x64xf32>
    %123 = arith.truncf %122 : vector<32x64xf32> to vector<32x64xbf16>
    %cst_27 = arith.constant dense<0.000000e+00> : vector<128x64xf32>
    %124 = tpu.matmul %121, %123, %cst_27 {dimension_numbers = #tpu.dot_dimension_numbers<[1], [0], [0], [1], [0, 0, 1, 1], [], []>} : vector<128x32xbf16>, vector<32x64xbf16>, vector<128x64xf32> -> vector<128x64xf32>
    %c448 = arith.constant 448 : index
    %c0_28 = arith.constant 0 : index
    %125 = vector.load %arg1[%c448, %c0_28] : memref<768x128xf32, #tpu.memory_space<vmem>>, vector<1x64xf32>
    %126 = vector.broadcast %125 : vector<1x64xf32> to vector<128x64xf32>
    %127 = arith.addf %124, %126 : vector<128x64xf32>
    %cst_29 = arith.constant 0.000000e+00 : f32
    %128 = vector.broadcast %cst_29 : f32 to vector<128x64xf32>
    %129 = arith.maximumf %127, %128 : vector<128x64xf32>
    %130 = arith.truncf %129 : vector<128x64xf32> to vector<128x64xbf16>
    %c456 = arith.constant 456 : index
    %c0_30 = arith.constant 0 : index
    %131 = vector.load %arg1[%c456, %c0_30] : memref<768x128xf32, #tpu.memory_space<vmem>>, vector<64x32xf32>
    %132 = arith.truncf %131 : vector<64x32xf32> to vector<64x32xbf16>
    %cst_31 = arith.constant dense<0.000000e+00> : vector<128x32xf32>
    %133 = tpu.matmul %130, %132, %cst_31 {dimension_numbers = #tpu.dot_dimension_numbers<[1], [0], [0], [1], [0, 0, 1, 1], [], []>} : vector<128x64xbf16>, vector<64x32xbf16>, vector<128x32xf32> -> vector<128x32xf32>
    %c520 = arith.constant 520 : index
    %c0_32 = arith.constant 0 : index
    %134 = vector.load %arg1[%c520, %c0_32] : memref<768x128xf32, #tpu.memory_space<vmem>>, vector<1x32xf32>
    %135 = vector.broadcast %134 : vector<1x32xf32> to vector<128x32xf32>
    %136 = arith.addf %133, %135 : vector<128x32xf32>
    %137 = arith.addf %120, %136 : vector<128x32xf32>
    %c528 = arith.constant 528 : index
    %c0_33 = arith.constant 0 : index
    %138 = vector.load %arg1[%c528, %c0_33] : memref<768x128xf32, #tpu.memory_space<vmem>>, vector<1x32xf32>
    %c536 = arith.constant 536 : index
    %c0_34 = arith.constant 0 : index
    %139 = vector.load %arg1[%c536, %c0_34] : memref<768x128xf32, #tpu.memory_space<vmem>>, vector<1x32xf32>
    %cst_35 = arith.constant dense<0.000000e+00> : vector<128xf32>
    %140 = vector.multi_reduction <add>, %137, %cst_35 [1] : vector<128x32xf32> to vector<128xf32>
    %141 = vector.shape_cast %140 : vector<128xf32> to vector<128x1xf32>
    %cst_36 = arith.constant 3.200000e+01 : f32
    %142 = vector.broadcast %cst_36 : f32 to vector<128x1xf32>
    %143 = arith.divf %141, %142 : vector<128x1xf32>
    %144 = vector.broadcast %143 : vector<128x1xf32> to vector<128x32xf32>
    %145 = arith.subf %137, %144 : vector<128x32xf32>
    %146 = arith.mulf %145, %145 : vector<128x32xf32>
    %cst_37 = arith.constant dense<0.000000e+00> : vector<128xf32>
    %147 = vector.multi_reduction <add>, %146, %cst_37 [1] : vector<128x32xf32> to vector<128xf32>
    %148 = vector.shape_cast %147 : vector<128xf32> to vector<128x1xf32>
    %cst_38 = arith.constant 3.200000e+01 : f32
    %149 = vector.broadcast %cst_38 : f32 to vector<128x1xf32>
    %150 = arith.divf %148, %149 : vector<128x1xf32>
    %151 = vector.broadcast %143 : vector<128x1xf32> to vector<128x32xf32>
    %152 = arith.subf %137, %151 : vector<128x32xf32>
    %cst_39 = arith.constant 9.99999974E-6 : f32
    %153 = vector.broadcast %cst_39 : f32 to vector<128x1xf32>
    %154 = arith.addf %150, %153 : vector<128x1xf32>
    %155 = math.rsqrt %154 : vector<128x1xf32>
    %156 = vector.broadcast %155 : vector<128x1xf32> to vector<128x32xf32>
    %157 = arith.mulf %152, %156 : vector<128x32xf32>
    %158 = vector.broadcast %138 : vector<1x32xf32> to vector<128x32xf32>
    %159 = arith.mulf %157, %158 : vector<128x32xf32>
    %160 = vector.broadcast %139 : vector<1x32xf32> to vector<128x32xf32>
    %161 = arith.addf %159, %160 : vector<128x32xf32>
    %162 = arith.truncf %161 : vector<128x32xf32> to vector<128x32xbf16>
    %c544 = arith.constant 544 : index
    %c0_40 = arith.constant 0 : index
    %163 = vector.load %arg1[%c544, %c0_40] : memref<768x128xf32, #tpu.memory_space<vmem>>, vector<32x96xf32>
    %164 = arith.truncf %163 : vector<32x96xf32> to vector<32x96xbf16>
    %cst_41 = arith.constant dense<0.000000e+00> : vector<128x96xf32>
    %165 = tpu.matmul %162, %164, %cst_41 {dimension_numbers = #tpu.dot_dimension_numbers<[1], [0], [0], [1], [0, 0, 1, 1], [], []>} : vector<128x32xbf16>, vector<32x96xbf16>, vector<128x96xf32> -> vector<128x96xf32>
    %c576 = arith.constant 576 : index
    %c0_42 = arith.constant 0 : index
    %166 = vector.load %arg1[%c576, %c0_42] : memref<768x128xf32, #tpu.memory_space<vmem>>, vector<1x96xf32>
    %167 = vector.broadcast %166 : vector<1x96xf32> to vector<128x96xf32>
    %168 = arith.addf %165, %167 : vector<128x96xf32>
    %169 = vector.extract_strided_slice %168 {offsets = [0, 0], sizes = [128, 8], strides = [1, 1]} : vector<128x96xf32> to vector<128x8xf32>
    %170 = vector.shape_cast %169 : vector<128x8xf32> to vector<8x16x8xf32>
    %171 = arith.truncf %170 : vector<8x16x8xf32> to vector<8x16x8xbf16>
    %172 = vector.extract_strided_slice %168 {offsets = [0, 8], sizes = [128, 8], strides = [1, 1]} : vector<128x96xf32> to vector<128x8xf32>
    %173 = vector.shape_cast %172 : vector<128x8xf32> to vector<8x16x8xf32>
    %174 = arith.truncf %173 : vector<8x16x8xf32> to vector<8x16x8xbf16>
    %175 = vector.extract_strided_slice %168 {offsets = [0, 16], sizes = [128, 8], strides = [1, 1]} : vector<128x96xf32> to vector<128x8xf32>
    %176 = vector.shape_cast %175 : vector<128x8xf32> to vector<8x16x8xf32>
    %177 = arith.truncf %176 : vector<8x16x8xf32> to vector<8x16x8xbf16>
    %178 = vector.extract_strided_slice %168 {offsets = [0, 24], sizes = [128, 8], strides = [1, 1]} : vector<128x96xf32> to vector<128x8xf32>
    %179 = vector.shape_cast %178 : vector<128x8xf32> to vector<8x16x8xf32>
    %180 = arith.truncf %179 : vector<8x16x8xf32> to vector<8x16x8xbf16>
    %181 = tpu.concatenate %171, %174, %177, %180 in 0 : vector<8x16x8xbf16>, vector<8x16x8xbf16>, vector<8x16x8xbf16>, vector<8x16x8xbf16> -> vector<32x16x8xbf16>
    %182 = vector.extract_strided_slice %168 {offsets = [0, 32], sizes = [128, 8], strides = [1, 1]} : vector<128x96xf32> to vector<128x8xf32>
    %183 = vector.shape_cast %182 : vector<128x8xf32> to vector<8x16x8xf32>
    %184 = arith.truncf %183 : vector<8x16x8xf32> to vector<8x16x8xbf16>
    %185 = vector.extract_strided_slice %168 {offsets = [0, 40], sizes = [128, 8], strides = [1, 1]} : vector<128x96xf32> to vector<128x8xf32>
    %186 = vector.shape_cast %185 : vector<128x8xf32> to vector<8x16x8xf32>
    %187 = arith.truncf %186 : vector<8x16x8xf32> to vector<8x16x8xbf16>
    %188 = vector.extract_strided_slice %168 {offsets = [0, 48], sizes = [128, 8], strides = [1, 1]} : vector<128x96xf32> to vector<128x8xf32>
    %189 = vector.shape_cast %188 : vector<128x8xf32> to vector<8x16x8xf32>
    %190 = arith.truncf %189 : vector<8x16x8xf32> to vector<8x16x8xbf16>
    %191 = vector.extract_strided_slice %168 {offsets = [0, 56], sizes = [128, 8], strides = [1, 1]} : vector<128x96xf32> to vector<128x8xf32>
    %192 = vector.shape_cast %191 : vector<128x8xf32> to vector<8x16x8xf32>
    %193 = arith.truncf %192 : vector<8x16x8xf32> to vector<8x16x8xbf16>
    %194 = tpu.concatenate %184, %187, %190, %193 in 0 : vector<8x16x8xbf16>, vector<8x16x8xbf16>, vector<8x16x8xbf16>, vector<8x16x8xbf16> -> vector<32x16x8xbf16>
    %195 = vector.extract_strided_slice %168 {offsets = [0, 64], sizes = [128, 8], strides = [1, 1]} : vector<128x96xf32> to vector<128x8xf32>
    %196 = vector.shape_cast %195 : vector<128x8xf32> to vector<8x16x8xf32>
    %197 = arith.truncf %196 : vector<8x16x8xf32> to vector<8x16x8xbf16>
    %198 = vector.extract_strided_slice %168 {offsets = [0, 72], sizes = [128, 8], strides = [1, 1]} : vector<128x96xf32> to vector<128x8xf32>
    %199 = vector.shape_cast %198 : vector<128x8xf32> to vector<8x16x8xf32>
    %200 = arith.truncf %199 : vector<8x16x8xf32> to vector<8x16x8xbf16>
    %201 = vector.extract_strided_slice %168 {offsets = [0, 80], sizes = [128, 8], strides = [1, 1]} : vector<128x96xf32> to vector<128x8xf32>
    %202 = vector.shape_cast %201 : vector<128x8xf32> to vector<8x16x8xf32>
    %203 = arith.truncf %202 : vector<8x16x8xf32> to vector<8x16x8xbf16>
    %204 = vector.extract_strided_slice %168 {offsets = [0, 88], sizes = [128, 8], strides = [1, 1]} : vector<128x96xf32> to vector<128x8xf32>
    %205 = vector.shape_cast %204 : vector<128x8xf32> to vector<8x16x8xf32>
    %206 = arith.truncf %205 : vector<8x16x8xf32> to vector<8x16x8xbf16>
    %207 = tpu.concatenate %197, %200, %203, %206 in 0 : vector<8x16x8xbf16>, vector<8x16x8xbf16>, vector<8x16x8xbf16>, vector<8x16x8xbf16> -> vector<32x16x8xbf16>
    "tpu.trace_start"() <{level = 10 : i32, message = "bqd,bkd->bqk"}> : () -> ()
    %cst_43 = arith.constant dense<0.000000e+00> : vector<32x16x16xf32>
    %208 = tpu.matmul %181, %194, %cst_43 {dimension_numbers = #tpu.dot_dimension_numbers<[2], [2], [1], [1], [0, 0, 0, 1, 1, 1], [0], [0]>} : vector<32x16x8xbf16>, vector<32x16x8xbf16>, vector<32x16x16xf32> -> vector<32x16x16xf32>
    "tpu.trace_stop"() : () -> ()
    %cst_44 = arith.constant dense<0xFF800000> : vector<32x16xf32>
    %209 = vector.multi_reduction <maximumf>, %208, %cst_44 [2] : vector<32x16x16xf32> to vector<32x16xf32>
    %210 = vector.shape_cast %209 : vector<32x16xf32> to vector<32x16x1xf32>
    %211 = vector.broadcast %210 : vector<32x16x1xf32> to vector<32x16x16xf32>
    %212 = arith.subf %208, %211 : vector<32x16x16xf32>
    %213 = math.exp %212 : vector<32x16x16xf32>
    %cst_45 = arith.constant dense<0.000000e+00> : vector<32x16xf32>
    %214 = vector.multi_reduction <add>, %213, %cst_45 [2] : vector<32x16x16xf32> to vector<32x16xf32>
    %215 = vector.shape_cast %214 : vector<32x16xf32> to vector<32x16x1xf32>
    %216 = tpu.reciprocal %215 {approx = true} : vector<32x16x1xf32> -> vector<32x16x1xf32>
    %217 = vector.broadcast %216 : vector<32x16x1xf32> to vector<32x16x16xf32>
    %218 = arith.mulf %213, %217 : vector<32x16x16xf32>
    %219 = arith.truncf %218 : vector<32x16x16xf32> to vector<32x16x16xbf16>
    "tpu.trace_start"() <{level = 10 : i32, message = "bqk,bkd->bqd"}> : () -> ()
    %cst_46 = arith.constant dense<0.000000e+00> : vector<32x16x8xf32>
    %220 = tpu.matmul %219, %207, %cst_46 {dimension_numbers = #tpu.dot_dimension_numbers<[2], [1], [1], [2], [0, 0, 0, 1, 1, 2], [0], [0]>} : vector<32x16x16xbf16>, vector<32x16x8xbf16>, vector<32x16x8xf32> -> vector<32x16x8xf32>
    "tpu.trace_stop"() : () -> ()
    %221 = vector.extract_strided_slice %220 {offsets = [0, 0, 0], sizes = [8, 16, 8], strides = [1, 1, 1]} : vector<32x16x8xf32> to vector<8x16x8xf32>
    %222 = vector.extract_strided_slice %220 {offsets = [8, 0, 0], sizes = [8, 16, 8], strides = [1, 1, 1]} : vector<32x16x8xf32> to vector<8x16x8xf32>
    %223 = vector.extract_strided_slice %220 {offsets = [16, 0, 0], sizes = [8, 16, 8], strides = [1, 1, 1]} : vector<32x16x8xf32> to vector<8x16x8xf32>
    %224 = vector.extract_strided_slice %220 {offsets = [24, 0, 0], sizes = [8, 16, 8], strides = [1, 1, 1]} : vector<32x16x8xf32> to vector<8x16x8xf32>
    %225 = tpu.concatenate %221, %222, %223, %224 in 2 : vector<8x16x8xf32>, vector<8x16x8xf32>, vector<8x16x8xf32>, vector<8x16x8xf32> -> vector<8x16x32xf32>
    %226 = vector.shape_cast %225 : vector<8x16x32xf32> to vector<128x32xf32>
    %227 = arith.truncf %226 : vector<128x32xf32> to vector<128x32xbf16>
    %c584 = arith.constant 584 : index
    %c0_47 = arith.constant 0 : index
    %228 = vector.load %arg1[%c584, %c0_47] : memref<768x128xf32, #tpu.memory_space<vmem>>, vector<32x32xf32>
    %229 = arith.truncf %228 : vector<32x32xf32> to vector<32x32xbf16>
    %cst_48 = arith.constant dense<0.000000e+00> : vector<128x32xf32>
    %230 = tpu.matmul %227, %229, %cst_48 {dimension_numbers = #tpu.dot_dimension_numbers<[1], [0], [0], [1], [0, 0, 1, 1], [], []>} : vector<128x32xbf16>, vector<32x32xbf16>, vector<128x32xf32> -> vector<128x32xf32>
    %c616 = arith.constant 616 : index
    %c0_49 = arith.constant 0 : index
    %231 = vector.load %arg1[%c616, %c0_49] : memref<768x128xf32, #tpu.memory_space<vmem>>, vector<1x32xf32>
    %232 = vector.broadcast %231 : vector<1x32xf32> to vector<128x32xf32>
    %233 = arith.addf %230, %232 : vector<128x32xf32>
    %234 = arith.addf %161, %233 : vector<128x32xf32>
    %c624 = arith.constant 624 : index
    %c0_50 = arith.constant 0 : index
    %235 = vector.load %arg1[%c624, %c0_50] : memref<768x128xf32, #tpu.memory_space<vmem>>, vector<1x32xf32>
    %c632 = arith.constant 632 : index
    %c0_51 = arith.constant 0 : index
    %236 = vector.load %arg1[%c632, %c0_51] : memref<768x128xf32, #tpu.memory_space<vmem>>, vector<1x32xf32>
    %cst_52 = arith.constant dense<0.000000e+00> : vector<128xf32>
    %237 = vector.multi_reduction <add>, %234, %cst_52 [1] : vector<128x32xf32> to vector<128xf32>
    %238 = vector.shape_cast %237 : vector<128xf32> to vector<128x1xf32>
    %cst_53 = arith.constant 3.200000e+01 : f32
    %239 = vector.broadcast %cst_53 : f32 to vector<128x1xf32>
    %240 = arith.divf %238, %239 : vector<128x1xf32>
    %241 = vector.broadcast %240 : vector<128x1xf32> to vector<128x32xf32>
    %242 = arith.subf %234, %241 : vector<128x32xf32>
    %243 = arith.mulf %242, %242 : vector<128x32xf32>
    %cst_54 = arith.constant dense<0.000000e+00> : vector<128xf32>
    %244 = vector.multi_reduction <add>, %243, %cst_54 [1] : vector<128x32xf32> to vector<128xf32>
    %245 = vector.shape_cast %244 : vector<128xf32> to vector<128x1xf32>
    %cst_55 = arith.constant 3.200000e+01 : f32
    %246 = vector.broadcast %cst_55 : f32 to vector<128x1xf32>
    %247 = arith.divf %245, %246 : vector<128x1xf32>
    %248 = vector.broadcast %240 : vector<128x1xf32> to vector<128x32xf32>
    %249 = arith.subf %234, %248 : vector<128x32xf32>
    %cst_56 = arith.constant 9.99999974E-6 : f32
    %250 = vector.broadcast %cst_56 : f32 to vector<128x1xf32>
    %251 = arith.addf %247, %250 : vector<128x1xf32>
    %252 = math.rsqrt %251 : vector<128x1xf32>
    %253 = vector.broadcast %252 : vector<128x1xf32> to vector<128x32xf32>
    %254 = arith.mulf %249, %253 : vector<128x32xf32>
    %255 = vector.broadcast %235 : vector<1x32xf32> to vector<128x32xf32>
    %256 = arith.mulf %254, %255 : vector<128x32xf32>
    %257 = vector.broadcast %236 : vector<1x32xf32> to vector<128x32xf32>
    %258 = arith.addf %256, %257 : vector<128x32xf32>
    %259 = arith.truncf %258 : vector<128x32xf32> to vector<128x32xbf16>
    %c640 = arith.constant 640 : index
    %c0_57 = arith.constant 0 : index
    %260 = vector.load %arg1[%c640, %c0_57] : memref<768x128xf32, #tpu.memory_space<vmem>>, vector<32x64xf32>
    %261 = arith.truncf %260 : vector<32x64xf32> to vector<32x64xbf16>
    %cst_58 = arith.constant dense<0.000000e+00> : vector<128x64xf32>
    %262 = tpu.matmul %259, %261, %cst_58 {dimension_numbers = #tpu.dot_dimension_numbers<[1], [0], [0], [1], [0, 0, 1, 1], [], []>} : vector<128x32xbf16>, vector<32x64xbf16>, vector<128x64xf32> -> vector<128x64xf32>
    %c672 = arith.constant 672 : index
    %c0_59 = arith.constant 0 : index
    %263 = vector.load %arg1[%c672, %c0_59] : memref<768x128xf32, #tpu.memory_space<vmem>>, vector<1x64xf32>
    %264 = vector.broadcast %263 : vector<1x64xf32> to vector<128x64xf32>
    %265 = arith.addf %262, %264 : vector<128x64xf32>
    %cst_60 = arith.constant 0.000000e+00 : f32
    %266 = vector.broadcast %cst_60 : f32 to vector<128x64xf32>
    %267 = arith.maximumf %265, %266 : vector<128x64xf32>
    %268 = arith.truncf %267 : vector<128x64xf32> to vector<128x64xbf16>
    %c680 = arith.constant 680 : index
    %c0_61 = arith.constant 0 : index
    %269 = vector.load %arg1[%c680, %c0_61] : memref<768x128xf32, #tpu.memory_space<vmem>>, vector<64x32xf32>
    %270 = arith.truncf %269 : vector<64x32xf32> to vector<64x32xbf16>
    %cst_62 = arith.constant dense<0.000000e+00> : vector<128x32xf32>
    %271 = tpu.matmul %268, %270, %cst_62 {dimension_numbers = #tpu.dot_dimension_numbers<[1], [0], [0], [1], [0, 0, 1, 1], [], []>} : vector<128x64xbf16>, vector<64x32xbf16>, vector<128x32xf32> -> vector<128x32xf32>
    %c744 = arith.constant 744 : index
    %c0_63 = arith.constant 0 : index
    %272 = vector.load %arg1[%c744, %c0_63] : memref<768x128xf32, #tpu.memory_space<vmem>>, vector<1x32xf32>
    %273 = vector.broadcast %272 : vector<1x32xf32> to vector<128x32xf32>
    %274 = arith.addf %271, %273 : vector<128x32xf32>
    %275 = arith.addf %258, %274 : vector<128x32xf32>
    %c752 = arith.constant 752 : index
    %c0_64 = arith.constant 0 : index
    %276 = vector.load %arg1[%c752, %c0_64] : memref<768x128xf32, #tpu.memory_space<vmem>>, vector<1x32xf32>
    %c760 = arith.constant 760 : index
    %c0_65 = arith.constant 0 : index
    %277 = vector.load %arg1[%c760, %c0_65] : memref<768x128xf32, #tpu.memory_space<vmem>>, vector<1x32xf32>
    %cst_66 = arith.constant dense<0.000000e+00> : vector<128xf32>
    %278 = vector.multi_reduction <add>, %275, %cst_66 [1] : vector<128x32xf32> to vector<128xf32>
    %279 = vector.shape_cast %278 : vector<128xf32> to vector<128x1xf32>
    %cst_67 = arith.constant 3.200000e+01 : f32
    %280 = vector.broadcast %cst_67 : f32 to vector<128x1xf32>
    %281 = arith.divf %279, %280 : vector<128x1xf32>
    %282 = vector.broadcast %281 : vector<128x1xf32> to vector<128x32xf32>
    %283 = arith.subf %275, %282 : vector<128x32xf32>
    %284 = arith.mulf %283, %283 : vector<128x32xf32>
    %cst_68 = arith.constant dense<0.000000e+00> : vector<128xf32>
    %285 = vector.multi_reduction <add>, %284, %cst_68 [1] : vector<128x32xf32> to vector<128xf32>
    %286 = vector.shape_cast %285 : vector<128xf32> to vector<128x1xf32>
    %cst_69 = arith.constant 3.200000e+01 : f32
    %287 = vector.broadcast %cst_69 : f32 to vector<128x1xf32>
    %288 = arith.divf %286, %287 : vector<128x1xf32>
    %289 = vector.broadcast %281 : vector<128x1xf32> to vector<128x32xf32>
    %290 = arith.subf %275, %289 : vector<128x32xf32>
    %cst_70 = arith.constant 9.99999974E-6 : f32
    %291 = vector.broadcast %cst_70 : f32 to vector<128x1xf32>
    %292 = arith.addf %288, %291 : vector<128x1xf32>
    %293 = math.rsqrt %292 : vector<128x1xf32>
    %294 = vector.broadcast %293 : vector<128x1xf32> to vector<128x32xf32>
    %295 = arith.mulf %290, %294 : vector<128x32xf32>
    %296 = vector.broadcast %276 : vector<1x32xf32> to vector<128x32xf32>
    %297 = arith.mulf %295, %296 : vector<128x32xf32>
    %298 = vector.broadcast %277 : vector<1x32xf32> to vector<128x32xf32>
    %299 = arith.addf %297, %298 : vector<128x32xf32>
    %300 = arith.truncf %0 : vector<8x8xf32> to vector<8x8xbf16>
    %c232 = arith.constant 232 : index
    %c0_71 = arith.constant 0 : index
    %301 = vector.load %arg1[%c232, %c0_71] : memref<768x128xf32, #tpu.memory_space<vmem>>, vector<8x64xf32>
    %302 = arith.truncf %301 : vector<8x64xf32> to vector<8x64xbf16>
    %cst_72 = arith.constant dense<0.000000e+00> : vector<8x64xf32>
    %303 = tpu.matmul %300, %302, %cst_72 {dimension_numbers = #tpu.dot_dimension_numbers<[1], [0], [0], [1], [0, 0, 1, 1], [], []>} : vector<8x8xbf16>, vector<8x64xbf16>, vector<8x64xf32> -> vector<8x64xf32>
    %c240 = arith.constant 240 : index
    %c0_73 = arith.constant 0 : index
    %304 = vector.load %arg1[%c240, %c0_73] : memref<768x128xf32, #tpu.memory_space<vmem>>, vector<1x64xf32>
    %305 = vector.broadcast %304 : vector<1x64xf32> to vector<8x64xf32>
    %306 = arith.addf %303, %305 : vector<8x64xf32>
    %cst_74 = arith.constant 0.000000e+00 : f32
    %307 = vector.broadcast %cst_74 : f32 to vector<8x64xf32>
    %308 = arith.maximumf %306, %307 : vector<8x64xf32>
    %309 = arith.truncf %308 : vector<8x64xf32> to vector<8x64xbf16>
    %c248 = arith.constant 248 : index
    %c0_75 = arith.constant 0 : index
    %310 = vector.load %arg1[%c248, %c0_75] : memref<768x128xf32, #tpu.memory_space<vmem>>, vector<64x2xf32>
    %311 = arith.truncf %310 : vector<64x2xf32> to vector<64x2xbf16>
    %cst_76 = arith.constant dense<0.000000e+00> : vector<8x2xf32>
    %312 = tpu.matmul %309, %311, %cst_76 {dimension_numbers = #tpu.dot_dimension_numbers<[1], [0], [0], [1], [0, 0, 1, 1], [], []>} : vector<8x64xbf16>, vector<64x2xbf16>, vector<8x2xf32> -> vector<8x2xf32>
    %c312 = arith.constant 312 : index
    %c0_77 = arith.constant 0 : index
    %313 = vector.load %arg1[%c312, %c0_77] : memref<768x128xf32, #tpu.memory_space<vmem>>, vector<1x2xf32>
    %314 = vector.broadcast %313 : vector<1x2xf32> to vector<8x2xf32>
    %315 = arith.addf %312, %314 : vector<8x2xf32>
    %316 = vector.extract_strided_slice %315 {offsets = [0, 0], sizes = [8, 1], strides = [1, 1]} : vector<8x2xf32> to vector<8x1xf32>
    %317 = vector.extract_strided_slice %315 {offsets = [0, 1], sizes = [8, 1], strides = [1, 1]} : vector<8x2xf32> to vector<8x1xf32>
    %cst_78 = arith.constant 0.000000e+00 : f32
    %318 = vector.broadcast %cst_78 : f32 to vector<8x1xf32>
    %319 = arith.maximumf %317, %318 : vector<8x1xf32>
    %320 = math.absf %317 : vector<8x1xf32>
    %cst_79 = arith.constant 0.000000e+00 : f32
    %321 = vector.broadcast %cst_79 : f32 to vector<8x1xf32>
    %322 = arith.subf %321, %320 : vector<8x1xf32>
    %323 = math.exp %322 : vector<8x1xf32>
    %cst_80 = arith.constant 1.000000e+00 : f32
    %324 = vector.broadcast %cst_80 : f32 to vector<8x1xf32>
    %325 = arith.addf %324, %323 : vector<8x1xf32>
    %326 = math.log %325 : vector<8x1xf32>
    %327 = arith.addf %319, %326 : vector<8x1xf32>
    %328 = vector.shape_cast %316 : vector<8x1xf32> to vector<8x1x1xf32>
    %329 = vector.shape_cast %328 : vector<8x1x1xf32> to vector<8x1x1xf32>
    %330 = vector.broadcast %329 : vector<8x1x1xf32> to vector<8x16x1xf32>
    %331 = vector.shape_cast %330 : vector<8x16x1xf32> to vector<128x1xf32>
    %332 = vector.shape_cast %327 : vector<8x1xf32> to vector<8x1x1xf32>
    %333 = vector.shape_cast %332 : vector<8x1x1xf32> to vector<8x1x1xf32>
    %334 = vector.broadcast %333 : vector<8x1x1xf32> to vector<8x16x1xf32>
    %335 = vector.shape_cast %334 : vector<8x16x1xf32> to vector<128x1xf32>
    %c16 = arith.constant 16 : index
    %c0_81 = arith.constant 0 : index
    %336 = vector.load %arg1[%c16, %c0_81] : memref<768x128xf32, #tpu.memory_space<vmem>>, vector<128x1xf32>
    %337 = arith.mulf %335, %336 : vector<128x1xf32>
    %338 = arith.subf %331, %337 : vector<128x1xf32>
    %339 = vector.shape_cast %338 : vector<128x1xf32> to vector<4x32x1xf32>
    %cst_82 = arith.constant dense<0xFF800000> : vector<32x1xf32>
    %340 = vector.multi_reduction <maximumf>, %339, %cst_82 [0] : vector<4x32x1xf32> to vector<32x1xf32>
    %341 = vector.shape_cast %340 : vector<32x1xf32> to vector<1x32x1xf32>
    %342 = vector.broadcast %341 : vector<1x32x1xf32> to vector<4x32x1xf32>
    %343 = arith.subf %339, %342 : vector<4x32x1xf32>
    %344 = math.exp %343 : vector<4x32x1xf32>
    %cst_83 = arith.constant dense<0.000000e+00> : vector<32x1xf32>
    %345 = vector.multi_reduction <add>, %344, %cst_83 [0] : vector<4x32x1xf32> to vector<32x1xf32>
    %346 = vector.shape_cast %345 : vector<32x1xf32> to vector<1x32x1xf32>
    %347 = tpu.reciprocal %346 {approx = true} : vector<1x32x1xf32> -> vector<1x32x1xf32>
    %348 = vector.broadcast %347 : vector<1x32x1xf32> to vector<4x32x1xf32>
    %349 = arith.mulf %344, %348 : vector<4x32x1xf32>
    %350 = vector.shape_cast %299 : vector<128x32xf32> to vector<4x32x32xf32>
    %351 = vector.broadcast %349 : vector<4x32x1xf32> to vector<4x32x32xf32>
    %352 = arith.mulf %351, %350 : vector<4x32x32xf32>
    %cst_84 = arith.constant dense<0.000000e+00> : vector<32x32xf32>
    %353 = vector.multi_reduction <add>, %352, %cst_84 [0] : vector<4x32x32xf32> to vector<32x32xf32>
    %354 = vector.extract_strided_slice %353 {offsets = [0, 0], sizes = [16, 32], strides = [1, 1]} : vector<32x32xf32> to vector<16x32xf32>
    %355 = vector.extract_strided_slice %353 {offsets = [16, 0], sizes = [16, 32], strides = [1, 1]} : vector<32x32xf32> to vector<16x32xf32>
    %356 = tpu.concatenate %354, %355 in 1 : vector<16x32xf32>, vector<16x32xf32> -> vector<16x64xf32>
    %c0_85 = arith.constant 0 : index
    %c0_86 = arith.constant 0 : index
    %357 = vector.load %arg2[%c0_85, %c0_86] : memref<16x64xf32, #tpu.memory_space<vmem>>, vector<16x64xf32>
    tpu.vector_store %arg2[%c0_85, %c0_86], %356 {strides = array<i32>} : memref<16x64xf32, #tpu.memory_space<vmem>>, vector<16x64xf32>,
    return
  }
}

</mosaic_0001>

<llo_original>
// kernel: forward.1
$region0: #{forward.1}
  #allocation0 [shape = 'u32[]', space=smem, size = 0x4, offset = 0x4, fixed_abs, tag = 'smem constant byte address 0x4 - core index']
  #allocation1 [shape = 'u32[144,128]{1,0:T(1,128)}', space=vmem, size = 0x12000, scoped, tag = 'internal scratch']
  %s0 = inlined_call_operand.hbm [shape: f32[8,8], index: 0, kind: input, shape index: {}]
  %s1 = inlined_call_operand.hbm [shape: f32[768,128], index: 1, kind: input, shape index: {}]
  %s2 = inlined_call_operand.vmem [shape: f32[16,64], index: 2, kind: output, shape index: {}]
  %s3 = sld [smem:[#allocation0]]
  $region26: #{forward.1} parent=0
    _
  %s5 = ssub.s32 1, %s3
  %s6 = scalar_select 0, %s5, %s3
  $region1: #{forward.1} parent=0
    #allocation2 [shape = 'u8[4096]{0}', space=vmem, size = 0x1000, scoped, tag = 'input window, operand 0, single buffered']
    #allocation3 [shape = 's32[1]{0}', space=sflag, size = 0x4, scoped, tag = 'scoped memory for forward.1']
    #allocation4 [shape = 'u8[393216]{0}', space=vmem, size = 0x60000, scoped, tag = 'input window, operand 1, single buffered']
    #allocation5 [shape = 's32[1]{0}', space=sflag, size = 0x4, scoped, tag = 'scoped memory for forward.1']
    %7 = vsyncpa [#allocation3], 0
    %8 = vsyncpa [#allocation5], 0
    // Predicated region
    $region2: #{forward.1} parent=1 // pred_check
      _
    $region3: #{forward.1} parent=1 // pred_check_branch
      %10 = sbr.rel (0) target = $region5
    $region4: #{forward.1} parent=1 // pred_region
      %s12 = ssub.s32 128, 128
      %13 = vsyncadd [#allocation3], %s12
      %s15 = sshll.u32 [#allocation2], 4
      %s16 = int_to_ptr.vmem [resolvable:$true] %s15
      %18 = dma.hbm_to_vmem [thread:$0]  %s0, 128, %s16, [#allocation3]
    $region5: #{forward.1} parent=1 // pred_fallthru
      _
    // Predicated region
    $region6: #{forward.1} parent=1 // pred_check
      _
    $region7: #{forward.1} parent=1 // pred_check_branch
      %20 = sbr.rel (0) target = $region9
    $region8: #{forward.1} parent=1 // pred_region
      %s22 = ssub.s32 12288, 12288
      %23 = vsyncadd [#allocation5], %s22
      %s24 = sshll.u32 [#allocation4], 4
      %s25 = int_to_ptr.vmem [resolvable:$true] %s24
      %30 = dma.hbm_to_vmem [thread:$0]  %s1, 12288, %s25, [#allocation5], 128, 128, 8
    $region9: #{forward.1} parent=1 // pred_fallthru
      _
    // Predicated region
    $region10: #{forward.1} parent=1 // pred_check
      _
    $region11: #{forward.1} parent=1 // pred_check_branch
      %32 = sbr.rel (0) target = $region13
    $region12: #{forward.1} parent=1 // pred_region
      %33 = dma.done [#allocation3], 128
    $region13: #{forward.1} parent=1 // pred_fallthru
      _
    // Predicated region
    $region14: #{forward.1} parent=1 // pred_check
      _
    $region15: #{forward.1} parent=1 // pred_check_branch
      %35 = sbr.rel (0) target = $region17
    $region16: #{forward.1} parent=1 // pred_region
      %36 = dma.done [#allocation5], 12288
    $region17: #{forward.1} parent=1 // pred_fallthru
      _
    %v38 = vld [vmem:[#allocation2] sm:$0xff]
    %v39 = vld [vmem:[#allocation4] sm:$0xff]
    %v40 = vld [vmem:[#allocation4 + $0x8] sm:$0xff]
    %v42 = vcombine.high %v38, %v38
    %v44 = vunpack.c.l.s4 1966171168
    %v45 = vunpack.c.0.s8 %v44
    %v46 = vlaneseq
    %v47 = vshrl.u32 %v46, 7
    %v48 = vsub.s32 %v45, %v47
    %v49 = vrot.slane %v38, %v48
    %v51 = vunpack.c.l.s4 1966171168
    %v52 = vunpack.c.0.s8 %v51
    %v53 = vlaneseq
    %v54 = vshrl.u32 %v53, 7
    %v55 = vsub.s32 %v52, %v54
    %v56 = vrot.slane %v42, %v55
    %v57 = vcombine.high %v49, %v49
    %v58 = vcombine.high %v56, %v56
    %v60 = vunpack.c.l.s4 1966171168
    %v61 = vunpack.c.0.s8 %v60
    %v62 = vlaneseq
    %v63 = vshrl.u32 %v62, 7
    %v64 = vsub.s32 %v61, %v63
    %v65 = vrot.slane %v49, %v64
    %v67 = vunpack.c.l.s4 1966171168
    %v68 = vunpack.c.0.s8 %v67
    %v69 = vlaneseq
    %v70 = vshrl.u32 %v69, 7
    %v71 = vsub.s32 %v68, %v70
    %v72 = vrot.slane %v56, %v71
    %v74 = vunpack.c.l.s4 1966171168
    %v75 = vunpack.c.0.s8 %v74
    %v76 = vlaneseq
    %v77 = vshrl.u32 %v76, 7
    %v78 = vsub.s32 %v75, %v77
    %v79 = vrot.slane %v57, %v78
    %v81 = vunpack.c.l.s4 1966171168
    %v82 = vunpack.c.0.s8 %v81
    %v83 = vlaneseq
    %v84 = vshrl.u32 %v83, 7
    %v85 = vsub.s32 %v82, %v84
    %v86 = vrot.slane %v58, %v85
    %v87 = vcombine.high %v65, %v65
    %v88 = vcombine.high %v72, %v72
    %v89 = vcombine.high %v79, %v79
    %v90 = vcombine.high %v86, %v86
    %v91 = vlaneseq
    %v92 = vshrl.u32 %v91, 7
    %v93 = vsub.s32 0, %v92
    %v94 = vrot.slane %v65, %v93
    %v95 = vlaneseq
    %v96 = vshrl.u32 %v95, 7
    %v97 = vsub.s32 0, %v96
    %v98 = vrot.slane %v79, %v97
    %v99 = vlaneseq
    %v100 = vshrl.u32 %v99, 7
    %v101 = vsub.s32 0, %v100
    %v102 = vrot.slane %v87, %v101
    %v103 = vlaneseq
    %v104 = vshrl.u32 %v103, 7
    %v105 = vsub.s32 0, %v104
    %v106 = vrot.slane %v89, %v105
    %v107 = vlaneseq
    %v108 = vshrl.u32 %v107, 7
    %v109 = vsub.s32 0, %v108
    %v110 = vrot.slane %v72, %v109
    %v111 = vlaneseq
    %v112 = vshrl.u32 %v111, 7
    %v113 = vsub.s32 0, %v112
    %v114 = vrot.slane %v86, %v113
    %v115 = vlaneseq
    %v116 = vshrl.u32 %v115, 7
    %v117 = vsub.s32 0, %v116
    %v118 = vrot.slane %v88, %v117
    %v119 = vlaneseq
    %v120 = vshrl.u32 %v119, 7
    %v121 = vsub.s32 0, %v120
    %v122 = vrot.slane %v90, %v121
    %v131 = vadd.f32 %v94, %v39
    %v132 = vadd.f32 %v94, %v40
    %v133 = vadd.f32 %v98, %v39
    %v134 = vadd.f32 %v98, %v40
    %v135 = vadd.f32 %v102, %v39
    %v136 = vadd.f32 %v102, %v40
    %v137 = vadd.f32 %v106, %v39
    %v138 = vadd.f32 %v106, %v40
    %v139 = vadd.f32 %v110, %v39
    %v140 = vadd.f32 %v110, %v40
    %v141 = vadd.f32 %v114, %v39
    %v142 = vadd.f32 %v114, %v40
    %v143 = vadd.f32 %v118, %v39
    %v144 = vadd.f32 %v118, %v40
    %v145 = vadd.f32 %v122, %v39
    %v146 = vadd.f32 %v122, %v40
    %v147 = vpack.c.bf16 %v132, %v131
    %v148 = vpack.c.bf16 %v134, %v133
    %v149 = vpack.c.bf16 %v136, %v135
    %v150 = vpack.c.bf16 %v138, %v137
    %v151 = vpack.c.bf16 %v140, %v139
    %v152 = vpack.c.bf16 %v142, %v141
    %v153 = vpack.c.bf16 %v144, %v143
    %v154 = vpack.c.bf16 %v146, %v145
    %v155 = vld [vmem:[#allocation4 + $0x90] sm:$0xff]
    %v156 = vpack.c.bf16 %v155, %v155
    %v157 = vld [vmem:[#allocation4 + $0x98] sm:$0x1]
    %v158 = vlaneseq
    %v159 = vshrl.u32 %v158, 7
    %v160 = vsub.s32 0, %v159
    %v161 = vrot.slane %v157, %v160
    %vm162 = vcmask 64512
    %v164 = vsel %vm162, %v147, 0
    %v167 = vsel %vm162, %v148, 0
    %v170 = vsel %vm162, %v149, 0
    %v173 = vsel %vm162, %v150, 0
    %v176 = vsel %vm162, %v151, 0
    %v179 = vsel %vm162, %v152, 0
    %v182 = vsel %vm162, %v153, 0
    %v185 = vsel %vm162, %v154, 0
    %vm187 = vcmask 1043456
    %v189 = vsel %vm187, %v156, 0
    %191 = vmatprep.subr.bf16.mxu0 0
    %192 = vmatpush1.bf16.msra.mxu0 0
    %193 = vmatprep.subr.bf16.mxu0 0
    %194 = vmatpush1.bf16.msra.mxu0 0
    %195 = vmatprep.subr.bf16.mxu0 0
    %196 = vmatpush1.bf16.msra.mxu0 0
    %197 = vmatprep.subr.bf16.mxu0 0
    %198 = vmatpush1.bf16.msra.mxu0 0
    %199 = vmatprep.subr.bf16.mxu0 0
    %200 = vmatpush1.bf16.msra.mxu0 0
    %201 = vmatprep.subr.bf16.mxu0 0
    %202 = vmatpush1.bf16.msra.mxu0 0
    %203 = vmatprep.subr.bf16.mxu0 0
    %204 = vmatpush1.bf16.msra.mxu0 0
    %205 = vmatprep.subr.bf16.mxu0 0
    %206 = vmatpush1.bf16.msra.mxu0 %v189
    %207 = vmatprep.subr.bf16.mxu0 0
    %208 = vmatpush2.bf16.msra.mxu0 0
    %209 = vmatprep.subr.bf16.mxu0 0
    %210 = vmatpush2.bf16.msra.mxu0 0
    %211 = vmatprep.subr.bf16.mxu0 0
    %212 = vmatpush2.bf16.msra.mxu0 0
    %213 = vmatprep.subr.bf16.mxu0 0
    %214 = vmatpush2.bf16.msra.mxu0 0
    %215 = vmatprep.subr.bf16.mxu0 0
    %216 = vmatpush2.bf16.msra.mxu0 0
    %217 = vmatprep.subr.bf16.mxu0 0
    %218 = vmatpush2.bf16.msra.mxu0 0
    %219 = vmatprep.subr.bf16.mxu0 0
    %220 = vmatpush2.bf16.msra.mxu0 0
    %221 = vmatprep.subr.bf16.mxu0 0
    %222 = vmatpush2.bf16.msra.mxu0 0
    %223 = vmatprep.mubr.bf16.mxu0 0
    %224 = vmatmul.mubr.bf16.gmra.mxu0 %v164
    %v225 = vpop.f32.mrf.mxu0
    %v226 = vadd.f32 %v161, %v225
    %v227 = vpop.f32.mrf.mxu0
    %v228 = vpop.f32.mrf.mxu0
    %v229 = vadd.f32 %v161, %v228
    %v230 = vpop.f32.mrf.mxu0
    %231 = vmatprep.mubr.bf16.mxu0 0
    %232 = vmatmul.mubr.bf16.gmra.mxu0 %v167
    %v233 = vpop.f32.mrf.mxu0
    %v234 = vadd.f32 %v161, %v233
    %v235 = vpop.f32.mrf.mxu0
    %v236 = vpop.f32.mrf.mxu0
    %v237 = vadd.f32 %v161, %v236
    %v238 = vpop.f32.mrf.mxu0
    %239 = vmatprep.mubr.bf16.mxu0 0
    %240 = vmatmul.mubr.bf16.gmra.mxu0 %v170
    %v241 = vpop.f32.mrf.mxu0
    %v242 = vadd.f32 %v161, %v241
    %v243 = vpop.f32.mrf.mxu0
    %v244 = vpop.f32.mrf.mxu0
    %v245 = vadd.f32 %v161, %v244
    %v246 = vpop.f32.mrf.mxu0
    %247 = vmatprep.mubr.bf16.mxu0 0
    %248 = vmatmul.mubr.bf16.gmra.mxu0 %v173
    %v249 = vpop.f32.mrf.mxu0
    %v250 = vadd.f32 %v161, %v249
    %v251 = vpop.f32.mrf.mxu0
    %v252 = vpop.f32.mrf.mxu0
    %v253 = vadd.f32 %v161, %v252
    %v254 = vpop.f32.mrf.mxu0
    %255 = vmatprep.mubr.bf16.mxu0 0
    %256 = vmatmul.mubr.bf16.gmra.mxu0 %v176
    %v257 = vpop.f32.mrf.mxu0
    %v258 = vadd.f32 %v161, %v257
    %v259 = vpop.f32.mrf.mxu0
    %v260 = vpop.f32.mrf.mxu0
    %v261 = vadd.f32 %v161, %v260
    %v262 = vpop.f32.mrf.mxu0
    %263 = vmatprep.mubr.bf16.mxu0 0
    %264 = vmatmul.mubr.bf16.gmra.mxu0 %v179
    %v265 = vpop.f32.mrf.mxu0
    %v266 = vadd.f32 %v161, %v265
    %v267 = vpop.f32.mrf.mxu0
    %v268 = vpop.f32.mrf.mxu0
    %v269 = vadd.f32 %v161, %v268
    %v270 = vpop.f32.mrf.mxu0
    %271 = vmatprep.mubr.bf16.mxu0 0
    %272 = vmatmul.mubr.bf16.gmra.mxu0 %v182
    %v273 = vpop.f32.mrf.mxu0
    %v274 = vadd.f32 %v161, %v273
    %v275 = vpop.f32.mrf.mxu0
    %v276 = vpop.f32.mrf.mxu0
    %v277 = vadd.f32 %v161, %v276
    %v278 = vpop.f32.mrf.mxu0
    %279 = vmatprep.mubr.bf16.mxu0 0
    %280 = vmatmul.mubr.bf16.gmra.mxu0 %v185
    %v281 = vpop.f32.mrf.mxu0
    %v282 = vadd.f32 %v161, %v281
    %v283 = vpop.f32.mrf.mxu0
    %v284 = vpop.f32.mrf.mxu0
    %v285 = vadd.f32 %v161, %v284
    %v286 = vpop.f32.mrf.mxu0
    %287 = vdwg.mxu0
    %v288 = vmax.f32 %v226, 0.0
    %v289 = vmax.f32 %v229, 0.0
    %v290 = vmax.f32 %v234, 0.0
    %v291 = vmax.f32 %v237, 0.0
    %v292 = vmax.f32 %v242, 0.0
    %v293 = vmax.f32 %v245, 0.0
    %v294 = vmax.f32 %v250, 0.0
    %v295 = vmax.f32 %v253, 0.0
    %v296 = vmax.f32 %v258, 0.0
    %v297 = vmax.f32 %v261, 0.0
    %v298 = vmax.f32 %v266, 0.0
    %v299 = vmax.f32 %v269, 0.0
    %v300 = vmax.f32 %v274, 0.0
    %v301 = vmax.f32 %v277, 0.0
    %v302 = vmax.f32 %v282, 0.0
    %v303 = vmax.f32 %v285, 0.0
    %v304 = vpack.c.bf16 %v289, %v288
    %v305 = vpack.c.bf16 %v291, %v290
    %v306 = vpack.c.bf16 %v293, %v292
    %v307 = vpack.c.bf16 %v295, %v294
    %v308 = vpack.c.bf16 %v297, %v296
    %v309 = vpack.c.bf16 %v299, %v298
    %v310 = vpack.c.bf16 %v301, %v300
    %v311 = vpack.c.bf16 %v303, %v302
    %v312 = vld [vmem:[#allocation4 + $0xa0] sm:$0xff]
    %v313 = vld [vmem:[#allocation4 + $0xa8] sm:$0xff]
    %v314 = vld [vmem:[#allocation4 + $0xb0] sm:$0xff]
    %v315 = vld [vmem:[#allocation4 + $0xb8] sm:$0xff]
    %v316 = vld [vmem:[#allocation4 + $0xc0] sm:$0xff]
    %v317 = vld [vmem:[#allocation4 + $0xc8] sm:$0xff]
    %v318 = vld [vmem:[#allocation4 + $0xd0] sm:$0xff]
    %v319 = vld [vmem:[#allocation4 + $0xd8] sm:$0xff]
    %v320 = vpack.c.bf16 %v313, %v312
    %v321 = vpack.c.bf16 %v315, %v314
    %v322 = vpack.c.bf16 %v317, %v316
    %v323 = vpack.c.bf16 %v319, %v318
    %v324 = vld [vmem:[#allocation4 + $0xe0] sm:$0x1]
    %v325 = vlaneseq
    %v326 = vshrl.u32 %v325, 7
    %v327 = vsub.s32 0, %v326
    %v328 = vrot.slane %v324, %v327
    %vm329 = vcmask 523264
    %v331 = vsel %vm329, %v304, 0
    %v334 = vsel %vm329, %v305, 0
    %v337 = vsel %vm329, %v306, 0
    %v340 = vsel %vm329, %v307, 0
    %v343 = vsel %vm329, %v308, 0
    %v346 = vsel %vm329, %v309, 0
    %v349 = vsel %vm329, %v310, 0
    %v352 = vsel %vm329, %v311, 0
    %354 = vmatprep.subr.bf16.mxu0 0
    %355 = vmatpush1.bf16.msra.mxu0 0
    %356 = vmatprep.subr.bf16.mxu0 0
    %357 = vmatpush1.bf16.msra.mxu0 0
    %358 = vmatprep.subr.bf16.mxu0 0
    %359 = vmatpush1.bf16.msra.mxu0 0
    %360 = vmatprep.subr.bf16.mxu0 0
    %361 = vmatpush1.bf16.msra.mxu0 0
    %362 = vmatprep.subr.bf16.mxu0 0
    %363 = vmatpush1.bf16.msra.mxu0 %v323
    %364 = vmatprep.subr.bf16.mxu0 0
    %365 = vmatpush1.bf16.msra.mxu0 %v322
    %366 = vmatprep.subr.bf16.mxu0 0
    %367 = vmatpush1.bf16.msra.mxu0 %v321
    %368 = vmatprep.subr.bf16.mxu0 0
    %369 = vmatpush1.bf16.msra.mxu0 %v320
    %370 = vmatprep.subr.bf16.mxu0 0
    %371 = vmatpush2.bf16.msra.mxu0 0
    %372 = vmatprep.subr.bf16.mxu0 0
    %373 = vmatpush2.bf16.msra.mxu0 0
    %374 = vmatprep.subr.bf16.mxu0 0
    %375 = vmatpush2.bf16.msra.mxu0 0
    %376 = vmatprep.subr.bf16.mxu0 0
    %377 = vmatpush2.bf16.msra.mxu0 0
    %378 = vmatprep.subr.bf16.mxu0 0
    %379 = vmatpush2.bf16.msra.mxu0 0
    %380 = vmatprep.subr.bf16.mxu0 0
    %381 = vmatpush2.bf16.msra.mxu0 0
    %382 = vmatprep.subr.bf16.mxu0 0
    %383 = vmatpush2.bf16.msra.mxu0 0
    %384 = vmatprep.subr.bf16.mxu0 0
    %385 = vmatpush2.bf16.msra.mxu0 0
    %386 = vmatprep.mubr.bf16.mxu0 0
    %387 = vmatmul.mubr.bf16.gmra.mxu0 %v331
    %v388 = vpop.f32.mrf.mxu0
    %v389 = vadd.f32 %v328, %v388
    %v390 = vpop.f32.mrf.mxu0
    %v391 = vpop.f32.mrf.mxu0
    %v392 = vadd.f32 %v328, %v391
    %v393 = vpop.f32.mrf.mxu0
    %394 = vmatprep.mubr.bf16.mxu0 0
    %395 = vmatmul.mubr.bf16.gmra.mxu0 %v334
    %v396 = vpop.f32.mrf.mxu0
    %v397 = vadd.f32 %v328, %v396
    %v398 = vpop.f32.mrf.mxu0
    %v399 = vpop.f32.mrf.mxu0
    %v400 = vadd.f32 %v328, %v399
    %v401 = vpop.f32.mrf.mxu0
    %402 = vmatprep.mubr.bf16.mxu0 0
    %403 = vmatmul.mubr.bf16.gmra.mxu0 %v337
    %v404 = vpop.f32.mrf.mxu0
    %v405 = vadd.f32 %v328, %v404
    %v406 = vpop.f32.mrf.mxu0
    %v407 = vpop.f32.mrf.mxu0
    %v408 = vadd.f32 %v328, %v407
    %v409 = vpop.f32.mrf.mxu0
    %410 = vmatprep.mubr.bf16.mxu0 0
    %411 = vmatmul.mubr.bf16.gmra.mxu0 %v340
    %v412 = vpop.f32.mrf.mxu0
    %v413 = vadd.f32 %v328, %v412
    %v414 = vpop.f32.mrf.mxu0
    %v415 = vpop.f32.mrf.mxu0
    %v416 = vadd.f32 %v328, %v415
    %v417 = vpop.f32.mrf.mxu0
    %418 = vmatprep.mubr.bf16.mxu0 0
    %419 = vmatmul.mubr.bf16.gmra.mxu0 %v343
    %v420 = vpop.f32.mrf.mxu0
    %v421 = vadd.f32 %v328, %v420
    %v422 = vpop.f32.mrf.mxu0
    %v423 = vpop.f32.mrf.mxu0
    %v424 = vadd.f32 %v328, %v423
    %v425 = vpop.f32.mrf.mxu0
    %426 = vmatprep.mubr.bf16.mxu0 0
    %427 = vmatmul.mubr.bf16.gmra.mxu0 %v346
    %v428 = vpop.f32.mrf.mxu0
    %v429 = vadd.f32 %v328, %v428
    %v430 = vpop.f32.mrf.mxu0
    %v431 = vpop.f32.mrf.mxu0
    %v432 = vadd.f32 %v328, %v431
    %v433 = vpop.f32.mrf.mxu0
    %434 = vmatprep.mubr.bf16.mxu0 0
    %435 = vmatmul.mubr.bf16.gmra.mxu0 %v349
    %v436 = vpop.f32.mrf.mxu0
    %v437 = vadd.f32 %v328, %v436
    %v438 = vpop.f32.mrf.mxu0
    %v439 = vpop.f32.mrf.mxu0
    %v440 = vadd.f32 %v328, %v439
    %v441 = vpop.f32.mrf.mxu0
    %442 = vmatprep.mubr.bf16.mxu0 0
    %443 = vmatmul.mubr.bf16.gmra.mxu0 %v352
    %v444 = vpop.f32.mrf.mxu0
    %v445 = vadd.f32 %v328, %v444
    %v446 = vpop.f32.mrf.mxu0
    %v447 = vpop.f32.mrf.mxu0
    %v448 = vadd.f32 %v328, %v447
    %v449 = vpop.f32.mrf.mxu0
    %450 = vdwg.mxu0
    %v451 = vpack.c.bf16 %v392, %v389
    %v452 = vpack.c.bf16 %v400, %v397
    %v453 = vpack.c.bf16 %v408, %v405
    %v454 = vpack.c.bf16 %v416, %v413
    %v455 = vpack.c.bf16 %v424, %v421
    %v456 = vpack.c.bf16 %v432, %v429
    %v457 = vpack.c.bf16 %v440, %v437
    %v458 = vpack.c.bf16 %v448, %v445
    %v459 = vld [vmem:[#allocation4 + $0x140] sm:$0xff]
    %v460 = vld [vmem:[#allocation4 + $0x148] sm:$0xff]
    %v461 = vld [vmem:[#allocation4 + $0x150] sm:$0xff]
    %v462 = vld [vmem:[#allocation4 + $0x158] sm:$0xff]
    %v463 = vpack.c.bf16 %v460, %v459
    %v464 = vpack.c.bf16 %v462, %v461
    %v465 = vld [vmem:[#allocation4 + $0x160] sm:$0x1]
    %v466 = vlaneseq
    %v467 = vshrl.u32 %v466, 7
    %v468 = vsub.s32 0, %v467
    %v469 = vrot.slane %v465, %v468
    %vm470 = vcmask 261120
    %v472 = vsel %vm470, %v451, 0
    %v475 = vsel %vm470, %v452, 0
    %v478 = vsel %vm470, %v453, 0
    %v481 = vsel %vm470, %v454, 0
    %v484 = vsel %vm470, %v455, 0
    %v487 = vsel %vm470, %v456, 0
    %v490 = vsel %vm470, %v457, 0
    %v493 = vsel %vm470, %v458, 0
    %495 = vmatprep.subr.bf16.mxu0 0
    %496 = vmatpush1.bf16.msra.mxu0 0
    %497 = vmatprep.subr.bf16.mxu0 0
    %498 = vmatpush1.bf16.msra.mxu0 0
    %499 = vmatprep.subr.bf16.mxu0 0
    %500 = vmatpush1.bf16.msra.mxu0 0
    %501 = vmatprep.subr.bf16.mxu0 0
    %502 = vmatpush1.bf16.msra.mxu0 0
    %503 = vmatprep.subr.bf16.mxu0 0
    %504 = vmatpush1.bf16.msra.mxu0 0
    %505 = vmatprep.subr.bf16.mxu0 0
    %506 = vmatpush1.bf16.msra.mxu0 0
    %507 = vmatprep.subr.bf16.mxu0 0
    %508 = vmatpush1.bf16.msra.mxu0 %v464
    %509 = vmatprep.subr.bf16.mxu0 0
    %510 = vmatpush1.bf16.msra.mxu0 %v463
    %511 = vmatprep.subr.bf16.mxu0 0
    %512 = vmatpush2.bf16.msra.mxu0 0
    %513 = vmatprep.subr.bf16.mxu0 0
    %514 = vmatpush2.bf16.msra.mxu0 0
    %515 = vmatprep.subr.bf16.mxu0 0
    %516 = vmatpush2.bf16.msra.mxu0 0
    %517 = vmatprep.subr.bf16.mxu0 0
    %518 = vmatpush2.bf16.msra.mxu0 0
    %519 = vmatprep.subr.bf16.mxu0 0
    %520 = vmatpush2.bf16.msra.mxu0 0
    %521 = vmatprep.subr.bf16.mxu0 0
    %522 = vmatpush2.bf16.msra.mxu0 0
    %523 = vmatprep.subr.bf16.mxu0 0
    %524 = vmatpush2.bf16.msra.mxu0 0
    %525 = vmatprep.subr.bf16.mxu0 0
    %526 = vmatpush2.bf16.msra.mxu0 0
    %527 = vmatprep.mubr.bf16.mxu0 0
    %528 = vmatmul.mubr.bf16.gmra.mxu0 %v472
    %v529 = vpop.f32.mrf.mxu0
    %v530 = vadd.f32 %v469, %v529
    %v531 = vpop.f32.mrf.mxu0
    %v532 = vpop.f32.mrf.mxu0
    %v533 = vadd.f32 %v469, %v532
    %v534 = vpop.f32.mrf.mxu0
    %535 = vmatprep.mubr.bf16.mxu0 0
    %536 = vmatmul.mubr.bf16.gmra.mxu0 %v475
    %v537 = vpop.f32.mrf.mxu0
    %v538 = vadd.f32 %v469, %v537
    %v539 = vpop.f32.mrf.mxu0
    %v540 = vpop.f32.mrf.mxu0
    %v541 = vadd.f32 %v469, %v540
    %v542 = vpop.f32.mrf.mxu0
    %543 = vmatprep.mubr.bf16.mxu0 0
    %544 = vmatmul.mubr.bf16.gmra.mxu0 %v478
    %v545 = vpop.f32.mrf.mxu0
    %v546 = vadd.f32 %v469, %v545
    %v547 = vpop.f32.mrf.mxu0
    %v548 = vpop.f32.mrf.mxu0
    %v549 = vadd.f32 %v469, %v548
    %v550 = vpop.f32.mrf.mxu0
    %551 = vmatprep.mubr.bf16.mxu0 0
    %552 = vmatmul.mubr.bf16.gmra.mxu0 %v481
    %v553 = vpop.f32.mrf.mxu0
    %v554 = vadd.f32 %v469, %v553
    %v555 = vpop.f32.mrf.mxu0
    %v556 = vpop.f32.mrf.mxu0
    %v557 = vadd.f32 %v469, %v556
    %v558 = vpop.f32.mrf.mxu0
    %559 = vmatprep.mubr.bf16.mxu0 0
    %560 = vmatmul.mubr.bf16.gmra.mxu0 %v484
    %v561 = vpop.f32.mrf.mxu0
    %v562 = vadd.f32 %v469, %v561
    %v563 = vpop.f32.mrf.mxu0
    %v564 = vpop.f32.mrf.mxu0
    %v565 = vadd.f32 %v469, %v564
    %v566 = vpop.f32.mrf.mxu0
    %567 = vmatprep.mubr.bf16.mxu0 0
    %568 = vmatmul.mubr.bf16.gmra.mxu0 %v487
    %v569 = vpop.f32.mrf.mxu0
    %v570 = vadd.f32 %v469, %v569
    %v571 = vpop.f32.mrf.mxu0
    %v572 = vpop.f32.mrf.mxu0
    %v573 = vadd.f32 %v469, %v572
    %v574 = vpop.f32.mrf.mxu0
    %575 = vmatprep.mubr.bf16.mxu0 0
    %576 = vmatmul.mubr.bf16.gmra.mxu0 %v490
    %v577 = vpop.f32.mrf.mxu0
    %v578 = vadd.f32 %v469, %v577
    %v579 = vpop.f32.mrf.mxu0
    %v580 = vpop.f32.mrf.mxu0
    %v581 = vadd.f32 %v469, %v580
    %v582 = vpop.f32.mrf.mxu0
    %583 = vmatprep.mubr.bf16.mxu0 0
    %584 = vmatmul.mubr.bf16.gmra.mxu0 %v493
    %v585 = vpop.f32.mrf.mxu0
    %v586 = vadd.f32 %v469, %v585
    %v587 = vpop.f32.mrf.mxu0
    %v588 = vpop.f32.mrf.mxu0
    %v589 = vadd.f32 %v469, %v588
    %v590 = vpop.f32.mrf.mxu0
    %591 = vdwg.mxu0
    %v592 = vpack.c.bf16 %v533, %v530
    %v593 = vpack.c.bf16 %v541, %v538
    %v594 = vpack.c.bf16 %v549, %v546
    %v595 = vpack.c.bf16 %v557, %v554
    %v596 = vpack.c.bf16 %v565, %v562
    %v597 = vpack.c.bf16 %v573, %v570
    %v598 = vpack.c.bf16 %v581, %v578
    %v599 = vpack.c.bf16 %v589, %v586
    %608 = vrot.lane.b32.xlu0 %v592, 120
    %v609 = vpop.permute.xlu0 %608
    %610 = vrot.lane.b32.xlu0 %v593, 120
    %v611 = vpop.permute.xlu0 %610
    %612 = vrot.lane.b32.xlu0 %v594, 120
    %v613 = vpop.permute.xlu0 %612
    %614 = vrot.lane.b32.xlu0 %v595, 120
    %v615 = vpop.permute.xlu0 %614
    %616 = vrot.lane.b32.xlu0 %v596, 120
    %v617 = vpop.permute.xlu0 %616
    %618 = vrot.lane.b32.xlu0 %v597, 120
    %v619 = vpop.permute.xlu0 %618
    %620 = vrot.lane.b32.xlu0 %v598, 120
    %v621 = vpop.permute.xlu0 %620
    %622 = vrot.lane.b32.xlu0 %v599, 120
    %v623 = vpop.permute.xlu0 %622
    %624 = vrot.lane.b32.xlu0 %v592, 112
    %v625 = vpop.permute.xlu0 %624
    %626 = vrot.lane.b32.xlu0 %v593, 112
    %v627 = vpop.permute.xlu0 %626
    %628 = vrot.lane.b32.xlu0 %v594, 112
    %v629 = vpop.permute.xlu0 %628
    %630 = vrot.lane.b32.xlu0 %v595, 112
    %v631 = vpop.permute.xlu0 %630
    %632 = vrot.lane.b32.xlu0 %v596, 112
    %v633 = vpop.permute.xlu0 %632
    %634 = vrot.lane.b32.xlu0 %v597, 112
    %v635 = vpop.permute.xlu0 %634
    %636 = vrot.lane.b32.xlu0 %v598, 112
    %v637 = vpop.permute.xlu0 %636
    %638 = vrot.lane.b32.xlu0 %v599, 112
    %v639 = vpop.permute.xlu0 %638
    %640 = vrot.lane.b32.xlu0 %v592, 104
    %v641 = vpop.permute.xlu0 %640
    %642 = vrot.lane.b32.xlu0 %v593, 104
    %v643 = vpop.permute.xlu0 %642
    %644 = vrot.lane.b32.xlu0 %v594, 104
    %v645 = vpop.permute.xlu0 %644
    %646 = vrot.lane.b32.xlu0 %v595, 104
    %v647 = vpop.permute.xlu0 %646
    %648 = vrot.lane.b32.xlu0 %v596, 104
    %v649 = vpop.permute.xlu0 %648
    %650 = vrot.lane.b32.xlu0 %v597, 104
    %v651 = vpop.permute.xlu0 %650
    %652 = vrot.lane.b32.xlu0 %v598, 104
    %v653 = vpop.permute.xlu0 %652
    %654 = vrot.lane.b32.xlu0 %v599, 104
    %v655 = vpop.permute.xlu0 %654
    %656 = vrot.lane.b32.xlu0 %v592, 96
    %v657 = vpop.permute.xlu0 %656
    %v659 = vsel %vm162, %v592, 0
    %v662 = vsel %vm162, %v657, 0
    %664 = vmatprep.subr.bf16.mxu0 0
    %665 = vmatpush1.bf16.xpose.msra.mxu0 0
    %666 = vmatprep.subr.bf16.mxu0 0
    %667 = vmatpush1.bf16.xpose.msra.mxu0 0
    %668 = vmatprep.subr.bf16.mxu0 0
    %669 = vmatpush1.bf16.xpose.msra.mxu0 0
    %670 = vmatprep.subr.bf16.mxu0 0
    %671 = vmatpush1.bf16.xpose.msra.mxu0 0
    %672 = vmatprep.subr.bf16.mxu0 0
    %673 = vmatpush1.bf16.xpose.msra.mxu0 0
    %674 = vmatprep.subr.bf16.mxu0 0
    %675 = vmatpush1.bf16.xpose.msra.mxu0 0
    %676 = vmatprep.subr.bf16.mxu0 0
    %677 = vmatpush1.bf16.xpose.msra.mxu0 0
    %678 = vmatprep.subr.bf16.mxu0 0
    %679 = vmatpush1.bf16.xpose.msra.mxu0 %v662
    %680 = vmatprep.subr.bf16.mxu0 0
    %681 = vmatpush2.bf16.xpose.msra.mxu0 0
    %682 = vmatprep.subr.bf16.mxu0 0
    %683 = vmatpush2.bf16.xpose.msra.mxu0 0
    %684 = vmatprep.subr.bf16.mxu0 0
    %685 = vmatpush2.bf16.xpose.msra.mxu0 0
    %686 = vmatprep.subr.bf16.mxu0 0
    %687 = vmatpush2.bf16.xpose.msra.mxu0 0
    %688 = vmatprep.subr.bf16.mxu0 0
    %689 = vmatpush2.bf16.xpose.msra.mxu0 0
    %690 = vmatprep.subr.bf16.mxu0 0
    %691 = vmatpush2.bf16.xpose.msra.mxu0 0
    %692 = vmatprep.subr.bf16.mxu0 0
    %693 = vmatpush2.bf16.xpose.msra.mxu0 0
    %694 = vmatprep.subr.bf16.mxu0 0
    %695 = vmatpush2.bf16.xpose.msra.mxu0 0
    %696 = vmatprep.mubr.bf16.mxu0 0
    %697 = vmatmul.mubr.bf16.gmra.mxu0 %v659
    %v698 = vpop.f32.mrf.mxu0
    %v699 = vadd.f32 0.0, %v698
    %v700 = vpop.f32.mrf.mxu0
    %v701 = vpop.f32.mrf.mxu0
    %v702 = vadd.f32 0.0, %v701
    %v703 = vpop.f32.mrf.mxu0
    %704 = vdwg.mxu0
    %705 = vrot.lane.b32.xlu0 %v593, 96
    %v706 = vpop.permute.xlu0 %705
    %v708 = vsel %vm162, %v593, 0
    %v711 = vsel %vm162, %v706, 0
    %713 = vmatprep.subr.bf16.mxu0 0
    %714 = vmatpush1.bf16.xpose.msra.mxu0 0
    %715 = vmatprep.subr.bf16.mxu0 0
    %716 = vmatpush1.bf16.xpose.msra.mxu0 0
    %717 = vmatprep.subr.bf16.mxu0 0
    %718 = vmatpush1.bf16.xpose.msra.mxu0 0
    %719 = vmatprep.subr.bf16.mxu0 0
    %720 = vmatpush1.bf16.xpose.msra.mxu0 0
    %721 = vmatprep.subr.bf16.mxu0 0
    %722 = vmatpush1.bf16.xpose.msra.mxu0 0
    %723 = vmatprep.subr.bf16.mxu0 0
    %724 = vmatpush1.bf16.xpose.msra.mxu0 0
    %725 = vmatprep.subr.bf16.mxu0 0
    %726 = vmatpush1.bf16.xpose.msra.mxu0 0
    %727 = vmatprep.subr.bf16.mxu0 0
    %728 = vmatpush1.bf16.xpose.msra.mxu0 %v711
    %729 = vmatprep.subr.bf16.mxu0 0
    %730 = vmatpush2.bf16.xpose.msra.mxu0 0
    %731 = vmatprep.subr.bf16.mxu0 0
    %732 = vmatpush2.bf16.xpose.msra.mxu0 0
    %733 = vmatprep.subr.bf16.mxu0 0
    %734 = vmatpush2.bf16.xpose.msra.mxu0 0
    %735 = vmatprep.subr.bf16.mxu0 0
    %736 = vmatpush2.bf16.xpose.msra.mxu0 0
    %737 = vmatprep.subr.bf16.mxu0 0
    %738 = vmatpush2.bf16.xpose.msra.mxu0 0
    %739 = vmatprep.subr.bf16.mxu0 0
    %740 = vmatpush2.bf16.xpose.msra.mxu0 0
    %741 = vmatprep.subr.bf16.mxu0 0
    %742 = vmatpush2.bf16.xpose.msra.mxu0 0
    %743 = vmatprep.subr.bf16.mxu0 0
    %744 = vmatpush2.bf16.xpose.msra.mxu0 0
    %745 = vmatprep.mubr.bf16.mxu0 0
    %746 = vmatmul.mubr.bf16.gmra.mxu0 %v708
    %v747 = vpop.f32.mrf.mxu0
    %v748 = vadd.f32 0.0, %v747
    %v749 = vpop.f32.mrf.mxu0
    %v750 = vpop.f32.mrf.mxu0
    %v751 = vadd.f32 0.0, %v750
    %v752 = vpop.f32.mrf.mxu0
    %753 = vdwg.mxu0
    %754 = vrot.lane.b32.xlu0 %v594, 96
    %v755 = vpop.permute.xlu0 %754
    %v757 = vsel %vm162, %v594, 0
    %v760 = vsel %vm162, %v755, 0
    %762 = vmatprep.subr.bf16.mxu0 0
    %763 = vmatpush1.bf16.xpose.msra.mxu0 0
    %764 = vmatprep.subr.bf16.mxu0 0
    %765 = vmatpush1.bf16.xpose.msra.mxu0 0
    %766 = vmatprep.subr.bf16.mxu0 0
    %767 = vmatpush1.bf16.xpose.msra.mxu0 0
    %768 = vmatprep.subr.bf16.mxu0 0
    %769 = vmatpush1.bf16.xpose.msra.mxu0 0
    %770 = vmatprep.subr.bf16.mxu0 0
    %771 = vmatpush1.bf16.xpose.msra.mxu0 0
    %772 = vmatprep.subr.bf16.mxu0 0
    %773 = vmatpush1.bf16.xpose.msra.mxu0 0
    %774 = vmatprep.subr.bf16.mxu0 0
    %775 = vmatpush1.bf16.xpose.msra.mxu0 0
    %776 = vmatprep.subr.bf16.mxu0 0
    %777 = vmatpush1.bf16.xpose.msra.mxu0 %v760
    %778 = vmatprep.subr.bf16.mxu0 0
    %779 = vmatpush2.bf16.xpose.msra.mxu0 0
    %780 = vmatprep.subr.bf16.mxu0 0
    %781 = vmatpush2.bf16.xpose.msra.mxu0 0
    %782 = vmatprep.subr.bf16.mxu0 0
    %783 = vmatpush2.bf16.xpose.msra.mxu0 0
    %784 = vmatprep.subr.bf16.mxu0 0
    %785 = vmatpush2.bf16.xpose.msra.mxu0 0
    %786 = vmatprep.subr.bf16.mxu0 0
    %787 = vmatpush2.bf16.xpose.msra.mxu0 0
    %788 = vmatprep.subr.bf16.mxu0 0
    %789 = vmatpush2.bf16.xpose.msra.mxu0 0
    %790 = vmatprep.subr.bf16.mxu0 0
    %791 = vmatpush2.bf16.xpose.msra.mxu0 0
    %792 = vmatprep.subr.bf16.mxu0 0
    %793 = vmatpush2.bf16.xpose.msra.mxu0 0
    %794 = vmatprep.mubr.bf16.mxu0 0
    %795 = vmatmul.mubr.bf16.gmra.mxu0 %v757
    %v796 = vpop.f32.mrf.mxu0
    %v797 = vadd.f32 0.0, %v796
    %v798 = vpop.f32.mrf.mxu0
    %v799 = vpop.f32.mrf.mxu0
    %v800 = vadd.f32 0.0, %v799
    %v801 = vpop.f32.mrf.mxu0
    %802 = vdwg.mxu0
    %803 = vrot.lane.b32.xlu0 %v595, 96
    %v804 = vpop.permute.xlu0 %803
    %v806 = vsel %vm162, %v595, 0
    %v809 = vsel %vm162, %v804, 0
    %811 = vmatprep.subr.bf16.mxu0 0
    %812 = vmatpush1.bf16.xpose.msra.mxu0 0
    %813 = vmatprep.subr.bf16.mxu0 0
    %814 = vmatpush1.bf16.xpose.msra.mxu0 0
    %815 = vmatprep.subr.bf16.mxu0 0
    %816 = vmatpush1.bf16.xpose.msra.mxu0 0
    %817 = vmatprep.subr.bf16.mxu0 0
    %818 = vmatpush1.bf16.xpose.msra.mxu0 0
    %819 = vmatprep.subr.bf16.mxu0 0
    %820 = vmatpush1.bf16.xpose.msra.mxu0 0
    %821 = vmatprep.subr.bf16.mxu0 0
    %822 = vmatpush1.bf16.xpose.msra.mxu0 0
    %823 = vmatprep.subr.bf16.mxu0 0
    %824 = vmatpush1.bf16.xpose.msra.mxu0 0
    %825 = vmatprep.subr.bf16.mxu0 0
    %826 = vmatpush1.bf16.xpose.msra.mxu0 %v809
    %827 = vmatprep.subr.bf16.mxu0 0
    %828 = vmatpush2.bf16.xpose.msra.mxu0 0
    %829 = vmatprep.subr.bf16.mxu0 0
    %830 = vmatpush2.bf16.xpose.msra.mxu0 0
    %831 = vmatprep.subr.bf16.mxu0 0
    %832 = vmatpush2.bf16.xpose.msra.mxu0 0
    %833 = vmatprep.subr.bf16.mxu0 0
    %834 = vmatpush2.bf16.xpose.msra.mxu0 0
    %835 = vmatprep.subr.bf16.mxu0 0
    %836 = vmatpush2.bf16.xpose.msra.mxu0 0
    %837 = vmatprep.subr.bf16.mxu0 0
    %838 = vmatpush2.bf16.xpose.msra.mxu0 0
    %839 = vmatprep.subr.bf16.mxu0 0
    %840 = vmatpush2.bf16.xpose.msra.mxu0 0
    %841 = vmatprep.subr.bf16.mxu0 0
    %842 = vmatpush2.bf16.xpose.msra.mxu0 0
    %843 = vmatprep.mubr.bf16.mxu0 0
    %844 = vmatmul.mubr.bf16.gmra.mxu0 %v806
    %v845 = vpop.f32.mrf.mxu0
    %v846 = vadd.f32 0.0, %v845
    %v847 = vpop.f32.mrf.mxu0
    %v848 = vpop.f32.mrf.mxu0
    %v849 = vadd.f32 0.0, %v848
    %v850 = vpop.f32.mrf.mxu0
    %851 = vdwg.mxu0
    %852 = vrot.lane.b32.xlu0 %v596, 96
    %v853 = vpop.permute.xlu0 %852
    %v855 = vsel %vm162, %v596, 0
    %v858 = vsel %vm162, %v853, 0
    %860 = vmatprep.subr.bf16.mxu0 0
    %861 = vmatpush1.bf16.xpose.msra.mxu0 0
    %862 = vmatprep.subr.bf16.mxu0 0
    %863 = vmatpush1.bf16.xpose.msra.mxu0 0
    %864 = vmatprep.subr.bf16.mxu0 0
    %865 = vmatpush1.bf16.xpose.msra.mxu0 0
    %866 = vmatprep.subr.bf16.mxu0 0
    %867 = vmatpush1.bf16.xpose.msra.mxu0 0
    %868 = vmatprep.subr.bf16.mxu0 0
    %869 = vmatpush1.bf16.xpose.msra.mxu0 0
    %870 = vmatprep.subr.bf16.mxu0 0
    %871 = vmatpush1.bf16.xpose.msra.mxu0 0
    %872 = vmatprep.subr.bf16.mxu0 0
    %873 = vmatpush1.bf16.xpose.msra.mxu0 0
    %874 = vmatprep.subr.bf16.mxu0 0
    %875 = vmatpush1.bf16.xpose.msra.mxu0 %v858
    %876 = vmatprep.subr.bf16.mxu0 0
    %877 = vmatpush2.bf16.xpose.msra.mxu0 0
    %878 = vmatprep.subr.bf16.mxu0 0
    %879 = vmatpush2.bf16.xpose.msra.mxu0 0
    %880 = vmatprep.subr.bf16.mxu0 0
    %881 = vmatpush2.bf16.xpose.msra.mxu0 0
    %882 = vmatprep.subr.bf16.mxu0 0
    %883 = vmatpush2.bf16.xpose.msra.mxu0 0
    %884 = vmatprep.subr.bf16.mxu0 0
    %885 = vmatpush2.bf16.xpose.msra.mxu0 0
    %886 = vmatprep.subr.bf16.mxu0 0
    %887 = vmatpush2.bf16.xpose.msra.mxu0 0
    %888 = vmatprep.subr.bf16.mxu0 0
    %889 = vmatpush2.bf16.xpose.msra.mxu0 0
    %890 = vmatprep.subr.bf16.mxu0 0
    %891 = vmatpush2.bf16.xpose.msra.mxu0 0
    %892 = vmatprep.mubr.bf16.mxu0 0
    %893 = vmatmul.mubr.bf16.gmra.mxu0 %v855
    %v894 = vpop.f32.mrf.mxu0
    %v895 = vadd.f32 0.0, %v894
    %v896 = vpop.f32.mrf.mxu0
    %v897 = vpop.f32.mrf.mxu0
    %v898 = vadd.f32 0.0, %v897
    %v899 = vpop.f32.mrf.mxu0
    %900 = vdwg.mxu0
    %901 = vrot.lane.b32.xlu0 %v597, 96
    %v902 = vpop.permute.xlu0 %901
    %v904 = vsel %vm162, %v597, 0
    %v907 = vsel %vm162, %v902, 0
    %909 = vmatprep.subr.bf16.mxu0 0
    %910 = vmatpush1.bf16.xpose.msra.mxu0 0
    %911 = vmatprep.subr.bf16.mxu0 0
    %912 = vmatpush1.bf16.xpose.msra.mxu0 0
    %913 = vmatprep.subr.bf16.mxu0 0
    %914 = vmatpush1.bf16.xpose.msra.mxu0 0
    %915 = vmatprep.subr.bf16.mxu0 0
    %916 = vmatpush1.bf16.xpose.msra.mxu0 0
    %917 = vmatprep.subr.bf16.mxu0 0
    %918 = vmatpush1.bf16.xpose.msra.mxu0 0
    %919 = vmatprep.subr.bf16.mxu0 0
    %920 = vmatpush1.bf16.xpose.msra.mxu0 0
    %921 = vmatprep.subr.bf16.mxu0 0
    %922 = vmatpush1.bf16.xpose.msra.mxu0 0
    %923 = vmatprep.subr.bf16.mxu0 0
    %924 = vmatpush1.bf16.xpose.msra.mxu0 %v907
    %925 = vmatprep.subr.bf16.mxu0 0
    %926 = vmatpush2.bf16.xpose.msra.mxu0 0
    %927 = vmatprep.subr.bf16.mxu0 0
    %928 = vmatpush2.bf16.xpose.msra.mxu0 0
    %929 = vmatprep.subr.bf16.mxu0 0
    %930 = vmatpush2.bf16.xpose.msra.mxu0 0
    %931 = vmatprep.subr.bf16.mxu0 0
    %932 = vmatpush2.bf16.xpose.msra.mxu0 0
    %933 = vmatprep.subr.bf16.mxu0 0
    %934 = vmatpush2.bf16.xpose.msra.mxu0 0
    %935 = vmatprep.subr.bf16.mxu0 0
    %936 = vmatpush2.bf16.xpose.msra.mxu0 0
    %937 = vmatprep.subr.bf16.mxu0 0
    %938 = vmatpush2.bf16.xpose.msra.mxu0 0
    %939 = vmatprep.subr.bf16.mxu0 0
    %940 = vmatpush2.bf16.xpose.msra.mxu0 0
    %941 = vmatprep.mubr.bf16.mxu0 0
    %942 = vmatmul.mubr.bf16.gmra.mxu0 %v904
    %v943 = vpop.f32.mrf.mxu0
    %v944 = vadd.f32 0.0, %v943
    %v945 = vpop.f32.mrf.mxu0
    %v946 = vpop.f32.mrf.mxu0
    %v947 = vadd.f32 0.0, %v946
    %v948 = vpop.f32.mrf.mxu0
    %949 = vdwg.mxu0
    %950 = vrot.lane.b32.xlu0 %v598, 96
    %v951 = vpop.permute.xlu0 %950
    %v953 = vsel %vm162, %v598, 0
    %v956 = vsel %vm162, %v951, 0
    %958 = vmatprep.subr.bf16.mxu0 0
    %959 = vmatpush1.bf16.xpose.msra.mxu0 0
    %960 = vmatprep.subr.bf16.mxu0 0
    %961 = vmatpush1.bf16.xpose.msra.mxu0 0
    %962 = vmatprep.subr.bf16.mxu0 0
    %963 = vmatpush1.bf16.xpose.msra.mxu0 0
    %964 = vmatprep.subr.bf16.mxu0 0
    %965 = vmatpush1.bf16.xpose.msra.mxu0 0
    %966 = vmatprep.subr.bf16.mxu0 0
    %967 = vmatpush1.bf16.xpose.msra.mxu0 0
    %968 = vmatprep.subr.bf16.mxu0 0
    %969 = vmatpush1.bf16.xpose.msra.mxu0 0
    %970 = vmatprep.subr.bf16.mxu0 0
    %971 = vmatpush1.bf16.xpose.msra.mxu0 0
    %972 = vmatprep.subr.bf16.mxu0 0
    %973 = vmatpush1.bf16.xpose.msra.mxu0 %v956
    %974 = vmatprep.subr.bf16.mxu0 0
    %975 = vmatpush2.bf16.xpose.msra.mxu0 0
    %976 = vmatprep.subr.bf16.mxu0 0
    %977 = vmatpush2.bf16.xpose.msra.mxu0 0
    %978 = vmatprep.subr.bf16.mxu0 0
    %979 = vmatpush2.bf16.xpose.msra.mxu0 0
    %980 = vmatprep.subr.bf16.mxu0 0
    %981 = vmatpush2.bf16.xpose.msra.mxu0 0
    %982 = vmatprep.subr.bf16.mxu0 0
    %983 = vmatpush2.bf16.xpose.msra.mxu0 0
    %984 = vmatprep.subr.bf16.mxu0 0
    %985 = vmatpush2.bf16.xpose.msra.mxu0 0
    %986 = vmatprep.subr.bf16.mxu0 0
    %987 = vmatpush2.bf16.xpose.msra.mxu0 0
    %988 = vmatprep.subr.bf16.mxu0 0
    %989 = vmatpush2.bf16.xpose.msra.mxu0 0
    %990 = vmatprep.mubr.bf16.mxu0 0
    %991 = vmatmul.mubr.bf16.gmra.mxu0 %v953
    %v992 = vpop.f32.mrf.mxu0
    %v993 = vadd.f32 0.0, %v992
    %v994 = vpop.f32.mrf.mxu0
    %v995 = vpop.f32.mrf.mxu0
    %v996 = vadd.f32 0.0, %v995
    %v997 = vpop.f32.mrf.mxu0
    %998 = vdwg.mxu0
    %999 = vrot.lane.b32.xlu0 %v599, 96
    %v1000 = vpop.permute.xlu0 %999
    %v1002 = vsel %vm162, %v599, 0
    %v1005 = vsel %vm162, %v1000, 0
    %1007 = vmatprep.subr.bf16.mxu0 0
    %1008 = vmatpush1.bf16.xpose.msra.mxu0 0
    %1009 = vmatprep.subr.bf16.mxu0 0
    %1010 = vmatpush1.bf16.xpose.msra.mxu0 0
    %1011 = vmatprep.subr.bf16.mxu0 0
    %1012 = vmatpush1.bf16.xpose.msra.mxu0 0
    %1013 = vmatprep.subr.bf16.mxu0 0
    %1014 = vmatpush1.bf16.xpose.msra.mxu0 0
    %1015 = vmatprep.subr.bf16.mxu0 0
    %1016 = vmatpush1.bf16.xpose.msra.mxu0 0
    %1017 = vmatprep.subr.bf16.mxu0 0
    %1018 = vmatpush1.bf16.xpose.msra.mxu0 0
    %1019 = vmatprep.subr.bf16.mxu0 0
    %1020 = vmatpush1.bf16.xpose.msra.mxu0 0
    %1021 = vmatprep.subr.bf16.mxu0 0
    %1022 = vmatpush1.bf16.xpose.msra.mxu0 %v1005
    %1023 = vmatprep.subr.bf16.mxu0 0
    %1024 = vmatpush2.bf16.xpose.msra.mxu0 0
    %1025 = vmatprep.subr.bf16.mxu0 0
    %1026 = vmatpush2.bf16.xpose.msra.mxu0 0
    %1027 = vmatprep.subr.bf16.mxu0 0
    %1028 = vmatpush2.bf16.xpose.msra.mxu0 0
    %1029 = vmatprep.subr.bf16.mxu0 0
    %1030 = vmatpush2.bf16.xpose.msra.mxu0 0
    %1031 = vmatprep.subr.bf16.mxu0 0
    %1032 = vmatpush2.bf16.xpose.msra.mxu0 0
    %1033 = vmatprep.subr.bf16.mxu0 0
    %1034 = vmatpush2.bf16.xpose.msra.mxu0 0
    %1035 = vmatprep.subr.bf16.mxu0 0
    %1036 = vmatpush2.bf16.xpose.msra.mxu0 0
    %1037 = vmatprep.subr.bf16.mxu0 0
    %1038 = vmatpush2.bf16.xpose.msra.mxu0 0
    %1039 = vmatprep.mubr.bf16.mxu0 0
    %1040 = vmatmul.mubr.bf16.gmra.mxu0 %v1002
    %v1041 = vpop.f32.mrf.mxu0
    %v1042 = vadd.f32 0.0, %v1041
    %v1043 = vpop.f32.mrf.mxu0
    %v1044 = vpop.f32.mrf.mxu0
    %v1045 = vadd.f32 0.0, %v1044
    %v1046 = vpop.f32.mrf.mxu0
    %1047 = vdwg.mxu0
    %1048 = vrot.lane.b32.xlu0 %v609, 96
    %v1049 = vpop.permute.xlu0 %1048
    %v1051 = vsel %vm162, %v609, 0
    %v1054 = vsel %vm162, %v1049, 0
    %1056 = vmatprep.subr.bf16.mxu0 0
    %1057 = vmatpush1.bf16.xpose.msra.mxu0 0
    %1058 = vmatprep.subr.bf16.mxu0 0
    %1059 = vmatpush1.bf16.xpose.msra.mxu0 0
    %1060 = vmatprep.subr.bf16.mxu0 0
    %1061 = vmatpush1.bf16.xpose.msra.mxu0 0
    %1062 = vmatprep.subr.bf16.mxu0 0
    %1063 = vmatpush1.bf16.xpose.msra.mxu0 0
    %1064 = vmatprep.subr.bf16.mxu0 0
    %1065 = vmatpush1.bf16.xpose.msra.mxu0 0
    %1066 = vmatprep.subr.bf16.mxu0 0
    %1067 = vmatpush1.bf16.xpose.msra.mxu0 0
    %1068 = vmatprep.subr.bf16.mxu0 0
    %1069 = vmatpush1.bf16.xpose.msra.mxu0 0
    %1070 = vmatprep.subr.bf16.mxu0 0
    %1071 = vmatpush1.bf16.xpose.msra.mxu0 %v1054
    %1072 = vmatprep.subr.bf16.mxu0 0
    %1073 = vmatpush2.bf16.xpose.msra.mxu0 0
    %1074 = vmatprep.subr.bf16.mxu0 0
    %1075 = vmatpush2.bf16.xpose.msra.mxu0 0
    %1076 = vmatprep.subr.bf16.mxu0 0
    %1077 = vmatpush2.bf16.xpose.msra.mxu0 0
    %1078 = vmatprep.subr.bf16.mxu0 0
    %1079 = vmatpush2.bf16.xpose.msra.mxu0 0
    %1080 = vmatprep.subr.bf16.mxu0 0
    %1081 = vmatpush2.bf16.xpose.msra.mxu0 0
    %1082 = vmatprep.subr.bf16.mxu0 0
    %1083 = vmatpush2.bf16.xpose.msra.mxu0 0
    %1084 = vmatprep.subr.bf16.mxu0 0
    %1085 = vmatpush2.bf16.xpose.msra.mxu0 0
    %1086 = vmatprep.subr.bf16.mxu0 0
    %1087 = vmatpush2.bf16.xpose.msra.mxu0 0
    %1088 = vmatprep.mubr.bf16.mxu0 0
    %1089 = vmatmul.mubr.bf16.gmra.mxu0 %v1051
    %v1090 = vpop.f32.mrf.mxu0
    %v1091 = vadd.f32 0.0, %v1090
    %v1092 = vpop.f32.mrf.mxu0
    %v1093 = vpop.f32.mrf.mxu0
    %v1094 = vadd.f32 0.0, %v1093
    %v1095 = vpop.f32.mrf.mxu0
    %1096 = vdwg.mxu0
    %1097 = vrot.lane.b32.xlu0 %v611, 96
    %v1098 = vpop.permute.xlu0 %1097
    %v1100 = vsel %vm162, %v611, 0
    %v1103 = vsel %vm162, %v1098, 0
    %1105 = vmatprep.subr.bf16.mxu0 0
    %1106 = vmatpush1.bf16.xpose.msra.mxu0 0
    %1107 = vmatprep.subr.bf16.mxu0 0
    %1108 = vmatpush1.bf16.xpose.msra.mxu0 0
    %1109 = vmatprep.subr.bf16.mxu0 0
    %1110 = vmatpush1.bf16.xpose.msra.mxu0 0
    %1111 = vmatprep.subr.bf16.mxu0 0
    %1112 = vmatpush1.bf16.xpose.msra.mxu0 0
    %1113 = vmatprep.subr.bf16.mxu0 0
    %1114 = vmatpush1.bf16.xpose.msra.mxu0 0
    %1115 = vmatprep.subr.bf16.mxu0 0
    %1116 = vmatpush1.bf16.xpose.msra.mxu0 0
    %1117 = vmatprep.subr.bf16.mxu0 0
    %1118 = vmatpush1.bf16.xpose.msra.mxu0 0
    %1119 = vmatprep.subr.bf16.mxu0 0
    %1120 = vmatpush1.bf16.xpose.msra.mxu0 %v1103
    %1121 = vmatprep.subr.bf16.mxu0 0
    %1122 = vmatpush2.bf16.xpose.msra.mxu0 0
    %1123 = vmatprep.subr.bf16.mxu0 0
    %1124 = vmatpush2.bf16.xpose.msra.mxu0 0
    %1125 = vmatprep.subr.bf16.mxu0 0
    %1126 = vmatpush2.bf16.xpose.msra.mxu0 0
    %1127 = vmatprep.subr.bf16.mxu0 0
    %1128 = vmatpush2.bf16.xpose.msra.mxu0 0
    %1129 = vmatprep.subr.bf16.mxu0 0
    %1130 = vmatpush2.bf16.xpose.msra.mxu0 0
    %1131 = vmatprep.subr.bf16.mxu0 0
    %1132 = vmatpush2.bf16.xpose.msra.mxu0 0
    %1133 = vmatprep.subr.bf16.mxu0 0
    %1134 = vmatpush2.bf16.xpose.msra.mxu0 0
    %1135 = vmatprep.subr.bf16.mxu0 0
    %1136 = vmatpush2.bf16.xpose.msra.mxu0 0
    %1137 = vmatprep.mubr.bf16.mxu0 0
    %1138 = vmatmul.mubr.bf16.gmra.mxu0 %v1100
    %v1139 = vpop.f32.mrf.mxu0
    %v1140 = vadd.f32 0.0, %v1139
    %v1141 = vpop.f32.mrf.mxu0
    %v1142 = vpop.f32.mrf.mxu0
    %v1143 = vadd.f32 0.0, %v1142
    %v1144 = vpop.f32.mrf.mxu0
    %1145 = vdwg.mxu0
    %1146 = vrot.lane.b32.xlu0 %v613, 96
    %v1147 = vpop.permute.xlu0 %1146
    %v1149 = vsel %vm162, %v613, 0
    %v1152 = vsel %vm162, %v1147, 0
    %1154 = vmatprep.subr.bf16.mxu0 0
    %1155 = vmatpush1.bf16.xpose.msra.mxu0 0
    %1156 = vmatprep.subr.bf16.mxu0 0
    %1157 = vmatpush1.bf16.xpose.msra.mxu0 0
    %1158 = vmatprep.subr.bf16.mxu0 0
    %1159 = vmatpush1.bf16.xpose.msra.mxu0 0
    %1160 = vmatprep.subr.bf16.mxu0 0
    %1161 = vmatpush1.bf16.xpose.msra.mxu0 0
    %1162 = vmatprep.subr.bf16.mxu0 0
    %1163 = vmatpush1.bf16.xpose.msra.mxu0 0
    %1164 = vmatprep.subr.bf16.mxu0 0
    %1165 = vmatpush1.bf16.xpose.msra.mxu0 0
    %1166 = vmatprep.subr.bf16.mxu0 0
    %1167 = vmatpush1.bf16.xpose.msra.mxu0 0
    %1168 = vmatprep.subr.bf16.mxu0 0
    %1169 = vmatpush1.bf16.xpose.msra.mxu0 %v1152
    %1170 = vmatprep.subr.bf16.mxu0 0
    %1171 = vmatpush2.bf16.xpose.msra.mxu0 0
    %1172 = vmatprep.subr.bf16.mxu0 0
    %1173 = vmatpush2.bf16.xpose.msra.mxu0 0
    %1174 = vmatprep.subr.bf16.mxu0 0
    %1175 = vmatpush2.bf16.xpose.msra.mxu0 0
    %1176 = vmatprep.subr.bf16.mxu0 0
    %1177 = vmatpush2.bf16.xpose.msra.mxu0 0
    %1178 = vmatprep.subr.bf16.mxu0 0
    %1179 = vmatpush2.bf16.xpose.msra.mxu0 0
    %1180 = vmatprep.subr.bf16.mxu0 0
    %1181 = vmatpush2.bf16.xpose.msra.mxu0 0
    %1182 = vmatprep.subr.bf16.mxu0 0
    %1183 = vmatpush2.bf16.xpose.msra.mxu0 0
    %1184 = vmatprep.subr.bf16.mxu0 0
    %1185 = vmatpush2.bf16.xpose.msra.mxu0 0
    %1186 = vmatprep.mubr.bf16.mxu0 0
    %1187 = vmatmul.mubr.bf16.gmra.mxu0 %v1149
    %v1188 = vpop.f32.mrf.mxu0
    %v1189 = vadd.f32 0.0, %v1188
    %v1190 = vpop.f32.mrf.mxu0
    %v1191 = vpop.f32.mrf.mxu0
    %v1192 = vadd.f32 0.0, %v1191
    %v1193 = vpop.f32.mrf.mxu0
    %1194 = vdwg.mxu0
    %1195 = vrot.lane.b32.xlu0 %v615, 96
    %v1196 = vpop.permute.xlu0 %1195
    %v1198 = vsel %vm162, %v615, 0
    %v1201 = vsel %vm162, %v1196, 0
    %1203 = vmatprep.subr.bf16.mxu0 0
    %1204 = vmatpush1.bf16.xpose.msra.mxu0 0
    %1205 = vmatprep.subr.bf16.mxu0 0
    %1206 = vmatpush1.bf16.xpose.msra.mxu0 0
    %1207 = vmatprep.subr.bf16.mxu0 0
    %1208 = vmatpush1.bf16.xpose.msra.mxu0 0
    %1209 = vmatprep.subr.bf16.mxu0 0
    %1210 = vmatpush1.bf16.xpose.msra.mxu0 0
    %1211 = vmatprep.subr.bf16.mxu0 0
    %1212 = vmatpush1.bf16.xpose.msra.mxu0 0
    %1213 = vmatprep.subr.bf16.mxu0 0
    %1214 = vmatpush1.bf16.xpose.msra.mxu0 0
    %1215 = vmatprep.subr.bf16.mxu0 0
    %1216 = vmatpush1.bf16.xpose.msra.mxu0 0
    %1217 = vmatprep.subr.bf16.mxu0 0
    %1218 = vmatpush1.bf16.xpose.msra.mxu0 %v1201
    %1219 = vmatprep.subr.bf16.mxu0 0
    %1220 = vmatpush2.bf16.xpose.msra.mxu0 0
    %1221 = vmatprep.subr.bf16.mxu0 0
    %1222 = vmatpush2.bf16.xpose.msra.mxu0 0
    %1223 = vmatprep.subr.bf16.mxu0 0
    %1224 = vmatpush2.bf16.xpose.msra.mxu0 0
    %1225 = vmatprep.subr.bf16.mxu0 0
    %1226 = vmatpush2.bf16.xpose.msra.mxu0 0
    %1227 = vmatprep.subr.bf16.mxu0 0
    %1228 = vmatpush2.bf16.xpose.msra.mxu0 0
    %1229 = vmatprep.subr.bf16.mxu0 0
    %1230 = vmatpush2.bf16.xpose.msra.mxu0 0
    %1231 = vmatprep.subr.bf16.mxu0 0
    %1232 = vmatpush2.bf16.xpose.msra.mxu0 0
    %1233 = vmatprep.subr.bf16.mxu0 0
    %1234 = vmatpush2.bf16.xpose.msra.mxu0 0
    %1235 = vmatprep.mubr.bf16.mxu0 0
    %1236 = vmatmul.mubr.bf16.gmra.mxu0 %v1198
    %v1237 = vpop.f32.mrf.mxu0
    %v1238 = vadd.f32 0.0, %v1237
    %v1239 = vpop.f32.mrf.mxu0
    %v1240 = vpop.f32.mrf.mxu0
    %v1241 = vadd.f32 0.0, %v1240
    %v1242 = vpop.f32.mrf.mxu0
    %1243 = vdwg.mxu0
    %1244 = vrot.lane.b32.xlu0 %v617, 96
    %v1245 = vpop.permute.xlu0 %1244
    %v1247 = vsel %vm162, %v617, 0
    %v1250 = vsel %vm162, %v1245, 0
    %1252 = vmatprep.subr.bf16.mxu0 0
    %1253 = vmatpush1.bf16.xpose.msra.mxu0 0
    %1254 = vmatprep.subr.bf16.mxu0 0
    %1255 = vmatpush1.bf16.xpose.msra.mxu0 0
    %1256 = vmatprep.subr.bf16.mxu0 0
    %1257 = vmatpush1.bf16.xpose.msra.mxu0 0
    %1258 = vmatprep.subr.bf16.mxu0 0
    %1259 = vmatpush1.bf16.xpose.msra.mxu0 0
    %1260 = vmatprep.subr.bf16.mxu0 0
    %1261 = vmatpush1.bf16.xpose.msra.mxu0 0
    %1262 = vmatprep.subr.bf16.mxu0 0
    %1263 = vmatpush1.bf16.xpose.msra.mxu0 0
    %1264 = vmatprep.subr.bf16.mxu0 0
    %1265 = vmatpush1.bf16.xpose.msra.mxu0 0
    %1266 = vmatprep.subr.bf16.mxu0 0
    %1267 = vmatpush1.bf16.xpose.msra.mxu0 %v1250
    %1268 = vmatprep.subr.bf16.mxu0 0
    %1269 = vmatpush2.bf16.xpose.msra.mxu0 0
    %1270 = vmatprep.subr.bf16.mxu0 0
    %1271 = vmatpush2.bf16.xpose.msra.mxu0 0
    %1272 = vmatprep.subr.bf16.mxu0 0
    %1273 = vmatpush2.bf16.xpose.msra.mxu0 0
    %1274 = vmatprep.subr.bf16.mxu0 0
    %1275 = vmatpush2.bf16.xpose.msra.mxu0 0
    %1276 = vmatprep.subr.bf16.mxu0 0
    %1277 = vmatpush2.bf16.xpose.msra.mxu0 0
    %1278 = vmatprep.subr.bf16.mxu0 0
    %1279 = vmatpush2.bf16.xpose.msra.mxu0 0
    %1280 = vmatprep.subr.bf16.mxu0 0
    %1281 = vmatpush2.bf16.xpose.msra.mxu0 0
    %1282 = vmatprep.subr.bf16.mxu0 0
    %1283 = vmatpush2.bf16.xpose.msra.mxu0 0
    %1284 = vmatprep.mubr.bf16.mxu0 0
    %1285 = vmatmul.mubr.bf16.gmra.mxu0 %v1247
    %v1286 = vpop.f32.mrf.mxu0
    %v1287 = vadd.f32 0.0, %v1286
    %v1288 = vpop.f32.mrf.mxu0
    %v1289 = vpop.f32.mrf.mxu0
    %v1290 = vadd.f32 0.0, %v1289
    %v1291 = vpop.f32.mrf.mxu0
    %1292 = vdwg.mxu0
    %1293 = vrot.lane.b32.xlu0 %v619, 96
    %v1294 = vpop.permute.xlu0 %1293
    %v1296 = vsel %vm162, %v619, 0
    %v1299 = vsel %vm162, %v1294, 0
    %1301 = vmatprep.subr.bf16.mxu0 0
    %1302 = vmatpush1.bf16.xpose.msra.mxu0 0
    %1303 = vmatprep.subr.bf16.mxu0 0
    %1304 = vmatpush1.bf16.xpose.msra.mxu0 0
    %1305 = vmatprep.subr.bf16.mxu0 0
    %1306 = vmatpush1.bf16.xpose.msra.mxu0 0
    %1307 = vmatprep.subr.bf16.mxu0 0
    %1308 = vmatpush1.bf16.xpose.msra.mxu0 0
    %1309 = vmatprep.subr.bf16.mxu0 0
    %1310 = vmatpush1.bf16.xpose.msra.mxu0 0
    %1311 = vmatprep.subr.bf16.mxu0 0
    %1312 = vmatpush1.bf16.xpose.msra.mxu0 0
    %1313 = vmatprep.subr.bf16.mxu0 0
    %1314 = vmatpush1.bf16.xpose.msra.mxu0 0
    %1315 = vmatprep.subr.bf16.mxu0 0
    %1316 = vmatpush1.bf16.xpose.msra.mxu0 %v1299
    %1317 = vmatprep.subr.bf16.mxu0 0
    %1318 = vmatpush2.bf16.xpose.msra.mxu0 0
    %1319 = vmatprep.subr.bf16.mxu0 0
    %1320 = vmatpush2.bf16.xpose.msra.mxu0 0
    %1321 = vmatprep.subr.bf16.mxu0 0
    %1322 = vmatpush2.bf16.xpose.msra.mxu0 0
    %1323 = vmatprep.subr.bf16.mxu0 0
    %1324 = vmatpush2.bf16.xpose.msra.mxu0 0
    %1325 = vmatprep.subr.bf16.mxu0 0
    %1326 = vmatpush2.bf16.xpose.msra.mxu0 0
    %1327 = vmatprep.subr.bf16.mxu0 0
    %1328 = vmatpush2.bf16.xpose.msra.mxu0 0
    %1329 = vmatprep.subr.bf16.mxu0 0
    %1330 = vmatpush2.bf16.xpose.msra.mxu0 0
    %1331 = vmatprep.subr.bf16.mxu0 0
    %1332 = vmatpush2.bf16.xpose.msra.mxu0 0
    %1333 = vmatprep.mubr.bf16.mxu0 0
    %1334 = vmatmul.mubr.bf16.gmra.mxu0 %v1296
    %v1335 = vpop.f32.mrf.mxu0
    %v1336 = vadd.f32 0.0, %v1335
    %v1337 = vpop.f32.mrf.mxu0
    %v1338 = vpop.f32.mrf.mxu0
    %v1339 = vadd.f32 0.0, %v1338
    %v1340 = vpop.f32.mrf.mxu0
    %1341 = vdwg.mxu0
    %1342 = vrot.lane.b32.xlu0 %v621, 96
    %v1343 = vpop.permute.xlu0 %1342
    %v1345 = vsel %vm162, %v621, 0
    %v1348 = vsel %vm162, %v1343, 0
    %1350 = vmatprep.subr.bf16.mxu0 0
    %1351 = vmatpush1.bf16.xpose.msra.mxu0 0
    %1352 = vmatprep.subr.bf16.mxu0 0
    %1353 = vmatpush1.bf16.xpose.msra.mxu0 0
    %1354 = vmatprep.subr.bf16.mxu0 0
    %1355 = vmatpush1.bf16.xpose.msra.mxu0 0
    %1356 = vmatprep.subr.bf16.mxu0 0
    %1357 = vmatpush1.bf16.xpose.msra.mxu0 0
    %1358 = vmatprep.subr.bf16.mxu0 0
    %1359 = vmatpush1.bf16.xpose.msra.mxu0 0
    %1360 = vmatprep.subr.bf16.mxu0 0
    %1361 = vmatpush1.bf16.xpose.msra.mxu0 0
    %1362 = vmatprep.subr.bf16.mxu0 0
    %1363 = vmatpush1.bf16.xpose.msra.mxu0 0
    %1364 = vmatprep.subr.bf16.mxu0 0
    %1365 = vmatpush1.bf16.xpose.msra.mxu0 %v1348
    %1366 = vmatprep.subr.bf16.mxu0 0
    %1367 = vmatpush2.bf16.xpose.msra.mxu0 0
    %1368 = vmatprep.subr.bf16.mxu0 0
    %1369 = vmatpush2.bf16.xpose.msra.mxu0 0
    %1370 = vmatprep.subr.bf16.mxu0 0
    %1371 = vmatpush2.bf16.xpose.msra.mxu0 0
    %1372 = vmatprep.subr.bf16.mxu0 0
    %1373 = vmatpush2.bf16.xpose.msra.mxu0 0
    %1374 = vmatprep.subr.bf16.mxu0 0
    %1375 = vmatpush2.bf16.xpose.msra.mxu0 0
    %1376 = vmatprep.subr.bf16.mxu0 0
    %1377 = vmatpush2.bf16.xpose.msra.mxu0 0
    %1378 = vmatprep.subr.bf16.mxu0 0
    %1379 = vmatpush2.bf16.xpose.msra.mxu0 0
    %1380 = vmatprep.subr.bf16.mxu0 0
    %1381 = vmatpush2.bf16.xpose.msra.mxu0 0
    %1382 = vmatprep.mubr.bf16.mxu0 0
    %1383 = vmatmul.mubr.bf16.gmra.mxu0 %v1345
    %v1384 = vpop.f32.mrf.mxu0
    %v1385 = vadd.f32 0.0, %v1384
    %v1386 = vpop.f32.mrf.mxu0
    %v1387 = vpop.f32.mrf.mxu0
    %v1388 = vadd.f32 0.0, %v1387
    %v1389 = vpop.f32.mrf.mxu0
    %1390 = vdwg.mxu0
    %1391 = vrot.lane.b32.xlu0 %v623, 96
    %v1392 = vpop.permute.xlu0 %1391
    %v1394 = vsel %vm162, %v623, 0
    %v1397 = vsel %vm162, %v1392, 0
    %1399 = vmatprep.subr.bf16.mxu0 0
    %1400 = vmatpush1.bf16.xpose.msra.mxu0 0
    %1401 = vmatprep.subr.bf16.mxu0 0
    %1402 = vmatpush1.bf16.xpose.msra.mxu0 0
    %1403 = vmatprep.subr.bf16.mxu0 0
    %1404 = vmatpush1.bf16.xpose.msra.mxu0 0
    %1405 = vmatprep.subr.bf16.mxu0 0
    %1406 = vmatpush1.bf16.xpose.msra.mxu0 0
    %1407 = vmatprep.subr.bf16.mxu0 0
    %1408 = vmatpush1.bf16.xpose.msra.mxu0 0
    %1409 = vmatprep.subr.bf16.mxu0 0
    %1410 = vmatpush1.bf16.xpose.msra.mxu0 0
    %1411 = vmatprep.subr.bf16.mxu0 0
    %1412 = vmatpush1.bf16.xpose.msra.mxu0 0
    %1413 = vmatprep.subr.bf16.mxu0 0
    %1414 = vmatpush1.bf16.xpose.msra.mxu0 %v1397
    %1415 = vmatprep.subr.bf16.mxu0 0
    %1416 = vmatpush2.bf16.xpose.msra.mxu0 0
    %1417 = vmatprep.subr.bf16.mxu0 0
    %1418 = vmatpush2.bf16.xpose.msra.mxu0 0
    %1419 = vmatprep.subr.bf16.mxu0 0
    %1420 = vmatpush2.bf16.xpose.msra.mxu0 0
    %1421 = vmatprep.subr.bf16.mxu0 0
    %1422 = vmatpush2.bf16.xpose.msra.mxu0 0
    %1423 = vmatprep.subr.bf16.mxu0 0
    %1424 = vmatpush2.bf16.xpose.msra.mxu0 0
    %1425 = vmatprep.subr.bf16.mxu0 0
    %1426 = vmatpush2.bf16.xpose.msra.mxu0 0
    %1427 = vmatprep.subr.bf16.mxu0 0
    %1428 = vmatpush2.bf16.xpose.msra.mxu0 0
    %1429 = vmatprep.subr.bf16.mxu0 0
    %1430 = vmatpush2.bf16.xpose.msra.mxu0 0
    %1431 = vmatprep.mubr.bf16.mxu0 0
    %1432 = vmatmul.mubr.bf16.gmra.mxu0 %v1394
    %v1433 = vpop.f32.mrf.mxu0
    %v1434 = vadd.f32 0.0, %v1433
    %v1435 = vpop.f32.mrf.mxu0
    %v1436 = vpop.f32.mrf.mxu0
    %v1437 = vadd.f32 0.0, %v1436
    %v1438 = vpop.f32.mrf.mxu0
    %1439 = vdwg.mxu0
    %1440 = vrot.lane.b32.xlu0 %v625, 96
    %v1441 = vpop.permute.xlu0 %1440
    %v1443 = vsel %vm162, %v625, 0
    %v1446 = vsel %vm162, %v1441, 0
    %1448 = vmatprep.subr.bf16.mxu0 0
    %1449 = vmatpush1.bf16.xpose.msra.mxu0 0
    %1450 = vmatprep.subr.bf16.mxu0 0
    %1451 = vmatpush1.bf16.xpose.msra.mxu0 0
    %1452 = vmatprep.subr.bf16.mxu0 0
    %1453 = vmatpush1.bf16.xpose.msra.mxu0 0
    %1454 = vmatprep.subr.bf16.mxu0 0
    %1455 = vmatpush1.bf16.xpose.msra.mxu0 0
    %1456 = vmatprep.subr.bf16.mxu0 0
    %1457 = vmatpush1.bf16.xpose.msra.mxu0 0
    %1458 = vmatprep.subr.bf16.mxu0 0
    %1459 = vmatpush1.bf16.xpose.msra.mxu0 0
    %1460 = vmatprep.subr.bf16.mxu0 0
    %1461 = vmatpush1.bf16.xpose.msra.mxu0 0
    %1462 = vmatprep.subr.bf16.mxu0 0
    %1463 = vmatpush1.bf16.xpose.msra.mxu0 %v1446
    %1464 = vmatprep.subr.bf16.mxu0 0
    %1465 = vmatpush2.bf16.xpose.msra.mxu0 0
    %1466 = vmatprep.subr.bf16.mxu0 0
    %1467 = vmatpush2.bf16.xpose.msra.mxu0 0
    %1468 = vmatprep.subr.bf16.mxu0 0
    %1469 = vmatpush2.bf16.xpose.msra.mxu0 0
    %1470 = vmatprep.subr.bf16.mxu0 0
    %1471 = vmatpush2.bf16.xpose.msra.mxu0 0
    %1472 = vmatprep.subr.bf16.mxu0 0
    %1473 = vmatpush2.bf16.xpose.msra.mxu0 0
    %1474 = vmatprep.subr.bf16.mxu0 0
    %1475 = vmatpush2.bf16.xpose.msra.mxu0 0
    %1476 = vmatprep.subr.bf16.mxu0 0
    %1477 = vmatpush2.bf16.xpose.msra.mxu0 0
    %1478 = vmatprep.subr.bf16.mxu0 0
    %1479 = vmatpush2.bf16.xpose.msra.mxu0 0
    %1480 = vmatprep.mubr.bf16.mxu0 0
    %1481 = vmatmul.mubr.bf16.gmra.mxu0 %v1443
    %v1482 = vpop.f32.mrf.mxu0
    %v1483 = vadd.f32 0.0, %v1482
    %v1484 = vpop.f32.mrf.mxu0
    %v1485 = vpop.f32.mrf.mxu0
    %v1486 = vadd.f32 0.0, %v1485
    %v1487 = vpop.f32.mrf.mxu0
    %1488 = vdwg.mxu0
    %1489 = vrot.lane.b32.xlu0 %v627, 96
    %v1490 = vpop.permute.xlu0 %1489
    %v1492 = vsel %vm162, %v627, 0
    %v1495 = vsel %vm162, %v1490, 0
    %1497 = vmatprep.subr.bf16.mxu0 0
    %1498 = vmatpush1.bf16.xpose.msra.mxu0 0
    %1499 = vmatprep.subr.bf16.mxu0 0
    %1500 = vmatpush1.bf16.xpose.msra.mxu0 0
    %1501 = vmatprep.subr.bf16.mxu0 0
    %1502 = vmatpush1.bf16.xpose.msra.mxu0 0
    %1503 = vmatprep.subr.bf16.mxu0 0
    %1504 = vmatpush1.bf16.xpose.msra.mxu0 0
    %1505 = vmatprep.subr.bf16.mxu0 0
    %1506 = vmatpush1.bf16.xpose.msra.mxu0 0
    %1507 = vmatprep.subr.bf16.mxu0 0
    %1508 = vmatpush1.bf16.xpose.msra.mxu0 0
    %1509 = vmatprep.subr.bf16.mxu0 0
    %1510 = vmatpush1.bf16.xpose.msra.mxu0 0
    %1511 = vmatprep.subr.bf16.mxu0 0
    %1512 = vmatpush1.bf16.xpose.msra.mxu0 %v1495
    %1513 = vmatprep.subr.bf16.mxu0 0
    %1514 = vmatpush2.bf16.xpose.msra.mxu0 0
    %1515 = vmatprep.subr.bf16.mxu0 0
    %1516 = vmatpush2.bf16.xpose.msra.mxu0 0
    %1517 = vmatprep.subr.bf16.mxu0 0
    %1518 = vmatpush2.bf16.xpose.msra.mxu0 0
    %1519 = vmatprep.subr.bf16.mxu0 0
    %1520 = vmatpush2.bf16.xpose.msra.mxu0 0
    %1521 = vmatprep.subr.bf16.mxu0 0
    %1522 = vmatpush2.bf16.xpose.msra.mxu0 0
    %1523 = vmatprep.subr.bf16.mxu0 0
    %1524 = vmatpush2.bf16.xpose.msra.mxu0 0
    %1525 = vmatprep.subr.bf16.mxu0 0
    %1526 = vmatpush2.bf16.xpose.msra.mxu0 0
    %1527 = vmatprep.subr.bf16.mxu0 0
    %1528 = vmatpush2.bf16.xpose.msra.mxu0 0
    %1529 = vmatprep.mubr.bf16.mxu0 0
    %1530 = vmatmul.mubr.bf16.gmra.mxu0 %v1492
    %v1531 = vpop.f32.mrf.mxu0
    %v1532 = vadd.f32 0.0, %v1531
    %v1533 = vpop.f32.mrf.mxu0
    %v1534 = vpop.f32.mrf.mxu0
    %v1535 = vadd.f32 0.0, %v1534
    %v1536 = vpop.f32.mrf.mxu0
    %1537 = vdwg.mxu0
    %1538 = vrot.lane.b32.xlu0 %v629, 96
    %v1539 = vpop.permute.xlu0 %1538
    %v1541 = vsel %vm162, %v629, 0
    %v1544 = vsel %vm162, %v1539, 0
    %1546 = vmatprep.subr.bf16.mxu0 0
    %1547 = vmatpush1.bf16.xpose.msra.mxu0 0
    %1548 = vmatprep.subr.bf16.mxu0 0
    %1549 = vmatpush1.bf16.xpose.msra.mxu0 0
    %1550 = vmatprep.subr.bf16.mxu0 0
    %1551 = vmatpush1.bf16.xpose.msra.mxu0 0
    %1552 = vmatprep.subr.bf16.mxu0 0
    %1553 = vmatpush1.bf16.xpose.msra.mxu0 0
    %1554 = vmatprep.subr.bf16.mxu0 0
    %1555 = vmatpush1.bf16.xpose.msra.mxu0 0
    %1556 = vmatprep.subr.bf16.mxu0 0
    %1557 = vmatpush1.bf16.xpose.msra.mxu0 0
    %1558 = vmatprep.subr.bf16.mxu0 0
    %1559 = vmatpush1.bf16.xpose.msra.mxu0 0
    %1560 = vmatprep.subr.bf16.mxu0 0
    %1561 = vmatpush1.bf16.xpose.msra.mxu0 %v1544
    %1562 = vmatprep.subr.bf16.mxu0 0
    %1563 = vmatpush2.bf16.xpose.msra.mxu0 0
    %1564 = vmatprep.subr.bf16.mxu0 0
    %1565 = vmatpush2.bf16.xpose.msra.mxu0 0
    %1566 = vmatprep.subr.bf16.mxu0 0
    %1567 = vmatpush2.bf16.xpose.msra.mxu0 0
    %1568 = vmatprep.subr.bf16.mxu0 0
    %1569 = vmatpush2.bf16.xpose.msra.mxu0 0
    %1570 = vmatprep.subr.bf16.mxu0 0
    %1571 = vmatpush2.bf16.xpose.msra.mxu0 0
    %1572 = vmatprep.subr.bf16.mxu0 0
    %1573 = vmatpush2.bf16.xpose.msra.mxu0 0
    %1574 = vmatprep.subr.bf16.mxu0 0
    %1575 = vmatpush2.bf16.xpose.msra.mxu0 0
    %1576 = vmatprep.subr.bf16.mxu0 0
    %1577 = vmatpush2.bf16.xpose.msra.mxu0 0
    %1578 = vmatprep.mubr.bf16.mxu0 0
    %1579 = vmatmul.mubr.bf16.gmra.mxu0 %v1541
    %v1580 = vpop.f32.mrf.mxu0
    %v1581 = vadd.f32 0.0, %v1580
    %v1582 = vpop.f32.mrf.mxu0
    %v1583 = vpop.f32.mrf.mxu0
    %v1584 = vadd.f32 0.0, %v1583
    %v1585 = vpop.f32.mrf.mxu0
    %1586 = vdwg.mxu0
    %1587 = vrot.lane.b32.xlu0 %v631, 96
    %v1588 = vpop.permute.xlu0 %1587
    %v1590 = vsel %vm162, %v631, 0
    %v1593 = vsel %vm162, %v1588, 0
    %1595 = vmatprep.subr.bf16.mxu0 0
    %1596 = vmatpush1.bf16.xpose.msra.mxu0 0
    %1597 = vmatprep.subr.bf16.mxu0 0
    %1598 = vmatpush1.bf16.xpose.msra.mxu0 0
    %1599 = vmatprep.subr.bf16.mxu0 0
    %1600 = vmatpush1.bf16.xpose.msra.mxu0 0
    %1601 = vmatprep.subr.bf16.mxu0 0
    %1602 = vmatpush1.bf16.xpose.msra.mxu0 0
    %1603 = vmatprep.subr.bf16.mxu0 0
    %1604 = vmatpush1.bf16.xpose.msra.mxu0 0
    %1605 = vmatprep.subr.bf16.mxu0 0
    %1606 = vmatpush1.bf16.xpose.msra.mxu0 0
    %1607 = vmatprep.subr.bf16.mxu0 0
    %1608 = vmatpush1.bf16.xpose.msra.mxu0 0
    %1609 = vmatprep.subr.bf16.mxu0 0
    %1610 = vmatpush1.bf16.xpose.msra.mxu0 %v1593
    %1611 = vmatprep.subr.bf16.mxu0 0
    %1612 = vmatpush2.bf16.xpose.msra.mxu0 0
    %1613 = vmatprep.subr.bf16.mxu0 0
    %1614 = vmatpush2.bf16.xpose.msra.mxu0 0
    %1615 = vmatprep.subr.bf16.mxu0 0
    %1616 = vmatpush2.bf16.xpose.msra.mxu0 0
    %1617 = vmatprep.subr.bf16.mxu0 0
    %1618 = vmatpush2.bf16.xpose.msra.mxu0 0
    %1619 = vmatprep.subr.bf16.mxu0 0
    %1620 = vmatpush2.bf16.xpose.msra.mxu0 0
    %1621 = vmatprep.subr.bf16.mxu0 0
    %1622 = vmatpush2.bf16.xpose.msra.mxu0 0
    %1623 = vmatprep.subr.bf16.mxu0 0
    %1624 = vmatpush2.bf16.xpose.msra.mxu0 0
    %1625 = vmatprep.subr.bf16.mxu0 0
    %1626 = vmatpush2.bf16.xpose.msra.mxu0 0
    %1627 = vmatprep.mubr.bf16.mxu0 0
    %1628 = vmatmul.mubr.bf16.gmra.mxu0 %v1590
    %v1629 = vpop.f32.mrf.mxu0
    %v1630 = vadd.f32 0.0, %v1629
    %v1631 = vpop.f32.mrf.mxu0
    %v1632 = vpop.f32.mrf.mxu0
    %v1633 = vadd.f32 0.0, %v1632
    %v1634 = vpop.f32.mrf.mxu0
    %1635 = vdwg.mxu0
    %1636 = vrot.lane.b32.xlu0 %v633, 96
    %v1637 = vpop.permute.xlu0 %1636
    %v1639 = vsel %vm162, %v633, 0
    %v1642 = vsel %vm162, %v1637, 0
    %1644 = vmatprep.subr.bf16.mxu0 0
    %1645 = vmatpush1.bf16.xpose.msra.mxu0 0
    %1646 = vmatprep.subr.bf16.mxu0 0
    %1647 = vmatpush1.bf16.xpose.msra.mxu0 0
    %1648 = vmatprep.subr.bf16.mxu0 0
    %1649 = vmatpush1.bf16.xpose.msra.mxu0 0
    %1650 = vmatprep.subr.bf16.mxu0 0
    %1651 = vmatpush1.bf16.xpose.msra.mxu0 0
    %1652 = vmatprep.subr.bf16.mxu0 0
    %1653 = vmatpush1.bf16.xpose.msra.mxu0 0
    %1654 = vmatprep.subr.bf16.mxu0 0
    %1655 = vmatpush1.bf16.xpose.msra.mxu0 0
    %1656 = vmatprep.subr.bf16.mxu0 0
    %1657 = vmatpush1.bf16.xpose.msra.mxu0 0
    %1658 = vmatprep.subr.bf16.mxu0 0
    %1659 = vmatpush1.bf16.xpose.msra.mxu0 %v1642
    %1660 = vmatprep.subr.bf16.mxu0 0
    %1661 = vmatpush2.bf16.xpose.msra.mxu0 0
    %1662 = vmatprep.subr.bf16.mxu0 0
    %1663 = vmatpush2.bf16.xpose.msra.mxu0 0
    %1664 = vmatprep.subr.bf16.mxu0 0
    %1665 = vmatpush2.bf16.xpose.msra.mxu0 0
    %1666 = vmatprep.subr.bf16.mxu0 0
    %1667 = vmatpush2.bf16.xpose.msra.mxu0 0
    %1668 = vmatprep.subr.bf16.mxu0 0
    %1669 = vmatpush2.bf16.xpose.msra.mxu0 0
    %1670 = vmatprep.subr.bf16.mxu0 0
    %1671 = vmatpush2.bf16.xpose.msra.mxu0 0
    %1672 = vmatprep.subr.bf16.mxu0 0
    %1673 = vmatpush2.bf16.xpose.msra.mxu0 0
    %1674 = vmatprep.subr.bf16.mxu0 0
    %1675 = vmatpush2.bf16.xpose.msra.mxu0 0
    %1676 = vmatprep.mubr.bf16.mxu0 0
    %1677 = vmatmul.mubr.bf16.gmra.mxu0 %v1639
    %v1678 = vpop.f32.mrf.mxu0
    %v1679 = vadd.f32 0.0, %v1678
    %v1680 = vpop.f32.mrf.mxu0
    %v1681 = vpop.f32.mrf.mxu0
    %v1682 = vadd.f32 0.0, %v1681
    %v1683 = vpop.f32.mrf.mxu0
    %1684 = vdwg.mxu0
    %1685 = vrot.lane.b32.xlu0 %v635, 96
    %v1686 = vpop.permute.xlu0 %1685
    %v1688 = vsel %vm162, %v635, 0
    %v1691 = vsel %vm162, %v1686, 0
    %1693 = vmatprep.subr.bf16.mxu0 0
    %1694 = vmatpush1.bf16.xpose.msra.mxu0 0
    %1695 = vmatprep.subr.bf16.mxu0 0
    %1696 = vmatpush1.bf16.xpose.msra.mxu0 0
    %1697 = vmatprep.subr.bf16.mxu0 0
    %1698 = vmatpush1.bf16.xpose.msra.mxu0 0
    %1699 = vmatprep.subr.bf16.mxu0 0
    %1700 = vmatpush1.bf16.xpose.msra.mxu0 0
    %1701 = vmatprep.subr.bf16.mxu0 0
    %1702 = vmatpush1.bf16.xpose.msra.mxu0 0
    %1703 = vmatprep.subr.bf16.mxu0 0
    %1704 = vmatpush1.bf16.xpose.msra.mxu0 0
    %1705 = vmatprep.subr.bf16.mxu0 0
    %1706 = vmatpush1.bf16.xpose.msra.mxu0 0
    %1707 = vmatprep.subr.bf16.mxu0 0
    %1708 = vmatpush1.bf16.xpose.msra.mxu0 %v1691
    %1709 = vmatprep.subr.bf16.mxu0 0
    %1710 = vmatpush2.bf16.xpose.msra.mxu0 0
    %1711 = vmatprep.subr.bf16.mxu0 0
    %1712 = vmatpush2.bf16.xpose.msra.mxu0 0
    %1713 = vmatprep.subr.bf16.mxu0 0
    %1714 = vmatpush2.bf16.xpose.msra.mxu0 0
    %1715 = vmatprep.subr.bf16.mxu0 0
    %1716 = vmatpush2.bf16.xpose.msra.mxu0 0
    %1717 = vmatprep.subr.bf16.mxu0 0
    %1718 = vmatpush2.bf16.xpose.msra.mxu0 0
    %1719 = vmatprep.subr.bf16.mxu0 0
    %1720 = vmatpush2.bf16.xpose.msra.mxu0 0
    %1721 = vmatprep.subr.bf16.mxu0 0
    %1722 = vmatpush2.bf16.xpose.msra.mxu0 0
    %1723 = vmatprep.subr.bf16.mxu0 0
    %1724 = vmatpush2.bf16.xpose.msra.mxu0 0
    %1725 = vmatprep.mubr.bf16.mxu0 0
    %1726 = vmatmul.mubr.bf16.gmra.mxu0 %v1688
    %v1727 = vpop.f32.mrf.mxu0
    %v1728 = vadd.f32 0.0, %v1727
    %v1729 = vpop.f32.mrf.mxu0
    %v1730 = vpop.f32.mrf.mxu0
    %v1731 = vadd.f32 0.0, %v1730
    %v1732 = vpop.f32.mrf.mxu0
    %1733 = vdwg.mxu0
    %1734 = vrot.lane.b32.xlu0 %v637, 96
    %v1735 = vpop.permute.xlu0 %1734
    %v1737 = vsel %vm162, %v637, 0
    %v1740 = vsel %vm162, %v1735, 0
    %1742 = vmatprep.subr.bf16.mxu0 0
    %1743 = vmatpush1.bf16.xpose.msra.mxu0 0
    %1744 = vmatprep.subr.bf16.mxu0 0
    %1745 = vmatpush1.bf16.xpose.msra.mxu0 0
    %1746 = vmatprep.subr.bf16.mxu0 0
    %1747 = vmatpush1.bf16.xpose.msra.mxu0 0
    %1748 = vmatprep.subr.bf16.mxu0 0
    %1749 = vmatpush1.bf16.xpose.msra.mxu0 0
    %1750 = vmatprep.subr.bf16.mxu0 0
    %1751 = vmatpush1.bf16.xpose.msra.mxu0 0
    %1752 = vmatprep.subr.bf16.mxu0 0
    %1753 = vmatpush1.bf16.xpose.msra.mxu0 0
    %1754 = vmatprep.subr.bf16.mxu0 0
    %1755 = vmatpush1.bf16.xpose.msra.mxu0 0
    %1756 = vmatprep.subr.bf16.mxu0 0
    %1757 = vmatpush1.bf16.xpose.msra.mxu0 %v1740
    %1758 = vmatprep.subr.bf16.mxu0 0
    %1759 = vmatpush2.bf16.xpose.msra.mxu0 0
    %1760 = vmatprep.subr.bf16.mxu0 0
    %1761 = vmatpush2.bf16.xpose.msra.mxu0 0
    %1762 = vmatprep.subr.bf16.mxu0 0
    %1763 = vmatpush2.bf16.xpose.msra.mxu0 0
    %1764 = vmatprep.subr.bf16.mxu0 0
    %1765 = vmatpush2.bf16.xpose.msra.mxu0 0
    %1766 = vmatprep.subr.bf16.mxu0 0
    %1767 = vmatpush2.bf16.xpose.msra.mxu0 0
    %1768 = vmatprep.subr.bf16.mxu0 0
    %1769 = vmatpush2.bf16.xpose.msra.mxu0 0
    %1770 = vmatprep.subr.bf16.mxu0 0
    %1771 = vmatpush2.bf16.xpose.msra.mxu0 0
    %1772 = vmatprep.subr.bf16.mxu0 0
    %1773 = vmatpush2.bf16.xpose.msra.mxu0 0
    %1774 = vmatprep.mubr.bf16.mxu0 0
    %1775 = vmatmul.mubr.bf16.gmra.mxu0 %v1737
    %v1776 = vpop.f32.mrf.mxu0
    %v1777 = vadd.f32 0.0, %v1776
    %v1778 = vpop.f32.mrf.mxu0
    %v1779 = vpop.f32.mrf.mxu0
    %v1780 = vadd.f32 0.0, %v1779
    %v1781 = vpop.f32.mrf.mxu0
    %1782 = vdwg.mxu0
    %1783 = vrot.lane.b32.xlu0 %v639, 96
    %v1784 = vpop.permute.xlu0 %1783
    %v1786 = vsel %vm162, %v639, 0
    %v1789 = vsel %vm162, %v1784, 0
    %1791 = vmatprep.subr.bf16.mxu0 0
    %1792 = vmatpush1.bf16.xpose.msra.mxu0 0
    %1793 = vmatprep.subr.bf16.mxu0 0
    %1794 = vmatpush1.bf16.xpose.msra.mxu0 0
    %1795 = vmatprep.subr.bf16.mxu0 0
    %1796 = vmatpush1.bf16.xpose.msra.mxu0 0
    %1797 = vmatprep.subr.bf16.mxu0 0
    %1798 = vmatpush1.bf16.xpose.msra.mxu0 0
    %1799 = vmatprep.subr.bf16.mxu0 0
    %1800 = vmatpush1.bf16.xpose.msra.mxu0 0
    %1801 = vmatprep.subr.bf16.mxu0 0
    %1802 = vmatpush1.bf16.xpose.msra.mxu0 0
    %1803 = vmatprep.subr.bf16.mxu0 0
    %1804 = vmatpush1.bf16.xpose.msra.mxu0 0
    %1805 = vmatprep.subr.bf16.mxu0 0
    %1806 = vmatpush1.bf16.xpose.msra.mxu0 %v1789
    %1807 = vmatprep.subr.bf16.mxu0 0
    %1808 = vmatpush2.bf16.xpose.msra.mxu0 0
    %1809 = vmatprep.subr.bf16.mxu0 0
    %1810 = vmatpush2.bf16.xpose.msra.mxu0 0
    %1811 = vmatprep.subr.bf16.mxu0 0
    %1812 = vmatpush2.bf16.xpose.msra.mxu0 0
    %1813 = vmatprep.subr.bf16.mxu0 0
    %1814 = vmatpush2.bf16.xpose.msra.mxu0 0
    %1815 = vmatprep.subr.bf16.mxu0 0
    %1816 = vmatpush2.bf16.xpose.msra.mxu0 0
    %1817 = vmatprep.subr.bf16.mxu0 0
    %1818 = vmatpush2.bf16.xpose.msra.mxu0 0
    %1819 = vmatprep.subr.bf16.mxu0 0
    %1820 = vmatpush2.bf16.xpose.msra.mxu0 0
    %1821 = vmatprep.subr.bf16.mxu0 0
    %1822 = vmatpush2.bf16.xpose.msra.mxu0 0
    %1823 = vmatprep.mubr.bf16.mxu0 0
    %1824 = vmatmul.mubr.bf16.gmra.mxu0 %v1786
    %v1825 = vpop.f32.mrf.mxu0
    %v1826 = vadd.f32 0.0, %v1825
    %v1827 = vpop.f32.mrf.mxu0
    %v1828 = vpop.f32.mrf.mxu0
    %v1829 = vadd.f32 0.0, %v1828
    %v1830 = vpop.f32.mrf.mxu0
    %1831 = vdwg.mxu0
    %1832 = vrot.lane.b32.xlu0 %v641, 96
    %v1833 = vpop.permute.xlu0 %1832
    %v1835 = vsel %vm162, %v641, 0
    %v1838 = vsel %vm162, %v1833, 0
    %1840 = vmatprep.subr.bf16.mxu0 0
    %1841 = vmatpush1.bf16.xpose.msra.mxu0 0
    %1842 = vmatprep.subr.bf16.mxu0 0
    %1843 = vmatpush1.bf16.xpose.msra.mxu0 0
    %1844 = vmatprep.subr.bf16.mxu0 0
    %1845 = vmatpush1.bf16.xpose.msra.mxu0 0
    %1846 = vmatprep.subr.bf16.mxu0 0
    %1847 = vmatpush1.bf16.xpose.msra.mxu0 0
    %1848 = vmatprep.subr.bf16.mxu0 0
    %1849 = vmatpush1.bf16.xpose.msra.mxu0 0
    %1850 = vmatprep.subr.bf16.mxu0 0
    %1851 = vmatpush1.bf16.xpose.msra.mxu0 0
    %1852 = vmatprep.subr.bf16.mxu0 0
    %1853 = vmatpush1.bf16.xpose.msra.mxu0 0
    %1854 = vmatprep.subr.bf16.mxu0 0
    %1855 = vmatpush1.bf16.xpose.msra.mxu0 %v1838
    %1856 = vmatprep.subr.bf16.mxu0 0
    %1857 = vmatpush2.bf16.xpose.msra.mxu0 0
    %1858 = vmatprep.subr.bf16.mxu0 0
    %1859 = vmatpush2.bf16.xpose.msra.mxu0 0
    %1860 = vmatprep.subr.bf16.mxu0 0
    %1861 = vmatpush2.bf16.xpose.msra.mxu0 0
    %1862 = vmatprep.subr.bf16.mxu0 0
    %1863 = vmatpush2.bf16.xpose.msra.mxu0 0
    %1864 = vmatprep.subr.bf16.mxu0 0
    %1865 = vmatpush2.bf16.xpose.msra.mxu0 0
    %1866 = vmatprep.subr.bf16.mxu0 0
    %1867 = vmatpush2.bf16.xpose.msra.mxu0 0
    %1868 = vmatprep.subr.bf16.mxu0 0
    %1869 = vmatpush2.bf16.xpose.msra.mxu0 0
    %1870 = vmatprep.subr.bf16.mxu0 0
    %1871 = vmatpush2.bf16.xpose.msra.mxu0 0
    %1872 = vmatprep.mubr.bf16.mxu0 0
    %1873 = vmatmul.mubr.bf16.gmra.mxu0 %v1835
    %v1874 = vpop.f32.mrf.mxu0
    %v1875 = vadd.f32 0.0, %v1874
    %v1876 = vpop.f32.mrf.mxu0
    %v1877 = vpop.f32.mrf.mxu0
    %v1878 = vadd.f32 0.0, %v1877
    %v1879 = vpop.f32.mrf.mxu0
    %1880 = vdwg.mxu0
    %1881 = vrot.lane.b32.xlu0 %v643, 96
    %v1882 = vpop.permute.xlu0 %1881
    %v1884 = vsel %vm162, %v643, 0
    %v1887 = vsel %vm162, %v1882, 0
    %1889 = vmatprep.subr.bf16.mxu0 0
    %1890 = vmatpush1.bf16.xpose.msra.mxu0 0
    %1891 = vmatprep.subr.bf16.mxu0 0
    %1892 = vmatpush1.bf16.xpose.msra.mxu0 0
    %1893 = vmatprep.subr.bf16.mxu0 0
    %1894 = vmatpush1.bf16.xpose.msra.mxu0 0
    %1895 = vmatprep.subr.bf16.mxu0 0
    %1896 = vmatpush1.bf16.xpose.msra.mxu0 0
    %1897 = vmatprep.subr.bf16.mxu0 0
    %1898 = vmatpush1.bf16.xpose.msra.mxu0 0
    %1899 = vmatprep.subr.bf16.mxu0 0
    %1900 = vmatpush1.bf16.xpose.msra.mxu0 0
    %1901 = vmatprep.subr.bf16.mxu0 0
    %1902 = vmatpush1.bf16.xpose.msra.mxu0 0
    %1903 = vmatprep.subr.bf16.mxu0 0
    %1904 = vmatpush1.bf16.xpose.msra.mxu0 %v1887
    %1905 = vmatprep.subr.bf16.mxu0 0
    %1906 = vmatpush2.bf16.xpose.msra.mxu0 0
    %1907 = vmatprep.subr.bf16.mxu0 0
    %1908 = vmatpush2.bf16.xpose.msra.mxu0 0
    %1909 = vmatprep.subr.bf16.mxu0 0
    %1910 = vmatpush2.bf16.xpose.msra.mxu0 0
    %1911 = vmatprep.subr.bf16.mxu0 0
    %1912 = vmatpush2.bf16.xpose.msra.mxu0 0
    %1913 = vmatprep.subr.bf16.mxu0 0
    %1914 = vmatpush2.bf16.xpose.msra.mxu0 0
    %1915 = vmatprep.subr.bf16.mxu0 0
    %1916 = vmatpush2.bf16.xpose.msra.mxu0 0
    %1917 = vmatprep.subr.bf16.mxu0 0
    %1918 = vmatpush2.bf16.xpose.msra.mxu0 0
    %1919 = vmatprep.subr.bf16.mxu0 0
    %1920 = vmatpush2.bf16.xpose.msra.mxu0 0
    %1921 = vmatprep.mubr.bf16.mxu0 0
    %1922 = vmatmul.mubr.bf16.gmra.mxu0 %v1884
    %v1923 = vpop.f32.mrf.mxu0
    %v1924 = vadd.f32 0.0, %v1923
    %v1925 = vpop.f32.mrf.mxu0
    %v1926 = vpop.f32.mrf.mxu0
    %v1927 = vadd.f32 0.0, %v1926
    %v1928 = vpop.f32.mrf.mxu0
    %1929 = vdwg.mxu0
    %1930 = vrot.lane.b32.xlu0 %v645, 96
    %v1931 = vpop.permute.xlu0 %1930
    %v1933 = vsel %vm162, %v645, 0
    %v1936 = vsel %vm162, %v1931, 0
    %1938 = vmatprep.subr.bf16.mxu0 0
    %1939 = vmatpush1.bf16.xpose.msra.mxu0 0
    %1940 = vmatprep.subr.bf16.mxu0 0
    %1941 = vmatpush1.bf16.xpose.msra.mxu0 0
    %1942 = vmatprep.subr.bf16.mxu0 0
    %1943 = vmatpush1.bf16.xpose.msra.mxu0 0
    %1944 = vmatprep.subr.bf16.mxu0 0
    %1945 = vmatpush1.bf16.xpose.msra.mxu0 0
    %1946 = vmatprep.subr.bf16.mxu0 0
    %1947 = vmatpush1.bf16.xpose.msra.mxu0 0
    %1948 = vmatprep.subr.bf16.mxu0 0
    %1949 = vmatpush1.bf16.xpose.msra.mxu0 0
    %1950 = vmatprep.subr.bf16.mxu0 0
    %1951 = vmatpush1.bf16.xpose.msra.mxu0 0
    %1952 = vmatprep.subr.bf16.mxu0 0
    %1953 = vmatpush1.bf16.xpose.msra.mxu0 %v1936
    %1954 = vmatprep.subr.bf16.mxu0 0
    %1955 = vmatpush2.bf16.xpose.msra.mxu0 0
    %1956 = vmatprep.subr.bf16.mxu0 0
    %1957 = vmatpush2.bf16.xpose.msra.mxu0 0
    %1958 = vmatprep.subr.bf16.mxu0 0
    %1959 = vmatpush2.bf16.xpose.msra.mxu0 0
    %1960 = vmatprep.subr.bf16.mxu0 0
    %1961 = vmatpush2.bf16.xpose.msra.mxu0 0
    %1962 = vmatprep.subr.bf16.mxu0 0
    %1963 = vmatpush2.bf16.xpose.msra.mxu0 0
    %1964 = vmatprep.subr.bf16.mxu0 0
    %1965 = vmatpush2.bf16.xpose.msra.mxu0 0
    %1966 = vmatprep.subr.bf16.mxu0 0
    %1967 = vmatpush2.bf16.xpose.msra.mxu0 0
    %1968 = vmatprep.subr.bf16.mxu0 0
    %1969 = vmatpush2.bf16.xpose.msra.mxu0 0
    %1970 = vmatprep.mubr.bf16.mxu0 0
    %1971 = vmatmul.mubr.bf16.gmra.mxu0 %v1933
    %v1972 = vpop.f32.mrf.mxu0
    %v1973 = vadd.f32 0.0, %v1972
    %v1974 = vpop.f32.mrf.mxu0
    %v1975 = vpop.f32.mrf.mxu0
    %v1976 = vadd.f32 0.0, %v1975
    %v1977 = vpop.f32.mrf.mxu0
    %1978 = vdwg.mxu0
    %1979 = vrot.lane.b32.xlu0 %v647, 96
    %v1980 = vpop.permute.xlu0 %1979
    %v1982 = vsel %vm162, %v647, 0
    %v1985 = vsel %vm162, %v1980, 0
    %1987 = vmatprep.subr.bf16.mxu0 0
    %1988 = vmatpush1.bf16.xpose.msra.mxu0 0
    %1989 = vmatprep.subr.bf16.mxu0 0
    %1990 = vmatpush1.bf16.xpose.msra.mxu0 0
    %1991 = vmatprep.subr.bf16.mxu0 0
    %1992 = vmatpush1.bf16.xpose.msra.mxu0 0
    %1993 = vmatprep.subr.bf16.mxu0 0
    %1994 = vmatpush1.bf16.xpose.msra.mxu0 0
    %1995 = vmatprep.subr.bf16.mxu0 0
    %1996 = vmatpush1.bf16.xpose.msra.mxu0 0
    %1997 = vmatprep.subr.bf16.mxu0 0
    %1998 = vmatpush1.bf16.xpose.msra.mxu0 0
    %1999 = vmatprep.subr.bf16.mxu0 0
    %2000 = vmatpush1.bf16.xpose.msra.mxu0 0
    %2001 = vmatprep.subr.bf16.mxu0 0
    %2002 = vmatpush1.bf16.xpose.msra.mxu0 %v1985
    %2003 = vmatprep.subr.bf16.mxu0 0
    %2004 = vmatpush2.bf16.xpose.msra.mxu0 0
    %2005 = vmatprep.subr.bf16.mxu0 0
    %2006 = vmatpush2.bf16.xpose.msra.mxu0 0
    %2007 = vmatprep.subr.bf16.mxu0 0
    %2008 = vmatpush2.bf16.xpose.msra.mxu0 0
    %2009 = vmatprep.subr.bf16.mxu0 0
    %2010 = vmatpush2.bf16.xpose.msra.mxu0 0
    %2011 = vmatprep.subr.bf16.mxu0 0
    %2012 = vmatpush2.bf16.xpose.msra.mxu0 0
    %2013 = vmatprep.subr.bf16.mxu0 0
    %2014 = vmatpush2.bf16.xpose.msra.mxu0 0
    %2015 = vmatprep.subr.bf16.mxu0 0
    %2016 = vmatpush2.bf16.xpose.msra.mxu0 0
    %2017 = vmatprep.subr.bf16.mxu0 0
    %2018 = vmatpush2.bf16.xpose.msra.mxu0 0
    %2019 = vmatprep.mubr.bf16.mxu0 0
    %2020 = vmatmul.mubr.bf16.gmra.mxu0 %v1982
    %v2021 = vpop.f32.mrf.mxu0
    %v2022 = vadd.f32 0.0, %v2021
    %v2023 = vpop.f32.mrf.mxu0
    %v2024 = vpop.f32.mrf.mxu0
    %v2025 = vadd.f32 0.0, %v2024
    %v2026 = vpop.f32.mrf.mxu0
    %2027 = vdwg.mxu0
    %2028 = vrot.lane.b32.xlu0 %v649, 96
    %v2029 = vpop.permute.xlu0 %2028
    %v2031 = vsel %vm162, %v649, 0
    %v2034 = vsel %vm162, %v2029, 0
    %2036 = vmatprep.subr.bf16.mxu0 0
    %2037 = vmatpush1.bf16.xpose.msra.mxu0 0
    %2038 = vmatprep.subr.bf16.mxu0 0
    %2039 = vmatpush1.bf16.xpose.msra.mxu0 0
    %2040 = vmatprep.subr.bf16.mxu0 0
    %2041 = vmatpush1.bf16.xpose.msra.mxu0 0
    %2042 = vmatprep.subr.bf16.mxu0 0
    %2043 = vmatpush1.bf16.xpose.msra.mxu0 0
    %2044 = vmatprep.subr.bf16.mxu0 0
    %2045 = vmatpush1.bf16.xpose.msra.mxu0 0
    %2046 = vmatprep.subr.bf16.mxu0 0
    %2047 = vmatpush1.bf16.xpose.msra.mxu0 0
    %2048 = vmatprep.subr.bf16.mxu0 0
    %2049 = vmatpush1.bf16.xpose.msra.mxu0 0
    %2050 = vmatprep.subr.bf16.mxu0 0
    %2051 = vmatpush1.bf16.xpose.msra.mxu0 %v2034
    %2052 = vmatprep.subr.bf16.mxu0 0
    %2053 = vmatpush2.bf16.xpose.msra.mxu0 0
    %2054 = vmatprep.subr.bf16.mxu0 0
    %2055 = vmatpush2.bf16.xpose.msra.mxu0 0
    %2056 = vmatprep.subr.bf16.mxu0 0
    %2057 = vmatpush2.bf16.xpose.msra.mxu0 0
    %2058 = vmatprep.subr.bf16.mxu0 0
    %2059 = vmatpush2.bf16.xpose.msra.mxu0 0
    %2060 = vmatprep.subr.bf16.mxu0 0
    %2061 = vmatpush2.bf16.xpose.msra.mxu0 0
    %2062 = vmatprep.subr.bf16.mxu0 0
    %2063 = vmatpush2.bf16.xpose.msra.mxu0 0
    %2064 = vmatprep.subr.bf16.mxu0 0
    %2065 = vmatpush2.bf16.xpose.msra.mxu0 0
    %2066 = vmatprep.subr.bf16.mxu0 0
    %2067 = vmatpush2.bf16.xpose.msra.mxu0 0
    %2068 = vmatprep.mubr.bf16.mxu0 0
    %2069 = vmatmul.mubr.bf16.gmra.mxu0 %v2031
    %v2070 = vpop.f32.mrf.mxu0
    %v2071 = vadd.f32 0.0, %v2070
    %v2072 = vpop.f32.mrf.mxu0
    %v2073 = vpop.f32.mrf.mxu0
    %v2074 = vadd.f32 0.0, %v2073
    %v2075 = vpop.f32.mrf.mxu0
    %2076 = vdwg.mxu0
    %2077 = vrot.lane.b32.xlu0 %v651, 96
    %v2078 = vpop.permute.xlu0 %2077
    %v2080 = vsel %vm162, %v651, 0
    %v2083 = vsel %vm162, %v2078, 0
    %2085 = vmatprep.subr.bf16.mxu0 0
    %2086 = vmatpush1.bf16.xpose.msra.mxu0 0
    %2087 = vmatprep.subr.bf16.mxu0 0
    %2088 = vmatpush1.bf16.xpose.msra.mxu0 0
    %2089 = vmatprep.subr.bf16.mxu0 0
    %2090 = vmatpush1.bf16.xpose.msra.mxu0 0
    %2091 = vmatprep.subr.bf16.mxu0 0
    %2092 = vmatpush1.bf16.xpose.msra.mxu0 0
    %2093 = vmatprep.subr.bf16.mxu0 0
    %2094 = vmatpush1.bf16.xpose.msra.mxu0 0
    %2095 = vmatprep.subr.bf16.mxu0 0
    %2096 = vmatpush1.bf16.xpose.msra.mxu0 0
    %2097 = vmatprep.subr.bf16.mxu0 0
    %2098 = vmatpush1.bf16.xpose.msra.mxu0 0
    %2099 = vmatprep.subr.bf16.mxu0 0
    %2100 = vmatpush1.bf16.xpose.msra.mxu0 %v2083
    %2101 = vmatprep.subr.bf16.mxu0 0
    %2102 = vmatpush2.bf16.xpose.msra.mxu0 0
    %2103 = vmatprep.subr.bf16.mxu0 0
    %2104 = vmatpush2.bf16.xpose.msra.mxu0 0
    %2105 = vmatprep.subr.bf16.mxu0 0
    %2106 = vmatpush2.bf16.xpose.msra.mxu0 0
    %2107 = vmatprep.subr.bf16.mxu0 0
    %2108 = vmatpush2.bf16.xpose.msra.mxu0 0
    %2109 = vmatprep.subr.bf16.mxu0 0
    %2110 = vmatpush2.bf16.xpose.msra.mxu0 0
    %2111 = vmatprep.subr.bf16.mxu0 0
    %2112 = vmatpush2.bf16.xpose.msra.mxu0 0
    %2113 = vmatprep.subr.bf16.mxu0 0
    %2114 = vmatpush2.bf16.xpose.msra.mxu0 0
    %2115 = vmatprep.subr.bf16.mxu0 0
    %2116 = vmatpush2.bf16.xpose.msra.mxu0 0
    %2117 = vmatprep.mubr.bf16.mxu0 0
    %2118 = vmatmul.mubr.bf16.gmra.mxu0 %v2080
    %v2119 = vpop.f32.mrf.mxu0
    %v2120 = vadd.f32 0.0, %v2119
    %v2121 = vpop.f32.mrf.mxu0
    %v2122 = vpop.f32.mrf.mxu0
    %v2123 = vadd.f32 0.0, %v2122
    %v2124 = vpop.f32.mrf.mxu0
    %2125 = vdwg.mxu0
    %2126 = vrot.lane.b32.xlu0 %v653, 96
    %v2127 = vpop.permute.xlu0 %2126
    %v2129 = vsel %vm162, %v653, 0
    %v2132 = vsel %vm162, %v2127, 0
    %2134 = vmatprep.subr.bf16.mxu0 0
    %2135 = vmatpush1.bf16.xpose.msra.mxu0 0
    %2136 = vmatprep.subr.bf16.mxu0 0
    %2137 = vmatpush1.bf16.xpose.msra.mxu0 0
    %2138 = vmatprep.subr.bf16.mxu0 0
    %2139 = vmatpush1.bf16.xpose.msra.mxu0 0
    %2140 = vmatprep.subr.bf16.mxu0 0
    %2141 = vmatpush1.bf16.xpose.msra.mxu0 0
    %2142 = vmatprep.subr.bf16.mxu0 0
    %2143 = vmatpush1.bf16.xpose.msra.mxu0 0
    %2144 = vmatprep.subr.bf16.mxu0 0
    %2145 = vmatpush1.bf16.xpose.msra.mxu0 0
    %2146 = vmatprep.subr.bf16.mxu0 0
    %2147 = vmatpush1.bf16.xpose.msra.mxu0 0
    %2148 = vmatprep.subr.bf16.mxu0 0
    %2149 = vmatpush1.bf16.xpose.msra.mxu0 %v2132
    %2150 = vmatprep.subr.bf16.mxu0 0
    %2151 = vmatpush2.bf16.xpose.msra.mxu0 0
    %2152 = vmatprep.subr.bf16.mxu0 0
    %2153 = vmatpush2.bf16.xpose.msra.mxu0 0
    %2154 = vmatprep.subr.bf16.mxu0 0
    %2155 = vmatpush2.bf16.xpose.msra.mxu0 0
    %2156 = vmatprep.subr.bf16.mxu0 0
    %2157 = vmatpush2.bf16.xpose.msra.mxu0 0
    %2158 = vmatprep.subr.bf16.mxu0 0
    %2159 = vmatpush2.bf16.xpose.msra.mxu0 0
    %2160 = vmatprep.subr.bf16.mxu0 0
    %2161 = vmatpush2.bf16.xpose.msra.mxu0 0
    %2162 = vmatprep.subr.bf16.mxu0 0
    %2163 = vmatpush2.bf16.xpose.msra.mxu0 0
    %2164 = vmatprep.subr.bf16.mxu0 0
    %2165 = vmatpush2.bf16.xpose.msra.mxu0 0
    %2166 = vmatprep.mubr.bf16.mxu0 0
    %2167 = vmatmul.mubr.bf16.gmra.mxu0 %v2129
    %v2168 = vpop.f32.mrf.mxu0
    %v2169 = vadd.f32 0.0, %v2168
    %v2170 = vpop.f32.mrf.mxu0
    %v2171 = vpop.f32.mrf.mxu0
    %v2172 = vadd.f32 0.0, %v2171
    %v2173 = vpop.f32.mrf.mxu0
    %2174 = vdwg.mxu0
    %2175 = vrot.lane.b32.xlu0 %v655, 96
    %v2176 = vpop.permute.xlu0 %2175
    %v2178 = vsel %vm162, %v655, 0
    %v2181 = vsel %vm162, %v2176, 0
    %2183 = vmatprep.subr.bf16.mxu0 0
    %2184 = vmatpush1.bf16.xpose.msra.mxu0 0
    %2185 = vmatprep.subr.bf16.mxu0 0
    %2186 = vmatpush1.bf16.xpose.msra.mxu0 0
    %2187 = vmatprep.subr.bf16.mxu0 0
    %2188 = vmatpush1.bf16.xpose.msra.mxu0 0
    %2189 = vmatprep.subr.bf16.mxu0 0
    %2190 = vmatpush1.bf16.xpose.msra.mxu0 0
    %2191 = vmatprep.subr.bf16.mxu0 0
    %2192 = vmatpush1.bf16.xpose.msra.mxu0 0
    %2193 = vmatprep.subr.bf16.mxu0 0
    %2194 = vmatpush1.bf16.xpose.msra.mxu0 0
    %2195 = vmatprep.subr.bf16.mxu0 0
    %2196 = vmatpush1.bf16.xpose.msra.mxu0 0
    %2197 = vmatprep.subr.bf16.mxu0 0
    %2198 = vmatpush1.bf16.xpose.msra.mxu0 %v2181
    %2199 = vmatprep.subr.bf16.mxu0 0
    %2200 = vmatpush2.bf16.xpose.msra.mxu0 0
    %2201 = vmatprep.subr.bf16.mxu0 0
    %2202 = vmatpush2.bf16.xpose.msra.mxu0 0
    %2203 = vmatprep.subr.bf16.mxu0 0
    %2204 = vmatpush2.bf16.xpose.msra.mxu0 0
    %2205 = vmatprep.subr.bf16.mxu0 0
    %2206 = vmatpush2.bf16.xpose.msra.mxu0 0
    %2207 = vmatprep.subr.bf16.mxu0 0
    %2208 = vmatpush2.bf16.xpose.msra.mxu0 0
    %2209 = vmatprep.subr.bf16.mxu0 0
    %2210 = vmatpush2.bf16.xpose.msra.mxu0 0
    %2211 = vmatprep.subr.bf16.mxu0 0
    %2212 = vmatpush2.bf16.xpose.msra.mxu0 0
    %2213 = vmatprep.subr.bf16.mxu0 0
    %2214 = vmatpush2.bf16.xpose.msra.mxu0 0
    %2215 = vmatprep.mubr.bf16.mxu0 0
    %2216 = vmatmul.mubr.bf16.gmra.mxu0 %v2178
    %v2217 = vpop.f32.mrf.mxu0
    %v2218 = vadd.f32 0.0, %v2217
    %v2219 = vpop.f32.mrf.mxu0
    %v2220 = vpop.f32.mrf.mxu0
    %v2221 = vadd.f32 0.0, %v2220
    %v2222 = vpop.f32.mrf.mxu0
    %2223 = vdwg.mxu0
    %vm2224 = vcmask 130048
    %v2225 = vsel %vm2224, %v699, -inf
    %2226 = vmax.xlane.f32.xlu0 %v2225
    %v2227 = vpop.xlane.xlu0 %2226
    %v2228 = vsel %vm2224, %v702, -inf
    %2229 = vmax.xlane.f32.xlu0 %v2228
    %v2230 = vpop.xlane.xlu0 %2229
    %v2231 = vsel %vm2224, %v748, -inf
    %2232 = vmax.xlane.f32.xlu0 %v2231
    %v2233 = vpop.xlane.xlu0 %2232
    %v2234 = vsel %vm2224, %v751, -inf
    %2235 = vmax.xlane.f32.xlu0 %v2234
    %v2236 = vpop.xlane.xlu0 %2235
    %v2237 = vsel %vm2224, %v797, -inf
    %2238 = vmax.xlane.f32.xlu0 %v2237
    %v2239 = vpop.xlane.xlu0 %2238
    %v2240 = vsel %vm2224, %v800, -inf
    %2241 = vmax.xlane.f32.xlu0 %v2240
    %v2242 = vpop.xlane.xlu0 %2241
    %v2243 = vsel %vm2224, %v846, -inf
    %2244 = vmax.xlane.f32.xlu0 %v2243
    %v2245 = vpop.xlane.xlu0 %2244
    %v2246 = vsel %vm2224, %v849, -inf
    %2247 = vmax.xlane.f32.xlu0 %v2246
    %v2248 = vpop.xlane.xlu0 %2247
    %v2249 = vsel %vm2224, %v895, -inf
    %2250 = vmax.xlane.f32.xlu0 %v2249
    %v2251 = vpop.xlane.xlu0 %2250
    %v2252 = vsel %vm2224, %v898, -inf
    %2253 = vmax.xlane.f32.xlu0 %v2252
    %v2254 = vpop.xlane.xlu0 %2253
    %v2255 = vsel %vm2224, %v944, -inf
    %2256 = vmax.xlane.f32.xlu0 %v2255
    %v2257 = vpop.xlane.xlu0 %2256
    %v2258 = vsel %vm2224, %v947, -inf
    %2259 = vmax.xlane.f32.xlu0 %v2258
    %v2260 = vpop.xlane.xlu0 %2259
    %v2261 = vsel %vm2224, %v993, -inf
    %2262 = vmax.xlane.f32.xlu0 %v2261
    %v2263 = vpop.xlane.xlu0 %2262
    %v2264 = vsel %vm2224, %v996, -inf
    %2265 = vmax.xlane.f32.xlu0 %v2264
    %v2266 = vpop.xlane.xlu0 %2265
    %v2267 = vsel %vm2224, %v1042, -inf
    %2268 = vmax.xlane.f32.xlu0 %v2267
    %v2269 = vpop.xlane.xlu0 %2268
    %v2270 = vsel %vm2224, %v1045, -inf
    %2271 = vmax.xlane.f32.xlu0 %v2270
    %v2272 = vpop.xlane.xlu0 %2271
    %v2273 = vsel %vm2224, %v1091, -inf
    %2274 = vmax.xlane.f32.xlu0 %v2273
    %v2275 = vpop.xlane.xlu0 %2274
    %v2276 = vsel %vm2224, %v1094, -inf
    %2277 = vmax.xlane.f32.xlu0 %v2276
    %v2278 = vpop.xlane.xlu0 %2277
    %v2279 = vsel %vm2224, %v1140, -inf
    %2280 = vmax.xlane.f32.xlu0 %v2279
    %v2281 = vpop.xlane.xlu0 %2280
    %v2282 = vsel %vm2224, %v1143, -inf
    %2283 = vmax.xlane.f32.xlu0 %v2282
    %v2284 = vpop.xlane.xlu0 %2283
    %v2285 = vsel %vm2224, %v1189, -inf
    %2286 = vmax.xlane.f32.xlu0 %v2285
    %v2287 = vpop.xlane.xlu0 %2286
    %v2288 = vsel %vm2224, %v1192, -inf
    %2289 = vmax.xlane.f32.xlu0 %v2288
    %v2290 = vpop.xlane.xlu0 %2289
    %v2291 = vsel %vm2224, %v1238, -inf
    %2292 = vmax.xlane.f32.xlu0 %v2291
    %v2293 = vpop.xlane.xlu0 %2292
    %v2294 = vsel %vm2224, %v1241, -inf
    %2295 = vmax.xlane.f32.xlu0 %v2294
    %v2296 = vpop.xlane.xlu0 %2295
    %v2297 = vsel %vm2224, %v1287, -inf
    %2298 = vmax.xlane.f32.xlu0 %v2297
    %v2299 = vpop.xlane.xlu0 %2298
    %v2300 = vsel %vm2224, %v1290, -inf
    %2301 = vmax.xlane.f32.xlu0 %v2300
    %v2302 = vpop.xlane.xlu0 %2301
    %v2303 = vsel %vm2224, %v1336, -inf
    %2304 = vmax.xlane.f32.xlu0 %v2303
    %v2305 = vpop.xlane.xlu0 %2304
    %v2306 = vsel %vm2224, %v1339, -inf
    %2307 = vmax.xlane.f32.xlu0 %v2306
    %v2308 = vpop.xlane.xlu0 %2307
    %v2309 = vsel %vm2224, %v1385, -inf
    %2310 = vmax.xlane.f32.xlu0 %v2309
    %v2311 = vpop.xlane.xlu0 %2310
    %v2312 = vsel %vm2224, %v1388, -inf
    %2313 = vmax.xlane.f32.xlu0 %v2312
    %v2314 = vpop.xlane.xlu0 %2313
    %v2315 = vsel %vm2224, %v1434, -inf
    %2316 = vmax.xlane.f32.xlu0 %v2315
    %v2317 = vpop.xlane.xlu0 %2316
    %v2318 = vsel %vm2224, %v1437, -inf
    %2319 = vmax.xlane.f32.xlu0 %v2318
    %v2320 = vpop.xlane.xlu0 %2319
    %v2321 = vsel %vm2224, %v1483, -inf
    %2322 = vmax.xlane.f32.xlu0 %v2321
    %v2323 = vpop.xlane.xlu0 %2322
    %v2324 = vsel %vm2224, %v1486, -inf
    %2325 = vmax.xlane.f32.xlu0 %v2324
    %v2326 = vpop.xlane.xlu0 %2325
    %v2327 = vsel %vm2224, %v1532, -inf
    %2328 = vmax.xlane.f32.xlu0 %v2327
    %v2329 = vpop.xlane.xlu0 %2328
    %v2330 = vsel %vm2224, %v1535, -inf
    %2331 = vmax.xlane.f32.xlu0 %v2330
    %v2332 = vpop.xlane.xlu0 %2331
    %v2333 = vsel %vm2224, %v1581, -inf
    %2334 = vmax.xlane.f32.xlu0 %v2333
    %v2335 = vpop.xlane.xlu0 %2334
    %v2336 = vsel %vm2224, %v1584, -inf
    %2337 = vmax.xlane.f32.xlu0 %v2336
    %v2338 = vpop.xlane.xlu0 %2337
    %v2339 = vsel %vm2224, %v1630, -inf
    %2340 = vmax.xlane.f32.xlu0 %v2339
    %v2341 = vpop.xlane.xlu0 %2340
    %v2342 = vsel %vm2224, %v1633, -inf
    %2343 = vmax.xlane.f32.xlu0 %v2342
    %v2344 = vpop.xlane.xlu0 %2343
    %v2345 = vsel %vm2224, %v1679, -inf
    %2346 = vmax.xlane.f32.xlu0 %v2345
    %v2347 = vpop.xlane.xlu0 %2346
    %v2348 = vsel %vm2224, %v1682, -inf
    %2349 = vmax.xlane.f32.xlu0 %v2348
    %v2350 = vpop.xlane.xlu0 %2349
    %v2351 = vsel %vm2224, %v1728, -inf
    %2352 = vmax.xlane.f32.xlu0 %v2351
    %v2353 = vpop.xlane.xlu0 %2352
    %v2354 = vsel %vm2224, %v1731, -inf
    %2355 = vmax.xlane.f32.xlu0 %v2354
    %v2356 = vpop.xlane.xlu0 %2355
    %v2357 = vsel %vm2224, %v1777, -inf
    %2358 = vmax.xlane.f32.xlu0 %v2357
    %v2359 = vpop.xlane.xlu0 %2358
    %v2360 = vsel %vm2224, %v1780, -inf
    %2361 = vmax.xlane.f32.xlu0 %v2360
    %v2362 = vpop.xlane.xlu0 %2361
    %v2363 = vsel %vm2224, %v1826, -inf
    %2364 = vmax.xlane.f32.xlu0 %v2363
    %v2365 = vpop.xlane.xlu0 %2364
    %v2366 = vsel %vm2224, %v1829, -inf
    %2367 = vmax.xlane.f32.xlu0 %v2366
    %v2368 = vpop.xlane.xlu0 %2367
    %v2369 = vsel %vm2224, %v1875, -inf
    %2370 = vmax.xlane.f32.xlu0 %v2369
    %v2371 = vpop.xlane.xlu0 %2370
    %v2372 = vsel %vm2224, %v1878, -inf
    %2373 = vmax.xlane.f32.xlu0 %v2372
    %v2374 = vpop.xlane.xlu0 %2373
    %v2375 = vsel %vm2224, %v1924, -inf
    %2376 = vmax.xlane.f32.xlu0 %v2375
    %v2377 = vpop.xlane.xlu0 %2376
    %v2378 = vsel %vm2224, %v1927, -inf
    %2379 = vmax.xlane.f32.xlu0 %v2378
    %v2380 = vpop.xlane.xlu0 %2379
    %v2381 = vsel %vm2224, %v1973, -inf
    %2382 = vmax.xlane.f32.xlu0 %v2381
    %v2383 = vpop.xlane.xlu0 %2382
    %v2384 = vsel %vm2224, %v1976, -inf
    %2385 = vmax.xlane.f32.xlu0 %v2384
    %v2386 = vpop.xlane.xlu0 %2385
    %v2387 = vsel %vm2224, %v2022, -inf
    %2388 = vmax.xlane.f32.xlu0 %v2387
    %v2389 = vpop.xlane.xlu0 %2388
    %v2390 = vsel %vm2224, %v2025, -inf
    %2391 = vmax.xlane.f32.xlu0 %v2390
    %v2392 = vpop.xlane.xlu0 %2391
    %v2393 = vsel %vm2224, %v2071, -inf
    %2394 = vmax.xlane.f32.xlu0 %v2393
    %v2395 = vpop.xlane.xlu0 %2394
    %v2396 = vsel %vm2224, %v2074, -inf
    %2397 = vmax.xlane.f32.xlu0 %v2396
    %v2398 = vpop.xlane.xlu0 %2397
    %v2399 = vsel %vm2224, %v2120, -inf
    %2400 = vmax.xlane.f32.xlu0 %v2399
    %v2401 = vpop.xlane.xlu0 %2400
    %v2402 = vsel %vm2224, %v2123, -inf
    %2403 = vmax.xlane.f32.xlu0 %v2402
    %v2404 = vpop.xlane.xlu0 %2403
    %v2405 = vsel %vm2224, %v2169, -inf
    %2406 = vmax.xlane.f32.xlu0 %v2405
    %v2407 = vpop.xlane.xlu0 %2406
    %v2408 = vsel %vm2224, %v2172, -inf
    %2409 = vmax.xlane.f32.xlu0 %v2408
    %v2410 = vpop.xlane.xlu0 %2409
    %v2411 = vsel %vm2224, %v2218, -inf
    %2412 = vmax.xlane.f32.xlu0 %v2411
    %v2413 = vpop.xlane.xlu0 %2412
    %v2414 = vsel %vm2224, %v2221, -inf
    %2415 = vmax.xlane.f32.xlu0 %v2414
    %v2416 = vpop.xlane.xlu0 %2415
    %v2417 = vsub.f32 %v699, %v2227
    %v2418 = vsub.f32 %v702, %v2230
    %v2419 = vsub.f32 %v748, %v2233
    %v2420 = vsub.f32 %v751, %v2236
    %v2421 = vsub.f32 %v797, %v2239
    %v2422 = vsub.f32 %v800, %v2242
    %v2423 = vsub.f32 %v846, %v2245
    %v2424 = vsub.f32 %v849, %v2248
    %v2425 = vsub.f32 %v895, %v2251
    %v2426 = vsub.f32 %v898, %v2254
    %v2427 = vsub.f32 %v944, %v2257
    %v2428 = vsub.f32 %v947, %v2260
    %v2429 = vsub.f32 %v993, %v2263
    %v2430 = vsub.f32 %v996, %v2266
    %v2431 = vsub.f32 %v1042, %v2269
    %v2432 = vsub.f32 %v1045, %v2272
    %v2433 = vsub.f32 %v1091, %v2275
    %v2434 = vsub.f32 %v1094, %v2278
    %v2435 = vsub.f32 %v1140, %v2281
    %v2436 = vsub.f32 %v1143, %v2284
    %v2437 = vsub.f32 %v1189, %v2287
    %v2438 = vsub.f32 %v1192, %v2290
    %v2439 = vsub.f32 %v1238, %v2293
    %v2440 = vsub.f32 %v1241, %v2296
    %v2441 = vsub.f32 %v1287, %v2299
    %v2442 = vsub.f32 %v1290, %v2302
    %v2443 = vsub.f32 %v1336, %v2305
    %v2444 = vsub.f32 %v1339, %v2308
    %v2445 = vsub.f32 %v1385, %v2311
    %v2446 = vsub.f32 %v1388, %v2314
    %v2447 = vsub.f32 %v1434, %v2317
    %v2448 = vsub.f32 %v1437, %v2320
    %v2449 = vsub.f32 %v1483, %v2323
    %v2450 = vsub.f32 %v1486, %v2326
    %v2451 = vsub.f32 %v1532, %v2329
    %v2452 = vsub.f32 %v1535, %v2332
    %v2453 = vsub.f32 %v1581, %v2335
    %v2454 = vsub.f32 %v1584, %v2338
    %v2455 = vsub.f32 %v1630, %v2341
    %v2456 = vsub.f32 %v1633, %v2344
    %v2457 = vsub.f32 %v1679, %v2347
    %v2458 = vsub.f32 %v1682, %v2350
    %v2459 = vsub.f32 %v1728, %v2353
    %v2460 = vsub.f32 %v1731, %v2356
    %v2461 = vsub.f32 %v1777, %v2359
    %v2462 = vsub.f32 %v1780, %v2362
    %v2463 = vsub.f32 %v1826, %v2365
    %v2464 = vsub.f32 %v1829, %v2368
    %v2465 = vsub.f32 %v1875, %v2371
    %v2466 = vsub.f32 %v1878, %v2374
    %v2467 = vsub.f32 %v1924, %v2377
    %v2468 = vsub.f32 %v1927, %v2380
    %v2469 = vsub.f32 %v1973, %v2383
    %v2470 = vsub.f32 %v1976, %v2386
    %v2471 = vsub.f32 %v2022, %v2389
    %v2472 = vsub.f32 %v2025, %v2392
    %v2473 = vsub.f32 %v2071, %v2395
    %v2474 = vsub.f32 %v2074, %v2398
    %v2475 = vsub.f32 %v2120, %v2401
    %v2476 = vsub.f32 %v2123, %v2404
    %v2477 = vsub.f32 %v2169, %v2407
    %v2478 = vsub.f32 %v2172, %v2410
    %v2479 = vsub.f32 %v2218, %v2413
    %v2480 = vsub.f32 %v2221, %v2416
    %v2481 = vmul.f32 %v2417, 1.442695
    %v2482 = vpow.pop %v2481
    %v2483 = vmul.f32 %v2418, 1.442695
    %v2484 = vpow.pop %v2483
    %v2485 = vmul.f32 %v2419, 1.442695
    %v2486 = vpow.pop %v2485
    %v2487 = vmul.f32 %v2420, 1.442695
    %v2488 = vpow.pop %v2487
    %v2489 = vmul.f32 %v2421, 1.442695
    %v2490 = vpow.pop %v2489
    %v2491 = vmul.f32 %v2422, 1.442695
    %v2492 = vpow.pop %v2491
    %v2493 = vmul.f32 %v2423, 1.442695
    %v2494 = vpow.pop %v2493
    %v2495 = vmul.f32 %v2424, 1.442695
    %v2496 = vpow.pop %v2495
    %v2497 = vmul.f32 %v2425, 1.442695
    %v2498 = vpow.pop %v2497
    %v2499 = vmul.f32 %v2426, 1.442695
    %v2500 = vpow.pop %v2499
    %v2501 = vmul.f32 %v2427, 1.442695
    %v2502 = vpow.pop %v2501
    %v2503 = vmul.f32 %v2428, 1.442695
    %v2504 = vpow.pop %v2503
    %v2505 = vmul.f32 %v2429, 1.442695
    %v2506 = vpow.pop %v2505
    %v2507 = vmul.f32 %v2430, 1.442695
    %v2508 = vpow.pop %v2507
    %v2509 = vmul.f32 %v2431, 1.442695
    %v2510 = vpow.pop %v2509
    %v2511 = vmul.f32 %v2432, 1.442695
    %v2512 = vpow.pop %v2511
    %v2513 = vmul.f32 %v2433, 1.442695
    %v2514 = vpow.pop %v2513
    %v2515 = vmul.f32 %v2434, 1.442695
    %v2516 = vpow.pop %v2515
    %v2517 = vmul.f32 %v2435, 1.442695
    %v2518 = vpow.pop %v2517
    %v2519 = vmul.f32 %v2436, 1.442695
    %v2520 = vpow.pop %v2519
    %v2521 = vmul.f32 %v2437, 1.442695
    %v2522 = vpow.pop %v2521
    %v2523 = vmul.f32 %v2438, 1.442695
    %v2524 = vpow.pop %v2523
    %v2525 = vmul.f32 %v2439, 1.442695
    %v2526 = vpow.pop %v2525
    %v2527 = vmul.f32 %v2440, 1.442695
    %v2528 = vpow.pop %v2527
    %v2529 = vmul.f32 %v2441, 1.442695
    %v2530 = vpow.pop %v2529
    %v2531 = vmul.f32 %v2442, 1.442695
    %v2532 = vpow.pop %v2531
    %v2533 = vmul.f32 %v2443, 1.442695
    %v2534 = vpow.pop %v2533
    %v2535 = vmul.f32 %v2444, 1.442695
    %v2536 = vpow.pop %v2535
    %v2537 = vmul.f32 %v2445, 1.442695
    %v2538 = vpow.pop %v2537
    %v2539 = vmul.f32 %v2446, 1.442695
    %v2540 = vpow.pop %v2539
    %v2541 = vmul.f32 %v2447, 1.442695
    %v2542 = vpow.pop %v2541
    %v2543 = vmul.f32 %v2448, 1.442695
    %v2544 = vpow.pop %v2543
    %v2545 = vmul.f32 %v2449, 1.442695
    %v2546 = vpow.pop %v2545
    %v2547 = vmul.f32 %v2450, 1.442695
    %v2548 = vpow.pop %v2547
    %v2549 = vmul.f32 %v2451, 1.442695
    %v2550 = vpow.pop %v2549
    %v2551 = vmul.f32 %v2452, 1.442695
    %v2552 = vpow.pop %v2551
    %v2553 = vmul.f32 %v2453, 1.442695
    %v2554 = vpow.pop %v2553
    %v2555 = vmul.f32 %v2454, 1.442695
    %v2556 = vpow.pop %v2555
    %v2557 = vmul.f32 %v2455, 1.442695
    %v2558 = vpow.pop %v2557
    %v2559 = vmul.f32 %v2456, 1.442695
    %v2560 = vpow.pop %v2559
    %v2561 = vmul.f32 %v2457, 1.442695
    %v2562 = vpow.pop %v2561
    %v2563 = vmul.f32 %v2458, 1.442695
    %v2564 = vpow.pop %v2563
    %v2565 = vmul.f32 %v2459, 1.442695
    %v2566 = vpow.pop %v2565
    %v2567 = vmul.f32 %v2460, 1.442695
    %v2568 = vpow.pop %v2567
    %v2569 = vmul.f32 %v2461, 1.442695
    %v2570 = vpow.pop %v2569
    %v2571 = vmul.f32 %v2462, 1.442695
    %v2572 = vpow.pop %v2571
    %v2573 = vmul.f32 %v2463, 1.442695
    %v2574 = vpow.pop %v2573
    %v2575 = vmul.f32 %v2464, 1.442695
    %v2576 = vpow.pop %v2575
    %v2577 = vmul.f32 %v2465, 1.442695
    %v2578 = vpow.pop %v2577
    %v2579 = vmul.f32 %v2466, 1.442695
    %v2580 = vpow.pop %v2579
    %v2581 = vmul.f32 %v2467, 1.442695
    %v2582 = vpow.pop %v2581
    %v2583 = vmul.f32 %v2468, 1.442695
    %v2584 = vpow.pop %v2583
    %v2585 = vmul.f32 %v2469, 1.442695
    %v2586 = vpow.pop %v2585
    %v2587 = vmul.f32 %v2470, 1.442695
    %v2588 = vpow.pop %v2587
    %v2589 = vmul.f32 %v2471, 1.442695
    %v2590 = vpow.pop %v2589
    %v2591 = vmul.f32 %v2472, 1.442695
    %v2592 = vpow.pop %v2591
    %v2593 = vmul.f32 %v2473, 1.442695
    %v2594 = vpow.pop %v2593
    %v2595 = vmul.f32 %v2474, 1.442695
    %v2596 = vpow.pop %v2595
    %v2597 = vmul.f32 %v2475, 1.442695
    %v2598 = vpow.pop %v2597
    %v2599 = vmul.f32 %v2476, 1.442695
    %v2600 = vpow.pop %v2599
    %v2601 = vmul.f32 %v2477, 1.442695
    %v2602 = vpow.pop %v2601
    %v2603 = vmul.f32 %v2478, 1.442695
    %v2604 = vpow.pop %v2603
    %v2605 = vmul.f32 %v2479, 1.442695
    %v2606 = vpow.pop %v2605
    %v2607 = vmul.f32 %v2480, 1.442695
    %v2608 = vpow.pop %v2607
    %v2609 = vsel %vm2224, %v2482, 0.0
    %2610 = vadd.xlane.f32.xlu0 %v2609
    %v2611 = vpop.xlane.xlu0 %2610
    %v2612 = vsel %vm2224, %v2484, 0.0
    %2613 = vadd.xlane.f32.xlu0 %v2612
    %v2614 = vpop.xlane.xlu0 %2613
    %v2615 = vsel %vm2224, %v2486, 0.0
    %2616 = vadd.xlane.f32.xlu0 %v2615
    %v2617 = vpop.xlane.xlu0 %2616
    %v2618 = vsel %vm2224, %v2488, 0.0
    %2619 = vadd.xlane.f32.xlu0 %v2618
    %v2620 = vpop.xlane.xlu0 %2619
    %v2621 = vsel %vm2224, %v2490, 0.0
    %2622 = vadd.xlane.f32.xlu0 %v2621
    %v2623 = vpop.xlane.xlu0 %2622
    %v2624 = vsel %vm2224, %v2492, 0.0
    %2625 = vadd.xlane.f32.xlu0 %v2624
    %v2626 = vpop.xlane.xlu0 %2625
    %v2627 = vsel %vm2224, %v2494, 0.0
    %2628 = vadd.xlane.f32.xlu0 %v2627
    %v2629 = vpop.xlane.xlu0 %2628
    %v2630 = vsel %vm2224, %v2496, 0.0
    %2631 = vadd.xlane.f32.xlu0 %v2630
    %v2632 = vpop.xlane.xlu0 %2631
    %v2633 = vsel %vm2224, %v2498, 0.0
    %2634 = vadd.xlane.f32.xlu0 %v2633
    %v2635 = vpop.xlane.xlu0 %2634
    %v2636 = vsel %vm2224, %v2500, 0.0
    %2637 = vadd.xlane.f32.xlu0 %v2636
    %v2638 = vpop.xlane.xlu0 %2637
    %v2639 = vsel %vm2224, %v2502, 0.0
    %2640 = vadd.xlane.f32.xlu0 %v2639
    %v2641 = vpop.xlane.xlu0 %2640
    %v2642 = vsel %vm2224, %v2504, 0.0
    %2643 = vadd.xlane.f32.xlu0 %v2642
    %v2644 = vpop.xlane.xlu0 %2643
    %v2645 = vsel %vm2224, %v2506, 0.0
    %2646 = vadd.xlane.f32.xlu0 %v2645
    %v2647 = vpop.xlane.xlu0 %2646
    %v2648 = vsel %vm2224, %v2508, 0.0
    %2649 = vadd.xlane.f32.xlu0 %v2648
    %v2650 = vpop.xlane.xlu0 %2649
    %v2651 = vsel %vm2224, %v2510, 0.0
    %2652 = vadd.xlane.f32.xlu0 %v2651
    %v2653 = vpop.xlane.xlu0 %2652
    %v2654 = vsel %vm2224, %v2512, 0.0
    %2655 = vadd.xlane.f32.xlu0 %v2654
    %v2656 = vpop.xlane.xlu0 %2655
    %v2657 = vsel %vm2224, %v2514, 0.0
    %2658 = vadd.xlane.f32.xlu0 %v2657
    %v2659 = vpop.xlane.xlu0 %2658
    %v2660 = vsel %vm2224, %v2516, 0.0
    %2661 = vadd.xlane.f32.xlu0 %v2660
    %v2662 = vpop.xlane.xlu0 %2661
    %v2663 = vsel %vm2224, %v2518, 0.0
    %2664 = vadd.xlane.f32.xlu0 %v2663
    %v2665 = vpop.xlane.xlu0 %2664
    %v2666 = vsel %vm2224, %v2520, 0.0
    %2667 = vadd.xlane.f32.xlu0 %v2666
    %v2668 = vpop.xlane.xlu0 %2667
    %v2669 = vsel %vm2224, %v2522, 0.0
    %2670 = vadd.xlane.f32.xlu0 %v2669
    %v2671 = vpop.xlane.xlu0 %2670
    %v2672 = vsel %vm2224, %v2524, 0.0
    %2673 = vadd.xlane.f32.xlu0 %v2672
    %v2674 = vpop.xlane.xlu0 %2673
    %v2675 = vsel %vm2224, %v2526, 0.0
    %2676 = vadd.xlane.f32.xlu0 %v2675
    %v2677 = vpop.xlane.xlu0 %2676
    %v2678 = vsel %vm2224, %v2528, 0.0
    %2679 = vadd.xlane.f32.xlu0 %v2678
    %v2680 = vpop.xlane.xlu0 %2679
    %v2681 = vsel %vm2224, %v2530, 0.0
    %2682 = vadd.xlane.f32.xlu0 %v2681
    %v2683 = vpop.xlane.xlu0 %2682
    %v2684 = vsel %vm2224, %v2532, 0.0
    %2685 = vadd.xlane.f32.xlu0 %v2684
    %v2686 = vpop.xlane.xlu0 %2685
    %v2687 = vsel %vm2224, %v2534, 0.0
    %2688 = vadd.xlane.f32.xlu0 %v2687
    %v2689 = vpop.xlane.xlu0 %2688
    %v2690 = vsel %vm2224, %v2536, 0.0
    %2691 = vadd.xlane.f32.xlu0 %v2690
    %v2692 = vpop.xlane.xlu0 %2691
    %v2693 = vsel %vm2224, %v2538, 0.0
    %2694 = vadd.xlane.f32.xlu0 %v2693
    %v2695 = vpop.xlane.xlu0 %2694
    %v2696 = vsel %vm2224, %v2540, 0.0
    %2697 = vadd.xlane.f32.xlu0 %v2696
    %v2698 = vpop.xlane.xlu0 %2697
    %v2699 = vsel %vm2224, %v2542, 0.0
    %2700 = vadd.xlane.f32.xlu0 %v2699
    %v2701 = vpop.xlane.xlu0 %2700
    %v2702 = vsel %vm2224, %v2544, 0.0
    %2703 = vadd.xlane.f32.xlu0 %v2702
    %v2704 = vpop.xlane.xlu0 %2703
    %v2705 = vsel %vm2224, %v2546, 0.0
    %2706 = vadd.xlane.f32.xlu0 %v2705
    %v2707 = vpop.xlane.xlu0 %2706
    %v2708 = vsel %vm2224, %v2548, 0.0
    %2709 = vadd.xlane.f32.xlu0 %v2708
    %v2710 = vpop.xlane.xlu0 %2709
    %v2711 = vsel %vm2224, %v2550, 0.0
    %2712 = vadd.xlane.f32.xlu0 %v2711
    %v2713 = vpop.xlane.xlu0 %2712
    %v2714 = vsel %vm2224, %v2552, 0.0
    %2715 = vadd.xlane.f32.xlu0 %v2714
    %v2716 = vpop.xlane.xlu0 %2715
    %v2717 = vsel %vm2224, %v2554, 0.0
    %2718 = vadd.xlane.f32.xlu0 %v2717
    %v2719 = vpop.xlane.xlu0 %2718
    %v2720 = vsel %vm2224, %v2556, 0.0
    %2721 = vadd.xlane.f32.xlu0 %v2720
    %v2722 = vpop.xlane.xlu0 %2721
    %v2723 = vsel %vm2224, %v2558, 0.0
    %2724 = vadd.xlane.f32.xlu0 %v2723
    %v2725 = vpop.xlane.xlu0 %2724
    %v2726 = vsel %vm2224, %v2560, 0.0
    %2727 = vadd.xlane.f32.xlu0 %v2726
    %v2728 = vpop.xlane.xlu0 %2727
    %v2729 = vsel %vm2224, %v2562, 0.0
    %2730 = vadd.xlane.f32.xlu0 %v2729
    %v2731 = vpop.xlane.xlu0 %2730
    %v2732 = vsel %vm2224, %v2564, 0.0
    %2733 = vadd.xlane.f32.xlu0 %v2732
    %v2734 = vpop.xlane.xlu0 %2733
    %v2735 = vsel %vm2224, %v2566, 0.0
    %2736 = vadd.xlane.f32.xlu0 %v2735
    %v2737 = vpop.xlane.xlu0 %2736
    %v2738 = vsel %vm2224, %v2568, 0.0
    %2739 = vadd.xlane.f32.xlu0 %v2738
    %v2740 = vpop.xlane.xlu0 %2739
    %v2741 = vsel %vm2224, %v2570, 0.0
    %2742 = vadd.xlane.f32.xlu0 %v2741
    %v2743 = vpop.xlane.xlu0 %2742
    %v2744 = vsel %vm2224, %v2572, 0.0
    %2745 = vadd.xlane.f32.xlu0 %v2744
    %v2746 = vpop.xlane.xlu0 %2745
    %v2747 = vsel %vm2224, %v2574, 0.0
    %2748 = vadd.xlane.f32.xlu0 %v2747
    %v2749 = vpop.xlane.xlu0 %2748
    %v2750 = vsel %vm2224, %v2576, 0.0
    %2751 = vadd.xlane.f32.xlu0 %v2750
    %v2752 = vpop.xlane.xlu0 %2751
    %v2753 = vsel %vm2224, %v2578, 0.0
    %2754 = vadd.xlane.f32.xlu0 %v2753
    %v2755 = vpop.xlane.xlu0 %2754
    %v2756 = vsel %vm2224, %v2580, 0.0
    %2757 = vadd.xlane.f32.xlu0 %v2756
    %v2758 = vpop.xlane.xlu0 %2757
    %v2759 = vsel %vm2224, %v2582, 0.0
    %2760 = vadd.xlane.f32.xlu0 %v2759
    %v2761 = vpop.xlane.xlu0 %2760
    %v2762 = vsel %vm2224, %v2584, 0.0
    %2763 = vadd.xlane.f32.xlu0 %v2762
    %v2764 = vpop.xlane.xlu0 %2763
    %v2765 = vsel %vm2224, %v2586, 0.0
    %2766 = vadd.xlane.f32.xlu0 %v2765
    %v2767 = vpop.xlane.xlu0 %2766
    %v2768 = vsel %vm2224, %v2588, 0.0
    %2769 = vadd.xlane.f32.xlu0 %v2768
    %v2770 = vpop.xlane.xlu0 %2769
    %v2771 = vsel %vm2224, %v2590, 0.0
    %2772 = vadd.xlane.f32.xlu0 %v2771
    %v2773 = vpop.xlane.xlu0 %2772
    %v2774 = vsel %vm2224, %v2592, 0.0
    %2775 = vadd.xlane.f32.xlu0 %v2774
    %v2776 = vpop.xlane.xlu0 %2775
    %v2777 = vsel %vm2224, %v2594, 0.0
    %2778 = vadd.xlane.f32.xlu0 %v2777
    %v2779 = vpop.xlane.xlu0 %2778
    %v2780 = vsel %vm2224, %v2596, 0.0
    %2781 = vadd.xlane.f32.xlu0 %v2780
    %v2782 = vpop.xlane.xlu0 %2781
    %v2783 = vsel %vm2224, %v2598, 0.0
    %2784 = vadd.xlane.f32.xlu0 %v2783
    %v2785 = vpop.xlane.xlu0 %2784
    %v2786 = vsel %vm2224, %v2600, 0.0
    %2787 = vadd.xlane.f32.xlu0 %v2786
    %v2788 = vpop.xlane.xlu0 %2787
    %v2789 = vsel %vm2224, %v2602, 0.0
    %2790 = vadd.xlane.f32.xlu0 %v2789
    %v2791 = vpop.xlane.xlu0 %2790
    %v2792 = vsel %vm2224, %v2604, 0.0
    %2793 = vadd.xlane.f32.xlu0 %v2792
    %v2794 = vpop.xlane.xlu0 %2793
    %v2795 = vsel %vm2224, %v2606, 0.0
    %2796 = vadd.xlane.f32.xlu0 %v2795
    %v2797 = vpop.xlane.xlu0 %2796
    %v2798 = vsel %vm2224, %v2608, 0.0
    %2799 = vadd.xlane.f32.xlu0 %v2798
    %v2800 = vpop.xlane.xlu0 %2799
    %v2801 = vrcp.pop %v2611
    %v2802 = vrcp.pop %v2614
    %v2803 = vrcp.pop %v2617
    %v2804 = vrcp.pop %v2620
    %v2805 = vrcp.pop %v2623
    %v2806 = vrcp.pop %v2626
    %v2807 = vrcp.pop %v2629
    %v2808 = vrcp.pop %v2632
    %v2809 = vrcp.pop %v2635
    %v2810 = vrcp.pop %v2638
    %v2811 = vrcp.pop %v2641
    %v2812 = vrcp.pop %v2644
    %v2813 = vrcp.pop %v2647
    %v2814 = vrcp.pop %v2650
    %v2815 = vrcp.pop %v2653
    %v2816 = vrcp.pop %v2656
    %v2817 = vrcp.pop %v2659
    %v2818 = vrcp.pop %v2662
    %v2819 = vrcp.pop %v2665
    %v2820 = vrcp.pop %v2668
    %v2821 = vrcp.pop %v2671
    %v2822 = vrcp.pop %v2674
    %v2823 = vrcp.pop %v2677
    %v2824 = vrcp.pop %v2680
    %v2825 = vrcp.pop %v2683
    %v2826 = vrcp.pop %v2686
    %v2827 = vrcp.pop %v2689
    %v2828 = vrcp.pop %v2692
    %v2829 = vrcp.pop %v2695
    %v2830 = vrcp.pop %v2698
    %v2831 = vrcp.pop %v2701
    %v2832 = vrcp.pop %v2704
    %v2833 = vrcp.pop %v2707
    %v2834 = vrcp.pop %v2710
    %v2835 = vrcp.pop %v2713
    %v2836 = vrcp.pop %v2716
    %v2837 = vrcp.pop %v2719
    %v2838 = vrcp.pop %v2722
    %v2839 = vrcp.pop %v2725
    %v2840 = vrcp.pop %v2728
    %v2841 = vrcp.pop %v2731
    %v2842 = vrcp.pop %v2734
    %v2843 = vrcp.pop %v2737
    %v2844 = vrcp.pop %v2740
    %v2845 = vrcp.pop %v2743
    %v2846 = vrcp.pop %v2746
    %v2847 = vrcp.pop %v2749
    %v2848 = vrcp.pop %v2752
    %v2849 = vrcp.pop %v2755
    %v2850 = vrcp.pop %v2758
    %v2851 = vrcp.pop %v2761
    %v2852 = vrcp.pop %v2764
    %v2853 = vrcp.pop %v2767
    %v2854 = vrcp.pop %v2770
    %v2855 = vrcp.pop %v2773
    %v2856 = vrcp.pop %v2776
    %v2857 = vrcp.pop %v2779
    %v2858 = vrcp.pop %v2782
    %v2859 = vrcp.pop %v2785
    %v2860 = vrcp.pop %v2788
    %v2861 = vrcp.pop %v2791
    %v2862 = vrcp.pop %v2794
    %v2863 = vrcp.pop %v2797
    %v2864 = vrcp.pop %v2800
    %v2865 = vmul.f32 %v2482, %v2801
    %v2866 = vmul.f32 %v2484, %v2802
    %v2867 = vmul.f32 %v2486, %v2803
    %v2868 = vmul.f32 %v2488, %v2804
    %v2869 = vmul.f32 %v2490, %v2805
    %v2870 = vmul.f32 %v2492, %v2806
    %v2871 = vmul.f32 %v2494, %v2807
    %v2872 = vmul.f32 %v2496, %v2808
    %v2873 = vmul.f32 %v2498, %v2809
    %v2874 = vmul.f32 %v2500, %v2810
    %v2875 = vmul.f32 %v2502, %v2811
    %v2876 = vmul.f32 %v2504, %v2812
    %v2877 = vmul.f32 %v2506, %v2813
    %v2878 = vmul.f32 %v2508, %v2814
    %v2879 = vmul.f32 %v2510, %v2815
    %v2880 = vmul.f32 %v2512, %v2816
    %v2881 = vmul.f32 %v2514, %v2817
    %v2882 = vmul.f32 %v2516, %v2818
    %v2883 = vmul.f32 %v2518, %v2819
    %v2884 = vmul.f32 %v2520, %v2820
    %v2885 = vmul.f32 %v2522, %v2821
    %v2886 = vmul.f32 %v2524, %v2822
    %v2887 = vmul.f32 %v2526, %v2823
    %v2888 = vmul.f32 %v2528, %v2824
    %v2889 = vmul.f32 %v2530, %v2825
    %v2890 = vmul.f32 %v2532, %v2826
    %v2891 = vmul.f32 %v2534, %v2827
    %v2892 = vmul.f32 %v2536, %v2828
    %v2893 = vmul.f32 %v2538, %v2829
    %v2894 = vmul.f32 %v2540, %v2830
    %v2895 = vmul.f32 %v2542, %v2831
    %v2896 = vmul.f32 %v2544, %v2832
    %v2897 = vmul.f32 %v2546, %v2833
    %v2898 = vmul.f32 %v2548, %v2834
    %v2899 = vmul.f32 %v2550, %v2835
    %v2900 = vmul.f32 %v2552, %v2836
    %v2901 = vmul.f32 %v2554, %v2837
    %v2902 = vmul.f32 %v2556, %v2838
    %v2903 = vmul.f32 %v2558, %v2839
    %v2904 = vmul.f32 %v2560, %v2840
    %v2905 = vmul.f32 %v2562, %v2841
    %v2906 = vmul.f32 %v2564, %v2842
    %v2907 = vmul.f32 %v2566, %v2843
    %v2908 = vmul.f32 %v2568, %v2844
    %v2909 = vmul.f32 %v2570, %v2845
    %v2910 = vmul.f32 %v2572, %v2846
    %v2911 = vmul.f32 %v2574, %v2847
    %v2912 = vmul.f32 %v2576, %v2848
    %v2913 = vmul.f32 %v2578, %v2849
    %v2914 = vmul.f32 %v2580, %v2850
    %v2915 = vmul.f32 %v2582, %v2851
    %v2916 = vmul.f32 %v2584, %v2852
    %v2917 = vmul.f32 %v2586, %v2853
    %v2918 = vmul.f32 %v2588, %v2854
    %v2919 = vmul.f32 %v2590, %v2855
    %v2920 = vmul.f32 %v2592, %v2856
    %v2921 = vmul.f32 %v2594, %v2857
    %v2922 = vmul.f32 %v2596, %v2858
    %v2923 = vmul.f32 %v2598, %v2859
    %v2924 = vmul.f32 %v2600, %v2860
    %v2925 = vmul.f32 %v2602, %v2861
    %v2926 = vmul.f32 %v2604, %v2862
    %v2927 = vmul.f32 %v2606, %v2863
    %v2928 = vmul.f32 %v2608, %v2864
    %v2929 = vpack.c.bf16 %v2866, %v2865
    %v2930 = vpack.c.bf16 %v2868, %v2867
    %v2931 = vpack.c.bf16 %v2870, %v2869
    %v2932 = vpack.c.bf16 %v2872, %v2871
    %v2933 = vpack.c.bf16 %v2874, %v2873
    %v2934 = vpack.c.bf16 %v2876, %v2875
    %v2935 = vpack.c.bf16 %v2878, %v2877
    %v2936 = vpack.c.bf16 %v2880, %v2879
    %v2937 = vpack.c.bf16 %v2882, %v2881
    %v2938 = vpack.c.bf16 %v2884, %v2883
    %v2939 = vpack.c.bf16 %v2886, %v2885
    %v2940 = vpack.c.bf16 %v2888, %v2887
    %v2941 = vpack.c.bf16 %v2890, %v2889
    %v2942 = vpack.c.bf16 %v2892, %v2891
    %v2943 = vpack.c.bf16 %v2894, %v2893
    %v2944 = vpack.c.bf16 %v2896, %v2895
    %v2945 = vpack.c.bf16 %v2898, %v2897
    %v2946 = vpack.c.bf16 %v2900, %v2899
    %v2947 = vpack.c.bf16 %v2902, %v2901
    %v2948 = vpack.c.bf16 %v2904, %v2903
    %v2949 = vpack.c.bf16 %v2906, %v2905
    %v2950 = vpack.c.bf16 %v2908, %v2907
    %v2951 = vpack.c.bf16 %v2910, %v2909
    %v2952 = vpack.c.bf16 %v2912, %v2911
    %v2953 = vpack.c.bf16 %v2914, %v2913
    %v2954 = vpack.c.bf16 %v2916, %v2915
    %v2955 = vpack.c.bf16 %v2918, %v2917
    %v2956 = vpack.c.bf16 %v2920, %v2919
    %v2957 = vpack.c.bf16 %v2922, %v2921
    %v2958 = vpack.c.bf16 %v2924, %v2923
    %v2959 = vpack.c.bf16 %v2926, %v2925
    %v2960 = vpack.c.bf16 %v2928, %v2927
    %2961 = vrot.lane.b32.xlu0 %v592, 64
    %v2962 = vpop.permute.xlu0 %2961
    %v2965 = vsel %vm2224, %v2929, 0
    %2967 = vmatprep.subr.bf16.mxu0 0
    %2968 = vmatpush1.bf16.msra.mxu0 0
    %2969 = vmatprep.subr.bf16.mxu0 0
    %2970 = vmatpush1.bf16.msra.mxu0 0
    %2971 = vmatprep.subr.bf16.mxu0 0
    %2972 = vmatpush1.bf16.msra.mxu0 0
    %2973 = vmatprep.subr.bf16.mxu0 0
    %2974 = vmatpush1.bf16.msra.mxu0 0
    %2975 = vmatprep.subr.bf16.mxu0 0
    %2976 = vmatpush1.bf16.msra.mxu0 0
    %2977 = vmatprep.subr.bf16.mxu0 0
    %2978 = vmatpush1.bf16.msra.mxu0 0
    %2979 = vmatprep.subr.bf16.mxu0 0
    %2980 = vmatpush1.bf16.msra.mxu0 0
    %2981 = vmatprep.subr.bf16.mxu0 0
    %2982 = vmatpush1.bf16.msra.mxu0 %v2962
    %2983 = vmatprep.subr.bf16.mxu0 0
    %2984 = vmatpush2.bf16.msra.mxu0 0
    %2985 = vmatprep.subr.bf16.mxu0 0
    %2986 = vmatpush2.bf16.msra.mxu0 0
    %2987 = vmatprep.subr.bf16.mxu0 0
    %2988 = vmatpush2.bf16.msra.mxu0 0
    %2989 = vmatprep.subr.bf16.mxu0 0
    %2990 = vmatpush2.bf16.msra.mxu0 0
    %2991 = vmatprep.subr.bf16.mxu0 0
    %2992 = vmatpush2.bf16.msra.mxu0 0
    %2993 = vmatprep.subr.bf16.mxu0 0
    %2994 = vmatpush2.bf16.msra.mxu0 0
    %2995 = vmatprep.subr.bf16.mxu0 0
    %2996 = vmatpush2.bf16.msra.mxu0 0
    %2997 = vmatprep.subr.bf16.mxu0 0
    %2998 = vmatpush2.bf16.msra.mxu0 0
    %2999 = vmatprep.mubr.bf16.mxu0 0
    %3000 = vmatmul.mubr.bf16.gmra.mxu0 %v2965
    %v3001 = vpop.f32.mrf.mxu0
    %v3002 = vadd.f32 0.0, %v3001
    %v3003 = vpop.f32.mrf.mxu0
    %v3004 = vpop.f32.mrf.mxu0
    %v3005 = vadd.f32 0.0, %v3004
    %v3006 = vpop.f32.mrf.mxu0
    %3007 = vdwg.mxu0
    %3008 = vrot.lane.b32.xlu0 %v593, 64
    %v3009 = vpop.permute.xlu0 %3008
    %v3012 = vsel %vm2224, %v2930, 0
    %3014 = vmatprep.subr.bf16.mxu0 0
    %3015 = vmatpush1.bf16.msra.mxu0 0
    %3016 = vmatprep.subr.bf16.mxu0 0
    %3017 = vmatpush1.bf16.msra.mxu0 0
    %3018 = vmatprep.subr.bf16.mxu0 0
    %3019 = vmatpush1.bf16.msra.mxu0 0
    %3020 = vmatprep.subr.bf16.mxu0 0
    %3021 = vmatpush1.bf16.msra.mxu0 0
    %3022 = vmatprep.subr.bf16.mxu0 0
    %3023 = vmatpush1.bf16.msra.mxu0 0
    %3024 = vmatprep.subr.bf16.mxu0 0
    %3025 = vmatpush1.bf16.msra.mxu0 0
    %3026 = vmatprep.subr.bf16.mxu0 0
    %3027 = vmatpush1.bf16.msra.mxu0 0
    %3028 = vmatprep.subr.bf16.mxu0 0
    %3029 = vmatpush1.bf16.msra.mxu0 %v3009
    %3030 = vmatprep.subr.bf16.mxu0 0
    %3031 = vmatpush2.bf16.msra.mxu0 0
    %3032 = vmatprep.subr.bf16.mxu0 0
    %3033 = vmatpush2.bf16.msra.mxu0 0
    %3034 = vmatprep.subr.bf16.mxu0 0
    %3035 = vmatpush2.bf16.msra.mxu0 0
    %3036 = vmatprep.subr.bf16.mxu0 0
    %3037 = vmatpush2.bf16.msra.mxu0 0
    %3038 = vmatprep.subr.bf16.mxu0 0
    %3039 = vmatpush2.bf16.msra.mxu0 0
    %3040 = vmatprep.subr.bf16.mxu0 0
    %3041 = vmatpush2.bf16.msra.mxu0 0
    %3042 = vmatprep.subr.bf16.mxu0 0
    %3043 = vmatpush2.bf16.msra.mxu0 0
    %3044 = vmatprep.subr.bf16.mxu0 0
    %3045 = vmatpush2.bf16.msra.mxu0 0
    %3046 = vmatprep.mubr.bf16.mxu0 0
    %3047 = vmatmul.mubr.bf16.gmra.mxu0 %v3012
    %v3048 = vpop.f32.mrf.mxu0
    %v3049 = vadd.f32 0.0, %v3048
    %v3050 = vpop.f32.mrf.mxu0
    %v3051 = vpop.f32.mrf.mxu0
    %v3052 = vadd.f32 0.0, %v3051
    %v3053 = vpop.f32.mrf.mxu0
    %3054 = vdwg.mxu0
    %3055 = vrot.lane.b32.xlu0 %v594, 64
    %v3056 = vpop.permute.xlu0 %3055
    %v3059 = vsel %vm2224, %v2931, 0
    %3061 = vmatprep.subr.bf16.mxu0 0
    %3062 = vmatpush1.bf16.msra.mxu0 0
    %3063 = vmatprep.subr.bf16.mxu0 0
    %3064 = vmatpush1.bf16.msra.mxu0 0
    %3065 = vmatprep.subr.bf16.mxu0 0
    %3066 = vmatpush1.bf16.msra.mxu0 0
    %3067 = vmatprep.subr.bf16.mxu0 0
    %3068 = vmatpush1.bf16.msra.mxu0 0
    %3069 = vmatprep.subr.bf16.mxu0 0
    %3070 = vmatpush1.bf16.msra.mxu0 0
    %3071 = vmatprep.subr.bf16.mxu0 0
    %3072 = vmatpush1.bf16.msra.mxu0 0
    %3073 = vmatprep.subr.bf16.mxu0 0
    %3074 = vmatpush1.bf16.msra.mxu0 0
    %3075 = vmatprep.subr.bf16.mxu0 0
    %3076 = vmatpush1.bf16.msra.mxu0 %v3056
    %3077 = vmatprep.subr.bf16.mxu0 0
    %3078 = vmatpush2.bf16.msra.mxu0 0
    %3079 = vmatprep.subr.bf16.mxu0 0
    %3080 = vmatpush2.bf16.msra.mxu0 0
    %3081 = vmatprep.subr.bf16.mxu0 0
    %3082 = vmatpush2.bf16.msra.mxu0 0
    %3083 = vmatprep.subr.bf16.mxu0 0
    %3084 = vmatpush2.bf16.msra.mxu0 0
    %3085 = vmatprep.subr.bf16.mxu0 0
    %3086 = vmatpush2.bf16.msra.mxu0 0
    %3087 = vmatprep.subr.bf16.mxu0 0
    %3088 = vmatpush2.bf16.msra.mxu0 0
    %3089 = vmatprep.subr.bf16.mxu0 0
    %3090 = vmatpush2.bf16.msra.mxu0 0
    %3091 = vmatprep.subr.bf16.mxu0 0
    %3092 = vmatpush2.bf16.msra.mxu0 0
    %3093 = vmatprep.mubr.bf16.mxu0 0
    %3094 = vmatmul.mubr.bf16.gmra.mxu0 %v3059
    %v3095 = vpop.f32.mrf.mxu0
    %v3096 = vadd.f32 0.0, %v3095
    %v3097 = vpop.f32.mrf.mxu0
    %v3098 = vpop.f32.mrf.mxu0
    %v3099 = vadd.f32 0.0, %v3098
    %v3100 = vpop.f32.mrf.mxu0
    %3101 = vdwg.mxu0
    %3102 = vrot.lane.b32.xlu0 %v595, 64
    %v3103 = vpop.permute.xlu0 %3102
    %v3106 = vsel %vm2224, %v2932, 0
    %3108 = vmatprep.subr.bf16.mxu0 0
    %3109 = vmatpush1.bf16.msra.mxu0 0
    %3110 = vmatprep.subr.bf16.mxu0 0
    %3111 = vmatpush1.bf16.msra.mxu0 0
    %3112 = vmatprep.subr.bf16.mxu0 0
    %3113 = vmatpush1.bf16.msra.mxu0 0
    %3114 = vmatprep.subr.bf16.mxu0 0
    %3115 = vmatpush1.bf16.msra.mxu0 0
    %3116 = vmatprep.subr.bf16.mxu0 0
    %3117 = vmatpush1.bf16.msra.mxu0 0
    %3118 = vmatprep.subr.bf16.mxu0 0
    %3119 = vmatpush1.bf16.msra.mxu0 0
    %3120 = vmatprep.subr.bf16.mxu0 0
    %3121 = vmatpush1.bf16.msra.mxu0 0
    %3122 = vmatprep.subr.bf16.mxu0 0
    %3123 = vmatpush1.bf16.msra.mxu0 %v3103
    %3124 = vmatprep.subr.bf16.mxu0 0
    %3125 = vmatpush2.bf16.msra.mxu0 0
    %3126 = vmatprep.subr.bf16.mxu0 0
    %3127 = vmatpush2.bf16.msra.mxu0 0
    %3128 = vmatprep.subr.bf16.mxu0 0
    %3129 = vmatpush2.bf16.msra.mxu0 0
    %3130 = vmatprep.subr.bf16.mxu0 0
    %3131 = vmatpush2.bf16.msra.mxu0 0
    %3132 = vmatprep.subr.bf16.mxu0 0
    %3133 = vmatpush2.bf16.msra.mxu0 0
    %3134 = vmatprep.subr.bf16.mxu0 0
    %3135 = vmatpush2.bf16.msra.mxu0 0
    %3136 = vmatprep.subr.bf16.mxu0 0
    %3137 = vmatpush2.bf16.msra.mxu0 0
    %3138 = vmatprep.subr.bf16.mxu0 0
    %3139 = vmatpush2.bf16.msra.mxu0 0
    %3140 = vmatprep.mubr.bf16.mxu0 0
    %3141 = vmatmul.mubr.bf16.gmra.mxu0 %v3106
    %v3142 = vpop.f32.mrf.mxu0
    %v3143 = vadd.f32 0.0, %v3142
    %v3144 = vpop.f32.mrf.mxu0
    %v3145 = vpop.f32.mrf.mxu0
    %v3146 = vadd.f32 0.0, %v3145
    %v3147 = vpop.f32.mrf.mxu0
    %3148 = vdwg.mxu0
    %3149 = vrot.lane.b32.xlu0 %v596, 64
    %v3150 = vpop.permute.xlu0 %3149
    %v3153 = vsel %vm2224, %v2933, 0
    %3155 = vmatprep.subr.bf16.mxu0 0
    %3156 = vmatpush1.bf16.msra.mxu0 0
    %3157 = vmatprep.subr.bf16.mxu0 0
    %3158 = vmatpush1.bf16.msra.mxu0 0
    %3159 = vmatprep.subr.bf16.mxu0 0
    %3160 = vmatpush1.bf16.msra.mxu0 0
    %3161 = vmatprep.subr.bf16.mxu0 0
    %3162 = vmatpush1.bf16.msra.mxu0 0
    %3163 = vmatprep.subr.bf16.mxu0 0
    %3164 = vmatpush1.bf16.msra.mxu0 0
    %3165 = vmatprep.subr.bf16.mxu0 0
    %3166 = vmatpush1.bf16.msra.mxu0 0
    %3167 = vmatprep.subr.bf16.mxu0 0
    %3168 = vmatpush1.bf16.msra.mxu0 0
    %3169 = vmatprep.subr.bf16.mxu0 0
    %3170 = vmatpush1.bf16.msra.mxu0 %v3150
    %3171 = vmatprep.subr.bf16.mxu0 0
    %3172 = vmatpush2.bf16.msra.mxu0 0
    %3173 = vmatprep.subr.bf16.mxu0 0
    %3174 = vmatpush2.bf16.msra.mxu0 0
    %3175 = vmatprep.subr.bf16.mxu0 0
    %3176 = vmatpush2.bf16.msra.mxu0 0
    %3177 = vmatprep.subr.bf16.mxu0 0
    %3178 = vmatpush2.bf16.msra.mxu0 0
    %3179 = vmatprep.subr.bf16.mxu0 0
    %3180 = vmatpush2.bf16.msra.mxu0 0
    %3181 = vmatprep.subr.bf16.mxu0 0
    %3182 = vmatpush2.bf16.msra.mxu0 0
    %3183 = vmatprep.subr.bf16.mxu0 0
    %3184 = vmatpush2.bf16.msra.mxu0 0
    %3185 = vmatprep.subr.bf16.mxu0 0
    %3186 = vmatpush2.bf16.msra.mxu0 0
    %3187 = vmatprep.mubr.bf16.mxu0 0
    %3188 = vmatmul.mubr.bf16.gmra.mxu0 %v3153
    %v3189 = vpop.f32.mrf.mxu0
    %v3190 = vadd.f32 0.0, %v3189
    %v3191 = vpop.f32.mrf.mxu0
    %v3192 = vpop.f32.mrf.mxu0
    %v3193 = vadd.f32 0.0, %v3192
    %v3194 = vpop.f32.mrf.mxu0
    %3195 = vdwg.mxu0
    %3196 = vrot.lane.b32.xlu0 %v597, 64
    %v3197 = vpop.permute.xlu0 %3196
    %v3200 = vsel %vm2224, %v2934, 0
    %3202 = vmatprep.subr.bf16.mxu0 0
    %3203 = vmatpush1.bf16.msra.mxu0 0
    %3204 = vmatprep.subr.bf16.mxu0 0
    %3205 = vmatpush1.bf16.msra.mxu0 0
    %3206 = vmatprep.subr.bf16.mxu0 0
    %3207 = vmatpush1.bf16.msra.mxu0 0
    %3208 = vmatprep.subr.bf16.mxu0 0
    %3209 = vmatpush1.bf16.msra.mxu0 0
    %3210 = vmatprep.subr.bf16.mxu0 0
    %3211 = vmatpush1.bf16.msra.mxu0 0
    %3212 = vmatprep.subr.bf16.mxu0 0
    %3213 = vmatpush1.bf16.msra.mxu0 0
    %3214 = vmatprep.subr.bf16.mxu0 0
    %3215 = vmatpush1.bf16.msra.mxu0 0
    %3216 = vmatprep.subr.bf16.mxu0 0
    %3217 = vmatpush1.bf16.msra.mxu0 %v3197
    %3218 = vmatprep.subr.bf16.mxu0 0
    %3219 = vmatpush2.bf16.msra.mxu0 0
    %3220 = vmatprep.subr.bf16.mxu0 0
    %3221 = vmatpush2.bf16.msra.mxu0 0
    %3222 = vmatprep.subr.bf16.mxu0 0
    %3223 = vmatpush2.bf16.msra.mxu0 0
    %3224 = vmatprep.subr.bf16.mxu0 0
    %3225 = vmatpush2.bf16.msra.mxu0 0
    %3226 = vmatprep.subr.bf16.mxu0 0
    %3227 = vmatpush2.bf16.msra.mxu0 0
    %3228 = vmatprep.subr.bf16.mxu0 0
    %3229 = vmatpush2.bf16.msra.mxu0 0
    %3230 = vmatprep.subr.bf16.mxu0 0
    %3231 = vmatpush2.bf16.msra.mxu0 0
    %3232 = vmatprep.subr.bf16.mxu0 0
    %3233 = vmatpush2.bf16.msra.mxu0 0
    %3234 = vmatprep.mubr.bf16.mxu0 0
    %3235 = vmatmul.mubr.bf16.gmra.mxu0 %v3200
    %v3236 = vpop.f32.mrf.mxu0
    %v3237 = vadd.f32 0.0, %v3236
    %v3238 = vpop.f32.mrf.mxu0
    %v3239 = vpop.f32.mrf.mxu0
    %v3240 = vadd.f32 0.0, %v3239
    %v3241 = vpop.f32.mrf.mxu0
    %3242 = vdwg.mxu0
    %3243 = vrot.lane.b32.xlu0 %v598, 64
    %v3244 = vpop.permute.xlu0 %3243
    %v3247 = vsel %vm2224, %v2935, 0
    %3249 = vmatprep.subr.bf16.mxu0 0
    %3250 = vmatpush1.bf16.msra.mxu0 0
    %3251 = vmatprep.subr.bf16.mxu0 0
    %3252 = vmatpush1.bf16.msra.mxu0 0
    %3253 = vmatprep.subr.bf16.mxu0 0
    %3254 = vmatpush1.bf16.msra.mxu0 0
    %3255 = vmatprep.subr.bf16.mxu0 0
    %3256 = vmatpush1.bf16.msra.mxu0 0
    %3257 = vmatprep.subr.bf16.mxu0 0
    %3258 = vmatpush1.bf16.msra.mxu0 0
    %3259 = vmatprep.subr.bf16.mxu0 0
    %3260 = vmatpush1.bf16.msra.mxu0 0
    %3261 = vmatprep.subr.bf16.mxu0 0
    %3262 = vmatpush1.bf16.msra.mxu0 0
    %3263 = vmatprep.subr.bf16.mxu0 0
    %3264 = vmatpush1.bf16.msra.mxu0 %v3244
    %3265 = vmatprep.subr.bf16.mxu0 0
    %3266 = vmatpush2.bf16.msra.mxu0 0
    %3267 = vmatprep.subr.bf16.mxu0 0
    %3268 = vmatpush2.bf16.msra.mxu0 0
    %3269 = vmatprep.subr.bf16.mxu0 0
    %3270 = vmatpush2.bf16.msra.mxu0 0
    %3271 = vmatprep.subr.bf16.mxu0 0
    %3272 = vmatpush2.bf16.msra.mxu0 0
    %3273 = vmatprep.subr.bf16.mxu0 0
    %3274 = vmatpush2.bf16.msra.mxu0 0
    %3275 = vmatprep.subr.bf16.mxu0 0
    %3276 = vmatpush2.bf16.msra.mxu0 0
    %3277 = vmatprep.subr.bf16.mxu0 0
    %3278 = vmatpush2.bf16.msra.mxu0 0
    %3279 = vmatprep.subr.bf16.mxu0 0
    %3280 = vmatpush2.bf16.msra.mxu0 0
    %3281 = vmatprep.mubr.bf16.mxu0 0
    %3282 = vmatmul.mubr.bf16.gmra.mxu0 %v3247
    %v3283 = vpop.f32.mrf.mxu0
    %v3284 = vadd.f32 0.0, %v3283
    %v3285 = vpop.f32.mrf.mxu0
    %v3286 = vpop.f32.mrf.mxu0
    %v3287 = vadd.f32 0.0, %v3286
    %v3288 = vpop.f32.mrf.mxu0
    %3289 = vdwg.mxu0
    %3290 = vrot.lane.b32.xlu0 %v599, 64
    %v3291 = vpop.permute.xlu0 %3290
    %v3294 = vsel %vm2224, %v2936, 0
    %3296 = vmatprep.subr.bf16.mxu0 0
    %3297 = vmatpush1.bf16.msra.mxu0 0
    %3298 = vmatprep.subr.bf16.mxu0 0
    %3299 = vmatpush1.bf16.msra.mxu0 0
    %3300 = vmatprep.subr.bf16.mxu0 0
    %3301 = vmatpush1.bf16.msra.mxu0 0
    %3302 = vmatprep.subr.bf16.mxu0 0
    %3303 = vmatpush1.bf16.msra.mxu0 0
    %3304 = vmatprep.subr.bf16.mxu0 0
    %3305 = vmatpush1.bf16.msra.mxu0 0
    %3306 = vmatprep.subr.bf16.mxu0 0
    %3307 = vmatpush1.bf16.msra.mxu0 0
    %3308 = vmatprep.subr.bf16.mxu0 0
    %3309 = vmatpush1.bf16.msra.mxu0 0
    %3310 = vmatprep.subr.bf16.mxu0 0
    %3311 = vmatpush1.bf16.msra.mxu0 %v3291
    %3312 = vmatprep.subr.bf16.mxu0 0
    %3313 = vmatpush2.bf16.msra.mxu0 0
    %3314 = vmatprep.subr.bf16.mxu0 0
    %3315 = vmatpush2.bf16.msra.mxu0 0
    %3316 = vmatprep.subr.bf16.mxu0 0
    %3317 = vmatpush2.bf16.msra.mxu0 0
    %3318 = vmatprep.subr.bf16.mxu0 0
    %3319 = vmatpush2.bf16.msra.mxu0 0
    %3320 = vmatprep.subr.bf16.mxu0 0
    %3321 = vmatpush2.bf16.msra.mxu0 0
    %3322 = vmatprep.subr.bf16.mxu0 0
    %3323 = vmatpush2.bf16.msra.mxu0 0
    %3324 = vmatprep.subr.bf16.mxu0 0
    %3325 = vmatpush2.bf16.msra.mxu0 0
    %3326 = vmatprep.subr.bf16.mxu0 0
    %3327 = vmatpush2.bf16.msra.mxu0 0
    %3328 = vmatprep.mubr.bf16.mxu0 0
    %3329 = vmatmul.mubr.bf16.gmra.mxu0 %v3294
    %v3330 = vpop.f32.mrf.mxu0
    %v3331 = vadd.f32 0.0, %v3330
    %v3332 = vpop.f32.mrf.mxu0
    %v3333 = vpop.f32.mrf.mxu0
    %v3334 = vadd.f32 0.0, %v3333
    %v3335 = vpop.f32.mrf.mxu0
    %3336 = vdwg.mxu0
    %3337 = vrot.lane.b32.xlu0 %v609, 64
    %v3338 = vpop.permute.xlu0 %3337
    %v3341 = vsel %vm2224, %v2937, 0
    %3343 = vmatprep.subr.bf16.mxu0 0
    %3344 = vmatpush1.bf16.msra.mxu0 0
    %3345 = vmatprep.subr.bf16.mxu0 0
    %3346 = vmatpush1.bf16.msra.mxu0 0
    %3347 = vmatprep.subr.bf16.mxu0 0
    %3348 = vmatpush1.bf16.msra.mxu0 0
    %3349 = vmatprep.subr.bf16.mxu0 0
    %3350 = vmatpush1.bf16.msra.mxu0 0
    %3351 = vmatprep.subr.bf16.mxu0 0
    %3352 = vmatpush1.bf16.msra.mxu0 0
    %3353 = vmatprep.subr.bf16.mxu0 0
    %3354 = vmatpush1.bf16.msra.mxu0 0
    %3355 = vmatprep.subr.bf16.mxu0 0
    %3356 = vmatpush1.bf16.msra.mxu0 0
    %3357 = vmatprep.subr.bf16.mxu0 0
    %3358 = vmatpush1.bf16.msra.mxu0 %v3338
    %3359 = vmatprep.subr.bf16.mxu0 0
    %3360 = vmatpush2.bf16.msra.mxu0 0
    %3361 = vmatprep.subr.bf16.mxu0 0
    %3362 = vmatpush2.bf16.msra.mxu0 0
    %3363 = vmatprep.subr.bf16.mxu0 0
    %3364 = vmatpush2.bf16.msra.mxu0 0
    %3365 = vmatprep.subr.bf16.mxu0 0
    %3366 = vmatpush2.bf16.msra.mxu0 0
    %3367 = vmatprep.subr.bf16.mxu0 0
    %3368 = vmatpush2.bf16.msra.mxu0 0
    %3369 = vmatprep.subr.bf16.mxu0 0
    %3370 = vmatpush2.bf16.msra.mxu0 0
    %3371 = vmatprep.subr.bf16.mxu0 0
    %3372 = vmatpush2.bf16.msra.mxu0 0
    %3373 = vmatprep.subr.bf16.mxu0 0
    %3374 = vmatpush2.bf16.msra.mxu0 0
    %3375 = vmatprep.mubr.bf16.mxu0 0
    %3376 = vmatmul.mubr.bf16.gmra.mxu0 %v3341
    %v3377 = vpop.f32.mrf.mxu0
    %v3378 = vadd.f32 0.0, %v3377
    %v3379 = vpop.f32.mrf.mxu0
    %v3380 = vpop.f32.mrf.mxu0
    %v3381 = vadd.f32 0.0, %v3380
    %v3382 = vpop.f32.mrf.mxu0
    %3383 = vdwg.mxu0
    %3384 = vrot.lane.b32.xlu0 %v611, 64
    %v3385 = vpop.permute.xlu0 %3384
    %v3388 = vsel %vm2224, %v2938, 0
    %3390 = vmatprep.subr.bf16.mxu0 0
    %3391 = vmatpush1.bf16.msra.mxu0 0
    %3392 = vmatprep.subr.bf16.mxu0 0
    %3393 = vmatpush1.bf16.msra.mxu0 0
    %3394 = vmatprep.subr.bf16.mxu0 0
    %3395 = vmatpush1.bf16.msra.mxu0 0
    %3396 = vmatprep.subr.bf16.mxu0 0
    %3397 = vmatpush1.bf16.msra.mxu0 0
    %3398 = vmatprep.subr.bf16.mxu0 0
    %3399 = vmatpush1.bf16.msra.mxu0 0
    %3400 = vmatprep.subr.bf16.mxu0 0
    %3401 = vmatpush1.bf16.msra.mxu0 0
    %3402 = vmatprep.subr.bf16.mxu0 0
    %3403 = vmatpush1.bf16.msra.mxu0 0
    %3404 = vmatprep.subr.bf16.mxu0 0
    %3405 = vmatpush1.bf16.msra.mxu0 %v3385
    %3406 = vmatprep.subr.bf16.mxu0 0
    %3407 = vmatpush2.bf16.msra.mxu0 0
    %3408 = vmatprep.subr.bf16.mxu0 0
    %3409 = vmatpush2.bf16.msra.mxu0 0
    %3410 = vmatprep.subr.bf16.mxu0 0
    %3411 = vmatpush2.bf16.msra.mxu0 0
    %3412 = vmatprep.subr.bf16.mxu0 0
    %3413 = vmatpush2.bf16.msra.mxu0 0
    %3414 = vmatprep.subr.bf16.mxu0 0
    %3415 = vmatpush2.bf16.msra.mxu0 0
    %3416 = vmatprep.subr.bf16.mxu0 0
    %3417 = vmatpush2.bf16.msra.mxu0 0
    %3418 = vmatprep.subr.bf16.mxu0 0
    %3419 = vmatpush2.bf16.msra.mxu0 0
    %3420 = vmatprep.subr.bf16.mxu0 0
    %3421 = vmatpush2.bf16.msra.mxu0 0
    %3422 = vmatprep.mubr.bf16.mxu0 0
    %3423 = vmatmul.mubr.bf16.gmra.mxu0 %v3388
    %v3424 = vpop.f32.mrf.mxu0
    %v3425 = vadd.f32 0.0, %v3424
    %v3426 = vpop.f32.mrf.mxu0
    %v3427 = vpop.f32.mrf.mxu0
    %v3428 = vadd.f32 0.0, %v3427
    %v3429 = vpop.f32.mrf.mxu0
    %3430 = vdwg.mxu0
    %3431 = vrot.lane.b32.xlu0 %v613, 64
    %v3432 = vpop.permute.xlu0 %3431
    %v3435 = vsel %vm2224, %v2939, 0
    %3437 = vmatprep.subr.bf16.mxu0 0
    %3438 = vmatpush1.bf16.msra.mxu0 0
    %3439 = vmatprep.subr.bf16.mxu0 0
    %3440 = vmatpush1.bf16.msra.mxu0 0
    %3441 = vmatprep.subr.bf16.mxu0 0
    %3442 = vmatpush1.bf16.msra.mxu0 0
    %3443 = vmatprep.subr.bf16.mxu0 0
    %3444 = vmatpush1.bf16.msra.mxu0 0
    %3445 = vmatprep.subr.bf16.mxu0 0
    %3446 = vmatpush1.bf16.msra.mxu0 0
    %3447 = vmatprep.subr.bf16.mxu0 0
    %3448 = vmatpush1.bf16.msra.mxu0 0
    %3449 = vmatprep.subr.bf16.mxu0 0
    %3450 = vmatpush1.bf16.msra.mxu0 0
    %3451 = vmatprep.subr.bf16.mxu0 0
    %3452 = vmatpush1.bf16.msra.mxu0 %v3432
    %3453 = vmatprep.subr.bf16.mxu0 0
    %3454 = vmatpush2.bf16.msra.mxu0 0
    %3455 = vmatprep.subr.bf16.mxu0 0
    %3456 = vmatpush2.bf16.msra.mxu0 0
    %3457 = vmatprep.subr.bf16.mxu0 0
    %3458 = vmatpush2.bf16.msra.mxu0 0
    %3459 = vmatprep.subr.bf16.mxu0 0
    %3460 = vmatpush2.bf16.msra.mxu0 0
    %3461 = vmatprep.subr.bf16.mxu0 0
    %3462 = vmatpush2.bf16.msra.mxu0 0
    %3463 = vmatprep.subr.bf16.mxu0 0
    %3464 = vmatpush2.bf16.msra.mxu0 0
    %3465 = vmatprep.subr.bf16.mxu0 0
    %3466 = vmatpush2.bf16.msra.mxu0 0
    %3467 = vmatprep.subr.bf16.mxu0 0
    %3468 = vmatpush2.bf16.msra.mxu0 0
    %3469 = vmatprep.mubr.bf16.mxu0 0
    %3470 = vmatmul.mubr.bf16.gmra.mxu0 %v3435
    %v3471 = vpop.f32.mrf.mxu0
    %v3472 = vadd.f32 0.0, %v3471
    %v3473 = vpop.f32.mrf.mxu0
    %v3474 = vpop.f32.mrf.mxu0
    %v3475 = vadd.f32 0.0, %v3474
    %v3476 = vpop.f32.mrf.mxu0
    %3477 = vdwg.mxu0
    %3478 = vrot.lane.b32.xlu0 %v615, 64
    %v3479 = vpop.permute.xlu0 %3478
    %v3482 = vsel %vm2224, %v2940, 0
    %3484 = vmatprep.subr.bf16.mxu0 0
    %3485 = vmatpush1.bf16.msra.mxu0 0
    %3486 = vmatprep.subr.bf16.mxu0 0
    %3487 = vmatpush1.bf16.msra.mxu0 0
    %3488 = vmatprep.subr.bf16.mxu0 0
    %3489 = vmatpush1.bf16.msra.mxu0 0
    %3490 = vmatprep.subr.bf16.mxu0 0
    %3491 = vmatpush1.bf16.msra.mxu0 0
    %3492 = vmatprep.subr.bf16.mxu0 0
    %3493 = vmatpush1.bf16.msra.mxu0 0
    %3494 = vmatprep.subr.bf16.mxu0 0
    %3495 = vmatpush1.bf16.msra.mxu0 0
    %3496 = vmatprep.subr.bf16.mxu0 0
    %3497 = vmatpush1.bf16.msra.mxu0 0
    %3498 = vmatprep.subr.bf16.mxu0 0
    %3499 = vmatpush1.bf16.msra.mxu0 %v3479
    %3500 = vmatprep.subr.bf16.mxu0 0
    %3501 = vmatpush2.bf16.msra.mxu0 0
    %3502 = vmatprep.subr.bf16.mxu0 0
    %3503 = vmatpush2.bf16.msra.mxu0 0
    %3504 = vmatprep.subr.bf16.mxu0 0
    %3505 = vmatpush2.bf16.msra.mxu0 0
    %3506 = vmatprep.subr.bf16.mxu0 0
    %3507 = vmatpush2.bf16.msra.mxu0 0
    %3508 = vmatprep.subr.bf16.mxu0 0
    %3509 = vmatpush2.bf16.msra.mxu0 0
    %3510 = vmatprep.subr.bf16.mxu0 0
    %3511 = vmatpush2.bf16.msra.mxu0 0
    %3512 = vmatprep.subr.bf16.mxu0 0
    %3513 = vmatpush2.bf16.msra.mxu0 0
    %3514 = vmatprep.subr.bf16.mxu0 0
    %3515 = vmatpush2.bf16.msra.mxu0 0
    %3516 = vmatprep.mubr.bf16.mxu0 0
    %3517 = vmatmul.mubr.bf16.gmra.mxu0 %v3482
    %v3518 = vpop.f32.mrf.mxu0
    %v3519 = vadd.f32 0.0, %v3518
    %v3520 = vpop.f32.mrf.mxu0
    %v3521 = vpop.f32.mrf.mxu0
    %v3522 = vadd.f32 0.0, %v3521
    %v3523 = vpop.f32.mrf.mxu0
    %3524 = vdwg.mxu0
    %3525 = vrot.lane.b32.xlu0 %v617, 64
    %v3526 = vpop.permute.xlu0 %3525
    %v3529 = vsel %vm2224, %v2941, 0
    %3531 = vmatprep.subr.bf16.mxu0 0
    %3532 = vmatpush1.bf16.msra.mxu0 0
    %3533 = vmatprep.subr.bf16.mxu0 0
    %3534 = vmatpush1.bf16.msra.mxu0 0
    %3535 = vmatprep.subr.bf16.mxu0 0
    %3536 = vmatpush1.bf16.msra.mxu0 0
    %3537 = vmatprep.subr.bf16.mxu0 0
    %3538 = vmatpush1.bf16.msra.mxu0 0
    %3539 = vmatprep.subr.bf16.mxu0 0
    %3540 = vmatpush1.bf16.msra.mxu0 0
    %3541 = vmatprep.subr.bf16.mxu0 0
    %3542 = vmatpush1.bf16.msra.mxu0 0
    %3543 = vmatprep.subr.bf16.mxu0 0
    %3544 = vmatpush1.bf16.msra.mxu0 0
    %3545 = vmatprep.subr.bf16.mxu0 0
    %3546 = vmatpush1.bf16.msra.mxu0 %v3526
    %3547 = vmatprep.subr.bf16.mxu0 0
    %3548 = vmatpush2.bf16.msra.mxu0 0
    %3549 = vmatprep.subr.bf16.mxu0 0
    %3550 = vmatpush2.bf16.msra.mxu0 0
    %3551 = vmatprep.subr.bf16.mxu0 0
    %3552 = vmatpush2.bf16.msra.mxu0 0
    %3553 = vmatprep.subr.bf16.mxu0 0
    %3554 = vmatpush2.bf16.msra.mxu0 0
    %3555 = vmatprep.subr.bf16.mxu0 0
    %3556 = vmatpush2.bf16.msra.mxu0 0
    %3557 = vmatprep.subr.bf16.mxu0 0
    %3558 = vmatpush2.bf16.msra.mxu0 0
    %3559 = vmatprep.subr.bf16.mxu0 0
    %3560 = vmatpush2.bf16.msra.mxu0 0
    %3561 = vmatprep.subr.bf16.mxu0 0
    %3562 = vmatpush2.bf16.msra.mxu0 0
    %3563 = vmatprep.mubr.bf16.mxu0 0
    %3564 = vmatmul.mubr.bf16.gmra.mxu0 %v3529
    %v3565 = vpop.f32.mrf.mxu0
    %v3566 = vadd.f32 0.0, %v3565
    %v3567 = vpop.f32.mrf.mxu0
    %v3568 = vpop.f32.mrf.mxu0
    %v3569 = vadd.f32 0.0, %v3568
    %v3570 = vpop.f32.mrf.mxu0
    %3571 = vdwg.mxu0
    %3572 = vrot.lane.b32.xlu0 %v619, 64
    %v3573 = vpop.permute.xlu0 %3572
    %v3576 = vsel %vm2224, %v2942, 0
    %3578 = vmatprep.subr.bf16.mxu0 0
    %3579 = vmatpush1.bf16.msra.mxu0 0
    %3580 = vmatprep.subr.bf16.mxu0 0
    %3581 = vmatpush1.bf16.msra.mxu0 0
    %3582 = vmatprep.subr.bf16.mxu0 0
    %3583 = vmatpush1.bf16.msra.mxu0 0
    %3584 = vmatprep.subr.bf16.mxu0 0
    %3585 = vmatpush1.bf16.msra.mxu0 0
    %3586 = vmatprep.subr.bf16.mxu0 0
    %3587 = vmatpush1.bf16.msra.mxu0 0
    %3588 = vmatprep.subr.bf16.mxu0 0
    %3589 = vmatpush1.bf16.msra.mxu0 0
    %3590 = vmatprep.subr.bf16.mxu0 0
    %3591 = vmatpush1.bf16.msra.mxu0 0
    %3592 = vmatprep.subr.bf16.mxu0 0
    %3593 = vmatpush1.bf16.msra.mxu0 %v3573
    %3594 = vmatprep.subr.bf16.mxu0 0
    %3595 = vmatpush2.bf16.msra.mxu0 0
    %3596 = vmatprep.subr.bf16.mxu0 0
    %3597 = vmatpush2.bf16.msra.mxu0 0
    %3598 = vmatprep.subr.bf16.mxu0 0
    %3599 = vmatpush2.bf16.msra.mxu0 0
    %3600 = vmatprep.subr.bf16.mxu0 0
    %3601 = vmatpush2.bf16.msra.mxu0 0
    %3602 = vmatprep.subr.bf16.mxu0 0
    %3603 = vmatpush2.bf16.msra.mxu0 0
    %3604 = vmatprep.subr.bf16.mxu0 0
    %3605 = vmatpush2.bf16.msra.mxu0 0
    %3606 = vmatprep.subr.bf16.mxu0 0
    %3607 = vmatpush2.bf16.msra.mxu0 0
    %3608 = vmatprep.subr.bf16.mxu0 0
    %3609 = vmatpush2.bf16.msra.mxu0 0
    %3610 = vmatprep.mubr.bf16.mxu0 0
    %3611 = vmatmul.mubr.bf16.gmra.mxu0 %v3576
    %v3612 = vpop.f32.mrf.mxu0
    %v3613 = vadd.f32 0.0, %v3612
    %v3614 = vpop.f32.mrf.mxu0
    %v3615 = vpop.f32.mrf.mxu0
    %v3616 = vadd.f32 0.0, %v3615
    %v3617 = vpop.f32.mrf.mxu0
    %3618 = vdwg.mxu0
    %3619 = vrot.lane.b32.xlu0 %v621, 64
    %v3620 = vpop.permute.xlu0 %3619
    %v3623 = vsel %vm2224, %v2943, 0
    %3625 = vmatprep.subr.bf16.mxu0 0
    %3626 = vmatpush1.bf16.msra.mxu0 0
    %3627 = vmatprep.subr.bf16.mxu0 0
    %3628 = vmatpush1.bf16.msra.mxu0 0
    %3629 = vmatprep.subr.bf16.mxu0 0
    %3630 = vmatpush1.bf16.msra.mxu0 0
    %3631 = vmatprep.subr.bf16.mxu0 0
    %3632 = vmatpush1.bf16.msra.mxu0 0
    %3633 = vmatprep.subr.bf16.mxu0 0
    %3634 = vmatpush1.bf16.msra.mxu0 0
    %3635 = vmatprep.subr.bf16.mxu0 0
    %3636 = vmatpush1.bf16.msra.mxu0 0
    %3637 = vmatprep.subr.bf16.mxu0 0
    %3638 = vmatpush1.bf16.msra.mxu0 0
    %3639 = vmatprep.subr.bf16.mxu0 0
    %3640 = vmatpush1.bf16.msra.mxu0 %v3620
    %3641 = vmatprep.subr.bf16.mxu0 0
    %3642 = vmatpush2.bf16.msra.mxu0 0
    %3643 = vmatprep.subr.bf16.mxu0 0
    %3644 = vmatpush2.bf16.msra.mxu0 0
    %3645 = vmatprep.subr.bf16.mxu0 0
    %3646 = vmatpush2.bf16.msra.mxu0 0
    %3647 = vmatprep.subr.bf16.mxu0 0
    %3648 = vmatpush2.bf16.msra.mxu0 0
    %3649 = vmatprep.subr.bf16.mxu0 0
    %3650 = vmatpush2.bf16.msra.mxu0 0
    %3651 = vmatprep.subr.bf16.mxu0 0
    %3652 = vmatpush2.bf16.msra.mxu0 0
    %3653 = vmatprep.subr.bf16.mxu0 0
    %3654 = vmatpush2.bf16.msra.mxu0 0
    %3655 = vmatprep.subr.bf16.mxu0 0
    %3656 = vmatpush2.bf16.msra.mxu0 0
    %3657 = vmatprep.mubr.bf16.mxu0 0
    %3658 = vmatmul.mubr.bf16.gmra.mxu0 %v3623
    %v3659 = vpop.f32.mrf.mxu0
    %v3660 = vadd.f32 0.0, %v3659
    %v3661 = vpop.f32.mrf.mxu0
    %v3662 = vpop.f32.mrf.mxu0
    %v3663 = vadd.f32 0.0, %v3662
    %v3664 = vpop.f32.mrf.mxu0
    %3665 = vdwg.mxu0
    %3666 = vrot.lane.b32.xlu0 %v623, 64
    %v3667 = vpop.permute.xlu0 %3666
    %v3670 = vsel %vm2224, %v2944, 0
    %3672 = vmatprep.subr.bf16.mxu0 0
    %3673 = vmatpush1.bf16.msra.mxu0 0
    %3674 = vmatprep.subr.bf16.mxu0 0
    %3675 = vmatpush1.bf16.msra.mxu0 0
    %3676 = vmatprep.subr.bf16.mxu0 0
    %3677 = vmatpush1.bf16.msra.mxu0 0
    %3678 = vmatprep.subr.bf16.mxu0 0
    %3679 = vmatpush1.bf16.msra.mxu0 0
    %3680 = vmatprep.subr.bf16.mxu0 0
    %3681 = vmatpush1.bf16.msra.mxu0 0
    %3682 = vmatprep.subr.bf16.mxu0 0
    %3683 = vmatpush1.bf16.msra.mxu0 0
    %3684 = vmatprep.subr.bf16.mxu0 0
    %3685 = vmatpush1.bf16.msra.mxu0 0
    %3686 = vmatprep.subr.bf16.mxu0 0
    %3687 = vmatpush1.bf16.msra.mxu0 %v3667
    %3688 = vmatprep.subr.bf16.mxu0 0
    %3689 = vmatpush2.bf16.msra.mxu0 0
    %3690 = vmatprep.subr.bf16.mxu0 0
    %3691 = vmatpush2.bf16.msra.mxu0 0
    %3692 = vmatprep.subr.bf16.mxu0 0
    %3693 = vmatpush2.bf16.msra.mxu0 0
    %3694 = vmatprep.subr.bf16.mxu0 0
    %3695 = vmatpush2.bf16.msra.mxu0 0
    %3696 = vmatprep.subr.bf16.mxu0 0
    %3697 = vmatpush2.bf16.msra.mxu0 0
    %3698 = vmatprep.subr.bf16.mxu0 0
    %3699 = vmatpush2.bf16.msra.mxu0 0
    %3700 = vmatprep.subr.bf16.mxu0 0
    %3701 = vmatpush2.bf16.msra.mxu0 0
    %3702 = vmatprep.subr.bf16.mxu0 0
    %3703 = vmatpush2.bf16.msra.mxu0 0
    %3704 = vmatprep.mubr.bf16.mxu0 0
    %3705 = vmatmul.mubr.bf16.gmra.mxu0 %v3670
    %v3706 = vpop.f32.mrf.mxu0
    %v3707 = vadd.f32 0.0, %v3706
    %v3708 = vpop.f32.mrf.mxu0
    %v3709 = vpop.f32.mrf.mxu0
    %v3710 = vadd.f32 0.0, %v3709
    %v3711 = vpop.f32.mrf.mxu0
    %3712 = vdwg.mxu0
    %3713 = vrot.lane.b32.xlu0 %v625, 64
    %v3714 = vpop.permute.xlu0 %3713
    %v3717 = vsel %vm2224, %v2945, 0
    %3719 = vmatprep.subr.bf16.mxu0 0
    %3720 = vmatpush1.bf16.msra.mxu0 0
    %3721 = vmatprep.subr.bf16.mxu0 0
    %3722 = vmatpush1.bf16.msra.mxu0 0
    %3723 = vmatprep.subr.bf16.mxu0 0
    %3724 = vmatpush1.bf16.msra.mxu0 0
    %3725 = vmatprep.subr.bf16.mxu0 0
    %3726 = vmatpush1.bf16.msra.mxu0 0
    %3727 = vmatprep.subr.bf16.mxu0 0
    %3728 = vmatpush1.bf16.msra.mxu0 0
    %3729 = vmatprep.subr.bf16.mxu0 0
    %3730 = vmatpush1.bf16.msra.mxu0 0
    %3731 = vmatprep.subr.bf16.mxu0 0
    %3732 = vmatpush1.bf16.msra.mxu0 0
    %3733 = vmatprep.subr.bf16.mxu0 0
    %3734 = vmatpush1.bf16.msra.mxu0 %v3714
    %3735 = vmatprep.subr.bf16.mxu0 0
    %3736 = vmatpush2.bf16.msra.mxu0 0
    %3737 = vmatprep.subr.bf16.mxu0 0
    %3738 = vmatpush2.bf16.msra.mxu0 0
    %3739 = vmatprep.subr.bf16.mxu0 0
    %3740 = vmatpush2.bf16.msra.mxu0 0
    %3741 = vmatprep.subr.bf16.mxu0 0
    %3742 = vmatpush2.bf16.msra.mxu0 0
    %3743 = vmatprep.subr.bf16.mxu0 0
    %3744 = vmatpush2.bf16.msra.mxu0 0
    %3745 = vmatprep.subr.bf16.mxu0 0
    %3746 = vmatpush2.bf16.msra.mxu0 0
    %3747 = vmatprep.subr.bf16.mxu0 0
    %3748 = vmatpush2.bf16.msra.mxu0 0
    %3749 = vmatprep.subr.bf16.mxu0 0
    %3750 = vmatpush2.bf16.msra.mxu0 0
    %3751 = vmatprep.mubr.bf16.mxu0 0
    %3752 = vmatmul.mubr.bf16.gmra.mxu0 %v3717
    %v3753 = vpop.f32.mrf.mxu0
    %v3754 = vadd.f32 0.0, %v3753
    %v3755 = vpop.f32.mrf.mxu0
    %v3756 = vpop.f32.mrf.mxu0
    %v3757 = vadd.f32 0.0, %v3756
    %v3758 = vpop.f32.mrf.mxu0
    %3759 = vdwg.mxu0
    %3760 = vrot.lane.b32.xlu0 %v627, 64
    %v3761 = vpop.permute.xlu0 %3760
    %v3764 = vsel %vm2224, %v2946, 0
    %3766 = vmatprep.subr.bf16.mxu0 0
    %3767 = vmatpush1.bf16.msra.mxu0 0
    %3768 = vmatprep.subr.bf16.mxu0 0
    %3769 = vmatpush1.bf16.msra.mxu0 0
    %3770 = vmatprep.subr.bf16.mxu0 0
    %3771 = vmatpush1.bf16.msra.mxu0 0
    %3772 = vmatprep.subr.bf16.mxu0 0
    %3773 = vmatpush1.bf16.msra.mxu0 0
    %3774 = vmatprep.subr.bf16.mxu0 0
    %3775 = vmatpush1.bf16.msra.mxu0 0
    %3776 = vmatprep.subr.bf16.mxu0 0
    %3777 = vmatpush1.bf16.msra.mxu0 0
    %3778 = vmatprep.subr.bf16.mxu0 0
    %3779 = vmatpush1.bf16.msra.mxu0 0
    %3780 = vmatprep.subr.bf16.mxu0 0
    %3781 = vmatpush1.bf16.msra.mxu0 %v3761
    %3782 = vmatprep.subr.bf16.mxu0 0
    %3783 = vmatpush2.bf16.msra.mxu0 0
    %3784 = vmatprep.subr.bf16.mxu0 0
    %3785 = vmatpush2.bf16.msra.mxu0 0
    %3786 = vmatprep.subr.bf16.mxu0 0
    %3787 = vmatpush2.bf16.msra.mxu0 0
    %3788 = vmatprep.subr.bf16.mxu0 0
    %3789 = vmatpush2.bf16.msra.mxu0 0
    %3790 = vmatprep.subr.bf16.mxu0 0
    %3791 = vmatpush2.bf16.msra.mxu0 0
    %3792 = vmatprep.subr.bf16.mxu0 0
    %3793 = vmatpush2.bf16.msra.mxu0 0
    %3794 = vmatprep.subr.bf16.mxu0 0
    %3795 = vmatpush2.bf16.msra.mxu0 0
    %3796 = vmatprep.subr.bf16.mxu0 0
    %3797 = vmatpush2.bf16.msra.mxu0 0
    %3798 = vmatprep.mubr.bf16.mxu0 0
    %3799 = vmatmul.mubr.bf16.gmra.mxu0 %v3764
    %v3800 = vpop.f32.mrf.mxu0
    %v3801 = vadd.f32 0.0, %v3800
    %v3802 = vpop.f32.mrf.mxu0
    %v3803 = vpop.f32.mrf.mxu0
    %v3804 = vadd.f32 0.0, %v3803
    %v3805 = vpop.f32.mrf.mxu0
    %3806 = vdwg.mxu0
    %3807 = vrot.lane.b32.xlu0 %v629, 64
    %v3808 = vpop.permute.xlu0 %3807
    %v3811 = vsel %vm2224, %v2947, 0
    %3813 = vmatprep.subr.bf16.mxu0 0
    %3814 = vmatpush1.bf16.msra.mxu0 0
    %3815 = vmatprep.subr.bf16.mxu0 0
    %3816 = vmatpush1.bf16.msra.mxu0 0
    %3817 = vmatprep.subr.bf16.mxu0 0
    %3818 = vmatpush1.bf16.msra.mxu0 0
    %3819 = vmatprep.subr.bf16.mxu0 0
    %3820 = vmatpush1.bf16.msra.mxu0 0
    %3821 = vmatprep.subr.bf16.mxu0 0
    %3822 = vmatpush1.bf16.msra.mxu0 0
    %3823 = vmatprep.subr.bf16.mxu0 0
    %3824 = vmatpush1.bf16.msra.mxu0 0
    %3825 = vmatprep.subr.bf16.mxu0 0
    %3826 = vmatpush1.bf16.msra.mxu0 0
    %3827 = vmatprep.subr.bf16.mxu0 0
    %3828 = vmatpush1.bf16.msra.mxu0 %v3808
    %3829 = vmatprep.subr.bf16.mxu0 0
    %3830 = vmatpush2.bf16.msra.mxu0 0
    %3831 = vmatprep.subr.bf16.mxu0 0
    %3832 = vmatpush2.bf16.msra.mxu0 0
    %3833 = vmatprep.subr.bf16.mxu0 0
    %3834 = vmatpush2.bf16.msra.mxu0 0
    %3835 = vmatprep.subr.bf16.mxu0 0
    %3836 = vmatpush2.bf16.msra.mxu0 0
    %3837 = vmatprep.subr.bf16.mxu0 0
    %3838 = vmatpush2.bf16.msra.mxu0 0
    %3839 = vmatprep.subr.bf16.mxu0 0
    %3840 = vmatpush2.bf16.msra.mxu0 0
    %3841 = vmatprep.subr.bf16.mxu0 0
    %3842 = vmatpush2.bf16.msra.mxu0 0
    %3843 = vmatprep.subr.bf16.mxu0 0
    %3844 = vmatpush2.bf16.msra.mxu0 0
    %3845 = vmatprep.mubr.bf16.mxu0 0
    %3846 = vmatmul.mubr.bf16.gmra.mxu0 %v3811
    %v3847 = vpop.f32.mrf.mxu0
    %v3848 = vadd.f32 0.0, %v3847
    %v3849 = vpop.f32.mrf.mxu0
    %v3850 = vpop.f32.mrf.mxu0
    %v3851 = vadd.f32 0.0, %v3850
    %v3852 = vpop.f32.mrf.mxu0
    %3853 = vdwg.mxu0
    %3854 = vrot.lane.b32.xlu0 %v631, 64
    %v3855 = vpop.permute.xlu0 %3854
    %v3858 = vsel %vm2224, %v2948, 0
    %3860 = vmatprep.subr.bf16.mxu0 0
    %3861 = vmatpush1.bf16.msra.mxu0 0
    %3862 = vmatprep.subr.bf16.mxu0 0
    %3863 = vmatpush1.bf16.msra.mxu0 0
    %3864 = vmatprep.subr.bf16.mxu0 0
    %3865 = vmatpush1.bf16.msra.mxu0 0
    %3866 = vmatprep.subr.bf16.mxu0 0
    %3867 = vmatpush1.bf16.msra.mxu0 0
    %3868 = vmatprep.subr.bf16.mxu0 0
    %3869 = vmatpush1.bf16.msra.mxu0 0
    %3870 = vmatprep.subr.bf16.mxu0 0
    %3871 = vmatpush1.bf16.msra.mxu0 0
    %3872 = vmatprep.subr.bf16.mxu0 0
    %3873 = vmatpush1.bf16.msra.mxu0 0
    %3874 = vmatprep.subr.bf16.mxu0 0
    %3875 = vmatpush1.bf16.msra.mxu0 %v3855
    %3876 = vmatprep.subr.bf16.mxu0 0
    %3877 = vmatpush2.bf16.msra.mxu0 0
    %3878 = vmatprep.subr.bf16.mxu0 0
    %3879 = vmatpush2.bf16.msra.mxu0 0
    %3880 = vmatprep.subr.bf16.mxu0 0
    %3881 = vmatpush2.bf16.msra.mxu0 0
    %3882 = vmatprep.subr.bf16.mxu0 0
    %3883 = vmatpush2.bf16.msra.mxu0 0
    %3884 = vmatprep.subr.bf16.mxu0 0
    %3885 = vmatpush2.bf16.msra.mxu0 0
    %3886 = vmatprep.subr.bf16.mxu0 0
    %3887 = vmatpush2.bf16.msra.mxu0 0
    %3888 = vmatprep.subr.bf16.mxu0 0
    %3889 = vmatpush2.bf16.msra.mxu0 0
    %3890 = vmatprep.subr.bf16.mxu0 0
    %3891 = vmatpush2.bf16.msra.mxu0 0
    %3892 = vmatprep.mubr.bf16.mxu0 0
    %3893 = vmatmul.mubr.bf16.gmra.mxu0 %v3858
    %v3894 = vpop.f32.mrf.mxu0
    %v3895 = vadd.f32 0.0, %v3894
    %v3896 = vpop.f32.mrf.mxu0
    %v3897 = vpop.f32.mrf.mxu0
    %v3898 = vadd.f32 0.0, %v3897
    %v3899 = vpop.f32.mrf.mxu0
    %3900 = vdwg.mxu0
    %3901 = vrot.lane.b32.xlu0 %v633, 64
    %v3902 = vpop.permute.xlu0 %3901
    %v3905 = vsel %vm2224, %v2949, 0
    %3907 = vmatprep.subr.bf16.mxu0 0
    %3908 = vmatpush1.bf16.msra.mxu0 0
    %3909 = vmatprep.subr.bf16.mxu0 0
    %3910 = vmatpush1.bf16.msra.mxu0 0
    %3911 = vmatprep.subr.bf16.mxu0 0
    %3912 = vmatpush1.bf16.msra.mxu0 0
    %3913 = vmatprep.subr.bf16.mxu0 0
    %3914 = vmatpush1.bf16.msra.mxu0 0
    %3915 = vmatprep.subr.bf16.mxu0 0
    %3916 = vmatpush1.bf16.msra.mxu0 0
    %3917 = vmatprep.subr.bf16.mxu0 0
    %3918 = vmatpush1.bf16.msra.mxu0 0
    %3919 = vmatprep.subr.bf16.mxu0 0
    %3920 = vmatpush1.bf16.msra.mxu0 0
    %3921 = vmatprep.subr.bf16.mxu0 0
    %3922 = vmatpush1.bf16.msra.mxu0 %v3902
    %3923 = vmatprep.subr.bf16.mxu0 0
    %3924 = vmatpush2.bf16.msra.mxu0 0
    %3925 = vmatprep.subr.bf16.mxu0 0
    %3926 = vmatpush2.bf16.msra.mxu0 0
    %3927 = vmatprep.subr.bf16.mxu0 0
    %3928 = vmatpush2.bf16.msra.mxu0 0
    %3929 = vmatprep.subr.bf16.mxu0 0
    %3930 = vmatpush2.bf16.msra.mxu0 0
    %3931 = vmatprep.subr.bf16.mxu0 0
    %3932 = vmatpush2.bf16.msra.mxu0 0
    %3933 = vmatprep.subr.bf16.mxu0 0
    %3934 = vmatpush2.bf16.msra.mxu0 0
    %3935 = vmatprep.subr.bf16.mxu0 0
    %3936 = vmatpush2.bf16.msra.mxu0 0
    %3937 = vmatprep.subr.bf16.mxu0 0
    %3938 = vmatpush2.bf16.msra.mxu0 0
    %3939 = vmatprep.mubr.bf16.mxu0 0
    %3940 = vmatmul.mubr.bf16.gmra.mxu0 %v3905
    %v3941 = vpop.f32.mrf.mxu0
    %v3942 = vadd.f32 0.0, %v3941
    %v3943 = vpop.f32.mrf.mxu0
    %v3944 = vpop.f32.mrf.mxu0
    %v3945 = vadd.f32 0.0, %v3944
    %v3946 = vpop.f32.mrf.mxu0
    %3947 = vdwg.mxu0
    %3948 = vrot.lane.b32.xlu0 %v635, 64
    %v3949 = vpop.permute.xlu0 %3948
    %v3952 = vsel %vm2224, %v2950, 0
    %3954 = vmatprep.subr.bf16.mxu0 0
    %3955 = vmatpush1.bf16.msra.mxu0 0
    %3956 = vmatprep.subr.bf16.mxu0 0
    %3957 = vmatpush1.bf16.msra.mxu0 0
    %3958 = vmatprep.subr.bf16.mxu0 0
    %3959 = vmatpush1.bf16.msra.mxu0 0
    %3960 = vmatprep.subr.bf16.mxu0 0
    %3961 = vmatpush1.bf16.msra.mxu0 0
    %3962 = vmatprep.subr.bf16.mxu0 0
    %3963 = vmatpush1.bf16.msra.mxu0 0
    %3964 = vmatprep.subr.bf16.mxu0 0
    %3965 = vmatpush1.bf16.msra.mxu0 0
    %3966 = vmatprep.subr.bf16.mxu0 0
    %3967 = vmatpush1.bf16.msra.mxu0 0
    %3968 = vmatprep.subr.bf16.mxu0 0
    %3969 = vmatpush1.bf16.msra.mxu0 %v3949
    %3970 = vmatprep.subr.bf16.mxu0 0
    %3971 = vmatpush2.bf16.msra.mxu0 0
    %3972 = vmatprep.subr.bf16.mxu0 0
    %3973 = vmatpush2.bf16.msra.mxu0 0
    %3974 = vmatprep.subr.bf16.mxu0 0
    %3975 = vmatpush2.bf16.msra.mxu0 0
    %3976 = vmatprep.subr.bf16.mxu0 0
    %3977 = vmatpush2.bf16.msra.mxu0 0
    %3978 = vmatprep.subr.bf16.mxu0 0
    %3979 = vmatpush2.bf16.msra.mxu0 0
    %3980 = vmatprep.subr.bf16.mxu0 0
    %3981 = vmatpush2.bf16.msra.mxu0 0
    %3982 = vmatprep.subr.bf16.mxu0 0
    %3983 = vmatpush2.bf16.msra.mxu0 0
    %3984 = vmatprep.subr.bf16.mxu0 0
    %3985 = vmatpush2.bf16.msra.mxu0 0
    %3986 = vmatprep.mubr.bf16.mxu0 0
    %3987 = vmatmul.mubr.bf16.gmra.mxu0 %v3952
    %v3988 = vpop.f32.mrf.mxu0
    %v3989 = vadd.f32 0.0, %v3988
    %v3990 = vpop.f32.mrf.mxu0
    %v3991 = vpop.f32.mrf.mxu0
    %v3992 = vadd.f32 0.0, %v3991
    %v3993 = vpop.f32.mrf.mxu0
    %3994 = vdwg.mxu0
    %3995 = vrot.lane.b32.xlu0 %v637, 64
    %v3996 = vpop.permute.xlu0 %3995
    %v3999 = vsel %vm2224, %v2951, 0
    %4001 = vmatprep.subr.bf16.mxu0 0
    %4002 = vmatpush1.bf16.msra.mxu0 0
    %4003 = vmatprep.subr.bf16.mxu0 0
    %4004 = vmatpush1.bf16.msra.mxu0 0
    %4005 = vmatprep.subr.bf16.mxu0 0
    %4006 = vmatpush1.bf16.msra.mxu0 0
    %4007 = vmatprep.subr.bf16.mxu0 0
    %4008 = vmatpush1.bf16.msra.mxu0 0
    %4009 = vmatprep.subr.bf16.mxu0 0
    %4010 = vmatpush1.bf16.msra.mxu0 0
    %4011 = vmatprep.subr.bf16.mxu0 0
    %4012 = vmatpush1.bf16.msra.mxu0 0
    %4013 = vmatprep.subr.bf16.mxu0 0
    %4014 = vmatpush1.bf16.msra.mxu0 0
    %4015 = vmatprep.subr.bf16.mxu0 0
    %4016 = vmatpush1.bf16.msra.mxu0 %v3996
    %4017 = vmatprep.subr.bf16.mxu0 0
    %4018 = vmatpush2.bf16.msra.mxu0 0
    %4019 = vmatprep.subr.bf16.mxu0 0
    %4020 = vmatpush2.bf16.msra.mxu0 0
    %4021 = vmatprep.subr.bf16.mxu0 0
    %4022 = vmatpush2.bf16.msra.mxu0 0
    %4023 = vmatprep.subr.bf16.mxu0 0
    %4024 = vmatpush2.bf16.msra.mxu0 0
    %4025 = vmatprep.subr.bf16.mxu0 0
    %4026 = vmatpush2.bf16.msra.mxu0 0
    %4027 = vmatprep.subr.bf16.mxu0 0
    %4028 = vmatpush2.bf16.msra.mxu0 0
    %4029 = vmatprep.subr.bf16.mxu0 0
    %4030 = vmatpush2.bf16.msra.mxu0 0
    %4031 = vmatprep.subr.bf16.mxu0 0
    %4032 = vmatpush2.bf16.msra.mxu0 0
    %4033 = vmatprep.mubr.bf16.mxu0 0
    %4034 = vmatmul.mubr.bf16.gmra.mxu0 %v3999
    %v4035 = vpop.f32.mrf.mxu0
    %v4036 = vadd.f32 0.0, %v4035
    %v4037 = vpop.f32.mrf.mxu0
    %v4038 = vpop.f32.mrf.mxu0
    %v4039 = vadd.f32 0.0, %v4038
    %v4040 = vpop.f32.mrf.mxu0
    %4041 = vdwg.mxu0
    %4042 = vrot.lane.b32.xlu0 %v639, 64
    %v4043 = vpop.permute.xlu0 %4042
    %v4046 = vsel %vm2224, %v2952, 0
    %4048 = vmatprep.subr.bf16.mxu0 0
    %4049 = vmatpush1.bf16.msra.mxu0 0
    %4050 = vmatprep.subr.bf16.mxu0 0
    %4051 = vmatpush1.bf16.msra.mxu0 0
    %4052 = vmatprep.subr.bf16.mxu0 0
    %4053 = vmatpush1.bf16.msra.mxu0 0
    %4054 = vmatprep.subr.bf16.mxu0 0
    %4055 = vmatpush1.bf16.msra.mxu0 0
    %4056 = vmatprep.subr.bf16.mxu0 0
    %4057 = vmatpush1.bf16.msra.mxu0 0
    %4058 = vmatprep.subr.bf16.mxu0 0
    %4059 = vmatpush1.bf16.msra.mxu0 0
    %4060 = vmatprep.subr.bf16.mxu0 0
    %4061 = vmatpush1.bf16.msra.mxu0 0
    %4062 = vmatprep.subr.bf16.mxu0 0
    %4063 = vmatpush1.bf16.msra.mxu0 %v4043
    %4064 = vmatprep.subr.bf16.mxu0 0
    %4065 = vmatpush2.bf16.msra.mxu0 0
    %4066 = vmatprep.subr.bf16.mxu0 0
    %4067 = vmatpush2.bf16.msra.mxu0 0
    %4068 = vmatprep.subr.bf16.mxu0 0
    %4069 = vmatpush2.bf16.msra.mxu0 0
    %4070 = vmatprep.subr.bf16.mxu0 0
    %4071 = vmatpush2.bf16.msra.mxu0 0
    %4072 = vmatprep.subr.bf16.mxu0 0
    %4073 = vmatpush2.bf16.msra.mxu0 0
    %4074 = vmatprep.subr.bf16.mxu0 0
    %4075 = vmatpush2.bf16.msra.mxu0 0
    %4076 = vmatprep.subr.bf16.mxu0 0
    %4077 = vmatpush2.bf16.msra.mxu0 0
    %4078 = vmatprep.subr.bf16.mxu0 0
    %4079 = vmatpush2.bf16.msra.mxu0 0
    %4080 = vmatprep.mubr.bf16.mxu0 0
    %4081 = vmatmul.mubr.bf16.gmra.mxu0 %v4046
    %v4082 = vpop.f32.mrf.mxu0
    %v4083 = vadd.f32 0.0, %v4082
    %v4084 = vpop.f32.mrf.mxu0
    %v4085 = vpop.f32.mrf.mxu0
    %v4086 = vadd.f32 0.0, %v4085
    %v4087 = vpop.f32.mrf.mxu0
    %4088 = vdwg.mxu0
    %4089 = vrot.lane.b32.xlu0 %v641, 64
    %v4090 = vpop.permute.xlu0 %4089
    %v4093 = vsel %vm2224, %v2953, 0
    %4095 = vmatprep.subr.bf16.mxu0 0
    %4096 = vmatpush1.bf16.msra.mxu0 0
    %4097 = vmatprep.subr.bf16.mxu0 0
    %4098 = vmatpush1.bf16.msra.mxu0 0
    %4099 = vmatprep.subr.bf16.mxu0 0
    %4100 = vmatpush1.bf16.msra.mxu0 0
    %4101 = vmatprep.subr.bf16.mxu0 0
    %4102 = vmatpush1.bf16.msra.mxu0 0
    %4103 = vmatprep.subr.bf16.mxu0 0
    %4104 = vmatpush1.bf16.msra.mxu0 0
    %4105 = vmatprep.subr.bf16.mxu0 0
    %4106 = vmatpush1.bf16.msra.mxu0 0
    %4107 = vmatprep.subr.bf16.mxu0 0
    %4108 = vmatpush1.bf16.msra.mxu0 0
    %4109 = vmatprep.subr.bf16.mxu0 0
    %4110 = vmatpush1.bf16.msra.mxu0 %v4090
    %4111 = vmatprep.subr.bf16.mxu0 0
    %4112 = vmatpush2.bf16.msra.mxu0 0
    %4113 = vmatprep.subr.bf16.mxu0 0
    %4114 = vmatpush2.bf16.msra.mxu0 0
    %4115 = vmatprep.subr.bf16.mxu0 0
    %4116 = vmatpush2.bf16.msra.mxu0 0
    %4117 = vmatprep.subr.bf16.mxu0 0
    %4118 = vmatpush2.bf16.msra.mxu0 0
    %4119 = vmatprep.subr.bf16.mxu0 0
    %4120 = vmatpush2.bf16.msra.mxu0 0
    %4121 = vmatprep.subr.bf16.mxu0 0
    %4122 = vmatpush2.bf16.msra.mxu0 0
    %4123 = vmatprep.subr.bf16.mxu0 0
    %4124 = vmatpush2.bf16.msra.mxu0 0
    %4125 = vmatprep.subr.bf16.mxu0 0
    %4126 = vmatpush2.bf16.msra.mxu0 0
    %4127 = vmatprep.mubr.bf16.mxu0 0
    %4128 = vmatmul.mubr.bf16.gmra.mxu0 %v4093
    %v4129 = vpop.f32.mrf.mxu0
    %v4130 = vadd.f32 0.0, %v4129
    %v4131 = vpop.f32.mrf.mxu0
    %v4132 = vpop.f32.mrf.mxu0
    %v4133 = vadd.f32 0.0, %v4132
    %v4134 = vpop.f32.mrf.mxu0
    %4135 = vdwg.mxu0
    %4136 = vrot.lane.b32.xlu0 %v643, 64
    %v4137 = vpop.permute.xlu0 %4136
    %v4140 = vsel %vm2224, %v2954, 0
    %4142 = vmatprep.subr.bf16.mxu0 0
    %4143 = vmatpush1.bf16.msra.mxu0 0
    %4144 = vmatprep.subr.bf16.mxu0 0
    %4145 = vmatpush1.bf16.msra.mxu0 0
    %4146 = vmatprep.subr.bf16.mxu0 0
    %4147 = vmatpush1.bf16.msra.mxu0 0
    %4148 = vmatprep.subr.bf16.mxu0 0
    %4149 = vmatpush1.bf16.msra.mxu0 0
    %4150 = vmatprep.subr.bf16.mxu0 0
    %4151 = vmatpush1.bf16.msra.mxu0 0
    %4152 = vmatprep.subr.bf16.mxu0 0
    %4153 = vmatpush1.bf16.msra.mxu0 0
    %4154 = vmatprep.subr.bf16.mxu0 0
    %4155 = vmatpush1.bf16.msra.mxu0 0
    %4156 = vmatprep.subr.bf16.mxu0 0
    %4157 = vmatpush1.bf16.msra.mxu0 %v4137
    %4158 = vmatprep.subr.bf16.mxu0 0
    %4159 = vmatpush2.bf16.msra.mxu0 0
    %4160 = vmatprep.subr.bf16.mxu0 0
    %4161 = vmatpush2.bf16.msra.mxu0 0
    %4162 = vmatprep.subr.bf16.mxu0 0
    %4163 = vmatpush2.bf16.msra.mxu0 0
    %4164 = vmatprep.subr.bf16.mxu0 0
    %4165 = vmatpush2.bf16.msra.mxu0 0
    %4166 = vmatprep.subr.bf16.mxu0 0
    %4167 = vmatpush2.bf16.msra.mxu0 0
    %4168 = vmatprep.subr.bf16.mxu0 0
    %4169 = vmatpush2.bf16.msra.mxu0 0
    %4170 = vmatprep.subr.bf16.mxu0 0
    %4171 = vmatpush2.bf16.msra.mxu0 0
    %4172 = vmatprep.subr.bf16.mxu0 0
    %4173 = vmatpush2.bf16.msra.mxu0 0
    %4174 = vmatprep.mubr.bf16.mxu0 0
    %4175 = vmatmul.mubr.bf16.gmra.mxu0 %v4140
    %v4176 = vpop.f32.mrf.mxu0
    %v4177 = vadd.f32 0.0, %v4176
    %v4178 = vpop.f32.mrf.mxu0
    %v4179 = vpop.f32.mrf.mxu0
    %v4180 = vadd.f32 0.0, %v4179
    %v4181 = vpop.f32.mrf.mxu0
    %4182 = vdwg.mxu0
    %4183 = vrot.lane.b32.xlu0 %v645, 64
    %v4184 = vpop.permute.xlu0 %4183
    %v4187 = vsel %vm2224, %v2955, 0
    %4189 = vmatprep.subr.bf16.mxu0 0
    %4190 = vmatpush1.bf16.msra.mxu0 0
    %4191 = vmatprep.subr.bf16.mxu0 0
    %4192 = vmatpush1.bf16.msra.mxu0 0
    %4193 = vmatprep.subr.bf16.mxu0 0
    %4194 = vmatpush1.bf16.msra.mxu0 0
    %4195 = vmatprep.subr.bf16.mxu0 0
    %4196 = vmatpush1.bf16.msra.mxu0 0
    %4197 = vmatprep.subr.bf16.mxu0 0
    %4198 = vmatpush1.bf16.msra.mxu0 0
    %4199 = vmatprep.subr.bf16.mxu0 0
    %4200 = vmatpush1.bf16.msra.mxu0 0
    %4201 = vmatprep.subr.bf16.mxu0 0
    %4202 = vmatpush1.bf16.msra.mxu0 0
    %4203 = vmatprep.subr.bf16.mxu0 0
    %4204 = vmatpush1.bf16.msra.mxu0 %v4184
    %4205 = vmatprep.subr.bf16.mxu0 0
    %4206 = vmatpush2.bf16.msra.mxu0 0
    %4207 = vmatprep.subr.bf16.mxu0 0
    %4208 = vmatpush2.bf16.msra.mxu0 0
    %4209 = vmatprep.subr.bf16.mxu0 0
    %4210 = vmatpush2.bf16.msra.mxu0 0
    %4211 = vmatprep.subr.bf16.mxu0 0
    %4212 = vmatpush2.bf16.msra.mxu0 0
    %4213 = vmatprep.subr.bf16.mxu0 0
    %4214 = vmatpush2.bf16.msra.mxu0 0
    %4215 = vmatprep.subr.bf16.mxu0 0
    %4216 = vmatpush2.bf16.msra.mxu0 0
    %4217 = vmatprep.subr.bf16.mxu0 0
    %4218 = vmatpush2.bf16.msra.mxu0 0
    %4219 = vmatprep.subr.bf16.mxu0 0
    %4220 = vmatpush2.bf16.msra.mxu0 0
    %4221 = vmatprep.mubr.bf16.mxu0 0
    %4222 = vmatmul.mubr.bf16.gmra.mxu0 %v4187
    %v4223 = vpop.f32.mrf.mxu0
    %v4224 = vadd.f32 0.0, %v4223
    %v4225 = vpop.f32.mrf.mxu0
    %v4226 = vpop.f32.mrf.mxu0
    %v4227 = vadd.f32 0.0, %v4226
    %v4228 = vpop.f32.mrf.mxu0
    %4229 = vdwg.mxu0
    %4230 = vrot.lane.b32.xlu0 %v647, 64
    %v4231 = vpop.permute.xlu0 %4230
    %v4234 = vsel %vm2224, %v2956, 0
    %4236 = vmatprep.subr.bf16.mxu0 0
    %4237 = vmatpush1.bf16.msra.mxu0 0
    %4238 = vmatprep.subr.bf16.mxu0 0
    %4239 = vmatpush1.bf16.msra.mxu0 0
    %4240 = vmatprep.subr.bf16.mxu0 0
    %4241 = vmatpush1.bf16.msra.mxu0 0
    %4242 = vmatprep.subr.bf16.mxu0 0
    %4243 = vmatpush1.bf16.msra.mxu0 0
    %4244 = vmatprep.subr.bf16.mxu0 0
    %4245 = vmatpush1.bf16.msra.mxu0 0
    %4246 = vmatprep.subr.bf16.mxu0 0
    %4247 = vmatpush1.bf16.msra.mxu0 0
    %4248 = vmatprep.subr.bf16.mxu0 0
    %4249 = vmatpush1.bf16.msra.mxu0 0
    %4250 = vmatprep.subr.bf16.mxu0 0
    %4251 = vmatpush1.bf16.msra.mxu0 %v4231
    %4252 = vmatprep.subr.bf16.mxu0 0
    %4253 = vmatpush2.bf16.msra.mxu0 0
    %4254 = vmatprep.subr.bf16.mxu0 0
    %4255 = vmatpush2.bf16.msra.mxu0 0
    %4256 = vmatprep.subr.bf16.mxu0 0
    %4257 = vmatpush2.bf16.msra.mxu0 0
    %4258 = vmatprep.subr.bf16.mxu0 0
    %4259 = vmatpush2.bf16.msra.mxu0 0
    %4260 = vmatprep.subr.bf16.mxu0 0
    %4261 = vmatpush2.bf16.msra.mxu0 0
    %4262 = vmatprep.subr.bf16.mxu0 0
    %4263 = vmatpush2.bf16.msra.mxu0 0
    %4264 = vmatprep.subr.bf16.mxu0 0
    %4265 = vmatpush2.bf16.msra.mxu0 0
    %4266 = vmatprep.subr.bf16.mxu0 0
    %4267 = vmatpush2.bf16.msra.mxu0 0
    %4268 = vmatprep.mubr.bf16.mxu0 0
    %4269 = vmatmul.mubr.bf16.gmra.mxu0 %v4234
    %v4270 = vpop.f32.mrf.mxu0
    %v4271 = vadd.f32 0.0, %v4270
    %v4272 = vpop.f32.mrf.mxu0
    %v4273 = vpop.f32.mrf.mxu0
    %v4274 = vadd.f32 0.0, %v4273
    %v4275 = vpop.f32.mrf.mxu0
    %4276 = vdwg.mxu0
    %4277 = vrot.lane.b32.xlu0 %v649, 64
    %v4278 = vpop.permute.xlu0 %4277
    %v4281 = vsel %vm2224, %v2957, 0
    %4283 = vmatprep.subr.bf16.mxu0 0
    %4284 = vmatpush1.bf16.msra.mxu0 0
    %4285 = vmatprep.subr.bf16.mxu0 0
    %4286 = vmatpush1.bf16.msra.mxu0 0
    %4287 = vmatprep.subr.bf16.mxu0 0
    %4288 = vmatpush1.bf16.msra.mxu0 0
    %4289 = vmatprep.subr.bf16.mxu0 0
    %4290 = vmatpush1.bf16.msra.mxu0 0
    %4291 = vmatprep.subr.bf16.mxu0 0
    %4292 = vmatpush1.bf16.msra.mxu0 0
    %4293 = vmatprep.subr.bf16.mxu0 0
    %4294 = vmatpush1.bf16.msra.mxu0 0
    %4295 = vmatprep.subr.bf16.mxu0 0
    %4296 = vmatpush1.bf16.msra.mxu0 0
    %4297 = vmatprep.subr.bf16.mxu0 0
    %4298 = vmatpush1.bf16.msra.mxu0 %v4278
    %4299 = vmatprep.subr.bf16.mxu0 0
    %4300 = vmatpush2.bf16.msra.mxu0 0
    %4301 = vmatprep.subr.bf16.mxu0 0
    %4302 = vmatpush2.bf16.msra.mxu0 0
    %4303 = vmatprep.subr.bf16.mxu0 0
    %4304 = vmatpush2.bf16.msra.mxu0 0
    %4305 = vmatprep.subr.bf16.mxu0 0
    %4306 = vmatpush2.bf16.msra.mxu0 0
    %4307 = vmatprep.subr.bf16.mxu0 0
    %4308 = vmatpush2.bf16.msra.mxu0 0
    %4309 = vmatprep.subr.bf16.mxu0 0
    %4310 = vmatpush2.bf16.msra.mxu0 0
    %4311 = vmatprep.subr.bf16.mxu0 0
    %4312 = vmatpush2.bf16.msra.mxu0 0
    %4313 = vmatprep.subr.bf16.mxu0 0
    %4314 = vmatpush2.bf16.msra.mxu0 0
    %4315 = vmatprep.mubr.bf16.mxu0 0
    %4316 = vmatmul.mubr.bf16.gmra.mxu0 %v4281
    %v4317 = vpop.f32.mrf.mxu0
    %v4318 = vadd.f32 0.0, %v4317
    %v4319 = vpop.f32.mrf.mxu0
    %v4320 = vpop.f32.mrf.mxu0
    %v4321 = vadd.f32 0.0, %v4320
    %v4322 = vpop.f32.mrf.mxu0
    %4323 = vdwg.mxu0
    %4324 = vrot.lane.b32.xlu0 %v651, 64
    %v4325 = vpop.permute.xlu0 %4324
    %v4328 = vsel %vm2224, %v2958, 0
    %4330 = vmatprep.subr.bf16.mxu0 0
    %4331 = vmatpush1.bf16.msra.mxu0 0
    %4332 = vmatprep.subr.bf16.mxu0 0
    %4333 = vmatpush1.bf16.msra.mxu0 0
    %4334 = vmatprep.subr.bf16.mxu0 0
    %4335 = vmatpush1.bf16.msra.mxu0 0
    %4336 = vmatprep.subr.bf16.mxu0 0
    %4337 = vmatpush1.bf16.msra.mxu0 0
    %4338 = vmatprep.subr.bf16.mxu0 0
    %4339 = vmatpush1.bf16.msra.mxu0 0
    %4340 = vmatprep.subr.bf16.mxu0 0
    %4341 = vmatpush1.bf16.msra.mxu0 0
    %4342 = vmatprep.subr.bf16.mxu0 0
    %4343 = vmatpush1.bf16.msra.mxu0 0
    %4344 = vmatprep.subr.bf16.mxu0 0
    %4345 = vmatpush1.bf16.msra.mxu0 %v4325
    %4346 = vmatprep.subr.bf16.mxu0 0
    %4347 = vmatpush2.bf16.msra.mxu0 0
    %4348 = vmatprep.subr.bf16.mxu0 0
    %4349 = vmatpush2.bf16.msra.mxu0 0
    %4350 = vmatprep.subr.bf16.mxu0 0
    %4351 = vmatpush2.bf16.msra.mxu0 0
    %4352 = vmatprep.subr.bf16.mxu0 0
    %4353 = vmatpush2.bf16.msra.mxu0 0
    %4354 = vmatprep.subr.bf16.mxu0 0
    %4355 = vmatpush2.bf16.msra.mxu0 0
    %4356 = vmatprep.subr.bf16.mxu0 0
    %4357 = vmatpush2.bf16.msra.mxu0 0
    %4358 = vmatprep.subr.bf16.mxu0 0
    %4359 = vmatpush2.bf16.msra.mxu0 0
    %4360 = vmatprep.subr.bf16.mxu0 0
    %4361 = vmatpush2.bf16.msra.mxu0 0
    %4362 = vmatprep.mubr.bf16.mxu0 0
    %4363 = vmatmul.mubr.bf16.gmra.mxu0 %v4328
    %v4364 = vpop.f32.mrf.mxu0
    %v4365 = vadd.f32 0.0, %v4364
    %v4366 = vpop.f32.mrf.mxu0
    %v4367 = vpop.f32.mrf.mxu0
    %v4368 = vadd.f32 0.0, %v4367
    %v4369 = vpop.f32.mrf.mxu0
    %4370 = vdwg.mxu0
    %4371 = vrot.lane.b32.xlu0 %v653, 64
    %v4372 = vpop.permute.xlu0 %4371
    %v4375 = vsel %vm2224, %v2959, 0
    %4377 = vmatprep.subr.bf16.mxu0 0
    %4378 = vmatpush1.bf16.msra.mxu0 0
    %4379 = vmatprep.subr.bf16.mxu0 0
    %4380 = vmatpush1.bf16.msra.mxu0 0
    %4381 = vmatprep.subr.bf16.mxu0 0
    %4382 = vmatpush1.bf16.msra.mxu0 0
    %4383 = vmatprep.subr.bf16.mxu0 0
    %4384 = vmatpush1.bf16.msra.mxu0 0
    %4385 = vmatprep.subr.bf16.mxu0 0
    %4386 = vmatpush1.bf16.msra.mxu0 0
    %4387 = vmatprep.subr.bf16.mxu0 0
    %4388 = vmatpush1.bf16.msra.mxu0 0
    %4389 = vmatprep.subr.bf16.mxu0 0
    %4390 = vmatpush1.bf16.msra.mxu0 0
    %4391 = vmatprep.subr.bf16.mxu0 0
    %4392 = vmatpush1.bf16.msra.mxu0 %v4372
    %4393 = vmatprep.subr.bf16.mxu0 0
    %4394 = vmatpush2.bf16.msra.mxu0 0
    %4395 = vmatprep.subr.bf16.mxu0 0
    %4396 = vmatpush2.bf16.msra.mxu0 0
    %4397 = vmatprep.subr.bf16.mxu0 0
    %4398 = vmatpush2.bf16.msra.mxu0 0
    %4399 = vmatprep.subr.bf16.mxu0 0
    %4400 = vmatpush2.bf16.msra.mxu0 0
    %4401 = vmatprep.subr.bf16.mxu0 0
    %4402 = vmatpush2.bf16.msra.mxu0 0
    %4403 = vmatprep.subr.bf16.mxu0 0
    %4404 = vmatpush2.bf16.msra.mxu0 0
    %4405 = vmatprep.subr.bf16.mxu0 0
    %4406 = vmatpush2.bf16.msra.mxu0 0
    %4407 = vmatprep.subr.bf16.mxu0 0
    %4408 = vmatpush2.bf16.msra.mxu0 0
    %4409 = vmatprep.mubr.bf16.mxu0 0
    %4410 = vmatmul.mubr.bf16.gmra.mxu0 %v4375
    %v4411 = vpop.f32.mrf.mxu0
    %v4412 = vadd.f32 0.0, %v4411
    %v4413 = vpop.f32.mrf.mxu0
    %v4414 = vpop.f32.mrf.mxu0
    %v4415 = vadd.f32 0.0, %v4414
    %v4416 = vpop.f32.mrf.mxu0
    %4417 = vdwg.mxu0
    %4418 = vrot.lane.b32.xlu0 %v655, 64
    %v4419 = vpop.permute.xlu0 %4418
    %v4422 = vsel %vm2224, %v2960, 0
    %4424 = vmatprep.subr.bf16.mxu0 0
    %4425 = vmatpush1.bf16.msra.mxu0 0
    %4426 = vmatprep.subr.bf16.mxu0 0
    %4427 = vmatpush1.bf16.msra.mxu0 0
    %4428 = vmatprep.subr.bf16.mxu0 0
    %4429 = vmatpush1.bf16.msra.mxu0 0
    %4430 = vmatprep.subr.bf16.mxu0 0
    %4431 = vmatpush1.bf16.msra.mxu0 0
    %4432 = vmatprep.subr.bf16.mxu0 0
    %4433 = vmatpush1.bf16.msra.mxu0 0
    %4434 = vmatprep.subr.bf16.mxu0 0
    %4435 = vmatpush1.bf16.msra.mxu0 0
    %4436 = vmatprep.subr.bf16.mxu0 0
    %4437 = vmatpush1.bf16.msra.mxu0 0
    %4438 = vmatprep.subr.bf16.mxu0 0
    %4439 = vmatpush1.bf16.msra.mxu0 %v4419
    %4440 = vmatprep.subr.bf16.mxu0 0
    %4441 = vmatpush2.bf16.msra.mxu0 0
    %4442 = vmatprep.subr.bf16.mxu0 0
    %4443 = vmatpush2.bf16.msra.mxu0 0
    %4444 = vmatprep.subr.bf16.mxu0 0
    %4445 = vmatpush2.bf16.msra.mxu0 0
    %4446 = vmatprep.subr.bf16.mxu0 0
    %4447 = vmatpush2.bf16.msra.mxu0 0
    %4448 = vmatprep.subr.bf16.mxu0 0
    %4449 = vmatpush2.bf16.msra.mxu0 0
    %4450 = vmatprep.subr.bf16.mxu0 0
    %4451 = vmatpush2.bf16.msra.mxu0 0
    %4452 = vmatprep.subr.bf16.mxu0 0
    %4453 = vmatpush2.bf16.msra.mxu0 0
    %4454 = vmatprep.subr.bf16.mxu0 0
    %4455 = vmatpush2.bf16.msra.mxu0 0
    %4456 = vmatprep.mubr.bf16.mxu0 0
    %4457 = vmatmul.mubr.bf16.gmra.mxu0 %v4422
    %v4458 = vpop.f32.mrf.mxu0
    %v4459 = vadd.f32 0.0, %v4458
    %v4460 = vpop.f32.mrf.mxu0
    %v4461 = vpop.f32.mrf.mxu0
    %v4462 = vadd.f32 0.0, %v4461
    %v4463 = vpop.f32.mrf.mxu0
    %4464 = vdwg.mxu0
    %4481 = vrot.lane.b32.xlu0 %v3378, 8
    %v4482 = vpop.permute.xlu0 %4481
    %4483 = vrot.lane.b32.xlu0 %v3381, 8
    %v4484 = vpop.permute.xlu0 %4483
    %4485 = vrot.lane.b32.xlu0 %v3425, 8
    %v4486 = vpop.permute.xlu0 %4485
    %4487 = vrot.lane.b32.xlu0 %v3428, 8
    %v4488 = vpop.permute.xlu0 %4487
    %4489 = vrot.lane.b32.xlu0 %v3472, 8
    %v4490 = vpop.permute.xlu0 %4489
    %4491 = vrot.lane.b32.xlu0 %v3475, 8
    %v4492 = vpop.permute.xlu0 %4491
    %4493 = vrot.lane.b32.xlu0 %v3519, 8
    %v4494 = vpop.permute.xlu0 %4493
    %4495 = vrot.lane.b32.xlu0 %v3522, 8
    %v4496 = vpop.permute.xlu0 %4495
    %4497 = vrot.lane.b32.xlu0 %v3566, 8
    %v4498 = vpop.permute.xlu0 %4497
    %4499 = vrot.lane.b32.xlu0 %v3569, 8
    %v4500 = vpop.permute.xlu0 %4499
    %4501 = vrot.lane.b32.xlu0 %v3613, 8
    %v4502 = vpop.permute.xlu0 %4501
    %4503 = vrot.lane.b32.xlu0 %v3616, 8
    %v4504 = vpop.permute.xlu0 %4503
    %4505 = vrot.lane.b32.xlu0 %v3660, 8
    %v4506 = vpop.permute.xlu0 %4505
    %4507 = vrot.lane.b32.xlu0 %v3663, 8
    %v4508 = vpop.permute.xlu0 %4507
    %4509 = vrot.lane.b32.xlu0 %v3707, 8
    %v4510 = vpop.permute.xlu0 %4509
    %4511 = vrot.lane.b32.xlu0 %v3710, 8
    %v4512 = vpop.permute.xlu0 %4511
    %4545 = vrot.lane.b32.xlu0 %v3754, 16
    %v4546 = vpop.permute.xlu0 %4545
    %4547 = vrot.lane.b32.xlu0 %v3757, 16
    %v4548 = vpop.permute.xlu0 %4547
    %4549 = vrot.lane.b32.xlu0 %v3801, 16
    %v4550 = vpop.permute.xlu0 %4549
    %4551 = vrot.lane.b32.xlu0 %v3804, 16
    %v4552 = vpop.permute.xlu0 %4551
    %4553 = vrot.lane.b32.xlu0 %v3848, 16
    %v4554 = vpop.permute.xlu0 %4553
    %4555 = vrot.lane.b32.xlu0 %v3851, 16
    %v4556 = vpop.permute.xlu0 %4555
    %4557 = vrot.lane.b32.xlu0 %v3895, 16
    %v4558 = vpop.permute.xlu0 %4557
    %4559 = vrot.lane.b32.xlu0 %v3898, 16
    %v4560 = vpop.permute.xlu0 %4559
    %4561 = vrot.lane.b32.xlu0 %v3942, 16
    %v4562 = vpop.permute.xlu0 %4561
    %4563 = vrot.lane.b32.xlu0 %v3945, 16
    %v4564 = vpop.permute.xlu0 %4563
    %4565 = vrot.lane.b32.xlu0 %v3989, 16
    %v4566 = vpop.permute.xlu0 %4565
    %4567 = vrot.lane.b32.xlu0 %v3992, 16
    %v4568 = vpop.permute.xlu0 %4567
    %4569 = vrot.lane.b32.xlu0 %v4036, 16
    %v4570 = vpop.permute.xlu0 %4569
    %4571 = vrot.lane.b32.xlu0 %v4039, 16
    %v4572 = vpop.permute.xlu0 %4571
    %4573 = vrot.lane.b32.xlu0 %v4083, 16
    %v4574 = vpop.permute.xlu0 %4573
    %4575 = vrot.lane.b32.xlu0 %v4086, 16
    %v4576 = vpop.permute.xlu0 %4575
    %4609 = vrot.lane.b32.xlu0 %v4130, 24
    %v4610 = vpop.permute.xlu0 %4609
    %4611 = vrot.lane.b32.xlu0 %v4133, 24
    %v4612 = vpop.permute.xlu0 %4611
    %4613 = vrot.lane.b32.xlu0 %v4177, 24
    %v4614 = vpop.permute.xlu0 %4613
    %4615 = vrot.lane.b32.xlu0 %v4180, 24
    %v4616 = vpop.permute.xlu0 %4615
    %4617 = vrot.lane.b32.xlu0 %v4224, 24
    %v4618 = vpop.permute.xlu0 %4617
    %4619 = vrot.lane.b32.xlu0 %v4227, 24
    %v4620 = vpop.permute.xlu0 %4619
    %4621 = vrot.lane.b32.xlu0 %v4271, 24
    %v4622 = vpop.permute.xlu0 %4621
    %4623 = vrot.lane.b32.xlu0 %v4274, 24
    %v4624 = vpop.permute.xlu0 %4623
    %4625 = vrot.lane.b32.xlu0 %v4318, 24
    %v4626 = vpop.permute.xlu0 %4625
    %4627 = vrot.lane.b32.xlu0 %v4321, 24
    %v4628 = vpop.permute.xlu0 %4627
    %4629 = vrot.lane.b32.xlu0 %v4365, 24
    %v4630 = vpop.permute.xlu0 %4629
    %4631 = vrot.lane.b32.xlu0 %v4368, 24
    %v4632 = vpop.permute.xlu0 %4631
    %4633 = vrot.lane.b32.xlu0 %v4412, 24
    %v4634 = vpop.permute.xlu0 %4633
    %4635 = vrot.lane.b32.xlu0 %v4415, 24
    %v4636 = vpop.permute.xlu0 %4635
    %4637 = vrot.lane.b32.xlu0 %v4459, 24
    %v4638 = vpop.permute.xlu0 %4637
    %4639 = vrot.lane.b32.xlu0 %v4462, 24
    %v4640 = vpop.permute.xlu0 %4639
    %v4657 = vsel %vm162, %v3002, %v4482
    %v4658 = vsel %vm162, %v3005, %v4484
    %v4659 = vsel %vm162, %v3049, %v4486
    %v4660 = vsel %vm162, %v3052, %v4488
    %v4661 = vsel %vm162, %v3096, %v4490
    %v4662 = vsel %vm162, %v3099, %v4492
    %v4663 = vsel %vm162, %v3143, %v4494
    %v4664 = vsel %vm162, %v3146, %v4496
    %v4665 = vsel %vm162, %v3190, %v4498
    %v4666 = vsel %vm162, %v3193, %v4500
    %v4667 = vsel %vm162, %v3237, %v4502
    %v4668 = vsel %vm162, %v3240, %v4504
    %v4669 = vsel %vm162, %v3284, %v4506
    %v4670 = vsel %vm162, %v3287, %v4508
    %v4671 = vsel %vm162, %v3331, %v4510
    %v4672 = vsel %vm162, %v3334, %v4512
    %v4673 = vsel %vm2224, %v4657, %v4546
    %v4674 = vsel %vm2224, %v4658, %v4548
    %v4675 = vsel %vm2224, %v4659, %v4550
    %v4676 = vsel %vm2224, %v4660, %v4552
    %v4677 = vsel %vm2224, %v4661, %v4554
    %v4678 = vsel %vm2224, %v4662, %v4556
    %v4679 = vsel %vm2224, %v4663, %v4558
    %v4680 = vsel %vm2224, %v4664, %v4560
    %v4681 = vsel %vm2224, %v4665, %v4562
    %v4682 = vsel %vm2224, %v4666, %v4564
    %v4683 = vsel %vm2224, %v4667, %v4566
    %v4684 = vsel %vm2224, %v4668, %v4568
    %v4685 = vsel %vm2224, %v4669, %v4570
    %v4686 = vsel %vm2224, %v4670, %v4572
    %v4687 = vsel %vm2224, %v4671, %v4574
    %v4688 = vsel %vm2224, %v4672, %v4576
    %vm4689 = vcmask 195584
    %v4690 = vsel %vm4689, %v4673, %v4610
    %v4691 = vsel %vm4689, %v4674, %v4612
    %v4692 = vsel %vm4689, %v4675, %v4614
    %v4693 = vsel %vm4689, %v4676, %v4616
    %v4694 = vsel %vm4689, %v4677, %v4618
    %v4695 = vsel %vm4689, %v4678, %v4620
    %v4696 = vsel %vm4689, %v4679, %v4622
    %v4697 = vsel %vm4689, %v4680, %v4624
    %v4698 = vsel %vm4689, %v4681, %v4626
    %v4699 = vsel %vm4689, %v4682, %v4628
    %v4700 = vsel %vm4689, %v4683, %v4630
    %v4701 = vsel %vm4689, %v4684, %v4632
    %v4702 = vsel %vm4689, %v4685, %v4634
    %v4703 = vsel %vm4689, %v4686, %v4636
    %v4704 = vsel %vm4689, %v4687, %v4638
    %v4705 = vsel %vm4689, %v4688, %v4640
    %v4706 = vpack.c.bf16 %v4691, %v4690
    %v4707 = vpack.c.bf16 %v4693, %v4692
    %v4708 = vpack.c.bf16 %v4695, %v4694
    %v4709 = vpack.c.bf16 %v4697, %v4696
    %v4710 = vpack.c.bf16 %v4699, %v4698
    %v4711 = vpack.c.bf16 %v4701, %v4700
    %v4712 = vpack.c.bf16 %v4703, %v4702
    %v4713 = vpack.c.bf16 %v4705, %v4704
    %v4714 = vld [vmem:[#allocation4 + $0x168] sm:$0xff]
    %v4715 = vld [vmem:[#allocation4 + $0x170] sm:$0xff]
    %v4716 = vld [vmem:[#allocation4 + $0x178] sm:$0xff]
    %v4717 = vld [vmem:[#allocation4 + $0x180] sm:$0xff]
    %v4718 = vpack.c.bf16 %v4715, %v4714
    %v4719 = vpack.c.bf16 %v4717, %v4716
    %v4720 = vld [vmem:[#allocation4 + $0x188] sm:$0x1]
    %v4721 = vlaneseq
    %v4722 = vshrl.u32 %v4721, 7
    %v4723 = vsub.s32 0, %v4722
    %v4724 = vrot.slane %v4720, %v4723
    %v4726 = vsel %vm470, %v4706, 0
    %v4729 = vsel %vm470, %v4707, 0
    %v4732 = vsel %vm470, %v4708, 0
    %v4735 = vsel %vm470, %v4709, 0
    %v4738 = vsel %vm470, %v4710, 0
    %v4741 = vsel %vm470, %v4711, 0
    %v4744 = vsel %vm470, %v4712, 0
    %v4747 = vsel %vm470, %v4713, 0
    %4749 = vmatprep.subr.bf16.mxu0 0
    %4750 = vmatpush1.bf16.msra.mxu0 0
    %4751 = vmatprep.subr.bf16.mxu0 0
    %4752 = vmatpush1.bf16.msra.mxu0 0
    %4753 = vmatprep.subr.bf16.mxu0 0
    %4754 = vmatpush1.bf16.msra.mxu0 0
    %4755 = vmatprep.subr.bf16.mxu0 0
    %4756 = vmatpush1.bf16.msra.mxu0 0
    %4757 = vmatprep.subr.bf16.mxu0 0
    %4758 = vmatpush1.bf16.msra.mxu0 0
    %4759 = vmatprep.subr.bf16.mxu0 0
    %4760 = vmatpush1.bf16.msra.mxu0 0
    %4761 = vmatprep.subr.bf16.mxu0 0
    %4762 = vmatpush1.bf16.msra.mxu0 %v4719
    %4763 = vmatprep.subr.bf16.mxu0 0
    %4764 = vmatpush1.bf16.msra.mxu0 %v4718
    %4765 = vmatprep.subr.bf16.mxu0 0
    %4766 = vmatpush2.bf16.msra.mxu0 0
    %4767 = vmatprep.subr.bf16.mxu0 0
    %4768 = vmatpush2.bf16.msra.mxu0 0
    %4769 = vmatprep.subr.bf16.mxu0 0
    %4770 = vmatpush2.bf16.msra.mxu0 0
    %4771 = vmatprep.subr.bf16.mxu0 0
    %4772 = vmatpush2.bf16.msra.mxu0 0
    %4773 = vmatprep.subr.bf16.mxu0 0
    %4774 = vmatpush2.bf16.msra.mxu0 0
    %4775 = vmatprep.subr.bf16.mxu0 0
    %4776 = vmatpush2.bf16.msra.mxu0 0
    %4777 = vmatprep.subr.bf16.mxu0 0
    %4778 = vmatpush2.bf16.msra.mxu0 0
    %4779 = vmatprep.subr.bf16.mxu0 0
    %4780 = vmatpush2.bf16.msra.mxu0 0
    %4781 = vmatprep.mubr.bf16.mxu0 0
    %4782 = vmatmul.mubr.bf16.gmra.mxu0 %v4726
    %v4783 = vpop.f32.mrf.mxu0
    %v4784 = vadd.f32 %v4724, %v4783
    %v4785 = vpop.f32.mrf.mxu0
    %v4786 = vpop.f32.mrf.mxu0
    %v4787 = vadd.f32 %v4724, %v4786
    %v4788 = vpop.f32.mrf.mxu0
    %4789 = vmatprep.mubr.bf16.mxu0 0
    %4790 = vmatmul.mubr.bf16.gmra.mxu0 %v4729
    %v4791 = vpop.f32.mrf.mxu0
    %v4792 = vadd.f32 %v4724, %v4791
    %v4793 = vpop.f32.mrf.mxu0
    %v4794 = vpop.f32.mrf.mxu0
    %v4795 = vadd.f32 %v4724, %v4794
    %v4796 = vpop.f32.mrf.mxu0
    %4797 = vmatprep.mubr.bf16.mxu0 0
    %4798 = vmatmul.mubr.bf16.gmra.mxu0 %v4732
    %v4799 = vpop.f32.mrf.mxu0
    %v4800 = vadd.f32 %v4724, %v4799
    %v4801 = vpop.f32.mrf.mxu0
    %v4802 = vpop.f32.mrf.mxu0
    %v4803 = vadd.f32 %v4724, %v4802
    %v4804 = vpop.f32.mrf.mxu0
    %4805 = vmatprep.mubr.bf16.mxu0 0
    %4806 = vmatmul.mubr.bf16.gmra.mxu0 %v4735
    %v4807 = vpop.f32.mrf.mxu0
    %v4808 = vadd.f32 %v4724, %v4807
    %v4809 = vpop.f32.mrf.mxu0
    %v4810 = vpop.f32.mrf.mxu0
    %v4811 = vadd.f32 %v4724, %v4810
    %v4812 = vpop.f32.mrf.mxu0
    %4813 = vmatprep.mubr.bf16.mxu0 0
    %4814 = vmatmul.mubr.bf16.gmra.mxu0 %v4738
    %v4815 = vpop.f32.mrf.mxu0
    %v4816 = vadd.f32 %v4724, %v4815
    %v4817 = vpop.f32.mrf.mxu0
    %v4818 = vpop.f32.mrf.mxu0
    %v4819 = vadd.f32 %v4724, %v4818
    %v4820 = vpop.f32.mrf.mxu0
    %4821 = vmatprep.mubr.bf16.mxu0 0
    %4822 = vmatmul.mubr.bf16.gmra.mxu0 %v4741
    %v4823 = vpop.f32.mrf.mxu0
    %v4824 = vadd.f32 %v4724, %v4823
    %v4825 = vpop.f32.mrf.mxu0
    %v4826 = vpop.f32.mrf.mxu0
    %v4827 = vadd.f32 %v4724, %v4826
    %v4828 = vpop.f32.mrf.mxu0
    %4829 = vmatprep.mubr.bf16.mxu0 0
    %4830 = vmatmul.mubr.bf16.gmra.mxu0 %v4744
    %v4831 = vpop.f32.mrf.mxu0
    %v4832 = vadd.f32 %v4724, %v4831
    %v4833 = vpop.f32.mrf.mxu0
    %v4834 = vpop.f32.mrf.mxu0
    %v4835 = vadd.f32 %v4724, %v4834
    %v4836 = vpop.f32.mrf.mxu0
    %4837 = vmatprep.mubr.bf16.mxu0 0
    %4838 = vmatmul.mubr.bf16.gmra.mxu0 %v4747
    %v4839 = vpop.f32.mrf.mxu0
    %v4840 = vadd.f32 %v4724, %v4839
    %v4841 = vpop.f32.mrf.mxu0
    %v4842 = vpop.f32.mrf.mxu0
    %v4843 = vadd.f32 %v4724, %v4842
    %v4844 = vpop.f32.mrf.mxu0
    %4845 = vdwg.mxu0
    %v4846 = vadd.f32 %v389, %v4784
    %v4847 = vadd.f32 %v392, %v4787
    %v4848 = vadd.f32 %v397, %v4792
    %v4849 = vadd.f32 %v400, %v4795
    %v4850 = vadd.f32 %v405, %v4800
    %v4851 = vadd.f32 %v408, %v4803
    %v4852 = vadd.f32 %v413, %v4808
    %v4853 = vadd.f32 %v416, %v4811
    %v4854 = vadd.f32 %v421, %v4816
    %v4855 = vadd.f32 %v424, %v4819
    %v4856 = vadd.f32 %v429, %v4824
    %v4857 = vadd.f32 %v432, %v4827
    %v4858 = vadd.f32 %v437, %v4832
    %v4859 = vadd.f32 %v440, %v4835
    %v4860 = vadd.f32 %v445, %v4840
    %v4861 = vadd.f32 %v448, %v4843
    %v4862 = vld [vmem:[#allocation4 + $0x190] sm:$0x1]
    %v4863 = vld [vmem:[#allocation4 + $0x198] sm:$0x1]
    %v4864 = vsel %vm470, %v4846, 0.0
    %4865 = vadd.xlane.f32.xlu0 %v4864
    %v4866 = vpop.xlane.xlu0 %4865
    %v4867 = vsel %vm470, %v4847, 0.0
    %4868 = vadd.xlane.f32.xlu0 %v4867
    %v4869 = vpop.xlane.xlu0 %4868
    %v4870 = vsel %vm470, %v4848, 0.0
    %4871 = vadd.xlane.f32.xlu0 %v4870
    %v4872 = vpop.xlane.xlu0 %4871
    %v4873 = vsel %vm470, %v4849, 0.0
    %4874 = vadd.xlane.f32.xlu0 %v4873
    %v4875 = vpop.xlane.xlu0 %4874
    %v4876 = vsel %vm470, %v4850, 0.0
    %4877 = vadd.xlane.f32.xlu0 %v4876
    %v4878 = vpop.xlane.xlu0 %4877
    %v4879 = vsel %vm470, %v4851, 0.0
    %4880 = vadd.xlane.f32.xlu0 %v4879
    %v4881 = vpop.xlane.xlu0 %4880
    %v4882 = vsel %vm470, %v4852, 0.0
    %4883 = vadd.xlane.f32.xlu0 %v4882
    %v4884 = vpop.xlane.xlu0 %4883
    %v4885 = vsel %vm470, %v4853, 0.0
    %4886 = vadd.xlane.f32.xlu0 %v4885
    %v4887 = vpop.xlane.xlu0 %4886
    %v4888 = vsel %vm470, %v4854, 0.0
    %4889 = vadd.xlane.f32.xlu0 %v4888
    %v4890 = vpop.xlane.xlu0 %4889
    %v4891 = vsel %vm470, %v4855, 0.0
    %4892 = vadd.xlane.f32.xlu0 %v4891
    %v4893 = vpop.xlane.xlu0 %4892
    %v4894 = vsel %vm470, %v4856, 0.0
    %4895 = vadd.xlane.f32.xlu0 %v4894
    %v4896 = vpop.xlane.xlu0 %4895
    %v4897 = vsel %vm470, %v4857, 0.0
    %4898 = vadd.xlane.f32.xlu0 %v4897
    %v4899 = vpop.xlane.xlu0 %4898
    %v4900 = vsel %vm470, %v4858, 0.0
    %4901 = vadd.xlane.f32.xlu0 %v4900
    %v4902 = vpop.xlane.xlu0 %4901
    %v4903 = vsel %vm470, %v4859, 0.0
    %4904 = vadd.xlane.f32.xlu0 %v4903
    %v4905 = vpop.xlane.xlu0 %4904
    %v4906 = vsel %vm470, %v4860, 0.0
    %4907 = vadd.xlane.f32.xlu0 %v4906
    %v4908 = vpop.xlane.xlu0 %4907
    %v4909 = vsel %vm470, %v4861, 0.0
    %4910 = vadd.xlane.f32.xlu0 %v4909
    %v4911 = vpop.xlane.xlu0 %4910
    %v4912 = vrcp.pop 32.0
    %v4913 = vmul.f32 %v4866, %v4912
    %v4914 = vmul.f32 %v4869, %v4912
    %v4915 = vmul.f32 %v4872, %v4912
    %v4916 = vmul.f32 %v4875, %v4912
    %v4917 = vmul.f32 %v4878, %v4912
    %v4918 = vmul.f32 %v4881, %v4912
    %v4919 = vmul.f32 %v4884, %v4912
    %v4920 = vmul.f32 %v4887, %v4912
    %v4921 = vmul.f32 %v4890, %v4912
    %v4922 = vmul.f32 %v4893, %v4912
    %v4923 = vmul.f32 %v4896, %v4912
    %v4924 = vmul.f32 %v4899, %v4912
    %v4925 = vmul.f32 %v4902, %v4912
    %v4926 = vmul.f32 %v4905, %v4912
    %v4927 = vmul.f32 %v4908, %v4912
    %v4928 = vmul.f32 %v4911, %v4912
    %v4929 = vsub.f32 %v4846, %v4913
    %v4930 = vsub.f32 %v4847, %v4914
    %v4931 = vsub.f32 %v4848, %v4915
    %v4932 = vsub.f32 %v4849, %v4916
    %v4933 = vsub.f32 %v4850, %v4917
    %v4934 = vsub.f32 %v4851, %v4918
    %v4935 = vsub.f32 %v4852, %v4919
    %v4936 = vsub.f32 %v4853, %v4920
    %v4937 = vsub.f32 %v4854, %v4921
    %v4938 = vsub.f32 %v4855, %v4922
    %v4939 = vsub.f32 %v4856, %v4923
    %v4940 = vsub.f32 %v4857, %v4924
    %v4941 = vsub.f32 %v4858, %v4925
    %v4942 = vsub.f32 %v4859, %v4926
    %v4943 = vsub.f32 %v4860, %v4927
    %v4944 = vsub.f32 %v4861, %v4928
    %v4945 = vmul.f32 %v4929, %v4929
    %v4946 = vmul.f32 %v4930, %v4930
    %v4947 = vmul.f32 %v4931, %v4931
    %v4948 = vmul.f32 %v4932, %v4932
    %v4949 = vmul.f32 %v4933, %v4933
    %v4950 = vmul.f32 %v4934, %v4934
    %v4951 = vmul.f32 %v4935, %v4935
    %v4952 = vmul.f32 %v4936, %v4936
    %v4953 = vmul.f32 %v4937, %v4937
    %v4954 = vmul.f32 %v4938, %v4938
    %v4955 = vmul.f32 %v4939, %v4939
    %v4956 = vmul.f32 %v4940, %v4940
    %v4957 = vmul.f32 %v4941, %v4941
    %v4958 = vmul.f32 %v4942, %v4942
    %v4959 = vmul.f32 %v4943, %v4943
    %v4960 = vmul.f32 %v4944, %v4944
    %v4961 = vsel %vm470, %v4945, 0.0
    %4962 = vadd.xlane.f32.xlu0 %v4961
    %v4963 = vpop.xlane.xlu0 %4962
    %v4964 = vsel %vm470, %v4946, 0.0
    %4965 = vadd.xlane.f32.xlu0 %v4964
    %v4966 = vpop.xlane.xlu0 %4965
    %v4967 = vsel %vm470, %v4947, 0.0
    %4968 = vadd.xlane.f32.xlu0 %v4967
    %v4969 = vpop.xlane.xlu0 %4968
    %v4970 = vsel %vm470, %v4948, 0.0
    %4971 = vadd.xlane.f32.xlu0 %v4970
    %v4972 = vpop.xlane.xlu0 %4971
    %v4973 = vsel %vm470, %v4949, 0.0
    %4974 = vadd.xlane.f32.xlu0 %v4973
    %v4975 = vpop.xlane.xlu0 %4974
    %v4976 = vsel %vm470, %v4950, 0.0
    %4977 = vadd.xlane.f32.xlu0 %v4976
    %v4978 = vpop.xlane.xlu0 %4977
    %v4979 = vsel %vm470, %v4951, 0.0
    %4980 = vadd.xlane.f32.xlu0 %v4979
    %v4981 = vpop.xlane.xlu0 %4980
    %v4982 = vsel %vm470, %v4952, 0.0
    %4983 = vadd.xlane.f32.xlu0 %v4982
    %v4984 = vpop.xlane.xlu0 %4983
    %v4985 = vsel %vm470, %v4953, 0.0
    %4986 = vadd.xlane.f32.xlu0 %v4985
    %v4987 = vpop.xlane.xlu0 %4986
    %v4988 = vsel %vm470, %v4954, 0.0
    %4989 = vadd.xlane.f32.xlu0 %v4988
    %v4990 = vpop.xlane.xlu0 %4989
    %v4991 = vsel %vm470, %v4955, 0.0
    %4992 = vadd.xlane.f32.xlu0 %v4991
    %v4993 = vpop.xlane.xlu0 %4992
    %v4994 = vsel %vm470, %v4956, 0.0
    %4995 = vadd.xlane.f32.xlu0 %v4994
    %v4996 = vpop.xlane.xlu0 %4995
    %v4997 = vsel %vm470, %v4957, 0.0
    %4998 = vadd.xlane.f32.xlu0 %v4997
    %v4999 = vpop.xlane.xlu0 %4998
    %v5000 = vsel %vm470, %v4958, 0.0
    %5001 = vadd.xlane.f32.xlu0 %v5000
    %v5002 = vpop.xlane.xlu0 %5001
    %v5003 = vsel %vm470, %v4959, 0.0
    %5004 = vadd.xlane.f32.xlu0 %v5003
    %v5005 = vpop.xlane.xlu0 %5004
    %v5006 = vsel %vm470, %v4960, 0.0
    %5007 = vadd.xlane.f32.xlu0 %v5006
    %v5008 = vpop.xlane.xlu0 %5007
    %v5009 = vmul.f32 %v4963, %v4912
    %v5010 = vmul.f32 %v4966, %v4912
    %v5011 = vmul.f32 %v4969, %v4912
    %v5012 = vmul.f32 %v4972, %v4912
    %v5013 = vmul.f32 %v4975, %v4912
    %v5014 = vmul.f32 %v4978, %v4912
    %v5015 = vmul.f32 %v4981, %v4912
    %v5016 = vmul.f32 %v4984, %v4912
    %v5017 = vmul.f32 %v4987, %v4912
    %v5018 = vmul.f32 %v4990, %v4912
    %v5019 = vmul.f32 %v4993, %v4912
    %v5020 = vmul.f32 %v4996, %v4912
    %v5021 = vmul.f32 %v4999, %v4912
    %v5022 = vmul.f32 %v5002, %v4912
    %v5023 = vmul.f32 %v5005, %v4912
    %v5024 = vmul.f32 %v5008, %v4912
    %v5025 = vadd.f32 %v5009, 1e-05
    %v5026 = vadd.f32 %v5010, 1e-05
    %v5027 = vadd.f32 %v5011, 1e-05
    %v5028 = vadd.f32 %v5012, 1e-05
    %v5029 = vadd.f32 %v5013, 1e-05
    %v5030 = vadd.f32 %v5014, 1e-05
    %v5031 = vadd.f32 %v5015, 1e-05
    %v5032 = vadd.f32 %v5016, 1e-05
    %v5033 = vadd.f32 %v5017, 1e-05
    %v5034 = vadd.f32 %v5018, 1e-05
    %v5035 = vadd.f32 %v5019, 1e-05
    %v5036 = vadd.f32 %v5020, 1e-05
    %v5037 = vadd.f32 %v5021, 1e-05
    %v5038 = vadd.f32 %v5022, 1e-05
    %v5039 = vadd.f32 %v5023, 1e-05
    %v5040 = vadd.f32 %v5024, 1e-05
    %v5041 = vrsqrt.pop %v5025
    %v5042 = vrsqrt.pop %v5026
    %v5043 = vrsqrt.pop %v5027
    %v5044 = vrsqrt.pop %v5028
    %v5045 = vrsqrt.pop %v5029
    %v5046 = vrsqrt.pop %v5030
    %v5047 = vrsqrt.pop %v5031
    %v5048 = vrsqrt.pop %v5032
    %v5049 = vrsqrt.pop %v5033
    %v5050 = vrsqrt.pop %v5034
    %v5051 = vrsqrt.pop %v5035
    %v5052 = vrsqrt.pop %v5036
    %v5053 = vrsqrt.pop %v5037
    %v5054 = vrsqrt.pop %v5038
    %v5055 = vrsqrt.pop %v5039
    %v5056 = vrsqrt.pop %v5040
    %v5057 = vmul.f32 %v4929, %v5041
    %v5058 = vmul.f32 %v4930, %v5042
    %v5059 = vmul.f32 %v4931, %v5043
    %v5060 = vmul.f32 %v4932, %v5044
    %v5061 = vmul.f32 %v4933, %v5045
    %v5062 = vmul.f32 %v4934, %v5046
    %v5063 = vmul.f32 %v4935, %v5047
    %v5064 = vmul.f32 %v4936, %v5048
    %v5065 = vmul.f32 %v4937, %v5049
    %v5066 = vmul.f32 %v4938, %v5050
    %v5067 = vmul.f32 %v4939, %v5051
    %v5068 = vmul.f32 %v4940, %v5052
    %v5069 = vmul.f32 %v4941, %v5053
    %v5070 = vmul.f32 %v4942, %v5054
    %v5071 = vmul.f32 %v4943, %v5055
    %v5072 = vmul.f32 %v4944, %v5056
    %v5073 = vlaneseq
    %v5074 = vshrl.u32 %v5073, 7
    %v5075 = vsub.s32 0, %v5074
    %v5076 = vrot.slane %v4862, %v5075
    %v5077 = vmul.f32 %v5057, %v5076
    %v5078 = vmul.f32 %v5058, %v5076
    %v5079 = vmul.f32 %v5059, %v5076
    %v5080 = vmul.f32 %v5060, %v5076
    %v5081 = vmul.f32 %v5061, %v5076
    %v5082 = vmul.f32 %v5062, %v5076
    %v5083 = vmul.f32 %v5063, %v5076
    %v5084 = vmul.f32 %v5064, %v5076
    %v5085 = vmul.f32 %v5065, %v5076
    %v5086 = vmul.f32 %v5066, %v5076
    %v5087 = vmul.f32 %v5067, %v5076
    %v5088 = vmul.f32 %v5068, %v5076
    %v5089 = vmul.f32 %v5069, %v5076
    %v5090 = vmul.f32 %v5070, %v5076
    %v5091 = vmul.f32 %v5071, %v5076
    %v5092 = vmul.f32 %v5072, %v5076
    %v5093 = vlaneseq
    %v5094 = vshrl.u32 %v5093, 7
    %v5095 = vsub.s32 0, %v5094
    %v5096 = vrot.slane %v4863, %v5095
    %v5097 = vadd.f32 %v5077, %v5096
    %v5098 = vadd.f32 %v5078, %v5096
    %v5099 = vadd.f32 %v5079, %v5096
    %v5100 = vadd.f32 %v5080, %v5096
    %v5101 = vadd.f32 %v5081, %v5096
    %v5102 = vadd.f32 %v5082, %v5096
    %v5103 = vadd.f32 %v5083, %v5096
    %v5104 = vadd.f32 %v5084, %v5096
    %v5105 = vadd.f32 %v5085, %v5096
    %v5106 = vadd.f32 %v5086, %v5096
    %v5107 = vadd.f32 %v5087, %v5096
    %v5108 = vadd.f32 %v5088, %v5096
    %v5109 = vadd.f32 %v5089, %v5096
    %v5110 = vadd.f32 %v5090, %v5096
    %v5111 = vadd.f32 %v5091, %v5096
    %v5112 = vadd.f32 %v5092, %v5096
    %v5113 = vpack.c.bf16 %v5098, %v5097
    %v5114 = vpack.c.bf16 %v5100, %v5099
    %v5115 = vpack.c.bf16 %v5102, %v5101
    %v5116 = vpack.c.bf16 %v5104, %v5103
    %v5117 = vpack.c.bf16 %v5106, %v5105
    %v5118 = vpack.c.bf16 %v5108, %v5107
    %v5119 = vpack.c.bf16 %v5110, %v5109
    %v5120 = vpack.c.bf16 %v5112, %v5111
    %v5121 = vld [vmem:[#allocation4 + $0x1a0] sm:$0xff]
    %v5122 = vld [vmem:[#allocation4 + $0x1a8] sm:$0xff]
    %v5123 = vld [vmem:[#allocation4 + $0x1b0] sm:$0xff]
    %v5124 = vld [vmem:[#allocation4 + $0x1b8] sm:$0xff]
    %v5125 = vpack.c.bf16 %v5122, %v5121
    %v5126 = vpack.c.bf16 %v5124, %v5123
    %v5127 = vld [vmem:[#allocation4 + $0x1c0] sm:$0x1]
    %v5128 = vlaneseq
    %v5129 = vshrl.u32 %v5128, 7
    %v5130 = vsub.s32 0, %v5129
    %v5131 = vrot.slane %v5127, %v5130
    %v5133 = vsel %vm470, %v5113, 0
    %v5136 = vsel %vm470, %v5114, 0
    %v5139 = vsel %vm470, %v5115, 0
    %v5142 = vsel %vm470, %v5116, 0
    %v5145 = vsel %vm470, %v5117, 0
    %v5148 = vsel %vm470, %v5118, 0
    %v5151 = vsel %vm470, %v5119, 0
    %v5154 = vsel %vm470, %v5120, 0
    %5156 = vmatprep.subr.bf16.mxu0 0
    %5157 = vmatpush1.bf16.msra.mxu0 0
    %5158 = vmatprep.subr.bf16.mxu0 0
    %5159 = vmatpush1.bf16.msra.mxu0 0
    %5160 = vmatprep.subr.bf16.mxu0 0
    %5161 = vmatpush1.bf16.msra.mxu0 0
    %5162 = vmatprep.subr.bf16.mxu0 0
    %5163 = vmatpush1.bf16.msra.mxu0 0
    %5164 = vmatprep.subr.bf16.mxu0 0
    %5165 = vmatpush1.bf16.msra.mxu0 0
    %5166 = vmatprep.subr.bf16.mxu0 0
    %5167 = vmatpush1.bf16.msra.mxu0 0
    %5168 = vmatprep.subr.bf16.mxu0 0
    %5169 = vmatpush1.bf16.msra.mxu0 %v5126
    %5170 = vmatprep.subr.bf16.mxu0 0
    %5171 = vmatpush1.bf16.msra.mxu0 %v5125
    %5172 = vmatprep.subr.bf16.mxu0 0
    %5173 = vmatpush2.bf16.msra.mxu0 0
    %5174 = vmatprep.subr.bf16.mxu0 0
    %5175 = vmatpush2.bf16.msra.mxu0 0
    %5176 = vmatprep.subr.bf16.mxu0 0
    %5177 = vmatpush2.bf16.msra.mxu0 0
    %5178 = vmatprep.subr.bf16.mxu0 0
    %5179 = vmatpush2.bf16.msra.mxu0 0
    %5180 = vmatprep.subr.bf16.mxu0 0
    %5181 = vmatpush2.bf16.msra.mxu0 0
    %5182 = vmatprep.subr.bf16.mxu0 0
    %5183 = vmatpush2.bf16.msra.mxu0 0
    %5184 = vmatprep.subr.bf16.mxu0 0
    %5185 = vmatpush2.bf16.msra.mxu0 0
    %5186 = vmatprep.subr.bf16.mxu0 0
    %5187 = vmatpush2.bf16.msra.mxu0 0
    %5188 = vmatprep.mubr.bf16.mxu0 0
    %5189 = vmatmul.mubr.bf16.gmra.mxu0 %v5133
    %v5190 = vpop.f32.mrf.mxu0
    %v5191 = vadd.f32 %v5131, %v5190
    %v5192 = vpop.f32.mrf.mxu0
    %v5193 = vpop.f32.mrf.mxu0
    %v5194 = vadd.f32 %v5131, %v5193
    %v5195 = vpop.f32.mrf.mxu0
    %5196 = vmatprep.mubr.bf16.mxu0 0
    %5197 = vmatmul.mubr.bf16.gmra.mxu0 %v5136
    %v5198 = vpop.f32.mrf.mxu0
    %v5199 = vadd.f32 %v5131, %v5198
    %v5200 = vpop.f32.mrf.mxu0
    %v5201 = vpop.f32.mrf.mxu0
    %v5202 = vadd.f32 %v5131, %v5201
    %v5203 = vpop.f32.mrf.mxu0
    %5204 = vmatprep.mubr.bf16.mxu0 0
    %5205 = vmatmul.mubr.bf16.gmra.mxu0 %v5139
    %v5206 = vpop.f32.mrf.mxu0
    %v5207 = vadd.f32 %v5131, %v5206
    %v5208 = vpop.f32.mrf.mxu0
    %v5209 = vpop.f32.mrf.mxu0
    %v5210 = vadd.f32 %v5131, %v5209
    %v5211 = vpop.f32.mrf.mxu0
    %5212 = vmatprep.mubr.bf16.mxu0 0
    %5213 = vmatmul.mubr.bf16.gmra.mxu0 %v5142
    %v5214 = vpop.f32.mrf.mxu0
    %v5215 = vadd.f32 %v5131, %v5214
    %v5216 = vpop.f32.mrf.mxu0
    %v5217 = vpop.f32.mrf.mxu0
    %v5218 = vadd.f32 %v5131, %v5217
    %v5219 = vpop.f32.mrf.mxu0
    %5220 = vmatprep.mubr.bf16.mxu0 0
    %5221 = vmatmul.mubr.bf16.gmra.mxu0 %v5145
    %v5222 = vpop.f32.mrf.mxu0
    %v5223 = vadd.f32 %v5131, %v5222
    %v5224 = vpop.f32.mrf.mxu0
    %v5225 = vpop.f32.mrf.mxu0
    %v5226 = vadd.f32 %v5131, %v5225
    %v5227 = vpop.f32.mrf.mxu0
    %5228 = vmatprep.mubr.bf16.mxu0 0
    %5229 = vmatmul.mubr.bf16.gmra.mxu0 %v5148
    %v5230 = vpop.f32.mrf.mxu0
    %v5231 = vadd.f32 %v5131, %v5230
    %v5232 = vpop.f32.mrf.mxu0
    %v5233 = vpop.f32.mrf.mxu0
    %v5234 = vadd.f32 %v5131, %v5233
    %v5235 = vpop.f32.mrf.mxu0
    %5236 = vmatprep.mubr.bf16.mxu0 0
    %5237 = vmatmul.mubr.bf16.gmra.mxu0 %v5151
    %v5238 = vpop.f32.mrf.mxu0
    %v5239 = vadd.f32 %v5131, %v5238
    %v5240 = vpop.f32.mrf.mxu0
    %v5241 = vpop.f32.mrf.mxu0
    %v5242 = vadd.f32 %v5131, %v5241
    %v5243 = vpop.f32.mrf.mxu0
    %5244 = vmatprep.mubr.bf16.mxu0 0
    %5245 = vmatmul.mubr.bf16.gmra.mxu0 %v5154
    %v5246 = vpop.f32.mrf.mxu0
    %v5247 = vadd.f32 %v5131, %v5246
    %v5248 = vpop.f32.mrf.mxu0
    %v5249 = vpop.f32.mrf.mxu0
    %v5250 = vadd.f32 %v5131, %v5249
    %v5251 = vpop.f32.mrf.mxu0
    %5252 = vdwg.mxu0
    %v5253 = vmax.f32 %v5191, 0.0
    %v5254 = vmax.f32 %v5194, 0.0
    %v5255 = vmax.f32 %v5199, 0.0
    %v5256 = vmax.f32 %v5202, 0.0
    %v5257 = vmax.f32 %v5207, 0.0
    %v5258 = vmax.f32 %v5210, 0.0
    %v5259 = vmax.f32 %v5215, 0.0
    %v5260 = vmax.f32 %v5218, 0.0
    %v5261 = vmax.f32 %v5223, 0.0
    %v5262 = vmax.f32 %v5226, 0.0
    %v5263 = vmax.f32 %v5231, 0.0
    %v5264 = vmax.f32 %v5234, 0.0
    %v5265 = vmax.f32 %v5239, 0.0
    %v5266 = vmax.f32 %v5242, 0.0
    %v5267 = vmax.f32 %v5247, 0.0
    %v5268 = vmax.f32 %v5250, 0.0
    %v5269 = vpack.c.bf16 %v5254, %v5253
    %v5270 = vpack.c.bf16 %v5256, %v5255
    %v5271 = vpack.c.bf16 %v5258, %v5257
    %v5272 = vpack.c.bf16 %v5260, %v5259
    %v5273 = vpack.c.bf16 %v5262, %v5261
    %v5274 = vpack.c.bf16 %v5264, %v5263
    %v5275 = vpack.c.bf16 %v5266, %v5265
    %v5276 = vpack.c.bf16 %v5268, %v5267
    %v5277 = vld [vmem:[#allocation4 + $0x1c8] sm:$0xff]
    %v5278 = vld [vmem:[#allocation4 + $0x1d0] sm:$0xff]
    %v5279 = vld [vmem:[#allocation4 + $0x1d8] sm:$0xff]
    %v5280 = vld [vmem:[#allocation4 + $0x1e0] sm:$0xff]
    %v5281 = vld [vmem:[#allocation4 + $0x1e8] sm:$0xff]
    %v5282 = vld [vmem:[#allocation4 + $0x1f0] sm:$0xff]
    %v5283 = vld [vmem:[#allocation4 + $0x1f8] sm:$0xff]
    %v5284 = vld [vmem:[#allocation4 + $0x200] sm:$0xff]
    %v5285 = vpack.c.bf16 %v5278, %v5277
    %v5286 = vpack.c.bf16 %v5280, %v5279
    %v5287 = vpack.c.bf16 %v5282, %v5281
    %v5288 = vpack.c.bf16 %v5284, %v5283
    %v5289 = vld [vmem:[#allocation4 + $0x208] sm:$0x1]
    %v5290 = vlaneseq
    %v5291 = vshrl.u32 %v5290, 7
    %v5292 = vsub.s32 0, %v5291
    %v5293 = vrot.slane %v5289, %v5292
    %v5295 = vsel %vm329, %v5269, 0
    %v5298 = vsel %vm329, %v5270, 0
    %v5301 = vsel %vm329, %v5271, 0
    %v5304 = vsel %vm329, %v5272, 0
    %v5307 = vsel %vm329, %v5273, 0
    %v5310 = vsel %vm329, %v5274, 0
    %v5313 = vsel %vm329, %v5275, 0
    %v5316 = vsel %vm329, %v5276, 0
    %5318 = vmatprep.subr.bf16.mxu0 0
    %5319 = vmatpush1.bf16.msra.mxu0 0
    %5320 = vmatprep.subr.bf16.mxu0 0
    %5321 = vmatpush1.bf16.msra.mxu0 0
    %5322 = vmatprep.subr.bf16.mxu0 0
    %5323 = vmatpush1.bf16.msra.mxu0 0
    %5324 = vmatprep.subr.bf16.mxu0 0
    %5325 = vmatpush1.bf16.msra.mxu0 0
    %5326 = vmatprep.subr.bf16.mxu0 0
    %5327 = vmatpush1.bf16.msra.mxu0 %v5288
    %5328 = vmatprep.subr.bf16.mxu0 0
    %5329 = vmatpush1.bf16.msra.mxu0 %v5287
    %5330 = vmatprep.subr.bf16.mxu0 0
    %5331 = vmatpush1.bf16.msra.mxu0 %v5286
    %5332 = vmatprep.subr.bf16.mxu0 0
    %5333 = vmatpush1.bf16.msra.mxu0 %v5285
    %5334 = vmatprep.subr.bf16.mxu0 0
    %5335 = vmatpush2.bf16.msra.mxu0 0
    %5336 = vmatprep.subr.bf16.mxu0 0
    %5337 = vmatpush2.bf16.msra.mxu0 0
    %5338 = vmatprep.subr.bf16.mxu0 0
    %5339 = vmatpush2.bf16.msra.mxu0 0
    %5340 = vmatprep.subr.bf16.mxu0 0
    %5341 = vmatpush2.bf16.msra.mxu0 0
    %5342 = vmatprep.subr.bf16.mxu0 0
    %5343 = vmatpush2.bf16.msra.mxu0 0
    %5344 = vmatprep.subr.bf16.mxu0 0
    %5345 = vmatpush2.bf16.msra.mxu0 0
    %5346 = vmatprep.subr.bf16.mxu0 0
    %5347 = vmatpush2.bf16.msra.mxu0 0
    %5348 = vmatprep.subr.bf16.mxu0 0
    %5349 = vmatpush2.bf16.msra.mxu0 0
    %5350 = vmatprep.mubr.bf16.mxu0 0
    %5351 = vmatmul.mubr.bf16.gmra.mxu0 %v5295
    %v5352 = vpop.f32.mrf.mxu0
    %v5353 = vadd.f32 %v5293, %v5352
    %v5354 = vpop.f32.mrf.mxu0
    %v5355 = vpop.f32.mrf.mxu0
    %v5356 = vadd.f32 %v5293, %v5355
    %v5357 = vpop.f32.mrf.mxu0
    %5358 = vmatprep.mubr.bf16.mxu0 0
    %5359 = vmatmul.mubr.bf16.gmra.mxu0 %v5298
    %v5360 = vpop.f32.mrf.mxu0
    %v5361 = vadd.f32 %v5293, %v5360
    %v5362 = vpop.f32.mrf.mxu0
    %v5363 = vpop.f32.mrf.mxu0
    %v5364 = vadd.f32 %v5293, %v5363
    %v5365 = vpop.f32.mrf.mxu0
    %5366 = vmatprep.mubr.bf16.mxu0 0
    %5367 = vmatmul.mubr.bf16.gmra.mxu0 %v5301
    %v5368 = vpop.f32.mrf.mxu0
    %v5369 = vadd.f32 %v5293, %v5368
    %v5370 = vpop.f32.mrf.mxu0
    %v5371 = vpop.f32.mrf.mxu0
    %v5372 = vadd.f32 %v5293, %v5371
    %v5373 = vpop.f32.mrf.mxu0
    %5374 = vmatprep.mubr.bf16.mxu0 0
    %5375 = vmatmul.mubr.bf16.gmra.mxu0 %v5304
    %v5376 = vpop.f32.mrf.mxu0
    %v5377 = vadd.f32 %v5293, %v5376
    %v5378 = vpop.f32.mrf.mxu0
    %v5379 = vpop.f32.mrf.mxu0
    %v5380 = vadd.f32 %v5293, %v5379
    %v5381 = vpop.f32.mrf.mxu0
    %5382 = vmatprep.mubr.bf16.mxu0 0
    %5383 = vmatmul.mubr.bf16.gmra.mxu0 %v5307
    %v5384 = vpop.f32.mrf.mxu0
    %v5385 = vadd.f32 %v5293, %v5384
    %v5386 = vpop.f32.mrf.mxu0
    %v5387 = vpop.f32.mrf.mxu0
    %v5388 = vadd.f32 %v5293, %v5387
    %v5389 = vpop.f32.mrf.mxu0
    %5390 = vmatprep.mubr.bf16.mxu0 0
    %5391 = vmatmul.mubr.bf16.gmra.mxu0 %v5310
    %v5392 = vpop.f32.mrf.mxu0
    %v5393 = vadd.f32 %v5293, %v5392
    %v5394 = vpop.f32.mrf.mxu0
    %v5395 = vpop.f32.mrf.mxu0
    %v5396 = vadd.f32 %v5293, %v5395
    %v5397 = vpop.f32.mrf.mxu0
    %5398 = vmatprep.mubr.bf16.mxu0 0
    %5399 = vmatmul.mubr.bf16.gmra.mxu0 %v5313
    %v5400 = vpop.f32.mrf.mxu0
    %v5401 = vadd.f32 %v5293, %v5400
    %v5402 = vpop.f32.mrf.mxu0
    %v5403 = vpop.f32.mrf.mxu0
    %v5404 = vadd.f32 %v5293, %v5403
    %v5405 = vpop.f32.mrf.mxu0
    %5406 = vmatprep.mubr.bf16.mxu0 0
    %5407 = vmatmul.mubr.bf16.gmra.mxu0 %v5316
    %v5408 = vpop.f32.mrf.mxu0
    %v5409 = vadd.f32 %v5293, %v5408
    %v5410 = vpop.f32.mrf.mxu0
    %v5411 = vpop.f32.mrf.mxu0
    %v5412 = vadd.f32 %v5293, %v5411
    %v5413 = vpop.f32.mrf.mxu0
    %5414 = vdwg.mxu0
    %v5415 = vadd.f32 %v5097, %v5353
    %v5416 = vadd.f32 %v5098, %v5356
    %v5417 = vadd.f32 %v5099, %v5361
    %v5418 = vadd.f32 %v5100, %v5364
    %v5419 = vadd.f32 %v5101, %v5369
    %v5420 = vadd.f32 %v5102, %v5372
    %v5421 = vadd.f32 %v5103, %v5377
    %v5422 = vadd.f32 %v5104, %v5380
    %v5423 = vadd.f32 %v5105, %v5385
    %v5424 = vadd.f32 %v5106, %v5388
    %v5425 = vadd.f32 %v5107, %v5393
    %v5426 = vadd.f32 %v5108, %v5396
    %v5427 = vadd.f32 %v5109, %v5401
    %v5428 = vadd.f32 %v5110, %v5404
    %v5429 = vadd.f32 %v5111, %v5409
    %v5430 = vadd.f32 %v5112, %v5412
    %v5431 = vld [vmem:[#allocation4 + $0x210] sm:$0x1]
    %v5432 = vld [vmem:[#allocation4 + $0x218] sm:$0x1]
    %v5433 = vsel %vm470, %v5415, 0.0
    %5434 = vadd.xlane.f32.xlu0 %v5433
    %v5435 = vpop.xlane.xlu0 %5434
    %v5436 = vsel %vm470, %v5416, 0.0
    %5437 = vadd.xlane.f32.xlu0 %v5436
    %v5438 = vpop.xlane.xlu0 %5437
    %v5439 = vsel %vm470, %v5417, 0.0
    %5440 = vadd.xlane.f32.xlu0 %v5439
    %v5441 = vpop.xlane.xlu0 %5440
    %v5442 = vsel %vm470, %v5418, 0.0
    %5443 = vadd.xlane.f32.xlu0 %v5442
    %v5444 = vpop.xlane.xlu0 %5443
    %v5445 = vsel %vm470, %v5419, 0.0
    %5446 = vadd.xlane.f32.xlu0 %v5445
    %v5447 = vpop.xlane.xlu0 %5446
    %v5448 = vsel %vm470, %v5420, 0.0
    %5449 = vadd.xlane.f32.xlu0 %v5448
    %v5450 = vpop.xlane.xlu0 %5449
    %v5451 = vsel %vm470, %v5421, 0.0
    %5452 = vadd.xlane.f32.xlu0 %v5451
    %v5453 = vpop.xlane.xlu0 %5452
    %v5454 = vsel %vm470, %v5422, 0.0
    %5455 = vadd.xlane.f32.xlu0 %v5454
    %v5456 = vpop.xlane.xlu0 %5455
    %v5457 = vsel %vm470, %v5423, 0.0
    %5458 = vadd.xlane.f32.xlu0 %v5457
    %v5459 = vpop.xlane.xlu0 %5458
    %v5460 = vsel %vm470, %v5424, 0.0
    %5461 = vadd.xlane.f32.xlu0 %v5460
    %v5462 = vpop.xlane.xlu0 %5461
    %v5463 = vsel %vm470, %v5425, 0.0
    %5464 = vadd.xlane.f32.xlu0 %v5463
    %v5465 = vpop.xlane.xlu0 %5464
    %v5466 = vsel %vm470, %v5426, 0.0
    %5467 = vadd.xlane.f32.xlu0 %v5466
    %v5468 = vpop.xlane.xlu0 %5467
    %v5469 = vsel %vm470, %v5427, 0.0
    %5470 = vadd.xlane.f32.xlu0 %v5469
    %v5471 = vpop.xlane.xlu0 %5470
    %v5472 = vsel %vm470, %v5428, 0.0
    %5473 = vadd.xlane.f32.xlu0 %v5472
    %v5474 = vpop.xlane.xlu0 %5473
    %v5475 = vsel %vm470, %v5429, 0.0
    %5476 = vadd.xlane.f32.xlu0 %v5475
    %v5477 = vpop.xlane.xlu0 %5476
    %v5478 = vsel %vm470, %v5430, 0.0
    %5479 = vadd.xlane.f32.xlu0 %v5478
    %v5480 = vpop.xlane.xlu0 %5479
    %v5481 = vmul.f32 %v5435, %v4912
    %v5482 = vmul.f32 %v5438, %v4912
    %v5483 = vmul.f32 %v5441, %v4912
    %v5484 = vmul.f32 %v5444, %v4912
    %v5485 = vmul.f32 %v5447, %v4912
    %v5486 = vmul.f32 %v5450, %v4912
    %v5487 = vmul.f32 %v5453, %v4912
    %v5488 = vmul.f32 %v5456, %v4912
    %v5489 = vmul.f32 %v5459, %v4912
    %v5490 = vmul.f32 %v5462, %v4912
    %v5491 = vmul.f32 %v5465, %v4912
    %v5492 = vmul.f32 %v5468, %v4912
    %v5493 = vmul.f32 %v5471, %v4912
    %v5494 = vmul.f32 %v5474, %v4912
    %v5495 = vmul.f32 %v5477, %v4912
    %v5496 = vmul.f32 %v5480, %v4912
    %v5497 = vsub.f32 %v5415, %v5481
    %v5498 = vsub.f32 %v5416, %v5482
    %v5499 = vsub.f32 %v5417, %v5483
    %v5500 = vsub.f32 %v5418, %v5484
    %v5501 = vsub.f32 %v5419, %v5485
    %v5502 = vsub.f32 %v5420, %v5486
    %v5503 = vsub.f32 %v5421, %v5487
    %v5504 = vsub.f32 %v5422, %v5488
    %v5505 = vsub.f32 %v5423, %v5489
    %v5506 = vsub.f32 %v5424, %v5490
    %v5507 = vsub.f32 %v5425, %v5491
    %v5508 = vsub.f32 %v5426, %v5492
    %v5509 = vsub.f32 %v5427, %v5493
    %v5510 = vsub.f32 %v5428, %v5494
    %v5511 = vsub.f32 %v5429, %v5495
    %v5512 = vsub.f32 %v5430, %v5496
    %v5513 = vmul.f32 %v5497, %v5497
    %v5514 = vmul.f32 %v5498, %v5498
    %v5515 = vmul.f32 %v5499, %v5499
    %v5516 = vmul.f32 %v5500, %v5500
    %v5517 = vmul.f32 %v5501, %v5501
    %v5518 = vmul.f32 %v5502, %v5502
    %v5519 = vmul.f32 %v5503, %v5503
    %v5520 = vmul.f32 %v5504, %v5504
    %v5521 = vmul.f32 %v5505, %v5505
    %v5522 = vmul.f32 %v5506, %v5506
    %v5523 = vmul.f32 %v5507, %v5507
    %v5524 = vmul.f32 %v5508, %v5508
    %v5525 = vmul.f32 %v5509, %v5509
    %v5526 = vmul.f32 %v5510, %v5510
    %v5527 = vmul.f32 %v5511, %v5511
    %v5528 = vmul.f32 %v5512, %v5512
    %v5529 = vsel %vm470, %v5513, 0.0
    %5530 = vadd.xlane.f32.xlu0 %v5529
    %v5531 = vpop.xlane.xlu0 %5530
    %v5532 = vsel %vm470, %v5514, 0.0
    %5533 = vadd.xlane.f32.xlu0 %v5532
    %v5534 = vpop.xlane.xlu0 %5533
    %v5535 = vsel %vm470, %v5515, 0.0
    %5536 = vadd.xlane.f32.xlu0 %v5535
    %v5537 = vpop.xlane.xlu0 %5536
    %v5538 = vsel %vm470, %v5516, 0.0
    %5539 = vadd.xlane.f32.xlu0 %v5538
    %v5540 = vpop.xlane.xlu0 %5539
    %v5541 = vsel %vm470, %v5517, 0.0
    %5542 = vadd.xlane.f32.xlu0 %v5541
    %v5543 = vpop.xlane.xlu0 %5542
    %v5544 = vsel %vm470, %v5518, 0.0
    %5545 = vadd.xlane.f32.xlu0 %v5544
    %v5546 = vpop.xlane.xlu0 %5545
    %v5547 = vsel %vm470, %v5519, 0.0
    %5548 = vadd.xlane.f32.xlu0 %v5547
    %v5549 = vpop.xlane.xlu0 %5548
    %v5550 = vsel %vm470, %v5520, 0.0
    %5551 = vadd.xlane.f32.xlu0 %v5550
    %v5552 = vpop.xlane.xlu0 %5551
    %v5553 = vsel %vm470, %v5521, 0.0
    %5554 = vadd.xlane.f32.xlu0 %v5553
    %v5555 = vpop.xlane.xlu0 %5554
    %v5556 = vsel %vm470, %v5522, 0.0
    %5557 = vadd.xlane.f32.xlu0 %v5556
    %v5558 = vpop.xlane.xlu0 %5557
    %v5559 = vsel %vm470, %v5523, 0.0
    %5560 = vadd.xlane.f32.xlu0 %v5559
    %v5561 = vpop.xlane.xlu0 %5560
    %v5562 = vsel %vm470, %v5524, 0.0
    %5563 = vadd.xlane.f32.xlu0 %v5562
    %v5564 = vpop.xlane.xlu0 %5563
    %v5565 = vsel %vm470, %v5525, 0.0
    %5566 = vadd.xlane.f32.xlu0 %v5565
    %v5567 = vpop.xlane.xlu0 %5566
    %v5568 = vsel %vm470, %v5526, 0.0
    %5569 = vadd.xlane.f32.xlu0 %v5568
    %v5570 = vpop.xlane.xlu0 %5569
    %v5571 = vsel %vm470, %v5527, 0.0
    %5572 = vadd.xlane.f32.xlu0 %v5571
    %v5573 = vpop.xlane.xlu0 %5572
    %v5574 = vsel %vm470, %v5528, 0.0
    %5575 = vadd.xlane.f32.xlu0 %v5574
    %v5576 = vpop.xlane.xlu0 %5575
    %v5577 = vmul.f32 %v5531, %v4912
    %v5578 = vmul.f32 %v5534, %v4912
    %v5579 = vmul.f32 %v5537, %v4912
    %v5580 = vmul.f32 %v5540, %v4912
    %v5581 = vmul.f32 %v5543, %v4912
    %v5582 = vmul.f32 %v5546, %v4912
    %v5583 = vmul.f32 %v5549, %v4912
    %v5584 = vmul.f32 %v5552, %v4912
    %v5585 = vmul.f32 %v5555, %v4912
    %v5586 = vmul.f32 %v5558, %v4912
    %v5587 = vmul.f32 %v5561, %v4912
    %v5588 = vmul.f32 %v5564, %v4912
    %v5589 = vmul.f32 %v5567, %v4912
    %v5590 = vmul.f32 %v5570, %v4912
    %v5591 = vmul.f32 %v5573, %v4912
    %v5592 = vmul.f32 %v5576, %v4912
    %v5593 = vadd.f32 %v5577, 1e-05
    %v5594 = vadd.f32 %v5578, 1e-05
    %v5595 = vadd.f32 %v5579, 1e-05
    %v5596 = vadd.f32 %v5580, 1e-05
    %v5597 = vadd.f32 %v5581, 1e-05
    %v5598 = vadd.f32 %v5582, 1e-05
    %v5599 = vadd.f32 %v5583, 1e-05
    %v5600 = vadd.f32 %v5584, 1e-05
    %v5601 = vadd.f32 %v5585, 1e-05
    %v5602 = vadd.f32 %v5586, 1e-05
    %v5603 = vadd.f32 %v5587, 1e-05
    %v5604 = vadd.f32 %v5588, 1e-05
    %v5605 = vadd.f32 %v5589, 1e-05
    %v5606 = vadd.f32 %v5590, 1e-05
    %v5607 = vadd.f32 %v5591, 1e-05
    %v5608 = vadd.f32 %v5592, 1e-05
    %v5609 = vrsqrt.pop %v5593
    %v5610 = vrsqrt.pop %v5594
    %v5611 = vrsqrt.pop %v5595
    %v5612 = vrsqrt.pop %v5596
    %v5613 = vrsqrt.pop %v5597
    %v5614 = vrsqrt.pop %v5598
    %v5615 = vrsqrt.pop %v5599
    %v5616 = vrsqrt.pop %v5600
    %v5617 = vrsqrt.pop %v5601
    %v5618 = vrsqrt.pop %v5602
    %v5619 = vrsqrt.pop %v5603
    %v5620 = vrsqrt.pop %v5604
    %v5621 = vrsqrt.pop %v5605
    %v5622 = vrsqrt.pop %v5606
    %v5623 = vrsqrt.pop %v5607
    %v5624 = vrsqrt.pop %v5608
    %v5625 = vmul.f32 %v5497, %v5609
    %v5626 = vmul.f32 %v5498, %v5610
    %v5627 = vmul.f32 %v5499, %v5611
    %v5628 = vmul.f32 %v5500, %v5612
    %v5629 = vmul.f32 %v5501, %v5613
    %v5630 = vmul.f32 %v5502, %v5614
    %v5631 = vmul.f32 %v5503, %v5615
    %v5632 = vmul.f32 %v5504, %v5616
    %v5633 = vmul.f32 %v5505, %v5617
    %v5634 = vmul.f32 %v5506, %v5618
    %v5635 = vmul.f32 %v5507, %v5619
    %v5636 = vmul.f32 %v5508, %v5620
    %v5637 = vmul.f32 %v5509, %v5621
    %v5638 = vmul.f32 %v5510, %v5622
    %v5639 = vmul.f32 %v5511, %v5623
    %v5640 = vmul.f32 %v5512, %v5624
    %v5641 = vlaneseq
    %v5642 = vshrl.u32 %v5641, 7
    %v5643 = vsub.s32 0, %v5642
    %v5644 = vrot.slane %v5431, %v5643
    %v5645 = vmul.f32 %v5625, %v5644
    %v5646 = vmul.f32 %v5626, %v5644
    %v5647 = vmul.f32 %v5627, %v5644
    %v5648 = vmul.f32 %v5628, %v5644
    %v5649 = vmul.f32 %v5629, %v5644
    %v5650 = vmul.f32 %v5630, %v5644
    %v5651 = vmul.f32 %v5631, %v5644
    %v5652 = vmul.f32 %v5632, %v5644
    %v5653 = vmul.f32 %v5633, %v5644
    %v5654 = vmul.f32 %v5634, %v5644
    %v5655 = vmul.f32 %v5635, %v5644
    %v5656 = vmul.f32 %v5636, %v5644
    %v5657 = vmul.f32 %v5637, %v5644
    %v5658 = vmul.f32 %v5638, %v5644
    %v5659 = vmul.f32 %v5639, %v5644
    %v5660 = vmul.f32 %v5640, %v5644
    %v5661 = vlaneseq
    %v5662 = vshrl.u32 %v5661, 7
    %v5663 = vsub.s32 0, %v5662
    %v5664 = vrot.slane %v5432, %v5663
    %v5665 = vadd.f32 %v5645, %v5664
    %v5666 = vadd.f32 %v5646, %v5664
    %v5667 = vadd.f32 %v5647, %v5664
    %v5668 = vadd.f32 %v5648, %v5664
    %v5669 = vadd.f32 %v5649, %v5664
    %v5670 = vadd.f32 %v5650, %v5664
    %v5671 = vadd.f32 %v5651, %v5664
    %v5672 = vadd.f32 %v5652, %v5664
    %v5673 = vadd.f32 %v5653, %v5664
    %v5674 = vadd.f32 %v5654, %v5664
    %v5675 = vadd.f32 %v5655, %v5664
    %v5676 = vadd.f32 %v5656, %v5664
    %v5677 = vadd.f32 %v5657, %v5664
    %v5678 = vadd.f32 %v5658, %v5664
    %v5679 = vadd.f32 %v5659, %v5664
    %v5680 = vadd.f32 %v5660, %v5664
    %v5681 = vpack.c.bf16 %v5666, %v5665
    %v5682 = vpack.c.bf16 %v5668, %v5667
    %v5683 = vpack.c.bf16 %v5670, %v5669
    %v5684 = vpack.c.bf16 %v5672, %v5671
    %v5685 = vpack.c.bf16 %v5674, %v5673
    %v5686 = vpack.c.bf16 %v5676, %v5675
    %v5687 = vpack.c.bf16 %v5678, %v5677
    %v5688 = vpack.c.bf16 %v5680, %v5679
    %v5689 = vld [vmem:[#allocation4 + $0x220] sm:$0xff]
    %v5690 = vld [vmem:[#allocation4 + $0x228] sm:$0xff]
    %v5691 = vld [vmem:[#allocation4 + $0x230] sm:$0xff]
    %v5692 = vld [vmem:[#allocation4 + $0x238] sm:$0xff]
    %v5693 = vpack.c.bf16 %v5690, %v5689
    %v5694 = vpack.c.bf16 %v5692, %v5691
    %v5695 = vld [vmem:[#allocation4 + $0x240] sm:$0x1]
    %v5696 = vlaneseq
    %v5697 = vshrl.u32 %v5696, 7
    %v5698 = vsub.s32 0, %v5697
    %v5699 = vrot.slane %v5695, %v5698
    %v5701 = vsel %vm470, %v5681, 0
    %v5704 = vsel %vm470, %v5682, 0
    %v5707 = vsel %vm470, %v5683, 0
    %v5710 = vsel %vm470, %v5684, 0
    %v5713 = vsel %vm470, %v5685, 0
    %v5716 = vsel %vm470, %v5686, 0
    %v5719 = vsel %vm470, %v5687, 0
    %v5722 = vsel %vm470, %v5688, 0
    %5724 = vmatprep.subr.bf16.mxu0 0
    %5725 = vmatpush1.bf16.msra.mxu0 0
    %5726 = vmatprep.subr.bf16.mxu0 0
    %5727 = vmatpush1.bf16.msra.mxu0 0
    %5728 = vmatprep.subr.bf16.mxu0 0
    %5729 = vmatpush1.bf16.msra.mxu0 0
    %5730 = vmatprep.subr.bf16.mxu0 0
    %5731 = vmatpush1.bf16.msra.mxu0 0
    %5732 = vmatprep.subr.bf16.mxu0 0
    %5733 = vmatpush1.bf16.msra.mxu0 0
    %5734 = vmatprep.subr.bf16.mxu0 0
    %5735 = vmatpush1.bf16.msra.mxu0 0
    %5736 = vmatprep.subr.bf16.mxu0 0
    %5737 = vmatpush1.bf16.msra.mxu0 %v5694
    %5738 = vmatprep.subr.bf16.mxu0 0
    %5739 = vmatpush1.bf16.msra.mxu0 %v5693
    %5740 = vmatprep.subr.bf16.mxu0 0
    %5741 = vmatpush2.bf16.msra.mxu0 0
    %5742 = vmatprep.subr.bf16.mxu0 0
    %5743 = vmatpush2.bf16.msra.mxu0 0
    %5744 = vmatprep.subr.bf16.mxu0 0
    %5745 = vmatpush2.bf16.msra.mxu0 0
    %5746 = vmatprep.subr.bf16.mxu0 0
    %5747 = vmatpush2.bf16.msra.mxu0 0
    %5748 = vmatprep.subr.bf16.mxu0 0
    %5749 = vmatpush2.bf16.msra.mxu0 0
    %5750 = vmatprep.subr.bf16.mxu0 0
    %5751 = vmatpush2.bf16.msra.mxu0 0
    %5752 = vmatprep.subr.bf16.mxu0 0
    %5753 = vmatpush2.bf16.msra.mxu0 0
    %5754 = vmatprep.subr.bf16.mxu0 0
    %5755 = vmatpush2.bf16.msra.mxu0 0
    %5756 = vmatprep.mubr.bf16.mxu0 0
    %5757 = vmatmul.mubr.bf16.gmra.mxu0 %v5701
    %v5758 = vpop.f32.mrf.mxu0
    %v5759 = vadd.f32 %v5699, %v5758
    %v5760 = vpop.f32.mrf.mxu0
    %v5761 = vpop.f32.mrf.mxu0
    %v5762 = vadd.f32 %v5699, %v5761
    %v5763 = vpop.f32.mrf.mxu0
    %5764 = vmatprep.mubr.bf16.mxu0 0
    %5765 = vmatmul.mubr.bf16.gmra.mxu0 %v5704
    %v5766 = vpop.f32.mrf.mxu0
    %v5767 = vadd.f32 %v5699, %v5766
    %v5768 = vpop.f32.mrf.mxu0
    %v5769 = vpop.f32.mrf.mxu0
    %v5770 = vadd.f32 %v5699, %v5769
    %v5771 = vpop.f32.mrf.mxu0
    %5772 = vmatprep.mubr.bf16.mxu0 0
    %5773 = vmatmul.mubr.bf16.gmra.mxu0 %v5707
    %v5774 = vpop.f32.mrf.mxu0
    %v5775 = vadd.f32 %v5699, %v5774
    %v5776 = vpop.f32.mrf.mxu0
    %v5777 = vpop.f32.mrf.mxu0
    %v5778 = vadd.f32 %v5699, %v5777
    %v5779 = vpop.f32.mrf.mxu0
    %5780 = vmatprep.mubr.bf16.mxu0 0
    %5781 = vmatmul.mubr.bf16.gmra.mxu0 %v5710
    %v5782 = vpop.f32.mrf.mxu0
    %v5783 = vadd.f32 %v5699, %v5782
    %v5784 = vpop.f32.mrf.mxu0
    %v5785 = vpop.f32.mrf.mxu0
    %v5786 = vadd.f32 %v5699, %v5785
    %v5787 = vpop.f32.mrf.mxu0
    %5788 = vmatprep.mubr.bf16.mxu0 0
    %5789 = vmatmul.mubr.bf16.gmra.mxu0 %v5713
    %v5790 = vpop.f32.mrf.mxu0
    %v5791 = vadd.f32 %v5699, %v5790
    %v5792 = vpop.f32.mrf.mxu0
    %v5793 = vpop.f32.mrf.mxu0
    %v5794 = vadd.f32 %v5699, %v5793
    %v5795 = vpop.f32.mrf.mxu0
    %5796 = vmatprep.mubr.bf16.mxu0 0
    %5797 = vmatmul.mubr.bf16.gmra.mxu0 %v5716
    %v5798 = vpop.f32.mrf.mxu0
    %v5799 = vadd.f32 %v5699, %v5798
    %v5800 = vpop.f32.mrf.mxu0
    %v5801 = vpop.f32.mrf.mxu0
    %v5802 = vadd.f32 %v5699, %v5801
    %v5803 = vpop.f32.mrf.mxu0
    %5804 = vmatprep.mubr.bf16.mxu0 0
    %5805 = vmatmul.mubr.bf16.gmra.mxu0 %v5719
    %v5806 = vpop.f32.mrf.mxu0
    %v5807 = vadd.f32 %v5699, %v5806
    %v5808 = vpop.f32.mrf.mxu0
    %v5809 = vpop.f32.mrf.mxu0
    %v5810 = vadd.f32 %v5699, %v5809
    %v5811 = vpop.f32.mrf.mxu0
    %5812 = vmatprep.mubr.bf16.mxu0 0
    %5813 = vmatmul.mubr.bf16.gmra.mxu0 %v5722
    %v5814 = vpop.f32.mrf.mxu0
    %v5815 = vadd.f32 %v5699, %v5814
    %v5816 = vpop.f32.mrf.mxu0
    %v5817 = vpop.f32.mrf.mxu0
    %v5818 = vadd.f32 %v5699, %v5817
    %v5819 = vpop.f32.mrf.mxu0
    %5820 = vdwg.mxu0
    %v5821 = vpack.c.bf16 %v5762, %v5759
    %v5822 = vpack.c.bf16 %v5770, %v5767
    %v5823 = vpack.c.bf16 %v5778, %v5775
    %v5824 = vpack.c.bf16 %v5786, %v5783
    %v5825 = vpack.c.bf16 %v5794, %v5791
    %v5826 = vpack.c.bf16 %v5802, %v5799
    %v5827 = vpack.c.bf16 %v5810, %v5807
    %v5828 = vpack.c.bf16 %v5818, %v5815
    %5837 = vrot.lane.b32.xlu0 %v5821, 120
    %v5838 = vpop.permute.xlu0 %5837
    %5839 = vrot.lane.b32.xlu0 %v5822, 120
    %v5840 = vpop.permute.xlu0 %5839
    %5841 = vrot.lane.b32.xlu0 %v5823, 120
    %v5842 = vpop.permute.xlu0 %5841
    %5843 = vrot.lane.b32.xlu0 %v5824, 120
    %v5844 = vpop.permute.xlu0 %5843
    %5845 = vrot.lane.b32.xlu0 %v5825, 120
    %v5846 = vpop.permute.xlu0 %5845
    %5847 = vrot.lane.b32.xlu0 %v5826, 120
    %v5848 = vpop.permute.xlu0 %5847
    %5849 = vrot.lane.b32.xlu0 %v5827, 120
    %v5850 = vpop.permute.xlu0 %5849
    %5851 = vrot.lane.b32.xlu0 %v5828, 120
    %v5852 = vpop.permute.xlu0 %5851
    %5853 = vrot.lane.b32.xlu0 %v5821, 112
    %v5854 = vpop.permute.xlu0 %5853
    %5855 = vrot.lane.b32.xlu0 %v5822, 112
    %v5856 = vpop.permute.xlu0 %5855
    %5857 = vrot.lane.b32.xlu0 %v5823, 112
    %v5858 = vpop.permute.xlu0 %5857
    %5859 = vrot.lane.b32.xlu0 %v5824, 112
    %v5860 = vpop.permute.xlu0 %5859
    %5861 = vrot.lane.b32.xlu0 %v5825, 112
    %v5862 = vpop.permute.xlu0 %5861
    %5863 = vrot.lane.b32.xlu0 %v5826, 112
    %v5864 = vpop.permute.xlu0 %5863
    %5865 = vrot.lane.b32.xlu0 %v5827, 112
    %v5866 = vpop.permute.xlu0 %5865
    %5867 = vrot.lane.b32.xlu0 %v5828, 112
    %v5868 = vpop.permute.xlu0 %5867
    %5869 = vrot.lane.b32.xlu0 %v5821, 104
    %v5870 = vpop.permute.xlu0 %5869
    %5871 = vrot.lane.b32.xlu0 %v5822, 104
    %v5872 = vpop.permute.xlu0 %5871
    %5873 = vrot.lane.b32.xlu0 %v5823, 104
    %v5874 = vpop.permute.xlu0 %5873
    %5875 = vrot.lane.b32.xlu0 %v5824, 104
    %v5876 = vpop.permute.xlu0 %5875
    %5877 = vrot.lane.b32.xlu0 %v5825, 104
    %v5878 = vpop.permute.xlu0 %5877
    %5879 = vrot.lane.b32.xlu0 %v5826, 104
    %v5880 = vpop.permute.xlu0 %5879
    %5881 = vrot.lane.b32.xlu0 %v5827, 104
    %v5882 = vpop.permute.xlu0 %5881
    %5883 = vrot.lane.b32.xlu0 %v5828, 104
    %v5884 = vpop.permute.xlu0 %5883
    %5885 = vrot.lane.b32.xlu0 %v5821, 96
    %v5886 = vpop.permute.xlu0 %5885
    %v5888 = vsel %vm162, %v5821, 0
    %v5891 = vsel %vm162, %v5886, 0
    %5893 = vmatprep.subr.bf16.mxu0 0
    %5894 = vmatpush1.bf16.xpose.msra.mxu0 0
    %5895 = vmatprep.subr.bf16.mxu0 0
    %5896 = vmatpush1.bf16.xpose.msra.mxu0 0
    %5897 = vmatprep.subr.bf16.mxu0 0
    %5898 = vmatpush1.bf16.xpose.msra.mxu0 0
    %5899 = vmatprep.subr.bf16.mxu0 0
    %5900 = vmatpush1.bf16.xpose.msra.mxu0 0
    %5901 = vmatprep.subr.bf16.mxu0 0
    %5902 = vmatpush1.bf16.xpose.msra.mxu0 0
    %5903 = vmatprep.subr.bf16.mxu0 0
    %5904 = vmatpush1.bf16.xpose.msra.mxu0 0
    %5905 = vmatprep.subr.bf16.mxu0 0
    %5906 = vmatpush1.bf16.xpose.msra.mxu0 0
    %5907 = vmatprep.subr.bf16.mxu0 0
    %5908 = vmatpush1.bf16.xpose.msra.mxu0 %v5891
    %5909 = vmatprep.subr.bf16.mxu0 0
    %5910 = vmatpush2.bf16.xpose.msra.mxu0 0
    %5911 = vmatprep.subr.bf16.mxu0 0
    %5912 = vmatpush2.bf16.xpose.msra.mxu0 0
    %5913 = vmatprep.subr.bf16.mxu0 0
    %5914 = vmatpush2.bf16.xpose.msra.mxu0 0
    %5915 = vmatprep.subr.bf16.mxu0 0
    %5916 = vmatpush2.bf16.xpose.msra.mxu0 0
    %5917 = vmatprep.subr.bf16.mxu0 0
    %5918 = vmatpush2.bf16.xpose.msra.mxu0 0
    %5919 = vmatprep.subr.bf16.mxu0 0
    %5920 = vmatpush2.bf16.xpose.msra.mxu0 0
    %5921 = vmatprep.subr.bf16.mxu0 0
    %5922 = vmatpush2.bf16.xpose.msra.mxu0 0
    %5923 = vmatprep.subr.bf16.mxu0 0
    %5924 = vmatpush2.bf16.xpose.msra.mxu0 0
    %5925 = vmatprep.mubr.bf16.mxu0 0
    %5926 = vmatmul.mubr.bf16.gmra.mxu0 %v5888
    %v5927 = vpop.f32.mrf.mxu0
    %v5928 = vadd.f32 0.0, %v5927
    %v5929 = vpop.f32.mrf.mxu0
    %v5930 = vpop.f32.mrf.mxu0
    %v5931 = vadd.f32 0.0, %v5930
    %v5932 = vpop.f32.mrf.mxu0
    %5933 = vdwg.mxu0
    %5934 = vrot.lane.b32.xlu0 %v5822, 96
    %v5935 = vpop.permute.xlu0 %5934
    %v5937 = vsel %vm162, %v5822, 0
    %v5940 = vsel %vm162, %v5935, 0
    %5942 = vmatprep.subr.bf16.mxu0 0
    %5943 = vmatpush1.bf16.xpose.msra.mxu0 0
    %5944 = vmatprep.subr.bf16.mxu0 0
    %5945 = vmatpush1.bf16.xpose.msra.mxu0 0
    %5946 = vmatprep.subr.bf16.mxu0 0
    %5947 = vmatpush1.bf16.xpose.msra.mxu0 0
    %5948 = vmatprep.subr.bf16.mxu0 0
    %5949 = vmatpush1.bf16.xpose.msra.mxu0 0
    %5950 = vmatprep.subr.bf16.mxu0 0
    %5951 = vmatpush1.bf16.xpose.msra.mxu0 0
    %5952 = vmatprep.subr.bf16.mxu0 0
    %5953 = vmatpush1.bf16.xpose.msra.mxu0 0
    %5954 = vmatprep.subr.bf16.mxu0 0
    %5955 = vmatpush1.bf16.xpose.msra.mxu0 0
    %5956 = vmatprep.subr.bf16.mxu0 0
    %5957 = vmatpush1.bf16.xpose.msra.mxu0 %v5940
    %5958 = vmatprep.subr.bf16.mxu0 0
    %5959 = vmatpush2.bf16.xpose.msra.mxu0 0
    %5960 = vmatprep.subr.bf16.mxu0 0
    %5961 = vmatpush2.bf16.xpose.msra.mxu0 0
    %5962 = vmatprep.subr.bf16.mxu0 0
    %5963 = vmatpush2.bf16.xpose.msra.mxu0 0
    %5964 = vmatprep.subr.bf16.mxu0 0
    %5965 = vmatpush2.bf16.xpose.msra.mxu0 0
    %5966 = vmatprep.subr.bf16.mxu0 0
    %5967 = vmatpush2.bf16.xpose.msra.mxu0 0
    %5968 = vmatprep.subr.bf16.mxu0 0
    %5969 = vmatpush2.bf16.xpose.msra.mxu0 0
    %5970 = vmatprep.subr.bf16.mxu0 0
    %5971 = vmatpush2.bf16.xpose.msra.mxu0 0
    %5972 = vmatprep.subr.bf16.mxu0 0
    %5973 = vmatpush2.bf16.xpose.msra.mxu0 0
    %5974 = vmatprep.mubr.bf16.mxu0 0
    %5975 = vmatmul.mubr.bf16.gmra.mxu0 %v5937
    %v5976 = vpop.f32.mrf.mxu0
    %v5977 = vadd.f32 0.0, %v5976
    %v5978 = vpop.f32.mrf.mxu0
    %v5979 = vpop.f32.mrf.mxu0
    %v5980 = vadd.f32 0.0, %v5979
    %v5981 = vpop.f32.mrf.mxu0
    %5982 = vdwg.mxu0
    %5983 = vrot.lane.b32.xlu0 %v5823, 96
    %v5984 = vpop.permute.xlu0 %5983
    %v5986 = vsel %vm162, %v5823, 0
    %v5989 = vsel %vm162, %v5984, 0
    %5991 = vmatprep.subr.bf16.mxu0 0
    %5992 = vmatpush1.bf16.xpose.msra.mxu0 0
    %5993 = vmatprep.subr.bf16.mxu0 0
    %5994 = vmatpush1.bf16.xpose.msra.mxu0 0
    %5995 = vmatprep.subr.bf16.mxu0 0
    %5996 = vmatpush1.bf16.xpose.msra.mxu0 0
    %5997 = vmatprep.subr.bf16.mxu0 0
    %5998 = vmatpush1.bf16.xpose.msra.mxu0 0
    %5999 = vmatprep.subr.bf16.mxu0 0
    %6000 = vmatpush1.bf16.xpose.msra.mxu0 0
    %6001 = vmatprep.subr.bf16.mxu0 0
    %6002 = vmatpush1.bf16.xpose.msra.mxu0 0
    %6003 = vmatprep.subr.bf16.mxu0 0
    %6004 = vmatpush1.bf16.xpose.msra.mxu0 0
    %6005 = vmatprep.subr.bf16.mxu0 0
    %6006 = vmatpush1.bf16.xpose.msra.mxu0 %v5989
    %6007 = vmatprep.subr.bf16.mxu0 0
    %6008 = vmatpush2.bf16.xpose.msra.mxu0 0
    %6009 = vmatprep.subr.bf16.mxu0 0
    %6010 = vmatpush2.bf16.xpose.msra.mxu0 0
    %6011 = vmatprep.subr.bf16.mxu0 0
    %6012 = vmatpush2.bf16.xpose.msra.mxu0 0
    %6013 = vmatprep.subr.bf16.mxu0 0
    %6014 = vmatpush2.bf16.xpose.msra.mxu0 0
    %6015 = vmatprep.subr.bf16.mxu0 0
    %6016 = vmatpush2.bf16.xpose.msra.mxu0 0
    %6017 = vmatprep.subr.bf16.mxu0 0
    %6018 = vmatpush2.bf16.xpose.msra.mxu0 0
    %6019 = vmatprep.subr.bf16.mxu0 0
    %6020 = vmatpush2.bf16.xpose.msra.mxu0 0
    %6021 = vmatprep.subr.bf16.mxu0 0
    %6022 = vmatpush2.bf16.xpose.msra.mxu0 0
    %6023 = vmatprep.mubr.bf16.mxu0 0
    %6024 = vmatmul.mubr.bf16.gmra.mxu0 %v5986
    %v6025 = vpop.f32.mrf.mxu0
    %v6026 = vadd.f32 0.0, %v6025
    %v6027 = vpop.f32.mrf.mxu0
    %v6028 = vpop.f32.mrf.mxu0
    %v6029 = vadd.f32 0.0, %v6028
    %v6030 = vpop.f32.mrf.mxu0
    %6031 = vdwg.mxu0
    %6032 = vrot.lane.b32.xlu0 %v5824, 96
    %v6033 = vpop.permute.xlu0 %6032
    %v6035 = vsel %vm162, %v5824, 0
    %v6038 = vsel %vm162, %v6033, 0
    %6040 = vmatprep.subr.bf16.mxu0 0
    %6041 = vmatpush1.bf16.xpose.msra.mxu0 0
    %6042 = vmatprep.subr.bf16.mxu0 0
    %6043 = vmatpush1.bf16.xpose.msra.mxu0 0
    %6044 = vmatprep.subr.bf16.mxu0 0
    %6045 = vmatpush1.bf16.xpose.msra.mxu0 0
    %6046 = vmatprep.subr.bf16.mxu0 0
    %6047 = vmatpush1.bf16.xpose.msra.mxu0 0
    %6048 = vmatprep.subr.bf16.mxu0 0
    %6049 = vmatpush1.bf16.xpose.msra.mxu0 0
    %6050 = vmatprep.subr.bf16.mxu0 0
    %6051 = vmatpush1.bf16.xpose.msra.mxu0 0
    %6052 = vmatprep.subr.bf16.mxu0 0
    %6053 = vmatpush1.bf16.xpose.msra.mxu0 0
    %6054 = vmatprep.subr.bf16.mxu0 0
    %6055 = vmatpush1.bf16.xpose.msra.mxu0 %v6038
    %6056 = vmatprep.subr.bf16.mxu0 0
    %6057 = vmatpush2.bf16.xpose.msra.mxu0 0
    %6058 = vmatprep.subr.bf16.mxu0 0
    %6059 = vmatpush2.bf16.xpose.msra.mxu0 0
    %6060 = vmatprep.subr.bf16.mxu0 0
    %6061 = vmatpush2.bf16.xpose.msra.mxu0 0
    %6062 = vmatprep.subr.bf16.mxu0 0
    %6063 = vmatpush2.bf16.xpose.msra.mxu0 0
    %6064 = vmatprep.subr.bf16.mxu0 0
    %6065 = vmatpush2.bf16.xpose.msra.mxu0 0
    %6066 = vmatprep.subr.bf16.mxu0 0
    %6067 = vmatpush2.bf16.xpose.msra.mxu0 0
    %6068 = vmatprep.subr.bf16.mxu0 0
    %6069 = vmatpush2.bf16.xpose.msra.mxu0 0
    %6070 = vmatprep.subr.bf16.mxu0 0
    %6071 = vmatpush2.bf16.xpose.msra.mxu0 0
    %6072 = vmatprep.mubr.bf16.mxu0 0
    %6073 = vmatmul.mubr.bf16.gmra.mxu0 %v6035
    %v6074 = vpop.f32.mrf.mxu0
    %v6075 = vadd.f32 0.0, %v6074
    %v6076 = vpop.f32.mrf.mxu0
    %v6077 = vpop.f32.mrf.mxu0
    %v6078 = vadd.f32 0.0, %v6077
    %v6079 = vpop.f32.mrf.mxu0
    %6080 = vdwg.mxu0
    %6081 = vrot.lane.b32.xlu0 %v5825, 96
    %v6082 = vpop.permute.xlu0 %6081
    %v6084 = vsel %vm162, %v5825, 0
    %v6087 = vsel %vm162, %v6082, 0
    %6089 = vmatprep.subr.bf16.mxu0 0
    %6090 = vmatpush1.bf16.xpose.msra.mxu0 0
    %6091 = vmatprep.subr.bf16.mxu0 0
    %6092 = vmatpush1.bf16.xpose.msra.mxu0 0
    %6093 = vmatprep.subr.bf16.mxu0 0
    %6094 = vmatpush1.bf16.xpose.msra.mxu0 0
    %6095 = vmatprep.subr.bf16.mxu0 0
    %6096 = vmatpush1.bf16.xpose.msra.mxu0 0
    %6097 = vmatprep.subr.bf16.mxu0 0
    %6098 = vmatpush1.bf16.xpose.msra.mxu0 0
    %6099 = vmatprep.subr.bf16.mxu0 0
    %6100 = vmatpush1.bf16.xpose.msra.mxu0 0
    %6101 = vmatprep.subr.bf16.mxu0 0
    %6102 = vmatpush1.bf16.xpose.msra.mxu0 0
    %6103 = vmatprep.subr.bf16.mxu0 0
    %6104 = vmatpush1.bf16.xpose.msra.mxu0 %v6087
    %6105 = vmatprep.subr.bf16.mxu0 0
    %6106 = vmatpush2.bf16.xpose.msra.mxu0 0
    %6107 = vmatprep.subr.bf16.mxu0 0
    %6108 = vmatpush2.bf16.xpose.msra.mxu0 0
    %6109 = vmatprep.subr.bf16.mxu0 0
    %6110 = vmatpush2.bf16.xpose.msra.mxu0 0
    %6111 = vmatprep.subr.bf16.mxu0 0
    %6112 = vmatpush2.bf16.xpose.msra.mxu0 0
    %6113 = vmatprep.subr.bf16.mxu0 0
    %6114 = vmatpush2.bf16.xpose.msra.mxu0 0
    %6115 = vmatprep.subr.bf16.mxu0 0
    %6116 = vmatpush2.bf16.xpose.msra.mxu0 0
    %6117 = vmatprep.subr.bf16.mxu0 0
    %6118 = vmatpush2.bf16.xpose.msra.mxu0 0
    %6119 = vmatprep.subr.bf16.mxu0 0
    %6120 = vmatpush2.bf16.xpose.msra.mxu0 0
    %6121 = vmatprep.mubr.bf16.mxu0 0
    %6122 = vmatmul.mubr.bf16.gmra.mxu0 %v6084
    %v6123 = vpop.f32.mrf.mxu0
    %v6124 = vadd.f32 0.0, %v6123
    %v6125 = vpop.f32.mrf.mxu0
    %v6126 = vpop.f32.mrf.mxu0
    %v6127 = vadd.f32 0.0, %v6126
    %v6128 = vpop.f32.mrf.mxu0
    %6129 = vdwg.mxu0
    %6130 = vrot.lane.b32.xlu0 %v5826, 96
    %v6131 = vpop.permute.xlu0 %6130
    %v6133 = vsel %vm162, %v5826, 0
    %v6136 = vsel %vm162, %v6131, 0
    %6138 = vmatprep.subr.bf16.mxu0 0
    %6139 = vmatpush1.bf16.xpose.msra.mxu0 0
    %6140 = vmatprep.subr.bf16.mxu0 0
    %6141 = vmatpush1.bf16.xpose.msra.mxu0 0
    %6142 = vmatprep.subr.bf16.mxu0 0
    %6143 = vmatpush1.bf16.xpose.msra.mxu0 0
    %6144 = vmatprep.subr.bf16.mxu0 0
    %6145 = vmatpush1.bf16.xpose.msra.mxu0 0
    %6146 = vmatprep.subr.bf16.mxu0 0
    %6147 = vmatpush1.bf16.xpose.msra.mxu0 0
    %6148 = vmatprep.subr.bf16.mxu0 0
    %6149 = vmatpush1.bf16.xpose.msra.mxu0 0
    %6150 = vmatprep.subr.bf16.mxu0 0
    %6151 = vmatpush1.bf16.xpose.msra.mxu0 0
    %6152 = vmatprep.subr.bf16.mxu0 0
    %6153 = vmatpush1.bf16.xpose.msra.mxu0 %v6136
    %6154 = vmatprep.subr.bf16.mxu0 0
    %6155 = vmatpush2.bf16.xpose.msra.mxu0 0
    %6156 = vmatprep.subr.bf16.mxu0 0
    %6157 = vmatpush2.bf16.xpose.msra.mxu0 0
    %6158 = vmatprep.subr.bf16.mxu0 0
    %6159 = vmatpush2.bf16.xpose.msra.mxu0 0
    %6160 = vmatprep.subr.bf16.mxu0 0
    %6161 = vmatpush2.bf16.xpose.msra.mxu0 0
    %6162 = vmatprep.subr.bf16.mxu0 0
    %6163 = vmatpush2.bf16.xpose.msra.mxu0 0
    %6164 = vmatprep.subr.bf16.mxu0 0
    %6165 = vmatpush2.bf16.xpose.msra.mxu0 0
    %6166 = vmatprep.subr.bf16.mxu0 0
    %6167 = vmatpush2.bf16.xpose.msra.mxu0 0
    %6168 = vmatprep.subr.bf16.mxu0 0
    %6169 = vmatpush2.bf16.xpose.msra.mxu0 0
    %6170 = vmatprep.mubr.bf16.mxu0 0
    %6171 = vmatmul.mubr.bf16.gmra.mxu0 %v6133
    %v6172 = vpop.f32.mrf.mxu0
    %v6173 = vadd.f32 0.0, %v6172
    %v6174 = vpop.f32.mrf.mxu0
    %v6175 = vpop.f32.mrf.mxu0
    %v6176 = vadd.f32 0.0, %v6175
    %v6177 = vpop.f32.mrf.mxu0
    %6178 = vdwg.mxu0
    %6179 = vrot.lane.b32.xlu0 %v5827, 96
    %v6180 = vpop.permute.xlu0 %6179
    %v6182 = vsel %vm162, %v5827, 0
    %v6185 = vsel %vm162, %v6180, 0
    %6187 = vmatprep.subr.bf16.mxu0 0
    %6188 = vmatpush1.bf16.xpose.msra.mxu0 0
    %6189 = vmatprep.subr.bf16.mxu0 0
    %6190 = vmatpush1.bf16.xpose.msra.mxu0 0
    %6191 = vmatprep.subr.bf16.mxu0 0
    %6192 = vmatpush1.bf16.xpose.msra.mxu0 0
    %6193 = vmatprep.subr.bf16.mxu0 0
    %6194 = vmatpush1.bf16.xpose.msra.mxu0 0
    %6195 = vmatprep.subr.bf16.mxu0 0
    %6196 = vmatpush1.bf16.xpose.msra.mxu0 0
    %6197 = vmatprep.subr.bf16.mxu0 0
    %6198 = vmatpush1.bf16.xpose.msra.mxu0 0
    %6199 = vmatprep.subr.bf16.mxu0 0
    %6200 = vmatpush1.bf16.xpose.msra.mxu0 0
    %6201 = vmatprep.subr.bf16.mxu0 0
    %6202 = vmatpush1.bf16.xpose.msra.mxu0 %v6185
    %6203 = vmatprep.subr.bf16.mxu0 0
    %6204 = vmatpush2.bf16.xpose.msra.mxu0 0
    %6205 = vmatprep.subr.bf16.mxu0 0
    %6206 = vmatpush2.bf16.xpose.msra.mxu0 0
    %6207 = vmatprep.subr.bf16.mxu0 0
    %6208 = vmatpush2.bf16.xpose.msra.mxu0 0
    %6209 = vmatprep.subr.bf16.mxu0 0
    %6210 = vmatpush2.bf16.xpose.msra.mxu0 0
    %6211 = vmatprep.subr.bf16.mxu0 0
    %6212 = vmatpush2.bf16.xpose.msra.mxu0 0
    %6213 = vmatprep.subr.bf16.mxu0 0
    %6214 = vmatpush2.bf16.xpose.msra.mxu0 0
    %6215 = vmatprep.subr.bf16.mxu0 0
    %6216 = vmatpush2.bf16.xpose.msra.mxu0 0
    %6217 = vmatprep.subr.bf16.mxu0 0
    %6218 = vmatpush2.bf16.xpose.msra.mxu0 0
    %6219 = vmatprep.mubr.bf16.mxu0 0
    %6220 = vmatmul.mubr.bf16.gmra.mxu0 %v6182
    %v6221 = vpop.f32.mrf.mxu0
    %v6222 = vadd.f32 0.0, %v6221
    %v6223 = vpop.f32.mrf.mxu0
    %v6224 = vpop.f32.mrf.mxu0
    %v6225 = vadd.f32 0.0, %v6224
    %v6226 = vpop.f32.mrf.mxu0
    %6227 = vdwg.mxu0
    %6228 = vrot.lane.b32.xlu0 %v5828, 96
    %v6229 = vpop.permute.xlu0 %6228
    %v6231 = vsel %vm162, %v5828, 0
    %v6234 = vsel %vm162, %v6229, 0
    %6236 = vmatprep.subr.bf16.mxu0 0
    %6237 = vmatpush1.bf16.xpose.msra.mxu0 0
    %6238 = vmatprep.subr.bf16.mxu0 0
    %6239 = vmatpush1.bf16.xpose.msra.mxu0 0
    %6240 = vmatprep.subr.bf16.mxu0 0
    %6241 = vmatpush1.bf16.xpose.msra.mxu0 0
    %6242 = vmatprep.subr.bf16.mxu0 0
    %6243 = vmatpush1.bf16.xpose.msra.mxu0 0
    %6244 = vmatprep.subr.bf16.mxu0 0
    %6245 = vmatpush1.bf16.xpose.msra.mxu0 0
    %6246 = vmatprep.subr.bf16.mxu0 0
    %6247 = vmatpush1.bf16.xpose.msra.mxu0 0
    %6248 = vmatprep.subr.bf16.mxu0 0
    %6249 = vmatpush1.bf16.xpose.msra.mxu0 0
    %6250 = vmatprep.subr.bf16.mxu0 0
    %6251 = vmatpush1.bf16.xpose.msra.mxu0 %v6234
    %6252 = vmatprep.subr.bf16.mxu0 0
    %6253 = vmatpush2.bf16.xpose.msra.mxu0 0
    %6254 = vmatprep.subr.bf16.mxu0 0
    %6255 = vmatpush2.bf16.xpose.msra.mxu0 0
    %6256 = vmatprep.subr.bf16.mxu0 0
    %6257 = vmatpush2.bf16.xpose.msra.mxu0 0
    %6258 = vmatprep.subr.bf16.mxu0 0
    %6259 = vmatpush2.bf16.xpose.msra.mxu0 0
    %6260 = vmatprep.subr.bf16.mxu0 0
    %6261 = vmatpush2.bf16.xpose.msra.mxu0 0
    %6262 = vmatprep.subr.bf16.mxu0 0
    %6263 = vmatpush2.bf16.xpose.msra.mxu0 0
    %6264 = vmatprep.subr.bf16.mxu0 0
    %6265 = vmatpush2.bf16.xpose.msra.mxu0 0
    %6266 = vmatprep.subr.bf16.mxu0 0
    %6267 = vmatpush2.bf16.xpose.msra.mxu0 0
    %6268 = vmatprep.mubr.bf16.mxu0 0
    %6269 = vmatmul.mubr.bf16.gmra.mxu0 %v6231
    %v6270 = vpop.f32.mrf.mxu0
    %v6271 = vadd.f32 0.0, %v6270
    %v6272 = vpop.f32.mrf.mxu0
    %v6273 = vpop.f32.mrf.mxu0
    %v6274 = vadd.f32 0.0, %v6273
    %v6275 = vpop.f32.mrf.mxu0
    %6276 = vdwg.mxu0
    %6277 = vrot.lane.b32.xlu0 %v5838, 96
    %v6278 = vpop.permute.xlu0 %6277
    %v6280 = vsel %vm162, %v5838, 0
    %v6283 = vsel %vm162, %v6278, 0
    %6285 = vmatprep.subr.bf16.mxu0 0
    %6286 = vmatpush1.bf16.xpose.msra.mxu0 0
    %6287 = vmatprep.subr.bf16.mxu0 0
    %6288 = vmatpush1.bf16.xpose.msra.mxu0 0
    %6289 = vmatprep.subr.bf16.mxu0 0
    %6290 = vmatpush1.bf16.xpose.msra.mxu0 0
    %6291 = vmatprep.subr.bf16.mxu0 0
    %6292 = vmatpush1.bf16.xpose.msra.mxu0 0
    %6293 = vmatprep.subr.bf16.mxu0 0
    %6294 = vmatpush1.bf16.xpose.msra.mxu0 0
    %6295 = vmatprep.subr.bf16.mxu0 0
    %6296 = vmatpush1.bf16.xpose.msra.mxu0 0
    %6297 = vmatprep.subr.bf16.mxu0 0
    %6298 = vmatpush1.bf16.xpose.msra.mxu0 0
    %6299 = vmatprep.subr.bf16.mxu0 0
    %6300 = vmatpush1.bf16.xpose.msra.mxu0 %v6283
    %6301 = vmatprep.subr.bf16.mxu0 0
    %6302 = vmatpush2.bf16.xpose.msra.mxu0 0
    %6303 = vmatprep.subr.bf16.mxu0 0
    %6304 = vmatpush2.bf16.xpose.msra.mxu0 0
    %6305 = vmatprep.subr.bf16.mxu0 0
    %6306 = vmatpush2.bf16.xpose.msra.mxu0 0
    %6307 = vmatprep.subr.bf16.mxu0 0
    %6308 = vmatpush2.bf16.xpose.msra.mxu0 0
    %6309 = vmatprep.subr.bf16.mxu0 0
    %6310 = vmatpush2.bf16.xpose.msra.mxu0 0
    %6311 = vmatprep.subr.bf16.mxu0 0
    %6312 = vmatpush2.bf16.xpose.msra.mxu0 0
    %6313 = vmatprep.subr.bf16.mxu0 0
    %6314 = vmatpush2.bf16.xpose.msra.mxu0 0
    %6315 = vmatprep.subr.bf16.mxu0 0
    %6316 = vmatpush2.bf16.xpose.msra.mxu0 0
    %6317 = vmatprep.mubr.bf16.mxu0 0
    %6318 = vmatmul.mubr.bf16.gmra.mxu0 %v6280
    %v6319 = vpop.f32.mrf.mxu0
    %v6320 = vadd.f32 0.0, %v6319
    %v6321 = vpop.f32.mrf.mxu0
    %v6322 = vpop.f32.mrf.mxu0
    %v6323 = vadd.f32 0.0, %v6322
    %v6324 = vpop.f32.mrf.mxu0
    %6325 = vdwg.mxu0
    %6326 = vrot.lane.b32.xlu0 %v5840, 96
    %v6327 = vpop.permute.xlu0 %6326
    %v6329 = vsel %vm162, %v5840, 0
    %v6332 = vsel %vm162, %v6327, 0
    %6334 = vmatprep.subr.bf16.mxu0 0
    %6335 = vmatpush1.bf16.xpose.msra.mxu0 0
    %6336 = vmatprep.subr.bf16.mxu0 0
    %6337 = vmatpush1.bf16.xpose.msra.mxu0 0
    %6338 = vmatprep.subr.bf16.mxu0 0
    %6339 = vmatpush1.bf16.xpose.msra.mxu0 0
    %6340 = vmatprep.subr.bf16.mxu0 0
    %6341 = vmatpush1.bf16.xpose.msra.mxu0 0
    %6342 = vmatprep.subr.bf16.mxu0 0
    %6343 = vmatpush1.bf16.xpose.msra.mxu0 0
    %6344 = vmatprep.subr.bf16.mxu0 0
    %6345 = vmatpush1.bf16.xpose.msra.mxu0 0
    %6346 = vmatprep.subr.bf16.mxu0 0
    %6347 = vmatpush1.bf16.xpose.msra.mxu0 0
    %6348 = vmatprep.subr.bf16.mxu0 0
    %6349 = vmatpush1.bf16.xpose.msra.mxu0 %v6332
    %6350 = vmatprep.subr.bf16.mxu0 0
    %6351 = vmatpush2.bf16.xpose.msra.mxu0 0
    %6352 = vmatprep.subr.bf16.mxu0 0
    %6353 = vmatpush2.bf16.xpose.msra.mxu0 0
    %6354 = vmatprep.subr.bf16.mxu0 0
    %6355 = vmatpush2.bf16.xpose.msra.mxu0 0
    %6356 = vmatprep.subr.bf16.mxu0 0
    %6357 = vmatpush2.bf16.xpose.msra.mxu0 0
    %6358 = vmatprep.subr.bf16.mxu0 0
    %6359 = vmatpush2.bf16.xpose.msra.mxu0 0
    %6360 = vmatprep.subr.bf16.mxu0 0
    %6361 = vmatpush2.bf16.xpose.msra.mxu0 0
    %6362 = vmatprep.subr.bf16.mxu0 0
    %6363 = vmatpush2.bf16.xpose.msra.mxu0 0
    %6364 = vmatprep.subr.bf16.mxu0 0
    %6365 = vmatpush2.bf16.xpose.msra.mxu0 0
    %6366 = vmatprep.mubr.bf16.mxu0 0
    %6367 = vmatmul.mubr.bf16.gmra.mxu0 %v6329
    %v6368 = vpop.f32.mrf.mxu0
    %v6369 = vadd.f32 0.0, %v6368
    %v6370 = vpop.f32.mrf.mxu0
    %v6371 = vpop.f32.mrf.mxu0
    %v6372 = vadd.f32 0.0, %v6371
    %v6373 = vpop.f32.mrf.mxu0
    %6374 = vdwg.mxu0
    %6375 = vrot.lane.b32.xlu0 %v5842, 96
    %v6376 = vpop.permute.xlu0 %6375
    %v6378 = vsel %vm162, %v5842, 0
    %v6381 = vsel %vm162, %v6376, 0
    %6383 = vmatprep.subr.bf16.mxu0 0
    %6384 = vmatpush1.bf16.xpose.msra.mxu0 0
    %6385 = vmatprep.subr.bf16.mxu0 0
    %6386 = vmatpush1.bf16.xpose.msra.mxu0 0
    %6387 = vmatprep.subr.bf16.mxu0 0
    %6388 = vmatpush1.bf16.xpose.msra.mxu0 0
    %6389 = vmatprep.subr.bf16.mxu0 0
    %6390 = vmatpush1.bf16.xpose.msra.mxu0 0
    %6391 = vmatprep.subr.bf16.mxu0 0
    %6392 = vmatpush1.bf16.xpose.msra.mxu0 0
    %6393 = vmatprep.subr.bf16.mxu0 0
    %6394 = vmatpush1.bf16.xpose.msra.mxu0 0
    %6395 = vmatprep.subr.bf16.mxu0 0
    %6396 = vmatpush1.bf16.xpose.msra.mxu0 0
    %6397 = vmatprep.subr.bf16.mxu0 0
    %6398 = vmatpush1.bf16.xpose.msra.mxu0 %v6381
    %6399 = vmatprep.subr.bf16.mxu0 0
    %6400 = vmatpush2.bf16.xpose.msra.mxu0 0
    %6401 = vmatprep.subr.bf16.mxu0 0
    %6402 = vmatpush2.bf16.xpose.msra.mxu0 0
    %6403 = vmatprep.subr.bf16.mxu0 0
    %6404 = vmatpush2.bf16.xpose.msra.mxu0 0
    %6405 = vmatprep.subr.bf16.mxu0 0
    %6406 = vmatpush2.bf16.xpose.msra.mxu0 0
    %6407 = vmatprep.subr.bf16.mxu0 0
    %6408 = vmatpush2.bf16.xpose.msra.mxu0 0
    %6409 = vmatprep.subr.bf16.mxu0 0
    %6410 = vmatpush2.bf16.xpose.msra.mxu0 0
    %6411 = vmatprep.subr.bf16.mxu0 0
    %6412 = vmatpush2.bf16.xpose.msra.mxu0 0
    %6413 = vmatprep.subr.bf16.mxu0 0
    %6414 = vmatpush2.bf16.xpose.msra.mxu0 0
    %6415 = vmatprep.mubr.bf16.mxu0 0
    %6416 = vmatmul.mubr.bf16.gmra.mxu0 %v6378
    %v6417 = vpop.f32.mrf.mxu0
    %v6418 = vadd.f32 0.0, %v6417
    %v6419 = vpop.f32.mrf.mxu0
    %v6420 = vpop.f32.mrf.mxu0
    %v6421 = vadd.f32 0.0, %v6420
    %v6422 = vpop.f32.mrf.mxu0
    %6423 = vdwg.mxu0
    %6424 = vrot.lane.b32.xlu0 %v5844, 96
    %v6425 = vpop.permute.xlu0 %6424
    %v6427 = vsel %vm162, %v5844, 0
    %v6430 = vsel %vm162, %v6425, 0
    %6432 = vmatprep.subr.bf16.mxu0 0
    %6433 = vmatpush1.bf16.xpose.msra.mxu0 0
    %6434 = vmatprep.subr.bf16.mxu0 0
    %6435 = vmatpush1.bf16.xpose.msra.mxu0 0
    %6436 = vmatprep.subr.bf16.mxu0 0
    %6437 = vmatpush1.bf16.xpose.msra.mxu0 0
    %6438 = vmatprep.subr.bf16.mxu0 0
    %6439 = vmatpush1.bf16.xpose.msra.mxu0 0
    %6440 = vmatprep.subr.bf16.mxu0 0
    %6441 = vmatpush1.bf16.xpose.msra.mxu0 0
    %6442 = vmatprep.subr.bf16.mxu0 0
    %6443 = vmatpush1.bf16.xpose.msra.mxu0 0
    %6444 = vmatprep.subr.bf16.mxu0 0
    %6445 = vmatpush1.bf16.xpose.msra.mxu0 0
    %6446 = vmatprep.subr.bf16.mxu0 0
    %6447 = vmatpush1.bf16.xpose.msra.mxu0 %v6430
    %6448 = vmatprep.subr.bf16.mxu0 0
    %6449 = vmatpush2.bf16.xpose.msra.mxu0 0
    %6450 = vmatprep.subr.bf16.mxu0 0
    %6451 = vmatpush2.bf16.xpose.msra.mxu0 0
    %6452 = vmatprep.subr.bf16.mxu0 0
    %6453 = vmatpush2.bf16.xpose.msra.mxu0 0
    %6454 = vmatprep.subr.bf16.mxu0 0
    %6455 = vmatpush2.bf16.xpose.msra.mxu0 0
    %6456 = vmatprep.subr.bf16.mxu0 0
    %6457 = vmatpush2.bf16.xpose.msra.mxu0 0
    %6458 = vmatprep.subr.bf16.mxu0 0
    %6459 = vmatpush2.bf16.xpose.msra.mxu0 0
    %6460 = vmatprep.subr.bf16.mxu0 0
    %6461 = vmatpush2.bf16.xpose.msra.mxu0 0
    %6462 = vmatprep.subr.bf16.mxu0 0
    %6463 = vmatpush2.bf16.xpose.msra.mxu0 0
    %6464 = vmatprep.mubr.bf16.mxu0 0
    %6465 = vmatmul.mubr.bf16.gmra.mxu0 %v6427
    %v6466 = vpop.f32.mrf.mxu0
    %v6467 = vadd.f32 0.0, %v6466
    %v6468 = vpop.f32.mrf.mxu0
    %v6469 = vpop.f32.mrf.mxu0
    %v6470 = vadd.f32 0.0, %v6469
    %v6471 = vpop.f32.mrf.mxu0
    %6472 = vdwg.mxu0
    %6473 = vrot.lane.b32.xlu0 %v5846, 96
    %v6474 = vpop.permute.xlu0 %6473
    %v6476 = vsel %vm162, %v5846, 0
    %v6479 = vsel %vm162, %v6474, 0
    %6481 = vmatprep.subr.bf16.mxu0 0
    %6482 = vmatpush1.bf16.xpose.msra.mxu0 0
    %6483 = vmatprep.subr.bf16.mxu0 0
    %6484 = vmatpush1.bf16.xpose.msra.mxu0 0
    %6485 = vmatprep.subr.bf16.mxu0 0
    %6486 = vmatpush1.bf16.xpose.msra.mxu0 0
    %6487 = vmatprep.subr.bf16.mxu0 0
    %6488 = vmatpush1.bf16.xpose.msra.mxu0 0
    %6489 = vmatprep.subr.bf16.mxu0 0
    %6490 = vmatpush1.bf16.xpose.msra.mxu0 0
    %6491 = vmatprep.subr.bf16.mxu0 0
    %6492 = vmatpush1.bf16.xpose.msra.mxu0 0
    %6493 = vmatprep.subr.bf16.mxu0 0
    %6494 = vmatpush1.bf16.xpose.msra.mxu0 0
    %6495 = vmatprep.subr.bf16.mxu0 0
    %6496 = vmatpush1.bf16.xpose.msra.mxu0 %v6479
    %6497 = vmatprep.subr.bf16.mxu0 0
    %6498 = vmatpush2.bf16.xpose.msra.mxu0 0
    %6499 = vmatprep.subr.bf16.mxu0 0
    %6500 = vmatpush2.bf16.xpose.msra.mxu0 0
    %6501 = vmatprep.subr.bf16.mxu0 0
    %6502 = vmatpush2.bf16.xpose.msra.mxu0 0
    %6503 = vmatprep.subr.bf16.mxu0 0
    %6504 = vmatpush2.bf16.xpose.msra.mxu0 0
    %6505 = vmatprep.subr.bf16.mxu0 0
    %6506 = vmatpush2.bf16.xpose.msra.mxu0 0
    %6507 = vmatprep.subr.bf16.mxu0 0
    %6508 = vmatpush2.bf16.xpose.msra.mxu0 0
    %6509 = vmatprep.subr.bf16.mxu0 0
    %6510 = vmatpush2.bf16.xpose.msra.mxu0 0
    %6511 = vmatprep.subr.bf16.mxu0 0
    %6512 = vmatpush2.bf16.xpose.msra.mxu0 0
    %6513 = vmatprep.mubr.bf16.mxu0 0
    %6514 = vmatmul.mubr.bf16.gmra.mxu0 %v6476
    %v6515 = vpop.f32.mrf.mxu0
    %v6516 = vadd.f32 0.0, %v6515
    %v6517 = vpop.f32.mrf.mxu0
    %v6518 = vpop.f32.mrf.mxu0
    %v6519 = vadd.f32 0.0, %v6518
    %v6520 = vpop.f32.mrf.mxu0
    %6521 = vdwg.mxu0
    %6522 = vrot.lane.b32.xlu0 %v5848, 96
    %v6523 = vpop.permute.xlu0 %6522
    %v6525 = vsel %vm162, %v5848, 0
    %v6528 = vsel %vm162, %v6523, 0
    %6530 = vmatprep.subr.bf16.mxu0 0
    %6531 = vmatpush1.bf16.xpose.msra.mxu0 0
    %6532 = vmatprep.subr.bf16.mxu0 0
    %6533 = vmatpush1.bf16.xpose.msra.mxu0 0
    %6534 = vmatprep.subr.bf16.mxu0 0
    %6535 = vmatpush1.bf16.xpose.msra.mxu0 0
    %6536 = vmatprep.subr.bf16.mxu0 0
    %6537 = vmatpush1.bf16.xpose.msra.mxu0 0
    %6538 = vmatprep.subr.bf16.mxu0 0
    %6539 = vmatpush1.bf16.xpose.msra.mxu0 0
    %6540 = vmatprep.subr.bf16.mxu0 0
    %6541 = vmatpush1.bf16.xpose.msra.mxu0 0
    %6542 = vmatprep.subr.bf16.mxu0 0
    %6543 = vmatpush1.bf16.xpose.msra.mxu0 0
    %6544 = vmatprep.subr.bf16.mxu0 0
    %6545 = vmatpush1.bf16.xpose.msra.mxu0 %v6528
    %6546 = vmatprep.subr.bf16.mxu0 0
    %6547 = vmatpush2.bf16.xpose.msra.mxu0 0
    %6548 = vmatprep.subr.bf16.mxu0 0
    %6549 = vmatpush2.bf16.xpose.msra.mxu0 0
    %6550 = vmatprep.subr.bf16.mxu0 0
    %6551 = vmatpush2.bf16.xpose.msra.mxu0 0
    %6552 = vmatprep.subr.bf16.mxu0 0
    %6553 = vmatpush2.bf16.xpose.msra.mxu0 0
    %6554 = vmatprep.subr.bf16.mxu0 0
    %6555 = vmatpush2.bf16.xpose.msra.mxu0 0
    %6556 = vmatprep.subr.bf16.mxu0 0
    %6557 = vmatpush2.bf16.xpose.msra.mxu0 0
    %6558 = vmatprep.subr.bf16.mxu0 0
    %6559 = vmatpush2.bf16.xpose.msra.mxu0 0
    %6560 = vmatprep.subr.bf16.mxu0 0
    %6561 = vmatpush2.bf16.xpose.msra.mxu0 0
    %6562 = vmatprep.mubr.bf16.mxu0 0
    %6563 = vmatmul.mubr.bf16.gmra.mxu0 %v6525
    %v6564 = vpop.f32.mrf.mxu0
    %v6565 = vadd.f32 0.0, %v6564
    %v6566 = vpop.f32.mrf.mxu0
    %v6567 = vpop.f32.mrf.mxu0
    %v6568 = vadd.f32 0.0, %v6567
    %v6569 = vpop.f32.mrf.mxu0
    %6570 = vdwg.mxu0
    %6571 = vrot.lane.b32.xlu0 %v5850, 96
    %v6572 = vpop.permute.xlu0 %6571
    %v6574 = vsel %vm162, %v5850, 0
    %v6577 = vsel %vm162, %v6572, 0
    %6579 = vmatprep.subr.bf16.mxu0 0
    %6580 = vmatpush1.bf16.xpose.msra.mxu0 0
    %6581 = vmatprep.subr.bf16.mxu0 0
    %6582 = vmatpush1.bf16.xpose.msra.mxu0 0
    %6583 = vmatprep.subr.bf16.mxu0 0
    %6584 = vmatpush1.bf16.xpose.msra.mxu0 0
    %6585 = vmatprep.subr.bf16.mxu0 0
    %6586 = vmatpush1.bf16.xpose.msra.mxu0 0
    %6587 = vmatprep.subr.bf16.mxu0 0
    %6588 = vmatpush1.bf16.xpose.msra.mxu0 0
    %6589 = vmatprep.subr.bf16.mxu0 0
    %6590 = vmatpush1.bf16.xpose.msra.mxu0 0
    %6591 = vmatprep.subr.bf16.mxu0 0
    %6592 = vmatpush1.bf16.xpose.msra.mxu0 0
    %6593 = vmatprep.subr.bf16.mxu0 0
    %6594 = vmatpush1.bf16.xpose.msra.mxu0 %v6577
    %6595 = vmatprep.subr.bf16.mxu0 0
    %6596 = vmatpush2.bf16.xpose.msra.mxu0 0
    %6597 = vmatprep.subr.bf16.mxu0 0
    %6598 = vmatpush2.bf16.xpose.msra.mxu0 0
    %6599 = vmatprep.subr.bf16.mxu0 0
    %6600 = vmatpush2.bf16.xpose.msra.mxu0 0
    %6601 = vmatprep.subr.bf16.mxu0 0
    %6602 = vmatpush2.bf16.xpose.msra.mxu0 0
    %6603 = vmatprep.subr.bf16.mxu0 0
    %6604 = vmatpush2.bf16.xpose.msra.mxu0 0
    %6605 = vmatprep.subr.bf16.mxu0 0
    %6606 = vmatpush2.bf16.xpose.msra.mxu0 0
    %6607 = vmatprep.subr.bf16.mxu0 0
    %6608 = vmatpush2.bf16.xpose.msra.mxu0 0
    %6609 = vmatprep.subr.bf16.mxu0 0
    %6610 = vmatpush2.bf16.xpose.msra.mxu0 0
    %6611 = vmatprep.mubr.bf16.mxu0 0
    %6612 = vmatmul.mubr.bf16.gmra.mxu0 %v6574
    %v6613 = vpop.f32.mrf.mxu0
    %v6614 = vadd.f32 0.0, %v6613
    %v6615 = vpop.f32.mrf.mxu0
    %v6616 = vpop.f32.mrf.mxu0
    %v6617 = vadd.f32 0.0, %v6616
    %v6618 = vpop.f32.mrf.mxu0
    %6619 = vdwg.mxu0
    %6620 = vrot.lane.b32.xlu0 %v5852, 96
    %v6621 = vpop.permute.xlu0 %6620
    %v6623 = vsel %vm162, %v5852, 0
    %v6626 = vsel %vm162, %v6621, 0
    %6628 = vmatprep.subr.bf16.mxu0 0
    %6629 = vmatpush1.bf16.xpose.msra.mxu0 0
    %6630 = vmatprep.subr.bf16.mxu0 0
    %6631 = vmatpush1.bf16.xpose.msra.mxu0 0
    %6632 = vmatprep.subr.bf16.mxu0 0
    %6633 = vmatpush1.bf16.xpose.msra.mxu0 0
    %6634 = vmatprep.subr.bf16.mxu0 0
    %6635 = vmatpush1.bf16.xpose.msra.mxu0 0
    %6636 = vmatprep.subr.bf16.mxu0 0
    %6637 = vmatpush1.bf16.xpose.msra.mxu0 0
    %6638 = vmatprep.subr.bf16.mxu0 0
    %6639 = vmatpush1.bf16.xpose.msra.mxu0 0
    %6640 = vmatprep.subr.bf16.mxu0 0
    %6641 = vmatpush1.bf16.xpose.msra.mxu0 0
    %6642 = vmatprep.subr.bf16.mxu0 0
    %6643 = vmatpush1.bf16.xpose.msra.mxu0 %v6626
    %6644 = vmatprep.subr.bf16.mxu0 0
    %6645 = vmatpush2.bf16.xpose.msra.mxu0 0
    %6646 = vmatprep.subr.bf16.mxu0 0
    %6647 = vmatpush2.bf16.xpose.msra.mxu0 0
    %6648 = vmatprep.subr.bf16.mxu0 0
    %6649 = vmatpush2.bf16.xpose.msra.mxu0 0
    %6650 = vmatprep.subr.bf16.mxu0 0
    %6651 = vmatpush2.bf16.xpose.msra.mxu0 0
    %6652 = vmatprep.subr.bf16.mxu0 0
    %6653 = vmatpush2.bf16.xpose.msra.mxu0 0
    %6654 = vmatprep.subr.bf16.mxu0 0
    %6655 = vmatpush2.bf16.xpose.msra.mxu0 0
    %6656 = vmatprep.subr.bf16.mxu0 0
    %6657 = vmatpush2.bf16.xpose.msra.mxu0 0
    %6658 = vmatprep.subr.bf16.mxu0 0
    %6659 = vmatpush2.bf16.xpose.msra.mxu0 0
    %6660 = vmatprep.mubr.bf16.mxu0 0
    %6661 = vmatmul.mubr.bf16.gmra.mxu0 %v6623
    %v6662 = vpop.f32.mrf.mxu0
    %v6663 = vadd.f32 0.0, %v6662
    %v6664 = vpop.f32.mrf.mxu0
    %v6665 = vpop.f32.mrf.mxu0
    %v6666 = vadd.f32 0.0, %v6665
    %v6667 = vpop.f32.mrf.mxu0
    %6668 = vdwg.mxu0
    %6669 = vrot.lane.b32.xlu0 %v5854, 96
    %v6670 = vpop.permute.xlu0 %6669
    %v6672 = vsel %vm162, %v5854, 0
    %v6675 = vsel %vm162, %v6670, 0
    %6677 = vmatprep.subr.bf16.mxu0 0
    %6678 = vmatpush1.bf16.xpose.msra.mxu0 0
    %6679 = vmatprep.subr.bf16.mxu0 0
    %6680 = vmatpush1.bf16.xpose.msra.mxu0 0
    %6681 = vmatprep.subr.bf16.mxu0 0
    %6682 = vmatpush1.bf16.xpose.msra.mxu0 0
    %6683 = vmatprep.subr.bf16.mxu0 0
    %6684 = vmatpush1.bf16.xpose.msra.mxu0 0
    %6685 = vmatprep.subr.bf16.mxu0 0
    %6686 = vmatpush1.bf16.xpose.msra.mxu0 0
    %6687 = vmatprep.subr.bf16.mxu0 0
    %6688 = vmatpush1.bf16.xpose.msra.mxu0 0
    %6689 = vmatprep.subr.bf16.mxu0 0
    %6690 = vmatpush1.bf16.xpose.msra.mxu0 0
    %6691 = vmatprep.subr.bf16.mxu0 0
    %6692 = vmatpush1.bf16.xpose.msra.mxu0 %v6675
    %6693 = vmatprep.subr.bf16.mxu0 0
    %6694 = vmatpush2.bf16.xpose.msra.mxu0 0
    %6695 = vmatprep.subr.bf16.mxu0 0
    %6696 = vmatpush2.bf16.xpose.msra.mxu0 0
    %6697 = vmatprep.subr.bf16.mxu0 0
    %6698 = vmatpush2.bf16.xpose.msra.mxu0 0
    %6699 = vmatprep.subr.bf16.mxu0 0
    %6700 = vmatpush2.bf16.xpose.msra.mxu0 0
    %6701 = vmatprep.subr.bf16.mxu0 0
    %6702 = vmatpush2.bf16.xpose.msra.mxu0 0
    %6703 = vmatprep.subr.bf16.mxu0 0
    %6704 = vmatpush2.bf16.xpose.msra.mxu0 0
    %6705 = vmatprep.subr.bf16.mxu0 0
    %6706 = vmatpush2.bf16.xpose.msra.mxu0 0
    %6707 = vmatprep.subr.bf16.mxu0 0
    %6708 = vmatpush2.bf16.xpose.msra.mxu0 0
    %6709 = vmatprep.mubr.bf16.mxu0 0
    %6710 = vmatmul.mubr.bf16.gmra.mxu0 %v6672
    %v6711 = vpop.f32.mrf.mxu0
    %v6712 = vadd.f32 0.0, %v6711
    %v6713 = vpop.f32.mrf.mxu0
    %v6714 = vpop.f32.mrf.mxu0
    %v6715 = vadd.f32 0.0, %v6714
    %v6716 = vpop.f32.mrf.mxu0
    %6717 = vdwg.mxu0
    %6718 = vrot.lane.b32.xlu0 %v5856, 96
    %v6719 = vpop.permute.xlu0 %6718
    %v6721 = vsel %vm162, %v5856, 0
    %v6724 = vsel %vm162, %v6719, 0
    %6726 = vmatprep.subr.bf16.mxu0 0
    %6727 = vmatpush1.bf16.xpose.msra.mxu0 0
    %6728 = vmatprep.subr.bf16.mxu0 0
    %6729 = vmatpush1.bf16.xpose.msra.mxu0 0
    %6730 = vmatprep.subr.bf16.mxu0 0
    %6731 = vmatpush1.bf16.xpose.msra.mxu0 0
    %6732 = vmatprep.subr.bf16.mxu0 0
    %6733 = vmatpush1.bf16.xpose.msra.mxu0 0
    %6734 = vmatprep.subr.bf16.mxu0 0
    %6735 = vmatpush1.bf16.xpose.msra.mxu0 0
    %6736 = vmatprep.subr.bf16.mxu0 0
    %6737 = vmatpush1.bf16.xpose.msra.mxu0 0
    %6738 = vmatprep.subr.bf16.mxu0 0
    %6739 = vmatpush1.bf16.xpose.msra.mxu0 0
    %6740 = vmatprep.subr.bf16.mxu0 0
    %6741 = vmatpush1.bf16.xpose.msra.mxu0 %v6724
    %6742 = vmatprep.subr.bf16.mxu0 0
    %6743 = vmatpush2.bf16.xpose.msra.mxu0 0
    %6744 = vmatprep.subr.bf16.mxu0 0
    %6745 = vmatpush2.bf16.xpose.msra.mxu0 0
    %6746 = vmatprep.subr.bf16.mxu0 0
    %6747 = vmatpush2.bf16.xpose.msra.mxu0 0
    %6748 = vmatprep.subr.bf16.mxu0 0
    %6749 = vmatpush2.bf16.xpose.msra.mxu0 0
    %6750 = vmatprep.subr.bf16.mxu0 0
    %6751 = vmatpush2.bf16.xpose.msra.mxu0 0
    %6752 = vmatprep.subr.bf16.mxu0 0
    %6753 = vmatpush2.bf16.xpose.msra.mxu0 0
    %6754 = vmatprep.subr.bf16.mxu0 0
    %6755 = vmatpush2.bf16.xpose.msra.mxu0 0
    %6756 = vmatprep.subr.bf16.mxu0 0
    %6757 = vmatpush2.bf16.xpose.msra.mxu0 0
    %6758 = vmatprep.mubr.bf16.mxu0 0
    %6759 = vmatmul.mubr.bf16.gmra.mxu0 %v6721
    %v6760 = vpop.f32.mrf.mxu0
    %v6761 = vadd.f32 0.0, %v6760
    %v6762 = vpop.f32.mrf.mxu0
    %v6763 = vpop.f32.mrf.mxu0
    %v6764 = vadd.f32 0.0, %v6763
    %v6765 = vpop.f32.mrf.mxu0
    %6766 = vdwg.mxu0
    %6767 = vrot.lane.b32.xlu0 %v5858, 96
    %v6768 = vpop.permute.xlu0 %6767
    %v6770 = vsel %vm162, %v5858, 0
    %v6773 = vsel %vm162, %v6768, 0
    %6775 = vmatprep.subr.bf16.mxu0 0
    %6776 = vmatpush1.bf16.xpose.msra.mxu0 0
    %6777 = vmatprep.subr.bf16.mxu0 0
    %6778 = vmatpush1.bf16.xpose.msra.mxu0 0
    %6779 = vmatprep.subr.bf16.mxu0 0
    %6780 = vmatpush1.bf16.xpose.msra.mxu0 0
    %6781 = vmatprep.subr.bf16.mxu0 0
    %6782 = vmatpush1.bf16.xpose.msra.mxu0 0
    %6783 = vmatprep.subr.bf16.mxu0 0
    %6784 = vmatpush1.bf16.xpose.msra.mxu0 0
    %6785 = vmatprep.subr.bf16.mxu0 0
    %6786 = vmatpush1.bf16.xpose.msra.mxu0 0
    %6787 = vmatprep.subr.bf16.mxu0 0
    %6788 = vmatpush1.bf16.xpose.msra.mxu0 0
    %6789 = vmatprep.subr.bf16.mxu0 0
    %6790 = vmatpush1.bf16.xpose.msra.mxu0 %v6773
    %6791 = vmatprep.subr.bf16.mxu0 0
    %6792 = vmatpush2.bf16.xpose.msra.mxu0 0
    %6793 = vmatprep.subr.bf16.mxu0 0
    %6794 = vmatpush2.bf16.xpose.msra.mxu0 0
    %6795 = vmatprep.subr.bf16.mxu0 0
    %6796 = vmatpush2.bf16.xpose.msra.mxu0 0
    %6797 = vmatprep.subr.bf16.mxu0 0
    %6798 = vmatpush2.bf16.xpose.msra.mxu0 0
    %6799 = vmatprep.subr.bf16.mxu0 0
    %6800 = vmatpush2.bf16.xpose.msra.mxu0 0
    %6801 = vmatprep.subr.bf16.mxu0 0
    %6802 = vmatpush2.bf16.xpose.msra.mxu0 0
    %6803 = vmatprep.subr.bf16.mxu0 0
    %6804 = vmatpush2.bf16.xpose.msra.mxu0 0
    %6805 = vmatprep.subr.bf16.mxu0 0
    %6806 = vmatpush2.bf16.xpose.msra.mxu0 0
    %6807 = vmatprep.mubr.bf16.mxu0 0
    %6808 = vmatmul.mubr.bf16.gmra.mxu0 %v6770
    %v6809 = vpop.f32.mrf.mxu0
    %v6810 = vadd.f32 0.0, %v6809
    %v6811 = vpop.f32.mrf.mxu0
    %v6812 = vpop.f32.mrf.mxu0
    %v6813 = vadd.f32 0.0, %v6812
    %v6814 = vpop.f32.mrf.mxu0
    %6815 = vdwg.mxu0
    %6816 = vrot.lane.b32.xlu0 %v5860, 96
    %v6817 = vpop.permute.xlu0 %6816
    %v6819 = vsel %vm162, %v5860, 0
    %v6822 = vsel %vm162, %v6817, 0
    %6824 = vmatprep.subr.bf16.mxu0 0
    %6825 = vmatpush1.bf16.xpose.msra.mxu0 0
    %6826 = vmatprep.subr.bf16.mxu0 0
    %6827 = vmatpush1.bf16.xpose.msra.mxu0 0
    %6828 = vmatprep.subr.bf16.mxu0 0
    %6829 = vmatpush1.bf16.xpose.msra.mxu0 0
    %6830 = vmatprep.subr.bf16.mxu0 0
    %6831 = vmatpush1.bf16.xpose.msra.mxu0 0
    %6832 = vmatprep.subr.bf16.mxu0 0
    %6833 = vmatpush1.bf16.xpose.msra.mxu0 0
    %6834 = vmatprep.subr.bf16.mxu0 0
    %6835 = vmatpush1.bf16.xpose.msra.mxu0 0
    %6836 = vmatprep.subr.bf16.mxu0 0
    %6837 = vmatpush1.bf16.xpose.msra.mxu0 0
    %6838 = vmatprep.subr.bf16.mxu0 0
    %6839 = vmatpush1.bf16.xpose.msra.mxu0 %v6822
    %6840 = vmatprep.subr.bf16.mxu0 0
    %6841 = vmatpush2.bf16.xpose.msra.mxu0 0
    %6842 = vmatprep.subr.bf16.mxu0 0
    %6843 = vmatpush2.bf16.xpose.msra.mxu0 0
    %6844 = vmatprep.subr.bf16.mxu0 0
    %6845 = vmatpush2.bf16.xpose.msra.mxu0 0
    %6846 = vmatprep.subr.bf16.mxu0 0
    %6847 = vmatpush2.bf16.xpose.msra.mxu0 0
    %6848 = vmatprep.subr.bf16.mxu0 0
    %6849 = vmatpush2.bf16.xpose.msra.mxu0 0
    %6850 = vmatprep.subr.bf16.mxu0 0
    %6851 = vmatpush2.bf16.xpose.msra.mxu0 0
    %6852 = vmatprep.subr.bf16.mxu0 0
    %6853 = vmatpush2.bf16.xpose.msra.mxu0 0
    %6854 = vmatprep.subr.bf16.mxu0 0
    %6855 = vmatpush2.bf16.xpose.msra.mxu0 0
    %6856 = vmatprep.mubr.bf16.mxu0 0
    %6857 = vmatmul.mubr.bf16.gmra.mxu0 %v6819
    %v6858 = vpop.f32.mrf.mxu0
    %v6859 = vadd.f32 0.0, %v6858
    %v6860 = vpop.f32.mrf.mxu0
    %v6861 = vpop.f32.mrf.mxu0
    %v6862 = vadd.f32 0.0, %v6861
    %v6863 = vpop.f32.mrf.mxu0
    %6864 = vdwg.mxu0
    %6865 = vrot.lane.b32.xlu0 %v5862, 96
    %v6866 = vpop.permute.xlu0 %6865
    %v6868 = vsel %vm162, %v5862, 0
    %v6871 = vsel %vm162, %v6866, 0
    %6873 = vmatprep.subr.bf16.mxu0 0
    %6874 = vmatpush1.bf16.xpose.msra.mxu0 0
    %6875 = vmatprep.subr.bf16.mxu0 0
    %6876 = vmatpush1.bf16.xpose.msra.mxu0 0
    %6877 = vmatprep.subr.bf16.mxu0 0
    %6878 = vmatpush1.bf16.xpose.msra.mxu0 0
    %6879 = vmatprep.subr.bf16.mxu0 0
    %6880 = vmatpush1.bf16.xpose.msra.mxu0 0
    %6881 = vmatprep.subr.bf16.mxu0 0
    %6882 = vmatpush1.bf16.xpose.msra.mxu0 0
    %6883 = vmatprep.subr.bf16.mxu0 0
    %6884 = vmatpush1.bf16.xpose.msra.mxu0 0
    %6885 = vmatprep.subr.bf16.mxu0 0
    %6886 = vmatpush1.bf16.xpose.msra.mxu0 0
    %6887 = vmatprep.subr.bf16.mxu0 0
    %6888 = vmatpush1.bf16.xpose.msra.mxu0 %v6871
    %6889 = vmatprep.subr.bf16.mxu0 0
    %6890 = vmatpush2.bf16.xpose.msra.mxu0 0
    %6891 = vmatprep.subr.bf16.mxu0 0
    %6892 = vmatpush2.bf16.xpose.msra.mxu0 0
    %6893 = vmatprep.subr.bf16.mxu0 0
    %6894 = vmatpush2.bf16.xpose.msra.mxu0 0
    %6895 = vmatprep.subr.bf16.mxu0 0
    %6896 = vmatpush2.bf16.xpose.msra.mxu0 0
    %6897 = vmatprep.subr.bf16.mxu0 0
    %6898 = vmatpush2.bf16.xpose.msra.mxu0 0
    %6899 = vmatprep.subr.bf16.mxu0 0
    %6900 = vmatpush2.bf16.xpose.msra.mxu0 0
    %6901 = vmatprep.subr.bf16.mxu0 0
    %6902 = vmatpush2.bf16.xpose.msra.mxu0 0
    %6903 = vmatprep.subr.bf16.mxu0 0
    %6904 = vmatpush2.bf16.xpose.msra.mxu0 0
    %6905 = vmatprep.mubr.bf16.mxu0 0
    %6906 = vmatmul.mubr.bf16.gmra.mxu0 %v6868
    %v6907 = vpop.f32.mrf.mxu0
    %v6908 = vadd.f32 0.0, %v6907
    %v6909 = vpop.f32.mrf.mxu0
    %v6910 = vpop.f32.mrf.mxu0
    %v6911 = vadd.f32 0.0, %v6910
    %v6912 = vpop.f32.mrf.mxu0
    %6913 = vdwg.mxu0
    %6914 = vrot.lane.b32.xlu0 %v5864, 96
    %v6915 = vpop.permute.xlu0 %6914
    %v6917 = vsel %vm162, %v5864, 0
    %v6920 = vsel %vm162, %v6915, 0
    %6922 = vmatprep.subr.bf16.mxu0 0
    %6923 = vmatpush1.bf16.xpose.msra.mxu0 0
    %6924 = vmatprep.subr.bf16.mxu0 0
    %6925 = vmatpush1.bf16.xpose.msra.mxu0 0
    %6926 = vmatprep.subr.bf16.mxu0 0
    %6927 = vmatpush1.bf16.xpose.msra.mxu0 0
    %6928 = vmatprep.subr.bf16.mxu0 0
    %6929 = vmatpush1.bf16.xpose.msra.mxu0 0
    %6930 = vmatprep.subr.bf16.mxu0 0
    %6931 = vmatpush1.bf16.xpose.msra.mxu0 0
    %6932 = vmatprep.subr.bf16.mxu0 0
    %6933 = vmatpush1.bf16.xpose.msra.mxu0 0
    %6934 = vmatprep.subr.bf16.mxu0 0
    %6935 = vmatpush1.bf16.xpose.msra.mxu0 0
    %6936 = vmatprep.subr.bf16.mxu0 0
    %6937 = vmatpush1.bf16.xpose.msra.mxu0 %v6920
    %6938 = vmatprep.subr.bf16.mxu0 0
    %6939 = vmatpush2.bf16.xpose.msra.mxu0 0
    %6940 = vmatprep.subr.bf16.mxu0 0
    %6941 = vmatpush2.bf16.xpose.msra.mxu0 0
    %6942 = vmatprep.subr.bf16.mxu0 0
    %6943 = vmatpush2.bf16.xpose.msra.mxu0 0
    %6944 = vmatprep.subr.bf16.mxu0 0
    %6945 = vmatpush2.bf16.xpose.msra.mxu0 0
    %6946 = vmatprep.subr.bf16.mxu0 0
    %6947 = vmatpush2.bf16.xpose.msra.mxu0 0
    %6948 = vmatprep.subr.bf16.mxu0 0
    %6949 = vmatpush2.bf16.xpose.msra.mxu0 0
    %6950 = vmatprep.subr.bf16.mxu0 0
    %6951 = vmatpush2.bf16.xpose.msra.mxu0 0
    %6952 = vmatprep.subr.bf16.mxu0 0
    %6953 = vmatpush2.bf16.xpose.msra.mxu0 0
    %6954 = vmatprep.mubr.bf16.mxu0 0
    %6955 = vmatmul.mubr.bf16.gmra.mxu0 %v6917
    %v6956 = vpop.f32.mrf.mxu0
    %v6957 = vadd.f32 0.0, %v6956
    %v6958 = vpop.f32.mrf.mxu0
    %v6959 = vpop.f32.mrf.mxu0
    %v6960 = vadd.f32 0.0, %v6959
    %v6961 = vpop.f32.mrf.mxu0
    %6962 = vdwg.mxu0
    %6963 = vrot.lane.b32.xlu0 %v5866, 96
    %v6964 = vpop.permute.xlu0 %6963
    %v6966 = vsel %vm162, %v5866, 0
    %v6969 = vsel %vm162, %v6964, 0
    %6971 = vmatprep.subr.bf16.mxu0 0
    %6972 = vmatpush1.bf16.xpose.msra.mxu0 0
    %6973 = vmatprep.subr.bf16.mxu0 0
    %6974 = vmatpush1.bf16.xpose.msra.mxu0 0
    %6975 = vmatprep.subr.bf16.mxu0 0
    %6976 = vmatpush1.bf16.xpose.msra.mxu0 0
    %6977 = vmatprep.subr.bf16.mxu0 0
    %6978 = vmatpush1.bf16.xpose.msra.mxu0 0
    %6979 = vmatprep.subr.bf16.mxu0 0
    %6980 = vmatpush1.bf16.xpose.msra.mxu0 0
    %6981 = vmatprep.subr.bf16.mxu0 0
    %6982 = vmatpush1.bf16.xpose.msra.mxu0 0
    %6983 = vmatprep.subr.bf16.mxu0 0
    %6984 = vmatpush1.bf16.xpose.msra.mxu0 0
    %6985 = vmatprep.subr.bf16.mxu0 0
    %6986 = vmatpush1.bf16.xpose.msra.mxu0 %v6969
    %6987 = vmatprep.subr.bf16.mxu0 0
    %6988 = vmatpush2.bf16.xpose.msra.mxu0 0
    %6989 = vmatprep.subr.bf16.mxu0 0
    %6990 = vmatpush2.bf16.xpose.msra.mxu0 0
    %6991 = vmatprep.subr.bf16.mxu0 0
    %6992 = vmatpush2.bf16.xpose.msra.mxu0 0
    %6993 = vmatprep.subr.bf16.mxu0 0
    %6994 = vmatpush2.bf16.xpose.msra.mxu0 0
    %6995 = vmatprep.subr.bf16.mxu0 0
    %6996 = vmatpush2.bf16.xpose.msra.mxu0 0
    %6997 = vmatprep.subr.bf16.mxu0 0
    %6998 = vmatpush2.bf16.xpose.msra.mxu0 0
    %6999 = vmatprep.subr.bf16.mxu0 0
    %7000 = vmatpush2.bf16.xpose.msra.mxu0 0
    %7001 = vmatprep.subr.bf16.mxu0 0
    %7002 = vmatpush2.bf16.xpose.msra.mxu0 0
    %7003 = vmatprep.mubr.bf16.mxu0 0
    %7004 = vmatmul.mubr.bf16.gmra.mxu0 %v6966
    %v7005 = vpop.f32.mrf.mxu0
    %v7006 = vadd.f32 0.0, %v7005
    %v7007 = vpop.f32.mrf.mxu0
    %v7008 = vpop.f32.mrf.mxu0
    %v7009 = vadd.f32 0.0, %v7008
    %v7010 = vpop.f32.mrf.mxu0
    %7011 = vdwg.mxu0
    %7012 = vrot.lane.b32.xlu0 %v5868, 96
    %v7013 = vpop.permute.xlu0 %7012
    %v7015 = vsel %vm162, %v5868, 0
    %v7018 = vsel %vm162, %v7013, 0
    %7020 = vmatprep.subr.bf16.mxu0 0
    %7021 = vmatpush1.bf16.xpose.msra.mxu0 0
    %7022 = vmatprep.subr.bf16.mxu0 0
    %7023 = vmatpush1.bf16.xpose.msra.mxu0 0
    %7024 = vmatprep.subr.bf16.mxu0 0
    %7025 = vmatpush1.bf16.xpose.msra.mxu0 0
    %7026 = vmatprep.subr.bf16.mxu0 0
    %7027 = vmatpush1.bf16.xpose.msra.mxu0 0
    %7028 = vmatprep.subr.bf16.mxu0 0
    %7029 = vmatpush1.bf16.xpose.msra.mxu0 0
    %7030 = vmatprep.subr.bf16.mxu0 0
    %7031 = vmatpush1.bf16.xpose.msra.mxu0 0
    %7032 = vmatprep.subr.bf16.mxu0 0
    %7033 = vmatpush1.bf16.xpose.msra.mxu0 0
    %7034 = vmatprep.subr.bf16.mxu0 0
    %7035 = vmatpush1.bf16.xpose.msra.mxu0 %v7018
    %7036 = vmatprep.subr.bf16.mxu0 0
    %7037 = vmatpush2.bf16.xpose.msra.mxu0 0
    %7038 = vmatprep.subr.bf16.mxu0 0
    %7039 = vmatpush2.bf16.xpose.msra.mxu0 0
    %7040 = vmatprep.subr.bf16.mxu0 0
    %7041 = vmatpush2.bf16.xpose.msra.mxu0 0
    %7042 = vmatprep.subr.bf16.mxu0 0
    %7043 = vmatpush2.bf16.xpose.msra.mxu0 0
    %7044 = vmatprep.subr.bf16.mxu0 0
    %7045 = vmatpush2.bf16.xpose.msra.mxu0 0
    %7046 = vmatprep.subr.bf16.mxu0 0
    %7047 = vmatpush2.bf16.xpose.msra.mxu0 0
    %7048 = vmatprep.subr.bf16.mxu0 0
    %7049 = vmatpush2.bf16.xpose.msra.mxu0 0
    %7050 = vmatprep.subr.bf16.mxu0 0
    %7051 = vmatpush2.bf16.xpose.msra.mxu0 0
    %7052 = vmatprep.mubr.bf16.mxu0 0
    %7053 = vmatmul.mubr.bf16.gmra.mxu0 %v7015
    %v7054 = vpop.f32.mrf.mxu0
    %v7055 = vadd.f32 0.0, %v7054
    %v7056 = vpop.f32.mrf.mxu0
    %v7057 = vpop.f32.mrf.mxu0
    %v7058 = vadd.f32 0.0, %v7057
    %v7059 = vpop.f32.mrf.mxu0
    %7060 = vdwg.mxu0
    %7061 = vrot.lane.b32.xlu0 %v5870, 96
    %v7062 = vpop.permute.xlu0 %7061
    %v7064 = vsel %vm162, %v5870, 0
    %v7067 = vsel %vm162, %v7062, 0
    %7069 = vmatprep.subr.bf16.mxu0 0
    %7070 = vmatpush1.bf16.xpose.msra.mxu0 0
    %7071 = vmatprep.subr.bf16.mxu0 0
    %7072 = vmatpush1.bf16.xpose.msra.mxu0 0
    %7073 = vmatprep.subr.bf16.mxu0 0
    %7074 = vmatpush1.bf16.xpose.msra.mxu0 0
    %7075 = vmatprep.subr.bf16.mxu0 0
    %7076 = vmatpush1.bf16.xpose.msra.mxu0 0
    %7077 = vmatprep.subr.bf16.mxu0 0
    %7078 = vmatpush1.bf16.xpose.msra.mxu0 0
    %7079 = vmatprep.subr.bf16.mxu0 0
    %7080 = vmatpush1.bf16.xpose.msra.mxu0 0
    %7081 = vmatprep.subr.bf16.mxu0 0
    %7082 = vmatpush1.bf16.xpose.msra.mxu0 0
    %7083 = vmatprep.subr.bf16.mxu0 0
    %7084 = vmatpush1.bf16.xpose.msra.mxu0 %v7067
    %7085 = vmatprep.subr.bf16.mxu0 0
    %7086 = vmatpush2.bf16.xpose.msra.mxu0 0
    %7087 = vmatprep.subr.bf16.mxu0 0
    %7088 = vmatpush2.bf16.xpose.msra.mxu0 0
    %7089 = vmatprep.subr.bf16.mxu0 0
    %7090 = vmatpush2.bf16.xpose.msra.mxu0 0
    %7091 = vmatprep.subr.bf16.mxu0 0
    %7092 = vmatpush2.bf16.xpose.msra.mxu0 0
    %7093 = vmatprep.subr.bf16.mxu0 0
    %7094 = vmatpush2.bf16.xpose.msra.mxu0 0
    %7095 = vmatprep.subr.bf16.mxu0 0
    %7096 = vmatpush2.bf16.xpose.msra.mxu0 0
    %7097 = vmatprep.subr.bf16.mxu0 0
    %7098 = vmatpush2.bf16.xpose.msra.mxu0 0
    %7099 = vmatprep.subr.bf16.mxu0 0
    %7100 = vmatpush2.bf16.xpose.msra.mxu0 0
    %7101 = vmatprep.mubr.bf16.mxu0 0
    %7102 = vmatmul.mubr.bf16.gmra.mxu0 %v7064
    %v7103 = vpop.f32.mrf.mxu0
    %v7104 = vadd.f32 0.0, %v7103
    %v7105 = vpop.f32.mrf.mxu0
    %v7106 = vpop.f32.mrf.mxu0
    %v7107 = vadd.f32 0.0, %v7106
    %v7108 = vpop.f32.mrf.mxu0
    %7109 = vdwg.mxu0
    %7110 = vrot.lane.b32.xlu0 %v5872, 96
    %v7111 = vpop.permute.xlu0 %7110
    %v7113 = vsel %vm162, %v5872, 0
    %v7116 = vsel %vm162, %v7111, 0
    %7118 = vmatprep.subr.bf16.mxu0 0
    %7119 = vmatpush1.bf16.xpose.msra.mxu0 0
    %7120 = vmatprep.subr.bf16.mxu0 0
    %7121 = vmatpush1.bf16.xpose.msra.mxu0 0
    %7122 = vmatprep.subr.bf16.mxu0 0
    %7123 = vmatpush1.bf16.xpose.msra.mxu0 0
    %7124 = vmatprep.subr.bf16.mxu0 0
    %7125 = vmatpush1.bf16.xpose.msra.mxu0 0
    %7126 = vmatprep.subr.bf16.mxu0 0
    %7127 = vmatpush1.bf16.xpose.msra.mxu0 0
    %7128 = vmatprep.subr.bf16.mxu0 0
    %7129 = vmatpush1.bf16.xpose.msra.mxu0 0
    %7130 = vmatprep.subr.bf16.mxu0 0
    %7131 = vmatpush1.bf16.xpose.msra.mxu0 0
    %7132 = vmatprep.subr.bf16.mxu0 0
    %7133 = vmatpush1.bf16.xpose.msra.mxu0 %v7116
    %7134 = vmatprep.subr.bf16.mxu0 0
    %7135 = vmatpush2.bf16.xpose.msra.mxu0 0
    %7136 = vmatprep.subr.bf16.mxu0 0
    %7137 = vmatpush2.bf16.xpose.msra.mxu0 0
    %7138 = vmatprep.subr.bf16.mxu0 0
    %7139 = vmatpush2.bf16.xpose.msra.mxu0 0
    %7140 = vmatprep.subr.bf16.mxu0 0
    %7141 = vmatpush2.bf16.xpose.msra.mxu0 0
    %7142 = vmatprep.subr.bf16.mxu0 0
    %7143 = vmatpush2.bf16.xpose.msra.mxu0 0
    %7144 = vmatprep.subr.bf16.mxu0 0
    %7145 = vmatpush2.bf16.xpose.msra.mxu0 0
    %7146 = vmatprep.subr.bf16.mxu0 0
    %7147 = vmatpush2.bf16.xpose.msra.mxu0 0
    %7148 = vmatprep.subr.bf16.mxu0 0
    %7149 = vmatpush2.bf16.xpose.msra.mxu0 0
    %7150 = vmatprep.mubr.bf16.mxu0 0
    %7151 = vmatmul.mubr.bf16.gmra.mxu0 %v7113
    %v7152 = vpop.f32.mrf.mxu0
    %v7153 = vadd.f32 0.0, %v7152
    %v7154 = vpop.f32.mrf.mxu0
    %v7155 = vpop.f32.mrf.mxu0
    %v7156 = vadd.f32 0.0, %v7155
    %v7157 = vpop.f32.mrf.mxu0
    %7158 = vdwg.mxu0
    %7159 = vrot.lane.b32.xlu0 %v5874, 96
    %v7160 = vpop.permute.xlu0 %7159
    %v7162 = vsel %vm162, %v5874, 0
    %v7165 = vsel %vm162, %v7160, 0
    %7167 = vmatprep.subr.bf16.mxu0 0
    %7168 = vmatpush1.bf16.xpose.msra.mxu0 0
    %7169 = vmatprep.subr.bf16.mxu0 0
    %7170 = vmatpush1.bf16.xpose.msra.mxu0 0
    %7171 = vmatprep.subr.bf16.mxu0 0
    %7172 = vmatpush1.bf16.xpose.msra.mxu0 0
    %7173 = vmatprep.subr.bf16.mxu0 0
    %7174 = vmatpush1.bf16.xpose.msra.mxu0 0
    %7175 = vmatprep.subr.bf16.mxu0 0
    %7176 = vmatpush1.bf16.xpose.msra.mxu0 0
    %7177 = vmatprep.subr.bf16.mxu0 0
    %7178 = vmatpush1.bf16.xpose.msra.mxu0 0
    %7179 = vmatprep.subr.bf16.mxu0 0
    %7180 = vmatpush1.bf16.xpose.msra.mxu0 0
    %7181 = vmatprep.subr.bf16.mxu0 0
    %7182 = vmatpush1.bf16.xpose.msra.mxu0 %v7165
    %7183 = vmatprep.subr.bf16.mxu0 0
    %7184 = vmatpush2.bf16.xpose.msra.mxu0 0
    %7185 = vmatprep.subr.bf16.mxu0 0
    %7186 = vmatpush2.bf16.xpose.msra.mxu0 0
    %7187 = vmatprep.subr.bf16.mxu0 0
    %7188 = vmatpush2.bf16.xpose.msra.mxu0 0
    %7189 = vmatprep.subr.bf16.mxu0 0
    %7190 = vmatpush2.bf16.xpose.msra.mxu0 0
    %7191 = vmatprep.subr.bf16.mxu0 0
    %7192 = vmatpush2.bf16.xpose.msra.mxu0 0
    %7193 = vmatprep.subr.bf16.mxu0 0
    %7194 = vmatpush2.bf16.xpose.msra.mxu0 0
    %7195 = vmatprep.subr.bf16.mxu0 0
    %7196 = vmatpush2.bf16.xpose.msra.mxu0 0
    %7197 = vmatprep.subr.bf16.mxu0 0
    %7198 = vmatpush2.bf16.xpose.msra.mxu0 0
    %7199 = vmatprep.mubr.bf16.mxu0 0
    %7200 = vmatmul.mubr.bf16.gmra.mxu0 %v7162
    %v7201 = vpop.f32.mrf.mxu0
    %v7202 = vadd.f32 0.0, %v7201
    %v7203 = vpop.f32.mrf.mxu0
    %v7204 = vpop.f32.mrf.mxu0
    %v7205 = vadd.f32 0.0, %v7204
    %v7206 = vpop.f32.mrf.mxu0
    %7207 = vdwg.mxu0
    %7208 = vrot.lane.b32.xlu0 %v5876, 96
    %v7209 = vpop.permute.xlu0 %7208
    %v7211 = vsel %vm162, %v5876, 0
    %v7214 = vsel %vm162, %v7209, 0
    %7216 = vmatprep.subr.bf16.mxu0 0
    %7217 = vmatpush1.bf16.xpose.msra.mxu0 0
    %7218 = vmatprep.subr.bf16.mxu0 0
    %7219 = vmatpush1.bf16.xpose.msra.mxu0 0
    %7220 = vmatprep.subr.bf16.mxu0 0
    %7221 = vmatpush1.bf16.xpose.msra.mxu0 0
    %7222 = vmatprep.subr.bf16.mxu0 0
    %7223 = vmatpush1.bf16.xpose.msra.mxu0 0
    %7224 = vmatprep.subr.bf16.mxu0 0
    %7225 = vmatpush1.bf16.xpose.msra.mxu0 0
    %7226 = vmatprep.subr.bf16.mxu0 0
    %7227 = vmatpush1.bf16.xpose.msra.mxu0 0
    %7228 = vmatprep.subr.bf16.mxu0 0
    %7229 = vmatpush1.bf16.xpose.msra.mxu0 0
    %7230 = vmatprep.subr.bf16.mxu0 0
    %7231 = vmatpush1.bf16.xpose.msra.mxu0 %v7214
    %7232 = vmatprep.subr.bf16.mxu0 0
    %7233 = vmatpush2.bf16.xpose.msra.mxu0 0
    %7234 = vmatprep.subr.bf16.mxu0 0
    %7235 = vmatpush2.bf16.xpose.msra.mxu0 0
    %7236 = vmatprep.subr.bf16.mxu0 0
    %7237 = vmatpush2.bf16.xpose.msra.mxu0 0
    %7238 = vmatprep.subr.bf16.mxu0 0
    %7239 = vmatpush2.bf16.xpose.msra.mxu0 0
    %7240 = vmatprep.subr.bf16.mxu0 0
    %7241 = vmatpush2.bf16.xpose.msra.mxu0 0
    %7242 = vmatprep.subr.bf16.mxu0 0
    %7243 = vmatpush2.bf16.xpose.msra.mxu0 0
    %7244 = vmatprep.subr.bf16.mxu0 0
    %7245 = vmatpush2.bf16.xpose.msra.mxu0 0
    %7246 = vmatprep.subr.bf16.mxu0 0
    %7247 = vmatpush2.bf16.xpose.msra.mxu0 0
    %7248 = vmatprep.mubr.bf16.mxu0 0
    %7249 = vmatmul.mubr.bf16.gmra.mxu0 %v7211
    %v7250 = vpop.f32.mrf.mxu0
    %v7251 = vadd.f32 0.0, %v7250
    %v7252 = vpop.f32.mrf.mxu0
    %v7253 = vpop.f32.mrf.mxu0
    %v7254 = vadd.f32 0.0, %v7253
    %v7255 = vpop.f32.mrf.mxu0
    %7256 = vdwg.mxu0
    %7257 = vrot.lane.b32.xlu0 %v5878, 96
    %v7258 = vpop.permute.xlu0 %7257
    %v7260 = vsel %vm162, %v5878, 0
    %v7263 = vsel %vm162, %v7258, 0
    %7265 = vmatprep.subr.bf16.mxu0 0
    %7266 = vmatpush1.bf16.xpose.msra.mxu0 0
    %7267 = vmatprep.subr.bf16.mxu0 0
    %7268 = vmatpush1.bf16.xpose.msra.mxu0 0
    %7269 = vmatprep.subr.bf16.mxu0 0
    %7270 = vmatpush1.bf16.xpose.msra.mxu0 0
    %7271 = vmatprep.subr.bf16.mxu0 0
    %7272 = vmatpush1.bf16.xpose.msra.mxu0 0
    %7273 = vmatprep.subr.bf16.mxu0 0
    %7274 = vmatpush1.bf16.xpose.msra.mxu0 0
    %7275 = vmatprep.subr.bf16.mxu0 0
    %7276 = vmatpush1.bf16.xpose.msra.mxu0 0
    %7277 = vmatprep.subr.bf16.mxu0 0
    %7278 = vmatpush1.bf16.xpose.msra.mxu0 0
    %7279 = vmatprep.subr.bf16.mxu0 0
    %7280 = vmatpush1.bf16.xpose.msra.mxu0 %v7263
    %7281 = vmatprep.subr.bf16.mxu0 0
    %7282 = vmatpush2.bf16.xpose.msra.mxu0 0
    %7283 = vmatprep.subr.bf16.mxu0 0
    %7284 = vmatpush2.bf16.xpose.msra.mxu0 0
    %7285 = vmatprep.subr.bf16.mxu0 0
    %7286 = vmatpush2.bf16.xpose.msra.mxu0 0
    %7287 = vmatprep.subr.bf16.mxu0 0
    %7288 = vmatpush2.bf16.xpose.msra.mxu0 0
    %7289 = vmatprep.subr.bf16.mxu0 0
    %7290 = vmatpush2.bf16.xpose.msra.mxu0 0
    %7291 = vmatprep.subr.bf16.mxu0 0
    %7292 = vmatpush2.bf16.xpose.msra.mxu0 0
    %7293 = vmatprep.subr.bf16.mxu0 0
    %7294 = vmatpush2.bf16.xpose.msra.mxu0 0
    %7295 = vmatprep.subr.bf16.mxu0 0
    %7296 = vmatpush2.bf16.xpose.msra.mxu0 0
    %7297 = vmatprep.mubr.bf16.mxu0 0
    %7298 = vmatmul.mubr.bf16.gmra.mxu0 %v7260
    %v7299 = vpop.f32.mrf.mxu0
    %v7300 = vadd.f32 0.0, %v7299
    %v7301 = vpop.f32.mrf.mxu0
    %v7302 = vpop.f32.mrf.mxu0
    %v7303 = vadd.f32 0.0, %v7302
    %v7304 = vpop.f32.mrf.mxu0
    %7305 = vdwg.mxu0
    %7306 = vrot.lane.b32.xlu0 %v5880, 96
    %v7307 = vpop.permute.xlu0 %7306
    %v7309 = vsel %vm162, %v5880, 0
    %v7312 = vsel %vm162, %v7307, 0
    %7314 = vmatprep.subr.bf16.mxu0 0
    %7315 = vmatpush1.bf16.xpose.msra.mxu0 0
    %7316 = vmatprep.subr.bf16.mxu0 0
    %7317 = vmatpush1.bf16.xpose.msra.mxu0 0
    %7318 = vmatprep.subr.bf16.mxu0 0
    %7319 = vmatpush1.bf16.xpose.msra.mxu0 0
    %7320 = vmatprep.subr.bf16.mxu0 0
    %7321 = vmatpush1.bf16.xpose.msra.mxu0 0
    %7322 = vmatprep.subr.bf16.mxu0 0
    %7323 = vmatpush1.bf16.xpose.msra.mxu0 0
    %7324 = vmatprep.subr.bf16.mxu0 0
    %7325 = vmatpush1.bf16.xpose.msra.mxu0 0
    %7326 = vmatprep.subr.bf16.mxu0 0
    %7327 = vmatpush1.bf16.xpose.msra.mxu0 0
    %7328 = vmatprep.subr.bf16.mxu0 0
    %7329 = vmatpush1.bf16.xpose.msra.mxu0 %v7312
    %7330 = vmatprep.subr.bf16.mxu0 0
    %7331 = vmatpush2.bf16.xpose.msra.mxu0 0
    %7332 = vmatprep.subr.bf16.mxu0 0
    %7333 = vmatpush2.bf16.xpose.msra.mxu0 0
    %7334 = vmatprep.subr.bf16.mxu0 0
    %7335 = vmatpush2.bf16.xpose.msra.mxu0 0
    %7336 = vmatprep.subr.bf16.mxu0 0
    %7337 = vmatpush2.bf16.xpose.msra.mxu0 0
    %7338 = vmatprep.subr.bf16.mxu0 0
    %7339 = vmatpush2.bf16.xpose.msra.mxu0 0
    %7340 = vmatprep.subr.bf16.mxu0 0
    %7341 = vmatpush2.bf16.xpose.msra.mxu0 0
    %7342 = vmatprep.subr.bf16.mxu0 0
    %7343 = vmatpush2.bf16.xpose.msra.mxu0 0
    %7344 = vmatprep.subr.bf16.mxu0 0
    %7345 = vmatpush2.bf16.xpose.msra.mxu0 0
    %7346 = vmatprep.mubr.bf16.mxu0 0
    %7347 = vmatmul.mubr.bf16.gmra.mxu0 %v7309
    %v7348 = vpop.f32.mrf.mxu0
    %v7349 = vadd.f32 0.0, %v7348
    %v7350 = vpop.f32.mrf.mxu0
    %v7351 = vpop.f32.mrf.mxu0
    %v7352 = vadd.f32 0.0, %v7351
    %v7353 = vpop.f32.mrf.mxu0
    %7354 = vdwg.mxu0
    %7355 = vrot.lane.b32.xlu0 %v5882, 96
    %v7356 = vpop.permute.xlu0 %7355
    %v7358 = vsel %vm162, %v5882, 0
    %v7361 = vsel %vm162, %v7356, 0
    %7363 = vmatprep.subr.bf16.mxu0 0
    %7364 = vmatpush1.bf16.xpose.msra.mxu0 0
    %7365 = vmatprep.subr.bf16.mxu0 0
    %7366 = vmatpush1.bf16.xpose.msra.mxu0 0
    %7367 = vmatprep.subr.bf16.mxu0 0
    %7368 = vmatpush1.bf16.xpose.msra.mxu0 0
    %7369 = vmatprep.subr.bf16.mxu0 0
    %7370 = vmatpush1.bf16.xpose.msra.mxu0 0
    %7371 = vmatprep.subr.bf16.mxu0 0
    %7372 = vmatpush1.bf16.xpose.msra.mxu0 0
    %7373 = vmatprep.subr.bf16.mxu0 0
    %7374 = vmatpush1.bf16.xpose.msra.mxu0 0
    %7375 = vmatprep.subr.bf16.mxu0 0
    %7376 = vmatpush1.bf16.xpose.msra.mxu0 0
    %7377 = vmatprep.subr.bf16.mxu0 0
    %7378 = vmatpush1.bf16.xpose.msra.mxu0 %v7361
    %7379 = vmatprep.subr.bf16.mxu0 0
    %7380 = vmatpush2.bf16.xpose.msra.mxu0 0
    %7381 = vmatprep.subr.bf16.mxu0 0
    %7382 = vmatpush2.bf16.xpose.msra.mxu0 0
    %7383 = vmatprep.subr.bf16.mxu0 0
    %7384 = vmatpush2.bf16.xpose.msra.mxu0 0
    %7385 = vmatprep.subr.bf16.mxu0 0
    %7386 = vmatpush2.bf16.xpose.msra.mxu0 0
    %7387 = vmatprep.subr.bf16.mxu0 0
    %7388 = vmatpush2.bf16.xpose.msra.mxu0 0
    %7389 = vmatprep.subr.bf16.mxu0 0
    %7390 = vmatpush2.bf16.xpose.msra.mxu0 0
    %7391 = vmatprep.subr.bf16.mxu0 0
    %7392 = vmatpush2.bf16.xpose.msra.mxu0 0
    %7393 = vmatprep.subr.bf16.mxu0 0
    %7394 = vmatpush2.bf16.xpose.msra.mxu0 0
    %7395 = vmatprep.mubr.bf16.mxu0 0
    %7396 = vmatmul.mubr.bf16.gmra.mxu0 %v7358
    %v7397 = vpop.f32.mrf.mxu0
    %v7398 = vadd.f32 0.0, %v7397
    %v7399 = vpop.f32.mrf.mxu0
    %v7400 = vpop.f32.mrf.mxu0
    %v7401 = vadd.f32 0.0, %v7400
    %v7402 = vpop.f32.mrf.mxu0
    %7403 = vdwg.mxu0
    %7404 = vrot.lane.b32.xlu0 %v5884, 96
    %v7405 = vpop.permute.xlu0 %7404
    %v7407 = vsel %vm162, %v5884, 0
    %v7410 = vsel %vm162, %v7405, 0
    %7412 = vmatprep.subr.bf16.mxu0 0
    %7413 = vmatpush1.bf16.xpose.msra.mxu0 0
    %7414 = vmatprep.subr.bf16.mxu0 0
    %7415 = vmatpush1.bf16.xpose.msra.mxu0 0
    %7416 = vmatprep.subr.bf16.mxu0 0
    %7417 = vmatpush1.bf16.xpose.msra.mxu0 0
    %7418 = vmatprep.subr.bf16.mxu0 0
    %7419 = vmatpush1.bf16.xpose.msra.mxu0 0
    %7420 = vmatprep.subr.bf16.mxu0 0
    %7421 = vmatpush1.bf16.xpose.msra.mxu0 0
    %7422 = vmatprep.subr.bf16.mxu0 0
    %7423 = vmatpush1.bf16.xpose.msra.mxu0 0
    %7424 = vmatprep.subr.bf16.mxu0 0
    %7425 = vmatpush1.bf16.xpose.msra.mxu0 0
    %7426 = vmatprep.subr.bf16.mxu0 0
    %7427 = vmatpush1.bf16.xpose.msra.mxu0 %v7410
    %7428 = vmatprep.subr.bf16.mxu0 0
    %7429 = vmatpush2.bf16.xpose.msra.mxu0 0
    %7430 = vmatprep.subr.bf16.mxu0 0
    %7431 = vmatpush2.bf16.xpose.msra.mxu0 0
    %7432 = vmatprep.subr.bf16.mxu0 0
    %7433 = vmatpush2.bf16.xpose.msra.mxu0 0
    %7434 = vmatprep.subr.bf16.mxu0 0
    %7435 = vmatpush2.bf16.xpose.msra.mxu0 0
    %7436 = vmatprep.subr.bf16.mxu0 0
    %7437 = vmatpush2.bf16.xpose.msra.mxu0 0
    %7438 = vmatprep.subr.bf16.mxu0 0
    %7439 = vmatpush2.bf16.xpose.msra.mxu0 0
    %7440 = vmatprep.subr.bf16.mxu0 0
    %7441 = vmatpush2.bf16.xpose.msra.mxu0 0
    %7442 = vmatprep.subr.bf16.mxu0 0
    %7443 = vmatpush2.bf16.xpose.msra.mxu0 0
    %7444 = vmatprep.mubr.bf16.mxu0 0
    %7445 = vmatmul.mubr.bf16.gmra.mxu0 %v7407
    %v7446 = vpop.f32.mrf.mxu0
    %v7447 = vadd.f32 0.0, %v7446
    %v7448 = vpop.f32.mrf.mxu0
    %v7449 = vpop.f32.mrf.mxu0
    %v7450 = vadd.f32 0.0, %v7449
    %v7451 = vpop.f32.mrf.mxu0
    %7452 = vdwg.mxu0
    %v7453 = vsel %vm2224, %v5928, -inf
    %7454 = vmax.xlane.f32.xlu0 %v7453
    %v7455 = vpop.xlane.xlu0 %7454
    %v7456 = vsel %vm2224, %v5931, -inf
    %7457 = vmax.xlane.f32.xlu0 %v7456
    %v7458 = vpop.xlane.xlu0 %7457
    %v7459 = vsel %vm2224, %v5977, -inf
    %7460 = vmax.xlane.f32.xlu0 %v7459
    %v7461 = vpop.xlane.xlu0 %7460
    %v7462 = vsel %vm2224, %v5980, -inf
    %7463 = vmax.xlane.f32.xlu0 %v7462
    %v7464 = vpop.xlane.xlu0 %7463
    %v7465 = vsel %vm2224, %v6026, -inf
    %7466 = vmax.xlane.f32.xlu0 %v7465
    %v7467 = vpop.xlane.xlu0 %7466
    %v7468 = vsel %vm2224, %v6029, -inf
    %7469 = vmax.xlane.f32.xlu0 %v7468
    %v7470 = vpop.xlane.xlu0 %7469
    %v7471 = vsel %vm2224, %v6075, -inf
    %7472 = vmax.xlane.f32.xlu0 %v7471
    %v7473 = vpop.xlane.xlu0 %7472
    %v7474 = vsel %vm2224, %v6078, -inf
    %7475 = vmax.xlane.f32.xlu0 %v7474
    %v7476 = vpop.xlane.xlu0 %7475
    %v7477 = vsel %vm2224, %v6124, -inf
    %7478 = vmax.xlane.f32.xlu0 %v7477
    %v7479 = vpop.xlane.xlu0 %7478
    %v7480 = vsel %vm2224, %v6127, -inf
    %7481 = vmax.xlane.f32.xlu0 %v7480
    %v7482 = vpop.xlane.xlu0 %7481
    %v7483 = vsel %vm2224, %v6173, -inf
    %7484 = vmax.xlane.f32.xlu0 %v7483
    %v7485 = vpop.xlane.xlu0 %7484
    %v7486 = vsel %vm2224, %v6176, -inf
    %7487 = vmax.xlane.f32.xlu0 %v7486
    %v7488 = vpop.xlane.xlu0 %7487
    %v7489 = vsel %vm2224, %v6222, -inf
    %7490 = vmax.xlane.f32.xlu0 %v7489
    %v7491 = vpop.xlane.xlu0 %7490
    %v7492 = vsel %vm2224, %v6225, -inf
    %7493 = vmax.xlane.f32.xlu0 %v7492
    %v7494 = vpop.xlane.xlu0 %7493
    %v7495 = vsel %vm2224, %v6271, -inf
    %7496 = vmax.xlane.f32.xlu0 %v7495
    %v7497 = vpop.xlane.xlu0 %7496
    %v7498 = vsel %vm2224, %v6274, -inf
    %7499 = vmax.xlane.f32.xlu0 %v7498
    %v7500 = vpop.xlane.xlu0 %7499
    %v7501 = vsel %vm2224, %v6320, -inf
    %7502 = vmax.xlane.f32.xlu0 %v7501
    %v7503 = vpop.xlane.xlu0 %7502
    %v7504 = vsel %vm2224, %v6323, -inf
    %7505 = vmax.xlane.f32.xlu0 %v7504
    %v7506 = vpop.xlane.xlu0 %7505
    %v7507 = vsel %vm2224, %v6369, -inf
    %7508 = vmax.xlane.f32.xlu0 %v7507
    %v7509 = vpop.xlane.xlu0 %7508
    %v7510 = vsel %vm2224, %v6372, -inf
    %7511 = vmax.xlane.f32.xlu0 %v7510
    %v7512 = vpop.xlane.xlu0 %7511
    %v7513 = vsel %vm2224, %v6418, -inf
    %7514 = vmax.xlane.f32.xlu0 %v7513
    %v7515 = vpop.xlane.xlu0 %7514
    %v7516 = vsel %vm2224, %v6421, -inf
    %7517 = vmax.xlane.f32.xlu0 %v7516
    %v7518 = vpop.xlane.xlu0 %7517
    %v7519 = vsel %vm2224, %v6467, -inf
    %7520 = vmax.xlane.f32.xlu0 %v7519
    %v7521 = vpop.xlane.xlu0 %7520
    %v7522 = vsel %vm2224, %v6470, -inf
    %7523 = vmax.xlane.f32.xlu0 %v7522
    %v7524 = vpop.xlane.xlu0 %7523
    %v7525 = vsel %vm2224, %v6516, -inf
    %7526 = vmax.xlane.f32.xlu0 %v7525
    %v7527 = vpop.xlane.xlu0 %7526
    %v7528 = vsel %vm2224, %v6519, -inf
    %7529 = vmax.xlane.f32.xlu0 %v7528
    %v7530 = vpop.xlane.xlu0 %7529
    %v7531 = vsel %vm2224, %v6565, -inf
    %7532 = vmax.xlane.f32.xlu0 %v7531
    %v7533 = vpop.xlane.xlu0 %7532
    %v7534 = vsel %vm2224, %v6568, -inf
    %7535 = vmax.xlane.f32.xlu0 %v7534
    %v7536 = vpop.xlane.xlu0 %7535
    %v7537 = vsel %vm2224, %v6614, -inf
    %7538 = vmax.xlane.f32.xlu0 %v7537
    %v7539 = vpop.xlane.xlu0 %7538
    %v7540 = vsel %vm2224, %v6617, -inf
    %7541 = vmax.xlane.f32.xlu0 %v7540
    %v7542 = vpop.xlane.xlu0 %7541
    %v7543 = vsel %vm2224, %v6663, -inf
    %7544 = vmax.xlane.f32.xlu0 %v7543
    %v7545 = vpop.xlane.xlu0 %7544
    %v7546 = vsel %vm2224, %v6666, -inf
    %7547 = vmax.xlane.f32.xlu0 %v7546
    %v7548 = vpop.xlane.xlu0 %7547
    %v7549 = vsel %vm2224, %v6712, -inf
    %7550 = vmax.xlane.f32.xlu0 %v7549
    %v7551 = vpop.xlane.xlu0 %7550
    %v7552 = vsel %vm2224, %v6715, -inf
    %7553 = vmax.xlane.f32.xlu0 %v7552
    %v7554 = vpop.xlane.xlu0 %7553
    %v7555 = vsel %vm2224, %v6761, -inf
    %7556 = vmax.xlane.f32.xlu0 %v7555
    %v7557 = vpop.xlane.xlu0 %7556
    %v7558 = vsel %vm2224, %v6764, -inf
    %7559 = vmax.xlane.f32.xlu0 %v7558
    %v7560 = vpop.xlane.xlu0 %7559
    %v7561 = vsel %vm2224, %v6810, -inf
    %7562 = vmax.xlane.f32.xlu0 %v7561
    %v7563 = vpop.xlane.xlu0 %7562
    %v7564 = vsel %vm2224, %v6813, -inf
    %7565 = vmax.xlane.f32.xlu0 %v7564
    %v7566 = vpop.xlane.xlu0 %7565
    %v7567 = vsel %vm2224, %v6859, -inf
    %7568 = vmax.xlane.f32.xlu0 %v7567
    %v7569 = vpop.xlane.xlu0 %7568
    %v7570 = vsel %vm2224, %v6862, -inf
    %7571 = vmax.xlane.f32.xlu0 %v7570
    %v7572 = vpop.xlane.xlu0 %7571
    %v7573 = vsel %vm2224, %v6908, -inf
    %7574 = vmax.xlane.f32.xlu0 %v7573
    %v7575 = vpop.xlane.xlu0 %7574
    %v7576 = vsel %vm2224, %v6911, -inf
    %7577 = vmax.xlane.f32.xlu0 %v7576
    %v7578 = vpop.xlane.xlu0 %7577
    %v7579 = vsel %vm2224, %v6957, -inf
    %7580 = vmax.xlane.f32.xlu0 %v7579
    %v7581 = vpop.xlane.xlu0 %7580
    %v7582 = vsel %vm2224, %v6960, -inf
    %7583 = vmax.xlane.f32.xlu0 %v7582
    %v7584 = vpop.xlane.xlu0 %7583
    %v7585 = vsel %vm2224, %v7006, -inf
    %7586 = vmax.xlane.f32.xlu0 %v7585
    %v7587 = vpop.xlane.xlu0 %7586
    %v7588 = vsel %vm2224, %v7009, -inf
    %7589 = vmax.xlane.f32.xlu0 %v7588
    %v7590 = vpop.xlane.xlu0 %7589
    %v7591 = vsel %vm2224, %v7055, -inf
    %7592 = vmax.xlane.f32.xlu0 %v7591
    %v7593 = vpop.xlane.xlu0 %7592
    %v7594 = vsel %vm2224, %v7058, -inf
    %7595 = vmax.xlane.f32.xlu0 %v7594
    %v7596 = vpop.xlane.xlu0 %7595
    %v7597 = vsel %vm2224, %v7104, -inf
    %7598 = vmax.xlane.f32.xlu0 %v7597
    %v7599 = vpop.xlane.xlu0 %7598
    %v7600 = vsel %vm2224, %v7107, -inf
    %7601 = vmax.xlane.f32.xlu0 %v7600
    %v7602 = vpop.xlane.xlu0 %7601
    %v7603 = vsel %vm2224, %v7153, -inf
    %7604 = vmax.xlane.f32.xlu0 %v7603
    %v7605 = vpop.xlane.xlu0 %7604
    %v7606 = vsel %vm2224, %v7156, -inf
    %7607 = vmax.xlane.f32.xlu0 %v7606
    %v7608 = vpop.xlane.xlu0 %7607
    %v7609 = vsel %vm2224, %v7202, -inf
    %7610 = vmax.xlane.f32.xlu0 %v7609
    %v7611 = vpop.xlane.xlu0 %7610
    %v7612 = vsel %vm2224, %v7205, -inf
    %7613 = vmax.xlane.f32.xlu0 %v7612
    %v7614 = vpop.xlane.xlu0 %7613
    %v7615 = vsel %vm2224, %v7251, -inf
    %7616 = vmax.xlane.f32.xlu0 %v7615
    %v7617 = vpop.xlane.xlu0 %7616
    %v7618 = vsel %vm2224, %v7254, -inf
    %7619 = vmax.xlane.f32.xlu0 %v7618
    %v7620 = vpop.xlane.xlu0 %7619
    %v7621 = vsel %vm2224, %v7300, -inf
    %7622 = vmax.xlane.f32.xlu0 %v7621
    %v7623 = vpop.xlane.xlu0 %7622
    %v7624 = vsel %vm2224, %v7303, -inf
    %7625 = vmax.xlane.f32.xlu0 %v7624
    %v7626 = vpop.xlane.xlu0 %7625
    %v7627 = vsel %vm2224, %v7349, -inf
    %7628 = vmax.xlane.f32.xlu0 %v7627
    %v7629 = vpop.xlane.xlu0 %7628
    %v7630 = vsel %vm2224, %v7352, -inf
    %7631 = vmax.xlane.f32.xlu0 %v7630
    %v7632 = vpop.xlane.xlu0 %7631
    %v7633 = vsel %vm2224, %v7398, -inf
    %7634 = vmax.xlane.f32.xlu0 %v7633
    %v7635 = vpop.xlane.xlu0 %7634
    %v7636 = vsel %vm2224, %v7401, -inf
    %7637 = vmax.xlane.f32.xlu0 %v7636
    %v7638 = vpop.xlane.xlu0 %7637
    %v7639 = vsel %vm2224, %v7447, -inf
    %7640 = vmax.xlane.f32.xlu0 %v7639
    %v7641 = vpop.xlane.xlu0 %7640
    %v7642 = vsel %vm2224, %v7450, -inf
    %7643 = vmax.xlane.f32.xlu0 %v7642
    %v7644 = vpop.xlane.xlu0 %7643
    %v7645 = vsub.f32 %v5928, %v7455
    %v7646 = vsub.f32 %v5931, %v7458
    %v7647 = vsub.f32 %v5977, %v7461
    %v7648 = vsub.f32 %v5980, %v7464
    %v7649 = vsub.f32 %v6026, %v7467
    %v7650 = vsub.f32 %v6029, %v7470
    %v7651 = vsub.f32 %v6075, %v7473
    %v7652 = vsub.f32 %v6078, %v7476
    %v7653 = vsub.f32 %v6124, %v7479
    %v7654 = vsub.f32 %v6127, %v7482
    %v7655 = vsub.f32 %v6173, %v7485
    %v7656 = vsub.f32 %v6176, %v7488
    %v7657 = vsub.f32 %v6222, %v7491
    %v7658 = vsub.f32 %v6225, %v7494
    %v7659 = vsub.f32 %v6271, %v7497
    %v7660 = vsub.f32 %v6274, %v7500
    %v7661 = vsub.f32 %v6320, %v7503
    %v7662 = vsub.f32 %v6323, %v7506
    %v7663 = vsub.f32 %v6369, %v7509
    %v7664 = vsub.f32 %v6372, %v7512
    %v7665 = vsub.f32 %v6418, %v7515
    %v7666 = vsub.f32 %v6421, %v7518
    %v7667 = vsub.f32 %v6467, %v7521
    %v7668 = vsub.f32 %v6470, %v7524
    %v7669 = vsub.f32 %v6516, %v7527
    %v7670 = vsub.f32 %v6519, %v7530
    %v7671 = vsub.f32 %v6565, %v7533
    %v7672 = vsub.f32 %v6568, %v7536
    %v7673 = vsub.f32 %v6614, %v7539
    %v7674 = vsub.f32 %v6617, %v7542
    %v7675 = vsub.f32 %v6663, %v7545
    %v7676 = vsub.f32 %v6666, %v7548
    %v7677 = vsub.f32 %v6712, %v7551
    %v7678 = vsub.f32 %v6715, %v7554
    %v7679 = vsub.f32 %v6761, %v7557
    %v7680 = vsub.f32 %v6764, %v7560
    %v7681 = vsub.f32 %v6810, %v7563
    %v7682 = vsub.f32 %v6813, %v7566
    %v7683 = vsub.f32 %v6859, %v7569
    %v7684 = vsub.f32 %v6862, %v7572
    %v7685 = vsub.f32 %v6908, %v7575
    %v7686 = vsub.f32 %v6911, %v7578
    %v7687 = vsub.f32 %v6957, %v7581
    %v7688 = vsub.f32 %v6960, %v7584
    %v7689 = vsub.f32 %v7006, %v7587
    %v7690 = vsub.f32 %v7009, %v7590
    %v7691 = vsub.f32 %v7055, %v7593
    %v7692 = vsub.f32 %v7058, %v7596
    %v7693 = vsub.f32 %v7104, %v7599
    %v7694 = vsub.f32 %v7107, %v7602
    %v7695 = vsub.f32 %v7153, %v7605
    %v7696 = vsub.f32 %v7156, %v7608
    %v7697 = vsub.f32 %v7202, %v7611
    %v7698 = vsub.f32 %v7205, %v7614
    %v7699 = vsub.f32 %v7251, %v7617
    %v7700 = vsub.f32 %v7254, %v7620
    %v7701 = vsub.f32 %v7300, %v7623
    %v7702 = vsub.f32 %v7303, %v7626
    %v7703 = vsub.f32 %v7349, %v7629
    %v7704 = vsub.f32 %v7352, %v7632
    %v7705 = vsub.f32 %v7398, %v7635
    %v7706 = vsub.f32 %v7401, %v7638
    %v7707 = vsub.f32 %v7447, %v7641
    %v7708 = vsub.f32 %v7450, %v7644
    %v7709 = vmul.f32 %v7645, 1.442695
    %v7710 = vpow.pop %v7709
    %v7711 = vmul.f32 %v7646, 1.442695
    %v7712 = vpow.pop %v7711
    %v7713 = vmul.f32 %v7647, 1.442695
    %v7714 = vpow.pop %v7713
    %v7715 = vmul.f32 %v7648, 1.442695
    %v7716 = vpow.pop %v7715
    %v7717 = vmul.f32 %v7649, 1.442695
    %v7718 = vpow.pop %v7717
    %v7719 = vmul.f32 %v7650, 1.442695
    %v7720 = vpow.pop %v7719
    %v7721 = vmul.f32 %v7651, 1.442695
    %v7722 = vpow.pop %v7721
    %v7723 = vmul.f32 %v7652, 1.442695
    %v7724 = vpow.pop %v7723
    %v7725 = vmul.f32 %v7653, 1.442695
    %v7726 = vpow.pop %v7725
    %v7727 = vmul.f32 %v7654, 1.442695
    %v7728 = vpow.pop %v7727
    %v7729 = vmul.f32 %v7655, 1.442695
    %v7730 = vpow.pop %v7729
    %v7731 = vmul.f32 %v7656, 1.442695
    %v7732 = vpow.pop %v7731
    %v7733 = vmul.f32 %v7657, 1.442695
    %v7734 = vpow.pop %v7733
    %v7735 = vmul.f32 %v7658, 1.442695
    %v7736 = vpow.pop %v7735
    %v7737 = vmul.f32 %v7659, 1.442695
    %v7738 = vpow.pop %v7737
    %v7739 = vmul.f32 %v7660, 1.442695
    %v7740 = vpow.pop %v7739
    %v7741 = vmul.f32 %v7661, 1.442695
    %v7742 = vpow.pop %v7741
    %v7743 = vmul.f32 %v7662, 1.442695
    %v7744 = vpow.pop %v7743
    %v7745 = vmul.f32 %v7663, 1.442695
    %v7746 = vpow.pop %v7745
    %v7747 = vmul.f32 %v7664, 1.442695
    %v7748 = vpow.pop %v7747
    %v7749 = vmul.f32 %v7665, 1.442695
    %v7750 = vpow.pop %v7749
    %v7751 = vmul.f32 %v7666, 1.442695
    %v7752 = vpow.pop %v7751
    %v7753 = vmul.f32 %v7667, 1.442695
    %v7754 = vpow.pop %v7753
    %v7755 = vmul.f32 %v7668, 1.442695
    %v7756 = vpow.pop %v7755
    %v7757 = vmul.f32 %v7669, 1.442695
    %v7758 = vpow.pop %v7757
    %v7759 = vmul.f32 %v7670, 1.442695
    %v7760 = vpow.pop %v7759
    %v7761 = vmul.f32 %v7671, 1.442695
    %v7762 = vpow.pop %v7761
    %v7763 = vmul.f32 %v7672, 1.442695
    %v7764 = vpow.pop %v7763
    %v7765 = vmul.f32 %v7673, 1.442695
    %v7766 = vpow.pop %v7765
    %v7767 = vmul.f32 %v7674, 1.442695
    %v7768 = vpow.pop %v7767
    %v7769 = vmul.f32 %v7675, 1.442695
    %v7770 = vpow.pop %v7769
    %v7771 = vmul.f32 %v7676, 1.442695
    %v7772 = vpow.pop %v7771
    %v7773 = vmul.f32 %v7677, 1.442695
    %v7774 = vpow.pop %v7773
    %v7775 = vmul.f32 %v7678, 1.442695
    %v7776 = vpow.pop %v7775
    %v7777 = vmul.f32 %v7679, 1.442695
    %v7778 = vpow.pop %v7777
    %v7779 = vmul.f32 %v7680, 1.442695
    %v7780 = vpow.pop %v7779
    %v7781 = vmul.f32 %v7681, 1.442695
    %v7782 = vpow.pop %v7781
    %v7783 = vmul.f32 %v7682, 1.442695
    %v7784 = vpow.pop %v7783
    %v7785 = vmul.f32 %v7683, 1.442695
    %v7786 = vpow.pop %v7785
    %v7787 = vmul.f32 %v7684, 1.442695
    %v7788 = vpow.pop %v7787
    %v7789 = vmul.f32 %v7685, 1.442695
    %v7790 = vpow.pop %v7789
    %v7791 = vmul.f32 %v7686, 1.442695
    %v7792 = vpow.pop %v7791
    %v7793 = vmul.f32 %v7687, 1.442695
    %v7794 = vpow.pop %v7793
    %v7795 = vmul.f32 %v7688, 1.442695
    %v7796 = vpow.pop %v7795
    %v7797 = vmul.f32 %v7689, 1.442695
    %v7798 = vpow.pop %v7797
    %v7799 = vmul.f32 %v7690, 1.442695
    %v7800 = vpow.pop %v7799
    %v7801 = vmul.f32 %v7691, 1.442695
    %v7802 = vpow.pop %v7801
    %v7803 = vmul.f32 %v7692, 1.442695
    %v7804 = vpow.pop %v7803
    %v7805 = vmul.f32 %v7693, 1.442695
    %v7806 = vpow.pop %v7805
    %v7807 = vmul.f32 %v7694, 1.442695
    %v7808 = vpow.pop %v7807
    %v7809 = vmul.f32 %v7695, 1.442695
    %v7810 = vpow.pop %v7809
    %v7811 = vmul.f32 %v7696, 1.442695
    %v7812 = vpow.pop %v7811
    %v7813 = vmul.f32 %v7697, 1.442695
    %v7814 = vpow.pop %v7813
    %v7815 = vmul.f32 %v7698, 1.442695
    %v7816 = vpow.pop %v7815
    %v7817 = vmul.f32 %v7699, 1.442695
    %v7818 = vpow.pop %v7817
    %v7819 = vmul.f32 %v7700, 1.442695
    %v7820 = vpow.pop %v7819
    %v7821 = vmul.f32 %v7701, 1.442695
    %v7822 = vpow.pop %v7821
    %v7823 = vmul.f32 %v7702, 1.442695
    %v7824 = vpow.pop %v7823
    %v7825 = vmul.f32 %v7703, 1.442695
    %v7826 = vpow.pop %v7825
    %v7827 = vmul.f32 %v7704, 1.442695
    %v7828 = vpow.pop %v7827
    %v7829 = vmul.f32 %v7705, 1.442695
    %v7830 = vpow.pop %v7829
    %v7831 = vmul.f32 %v7706, 1.442695
    %v7832 = vpow.pop %v7831
    %v7833 = vmul.f32 %v7707, 1.442695
    %v7834 = vpow.pop %v7833
    %v7835 = vmul.f32 %v7708, 1.442695
    %v7836 = vpow.pop %v7835
    %v7837 = vsel %vm2224, %v7710, 0.0
    %7838 = vadd.xlane.f32.xlu0 %v7837
    %v7839 = vpop.xlane.xlu0 %7838
    %v7840 = vsel %vm2224, %v7712, 0.0
    %7841 = vadd.xlane.f32.xlu0 %v7840
    %v7842 = vpop.xlane.xlu0 %7841
    %v7843 = vsel %vm2224, %v7714, 0.0
    %7844 = vadd.xlane.f32.xlu0 %v7843
    %v7845 = vpop.xlane.xlu0 %7844
    %v7846 = vsel %vm2224, %v7716, 0.0
    %7847 = vadd.xlane.f32.xlu0 %v7846
    %v7848 = vpop.xlane.xlu0 %7847
    %v7849 = vsel %vm2224, %v7718, 0.0
    %7850 = vadd.xlane.f32.xlu0 %v7849
    %v7851 = vpop.xlane.xlu0 %7850
    %v7852 = vsel %vm2224, %v7720, 0.0
    %7853 = vadd.xlane.f32.xlu0 %v7852
    %v7854 = vpop.xlane.xlu0 %7853
    %v7855 = vsel %vm2224, %v7722, 0.0
    %7856 = vadd.xlane.f32.xlu0 %v7855
    %v7857 = vpop.xlane.xlu0 %7856
    %v7858 = vsel %vm2224, %v7724, 0.0
    %7859 = vadd.xlane.f32.xlu0 %v7858
    %v7860 = vpop.xlane.xlu0 %7859
    %v7861 = vsel %vm2224, %v7726, 0.0
    %7862 = vadd.xlane.f32.xlu0 %v7861
    %v7863 = vpop.xlane.xlu0 %7862
    %v7864 = vsel %vm2224, %v7728, 0.0
    %7865 = vadd.xlane.f32.xlu0 %v7864
    %v7866 = vpop.xlane.xlu0 %7865
    %v7867 = vsel %vm2224, %v7730, 0.0
    %7868 = vadd.xlane.f32.xlu0 %v7867
    %v7869 = vpop.xlane.xlu0 %7868
    %v7870 = vsel %vm2224, %v7732, 0.0
    %7871 = vadd.xlane.f32.xlu0 %v7870
    %v7872 = vpop.xlane.xlu0 %7871
    %v7873 = vsel %vm2224, %v7734, 0.0
    %7874 = vadd.xlane.f32.xlu0 %v7873
    %v7875 = vpop.xlane.xlu0 %7874
    %v7876 = vsel %vm2224, %v7736, 0.0
    %7877 = vadd.xlane.f32.xlu0 %v7876
    %v7878 = vpop.xlane.xlu0 %7877
    %v7879 = vsel %vm2224, %v7738, 0.0
    %7880 = vadd.xlane.f32.xlu0 %v7879
    %v7881 = vpop.xlane.xlu0 %7880
    %v7882 = vsel %vm2224, %v7740, 0.0
    %7883 = vadd.xlane.f32.xlu0 %v7882
    %v7884 = vpop.xlane.xlu0 %7883
    %v7885 = vsel %vm2224, %v7742, 0.0
    %7886 = vadd.xlane.f32.xlu0 %v7885
    %v7887 = vpop.xlane.xlu0 %7886
    %v7888 = vsel %vm2224, %v7744, 0.0
    %7889 = vadd.xlane.f32.xlu0 %v7888
    %v7890 = vpop.xlane.xlu0 %7889
    %v7891 = vsel %vm2224, %v7746, 0.0
    %7892 = vadd.xlane.f32.xlu0 %v7891
    %v7893 = vpop.xlane.xlu0 %7892
    %v7894 = vsel %vm2224, %v7748, 0.0
    %7895 = vadd.xlane.f32.xlu0 %v7894
    %v7896 = vpop.xlane.xlu0 %7895
    %v7897 = vsel %vm2224, %v7750, 0.0
    %7898 = vadd.xlane.f32.xlu0 %v7897
    %v7899 = vpop.xlane.xlu0 %7898
    %v7900 = vsel %vm2224, %v7752, 0.0
    %7901 = vadd.xlane.f32.xlu0 %v7900
    %v7902 = vpop.xlane.xlu0 %7901
    %v7903 = vsel %vm2224, %v7754, 0.0
    %7904 = vadd.xlane.f32.xlu0 %v7903
    %v7905 = vpop.xlane.xlu0 %7904
    %v7906 = vsel %vm2224, %v7756, 0.0
    %7907 = vadd.xlane.f32.xlu0 %v7906
    %v7908 = vpop.xlane.xlu0 %7907
    %v7909 = vsel %vm2224, %v7758, 0.0
    %7910 = vadd.xlane.f32.xlu0 %v7909
    %v7911 = vpop.xlane.xlu0 %7910
    %v7912 = vsel %vm2224, %v7760, 0.0
    %7913 = vadd.xlane.f32.xlu0 %v7912
    %v7914 = vpop.xlane.xlu0 %7913
    %v7915 = vsel %vm2224, %v7762, 0.0
    %7916 = vadd.xlane.f32.xlu0 %v7915
    %v7917 = vpop.xlane.xlu0 %7916
    %v7918 = vsel %vm2224, %v7764, 0.0
    %7919 = vadd.xlane.f32.xlu0 %v7918
    %v7920 = vpop.xlane.xlu0 %7919
    %v7921 = vsel %vm2224, %v7766, 0.0
    %7922 = vadd.xlane.f32.xlu0 %v7921
    %v7923 = vpop.xlane.xlu0 %7922
    %v7924 = vsel %vm2224, %v7768, 0.0
    %7925 = vadd.xlane.f32.xlu0 %v7924
    %v7926 = vpop.xlane.xlu0 %7925
    %v7927 = vsel %vm2224, %v7770, 0.0
    %7928 = vadd.xlane.f32.xlu0 %v7927
    %v7929 = vpop.xlane.xlu0 %7928
    %v7930 = vsel %vm2224, %v7772, 0.0
    %7931 = vadd.xlane.f32.xlu0 %v7930
    %v7932 = vpop.xlane.xlu0 %7931
    %v7933 = vsel %vm2224, %v7774, 0.0
    %7934 = vadd.xlane.f32.xlu0 %v7933
    %v7935 = vpop.xlane.xlu0 %7934
    %v7936 = vsel %vm2224, %v7776, 0.0
    %7937 = vadd.xlane.f32.xlu0 %v7936
    %v7938 = vpop.xlane.xlu0 %7937
    %v7939 = vsel %vm2224, %v7778, 0.0
    %7940 = vadd.xlane.f32.xlu0 %v7939
    %v7941 = vpop.xlane.xlu0 %7940
    %v7942 = vsel %vm2224, %v7780, 0.0
    %7943 = vadd.xlane.f32.xlu0 %v7942
    %v7944 = vpop.xlane.xlu0 %7943
    %v7945 = vsel %vm2224, %v7782, 0.0
    %7946 = vadd.xlane.f32.xlu0 %v7945
    %v7947 = vpop.xlane.xlu0 %7946
    %v7948 = vsel %vm2224, %v7784, 0.0
    %7949 = vadd.xlane.f32.xlu0 %v7948
    %v7950 = vpop.xlane.xlu0 %7949
    %v7951 = vsel %vm2224, %v7786, 0.0
    %7952 = vadd.xlane.f32.xlu0 %v7951
    %v7953 = vpop.xlane.xlu0 %7952
    %v7954 = vsel %vm2224, %v7788, 0.0
    %7955 = vadd.xlane.f32.xlu0 %v7954
    %v7956 = vpop.xlane.xlu0 %7955
    %v7957 = vsel %vm2224, %v7790, 0.0
    %7958 = vadd.xlane.f32.xlu0 %v7957
    %v7959 = vpop.xlane.xlu0 %7958
    %v7960 = vsel %vm2224, %v7792, 0.0
    %7961 = vadd.xlane.f32.xlu0 %v7960
    %v7962 = vpop.xlane.xlu0 %7961
    %v7963 = vsel %vm2224, %v7794, 0.0
    %7964 = vadd.xlane.f32.xlu0 %v7963
    %v7965 = vpop.xlane.xlu0 %7964
    %v7966 = vsel %vm2224, %v7796, 0.0
    %7967 = vadd.xlane.f32.xlu0 %v7966
    %v7968 = vpop.xlane.xlu0 %7967
    %v7969 = vsel %vm2224, %v7798, 0.0
    %7970 = vadd.xlane.f32.xlu0 %v7969
    %v7971 = vpop.xlane.xlu0 %7970
    %v7972 = vsel %vm2224, %v7800, 0.0
    %7973 = vadd.xlane.f32.xlu0 %v7972
    %v7974 = vpop.xlane.xlu0 %7973
    %v7975 = vsel %vm2224, %v7802, 0.0
    %7976 = vadd.xlane.f32.xlu0 %v7975
    %v7977 = vpop.xlane.xlu0 %7976
    %v7978 = vsel %vm2224, %v7804, 0.0
    %7979 = vadd.xlane.f32.xlu0 %v7978
    %v7980 = vpop.xlane.xlu0 %7979
    %v7981 = vsel %vm2224, %v7806, 0.0
    %7982 = vadd.xlane.f32.xlu0 %v7981
    %v7983 = vpop.xlane.xlu0 %7982
    %v7984 = vsel %vm2224, %v7808, 0.0
    %7985 = vadd.xlane.f32.xlu0 %v7984
    %v7986 = vpop.xlane.xlu0 %7985
    %v7987 = vsel %vm2224, %v7810, 0.0
    %7988 = vadd.xlane.f32.xlu0 %v7987
    %v7989 = vpop.xlane.xlu0 %7988
    %v7990 = vsel %vm2224, %v7812, 0.0
    %7991 = vadd.xlane.f32.xlu0 %v7990
    %v7992 = vpop.xlane.xlu0 %7991
    %v7993 = vsel %vm2224, %v7814, 0.0
    %7994 = vadd.xlane.f32.xlu0 %v7993
    %v7995 = vpop.xlane.xlu0 %7994
    %v7996 = vsel %vm2224, %v7816, 0.0
    %7997 = vadd.xlane.f32.xlu0 %v7996
    %v7998 = vpop.xlane.xlu0 %7997
    %v7999 = vsel %vm2224, %v7818, 0.0
    %8000 = vadd.xlane.f32.xlu0 %v7999
    %v8001 = vpop.xlane.xlu0 %8000
    %v8002 = vsel %vm2224, %v7820, 0.0
    %8003 = vadd.xlane.f32.xlu0 %v8002
    %v8004 = vpop.xlane.xlu0 %8003
    %v8005 = vsel %vm2224, %v7822, 0.0
    %8006 = vadd.xlane.f32.xlu0 %v8005
    %v8007 = vpop.xlane.xlu0 %8006
    %v8008 = vsel %vm2224, %v7824, 0.0
    %8009 = vadd.xlane.f32.xlu0 %v8008
    %v8010 = vpop.xlane.xlu0 %8009
    %v8011 = vsel %vm2224, %v7826, 0.0
    %8012 = vadd.xlane.f32.xlu0 %v8011
    %v8013 = vpop.xlane.xlu0 %8012
    %v8014 = vsel %vm2224, %v7828, 0.0
    %8015 = vadd.xlane.f32.xlu0 %v8014
    %v8016 = vpop.xlane.xlu0 %8015
    %v8017 = vsel %vm2224, %v7830, 0.0
    %8018 = vadd.xlane.f32.xlu0 %v8017
    %v8019 = vpop.xlane.xlu0 %8018
    %v8020 = vsel %vm2224, %v7832, 0.0
    %8021 = vadd.xlane.f32.xlu0 %v8020
    %v8022 = vpop.xlane.xlu0 %8021
    %v8023 = vsel %vm2224, %v7834, 0.0
    %8024 = vadd.xlane.f32.xlu0 %v8023
    %v8025 = vpop.xlane.xlu0 %8024
    %v8026 = vsel %vm2224, %v7836, 0.0
    %8027 = vadd.xlane.f32.xlu0 %v8026
    %v8028 = vpop.xlane.xlu0 %8027
    %v8029 = vrcp.pop %v7839
    %v8030 = vrcp.pop %v7842
    %v8031 = vrcp.pop %v7845
    %v8032 = vrcp.pop %v7848
    %v8033 = vrcp.pop %v7851
    %v8034 = vrcp.pop %v7854
    %v8035 = vrcp.pop %v7857
    %v8036 = vrcp.pop %v7860
    %v8037 = vrcp.pop %v7863
    %v8038 = vrcp.pop %v7866
    %v8039 = vrcp.pop %v7869
    %v8040 = vrcp.pop %v7872
    %v8041 = vrcp.pop %v7875
    %v8042 = vrcp.pop %v7878
    %v8043 = vrcp.pop %v7881
    %v8044 = vrcp.pop %v7884
    %v8045 = vrcp.pop %v7887
    %v8046 = vrcp.pop %v7890
    %v8047 = vrcp.pop %v7893
    %v8048 = vrcp.pop %v7896
    %v8049 = vrcp.pop %v7899
    %v8050 = vrcp.pop %v7902
    %v8051 = vrcp.pop %v7905
    %v8052 = vrcp.pop %v7908
    %v8053 = vrcp.pop %v7911
    %v8054 = vrcp.pop %v7914
    %v8055 = vrcp.pop %v7917
    %v8056 = vrcp.pop %v7920
    %v8057 = vrcp.pop %v7923
    %v8058 = vrcp.pop %v7926
    %v8059 = vrcp.pop %v7929
    %v8060 = vrcp.pop %v7932
    %v8061 = vrcp.pop %v7935
    %v8062 = vrcp.pop %v7938
    %v8063 = vrcp.pop %v7941
    %v8064 = vrcp.pop %v7944
    %v8065 = vrcp.pop %v7947
    %v8066 = vrcp.pop %v7950
    %v8067 = vrcp.pop %v7953
    %v8068 = vrcp.pop %v7956
    %v8069 = vrcp.pop %v7959
    %v8070 = vrcp.pop %v7962
    %v8071 = vrcp.pop %v7965
    %v8072 = vrcp.pop %v7968
    %v8073 = vrcp.pop %v7971
    %v8074 = vrcp.pop %v7974
    %v8075 = vrcp.pop %v7977
    %v8076 = vrcp.pop %v7980
    %v8077 = vrcp.pop %v7983
    %v8078 = vrcp.pop %v7986
    %v8079 = vrcp.pop %v7989
    %v8080 = vrcp.pop %v7992
    %v8081 = vrcp.pop %v7995
    %v8082 = vrcp.pop %v7998
    %v8083 = vrcp.pop %v8001
    %v8084 = vrcp.pop %v8004
    %v8085 = vrcp.pop %v8007
    %v8086 = vrcp.pop %v8010
    %v8087 = vrcp.pop %v8013
    %v8088 = vrcp.pop %v8016
    %v8089 = vrcp.pop %v8019
    %v8090 = vrcp.pop %v8022
    %v8091 = vrcp.pop %v8025
    %v8092 = vrcp.pop %v8028
    %v8093 = vmul.f32 %v7710, %v8029
    %v8094 = vmul.f32 %v7712, %v8030
    %v8095 = vmul.f32 %v7714, %v8031
    %v8096 = vmul.f32 %v7716, %v8032
    %v8097 = vmul.f32 %v7718, %v8033
    %v8098 = vmul.f32 %v7720, %v8034
    %v8099 = vmul.f32 %v7722, %v8035
    %v8100 = vmul.f32 %v7724, %v8036
    %v8101 = vmul.f32 %v7726, %v8037
    %v8102 = vmul.f32 %v7728, %v8038
    %v8103 = vmul.f32 %v7730, %v8039
    %v8104 = vmul.f32 %v7732, %v8040
    %v8105 = vmul.f32 %v7734, %v8041
    %v8106 = vmul.f32 %v7736, %v8042
    %v8107 = vmul.f32 %v7738, %v8043
    %v8108 = vmul.f32 %v7740, %v8044
    %v8109 = vmul.f32 %v7742, %v8045
    %v8110 = vmul.f32 %v7744, %v8046
    %v8111 = vmul.f32 %v7746, %v8047
    %v8112 = vmul.f32 %v7748, %v8048
    %v8113 = vmul.f32 %v7750, %v8049
    %v8114 = vmul.f32 %v7752, %v8050
    %v8115 = vmul.f32 %v7754, %v8051
    %v8116 = vmul.f32 %v7756, %v8052
    %v8117 = vmul.f32 %v7758, %v8053
    %v8118 = vmul.f32 %v7760, %v8054
    %v8119 = vmul.f32 %v7762, %v8055
    %v8120 = vmul.f32 %v7764, %v8056
    %v8121 = vmul.f32 %v7766, %v8057
    %v8122 = vmul.f32 %v7768, %v8058
    %v8123 = vmul.f32 %v7770, %v8059
    %v8124 = vmul.f32 %v7772, %v8060
    %v8125 = vmul.f32 %v7774, %v8061
    %v8126 = vmul.f32 %v7776, %v8062
    %v8127 = vmul.f32 %v7778, %v8063
    %v8128 = vmul.f32 %v7780, %v8064
    %v8129 = vmul.f32 %v7782, %v8065
    %v8130 = vmul.f32 %v7784, %v8066
    %v8131 = vmul.f32 %v7786, %v8067
    %v8132 = vmul.f32 %v7788, %v8068
    %v8133 = vmul.f32 %v7790, %v8069
    %v8134 = vmul.f32 %v7792, %v8070
    %v8135 = vmul.f32 %v7794, %v8071
    %v8136 = vmul.f32 %v7796, %v8072
    %v8137 = vmul.f32 %v7798, %v8073
    %v8138 = vmul.f32 %v7800, %v8074
    %v8139 = vmul.f32 %v7802, %v8075
    %v8140 = vmul.f32 %v7804, %v8076
    %v8141 = vmul.f32 %v7806, %v8077
    %v8142 = vmul.f32 %v7808, %v8078
    %v8143 = vmul.f32 %v7810, %v8079
    %v8144 = vmul.f32 %v7812, %v8080
    %v8145 = vmul.f32 %v7814, %v8081
    %v8146 = vmul.f32 %v7816, %v8082
    %v8147 = vmul.f32 %v7818, %v8083
    %v8148 = vmul.f32 %v7820, %v8084
    %v8149 = vmul.f32 %v7822, %v8085
    %v8150 = vmul.f32 %v7824, %v8086
    %v8151 = vmul.f32 %v7826, %v8087
    %v8152 = vmul.f32 %v7828, %v8088
    %v8153 = vmul.f32 %v7830, %v8089
    %v8154 = vmul.f32 %v7832, %v8090
    %v8155 = vmul.f32 %v7834, %v8091
    %v8156 = vmul.f32 %v7836, %v8092
    %v8157 = vpack.c.bf16 %v8094, %v8093
    %v8158 = vpack.c.bf16 %v8096, %v8095
    %v8159 = vpack.c.bf16 %v8098, %v8097
    %v8160 = vpack.c.bf16 %v8100, %v8099
    %v8161 = vpack.c.bf16 %v8102, %v8101
    %v8162 = vpack.c.bf16 %v8104, %v8103
    %v8163 = vpack.c.bf16 %v8106, %v8105
    %v8164 = vpack.c.bf16 %v8108, %v8107
    %v8165 = vpack.c.bf16 %v8110, %v8109
    %v8166 = vpack.c.bf16 %v8112, %v8111
    %v8167 = vpack.c.bf16 %v8114, %v8113
    %v8168 = vpack.c.bf16 %v8116, %v8115
    %v8169 = vpack.c.bf16 %v8118, %v8117
    %v8170 = vpack.c.bf16 %v8120, %v8119
    %v8171 = vpack.c.bf16 %v8122, %v8121
    %v8172 = vpack.c.bf16 %v8124, %v8123
    %v8173 = vpack.c.bf16 %v8126, %v8125
    %v8174 = vpack.c.bf16 %v8128, %v8127
    %v8175 = vpack.c.bf16 %v8130, %v8129
    %v8176 = vpack.c.bf16 %v8132, %v8131
    %v8177 = vpack.c.bf16 %v8134, %v8133
    %v8178 = vpack.c.bf16 %v8136, %v8135
    %v8179 = vpack.c.bf16 %v8138, %v8137
    %v8180 = vpack.c.bf16 %v8140, %v8139
    %v8181 = vpack.c.bf16 %v8142, %v8141
    %v8182 = vpack.c.bf16 %v8144, %v8143
    %v8183 = vpack.c.bf16 %v8146, %v8145
    %v8184 = vpack.c.bf16 %v8148, %v8147
    %v8185 = vpack.c.bf16 %v8150, %v8149
    %v8186 = vpack.c.bf16 %v8152, %v8151
    %v8187 = vpack.c.bf16 %v8154, %v8153
    %v8188 = vpack.c.bf16 %v8156, %v8155
    %8189 = vrot.lane.b32.xlu0 %v5821, 64
    %v8190 = vpop.permute.xlu0 %8189
    %v8193 = vsel %vm2224, %v8157, 0
    %8195 = vmatprep.subr.bf16.mxu0 0
    %8196 = vmatpush1.bf16.msra.mxu0 0
    %8197 = vmatprep.subr.bf16.mxu0 0
    %8198 = vmatpush1.bf16.msra.mxu0 0
    %8199 = vmatprep.subr.bf16.mxu0 0
    %8200 = vmatpush1.bf16.msra.mxu0 0
    %8201 = vmatprep.subr.bf16.mxu0 0
    %8202 = vmatpush1.bf16.msra.mxu0 0
    %8203 = vmatprep.subr.bf16.mxu0 0
    %8204 = vmatpush1.bf16.msra.mxu0 0
    %8205 = vmatprep.subr.bf16.mxu0 0
    %8206 = vmatpush1.bf16.msra.mxu0 0
    %8207 = vmatprep.subr.bf16.mxu0 0
    %8208 = vmatpush1.bf16.msra.mxu0 0
    %8209 = vmatprep.subr.bf16.mxu0 0
    %8210 = vmatpush1.bf16.msra.mxu0 %v8190
    %8211 = vmatprep.subr.bf16.mxu0 0
    %8212 = vmatpush2.bf16.msra.mxu0 0
    %8213 = vmatprep.subr.bf16.mxu0 0
    %8214 = vmatpush2.bf16.msra.mxu0 0
    %8215 = vmatprep.subr.bf16.mxu0 0
    %8216 = vmatpush2.bf16.msra.mxu0 0
    %8217 = vmatprep.subr.bf16.mxu0 0
    %8218 = vmatpush2.bf16.msra.mxu0 0
    %8219 = vmatprep.subr.bf16.mxu0 0
    %8220 = vmatpush2.bf16.msra.mxu0 0
    %8221 = vmatprep.subr.bf16.mxu0 0
    %8222 = vmatpush2.bf16.msra.mxu0 0
    %8223 = vmatprep.subr.bf16.mxu0 0
    %8224 = vmatpush2.bf16.msra.mxu0 0
    %8225 = vmatprep.subr.bf16.mxu0 0
    %8226 = vmatpush2.bf16.msra.mxu0 0
    %8227 = vmatprep.mubr.bf16.mxu0 0
    %8228 = vmatmul.mubr.bf16.gmra.mxu0 %v8193
    %v8229 = vpop.f32.mrf.mxu0
    %v8230 = vadd.f32 0.0, %v8229
    %v8231 = vpop.f32.mrf.mxu0
    %v8232 = vpop.f32.mrf.mxu0
    %v8233 = vadd.f32 0.0, %v8232
    %v8234 = vpop.f32.mrf.mxu0
    %8235 = vdwg.mxu0
    %8236 = vrot.lane.b32.xlu0 %v5822, 64
    %v8237 = vpop.permute.xlu0 %8236
    %v8240 = vsel %vm2224, %v8158, 0
    %8242 = vmatprep.subr.bf16.mxu0 0
    %8243 = vmatpush1.bf16.msra.mxu0 0
    %8244 = vmatprep.subr.bf16.mxu0 0
    %8245 = vmatpush1.bf16.msra.mxu0 0
    %8246 = vmatprep.subr.bf16.mxu0 0
    %8247 = vmatpush1.bf16.msra.mxu0 0
    %8248 = vmatprep.subr.bf16.mxu0 0
    %8249 = vmatpush1.bf16.msra.mxu0 0
    %8250 = vmatprep.subr.bf16.mxu0 0
    %8251 = vmatpush1.bf16.msra.mxu0 0
    %8252 = vmatprep.subr.bf16.mxu0 0
    %8253 = vmatpush1.bf16.msra.mxu0 0
    %8254 = vmatprep.subr.bf16.mxu0 0
    %8255 = vmatpush1.bf16.msra.mxu0 0
    %8256 = vmatprep.subr.bf16.mxu0 0
    %8257 = vmatpush1.bf16.msra.mxu0 %v8237
    %8258 = vmatprep.subr.bf16.mxu0 0
    %8259 = vmatpush2.bf16.msra.mxu0 0
    %8260 = vmatprep.subr.bf16.mxu0 0
    %8261 = vmatpush2.bf16.msra.mxu0 0
    %8262 = vmatprep.subr.bf16.mxu0 0
    %8263 = vmatpush2.bf16.msra.mxu0 0
    %8264 = vmatprep.subr.bf16.mxu0 0
    %8265 = vmatpush2.bf16.msra.mxu0 0
    %8266 = vmatprep.subr.bf16.mxu0 0
    %8267 = vmatpush2.bf16.msra.mxu0 0
    %8268 = vmatprep.subr.bf16.mxu0 0
    %8269 = vmatpush2.bf16.msra.mxu0 0
    %8270 = vmatprep.subr.bf16.mxu0 0
    %8271 = vmatpush2.bf16.msra.mxu0 0
    %8272 = vmatprep.subr.bf16.mxu0 0
    %8273 = vmatpush2.bf16.msra.mxu0 0
    %8274 = vmatprep.mubr.bf16.mxu0 0
    %8275 = vmatmul.mubr.bf16.gmra.mxu0 %v8240
    %v8276 = vpop.f32.mrf.mxu0
    %v8277 = vadd.f32 0.0, %v8276
    %v8278 = vpop.f32.mrf.mxu0
    %v8279 = vpop.f32.mrf.mxu0
    %v8280 = vadd.f32 0.0, %v8279
    %v8281 = vpop.f32.mrf.mxu0
    %8282 = vdwg.mxu0
    %8283 = vrot.lane.b32.xlu0 %v5823, 64
    %v8284 = vpop.permute.xlu0 %8283
    %v8287 = vsel %vm2224, %v8159, 0
    %8289 = vmatprep.subr.bf16.mxu0 0
    %8290 = vmatpush1.bf16.msra.mxu0 0
    %8291 = vmatprep.subr.bf16.mxu0 0
    %8292 = vmatpush1.bf16.msra.mxu0 0
    %8293 = vmatprep.subr.bf16.mxu0 0
    %8294 = vmatpush1.bf16.msra.mxu0 0
    %8295 = vmatprep.subr.bf16.mxu0 0
    %8296 = vmatpush1.bf16.msra.mxu0 0
    %8297 = vmatprep.subr.bf16.mxu0 0
    %8298 = vmatpush1.bf16.msra.mxu0 0
    %8299 = vmatprep.subr.bf16.mxu0 0
    %8300 = vmatpush1.bf16.msra.mxu0 0
    %8301 = vmatprep.subr.bf16.mxu0 0
    %8302 = vmatpush1.bf16.msra.mxu0 0
    %8303 = vmatprep.subr.bf16.mxu0 0
    %8304 = vmatpush1.bf16.msra.mxu0 %v8284
    %8305 = vmatprep.subr.bf16.mxu0 0
    %8306 = vmatpush2.bf16.msra.mxu0 0
    %8307 = vmatprep.subr.bf16.mxu0 0
    %8308 = vmatpush2.bf16.msra.mxu0 0
    %8309 = vmatprep.subr.bf16.mxu0 0
    %8310 = vmatpush2.bf16.msra.mxu0 0
    %8311 = vmatprep.subr.bf16.mxu0 0
    %8312 = vmatpush2.bf16.msra.mxu0 0
    %8313 = vmatprep.subr.bf16.mxu0 0
    %8314 = vmatpush2.bf16.msra.mxu0 0
    %8315 = vmatprep.subr.bf16.mxu0 0
    %8316 = vmatpush2.bf16.msra.mxu0 0
    %8317 = vmatprep.subr.bf16.mxu0 0
    %8318 = vmatpush2.bf16.msra.mxu0 0
    %8319 = vmatprep.subr.bf16.mxu0 0
    %8320 = vmatpush2.bf16.msra.mxu0 0
    %8321 = vmatprep.mubr.bf16.mxu0 0
    %8322 = vmatmul.mubr.bf16.gmra.mxu0 %v8287
    %v8323 = vpop.f32.mrf.mxu0
    %v8324 = vadd.f32 0.0, %v8323
    %v8325 = vpop.f32.mrf.mxu0
    %v8326 = vpop.f32.mrf.mxu0
    %v8327 = vadd.f32 0.0, %v8326
    %v8328 = vpop.f32.mrf.mxu0
    %8329 = vdwg.mxu0
    %8330 = vrot.lane.b32.xlu0 %v5824, 64
    %v8331 = vpop.permute.xlu0 %8330
    %v8334 = vsel %vm2224, %v8160, 0
    %8336 = vmatprep.subr.bf16.mxu0 0
    %8337 = vmatpush1.bf16.msra.mxu0 0
    %8338 = vmatprep.subr.bf16.mxu0 0
    %8339 = vmatpush1.bf16.msra.mxu0 0
    %8340 = vmatprep.subr.bf16.mxu0 0
    %8341 = vmatpush1.bf16.msra.mxu0 0
    %8342 = vmatprep.subr.bf16.mxu0 0
    %8343 = vmatpush1.bf16.msra.mxu0 0
    %8344 = vmatprep.subr.bf16.mxu0 0
    %8345 = vmatpush1.bf16.msra.mxu0 0
    %8346 = vmatprep.subr.bf16.mxu0 0
    %8347 = vmatpush1.bf16.msra.mxu0 0
    %8348 = vmatprep.subr.bf16.mxu0 0
    %8349 = vmatpush1.bf16.msra.mxu0 0
    %8350 = vmatprep.subr.bf16.mxu0 0
    %8351 = vmatpush1.bf16.msra.mxu0 %v8331
    %8352 = vmatprep.subr.bf16.mxu0 0
    %8353 = vmatpush2.bf16.msra.mxu0 0
    %8354 = vmatprep.subr.bf16.mxu0 0
    %8355 = vmatpush2.bf16.msra.mxu0 0
    %8356 = vmatprep.subr.bf16.mxu0 0
    %8357 = vmatpush2.bf16.msra.mxu0 0
    %8358 = vmatprep.subr.bf16.mxu0 0
    %8359 = vmatpush2.bf16.msra.mxu0 0
    %8360 = vmatprep.subr.bf16.mxu0 0
    %8361 = vmatpush2.bf16.msra.mxu0 0
    %8362 = vmatprep.subr.bf16.mxu0 0
    %8363 = vmatpush2.bf16.msra.mxu0 0
    %8364 = vmatprep.subr.bf16.mxu0 0
    %8365 = vmatpush2.bf16.msra.mxu0 0
    %8366 = vmatprep.subr.bf16.mxu0 0
    %8367 = vmatpush2.bf16.msra.mxu0 0
    %8368 = vmatprep.mubr.bf16.mxu0 0
    %8369 = vmatmul.mubr.bf16.gmra.mxu0 %v8334
    %v8370 = vpop.f32.mrf.mxu0
    %v8371 = vadd.f32 0.0, %v8370
    %v8372 = vpop.f32.mrf.mxu0
    %v8373 = vpop.f32.mrf.mxu0
    %v8374 = vadd.f32 0.0, %v8373
    %v8375 = vpop.f32.mrf.mxu0
    %8376 = vdwg.mxu0
    %8377 = vrot.lane.b32.xlu0 %v5825, 64
    %v8378 = vpop.permute.xlu0 %8377
    %v8381 = vsel %vm2224, %v8161, 0
    %8383 = vmatprep.subr.bf16.mxu0 0
    %8384 = vmatpush1.bf16.msra.mxu0 0
    %8385 = vmatprep.subr.bf16.mxu0 0
    %8386 = vmatpush1.bf16.msra.mxu0 0
    %8387 = vmatprep.subr.bf16.mxu0 0
    %8388 = vmatpush1.bf16.msra.mxu0 0
    %8389 = vmatprep.subr.bf16.mxu0 0
    %8390 = vmatpush1.bf16.msra.mxu0 0
    %8391 = vmatprep.subr.bf16.mxu0 0
    %8392 = vmatpush1.bf16.msra.mxu0 0
    %8393 = vmatprep.subr.bf16.mxu0 0
    %8394 = vmatpush1.bf16.msra.mxu0 0
    %8395 = vmatprep.subr.bf16.mxu0 0
    %8396 = vmatpush1.bf16.msra.mxu0 0
    %8397 = vmatprep.subr.bf16.mxu0 0
    %8398 = vmatpush1.bf16.msra.mxu0 %v8378
    %8399 = vmatprep.subr.bf16.mxu0 0
    %8400 = vmatpush2.bf16.msra.mxu0 0
    %8401 = vmatprep.subr.bf16.mxu0 0
    %8402 = vmatpush2.bf16.msra.mxu0 0
    %8403 = vmatprep.subr.bf16.mxu0 0
    %8404 = vmatpush2.bf16.msra.mxu0 0
    %8405 = vmatprep.subr.bf16.mxu0 0
    %8406 = vmatpush2.bf16.msra.mxu0 0
    %8407 = vmatprep.subr.bf16.mxu0 0
    %8408 = vmatpush2.bf16.msra.mxu0 0
    %8409 = vmatprep.subr.bf16.mxu0 0
    %8410 = vmatpush2.bf16.msra.mxu0 0
    %8411 = vmatprep.subr.bf16.mxu0 0
    %8412 = vmatpush2.bf16.msra.mxu0 0
    %8413 = vmatprep.subr.bf16.mxu0 0
    %8414 = vmatpush2.bf16.msra.mxu0 0
    %8415 = vmatprep.mubr.bf16.mxu0 0
    %8416 = vmatmul.mubr.bf16.gmra.mxu0 %v8381
    %v8417 = vpop.f32.mrf.mxu0
    %v8418 = vadd.f32 0.0, %v8417
    %v8419 = vpop.f32.mrf.mxu0
    %v8420 = vpop.f32.mrf.mxu0
    %v8421 = vadd.f32 0.0, %v8420
    %v8422 = vpop.f32.mrf.mxu0
    %8423 = vdwg.mxu0
    %8424 = vrot.lane.b32.xlu0 %v5826, 64
    %v8425 = vpop.permute.xlu0 %8424
    %v8428 = vsel %vm2224, %v8162, 0
    %8430 = vmatprep.subr.bf16.mxu0 0
    %8431 = vmatpush1.bf16.msra.mxu0 0
    %8432 = vmatprep.subr.bf16.mxu0 0
    %8433 = vmatpush1.bf16.msra.mxu0 0
    %8434 = vmatprep.subr.bf16.mxu0 0
    %8435 = vmatpush1.bf16.msra.mxu0 0
    %8436 = vmatprep.subr.bf16.mxu0 0
    %8437 = vmatpush1.bf16.msra.mxu0 0
    %8438 = vmatprep.subr.bf16.mxu0 0
    %8439 = vmatpush1.bf16.msra.mxu0 0
    %8440 = vmatprep.subr.bf16.mxu0 0
    %8441 = vmatpush1.bf16.msra.mxu0 0
    %8442 = vmatprep.subr.bf16.mxu0 0
    %8443 = vmatpush1.bf16.msra.mxu0 0
    %8444 = vmatprep.subr.bf16.mxu0 0
    %8445 = vmatpush1.bf16.msra.mxu0 %v8425
    %8446 = vmatprep.subr.bf16.mxu0 0
    %8447 = vmatpush2.bf16.msra.mxu0 0
    %8448 = vmatprep.subr.bf16.mxu0 0
    %8449 = vmatpush2.bf16.msra.mxu0 0
    %8450 = vmatprep.subr.bf16.mxu0 0
    %8451 = vmatpush2.bf16.msra.mxu0 0
    %8452 = vmatprep.subr.bf16.mxu0 0
    %8453 = vmatpush2.bf16.msra.mxu0 0
    %8454 = vmatprep.subr.bf16.mxu0 0
    %8455 = vmatpush2.bf16.msra.mxu0 0
    %8456 = vmatprep.subr.bf16.mxu0 0
    %8457 = vmatpush2.bf16.msra.mxu0 0
    %8458 = vmatprep.subr.bf16.mxu0 0
    %8459 = vmatpush2.bf16.msra.mxu0 0
    %8460 = vmatprep.subr.bf16.mxu0 0
    %8461 = vmatpush2.bf16.msra.mxu0 0
    %8462 = vmatprep.mubr.bf16.mxu0 0
    %8463 = vmatmul.mubr.bf16.gmra.mxu0 %v8428
    %v8464 = vpop.f32.mrf.mxu0
    %v8465 = vadd.f32 0.0, %v8464
    %v8466 = vpop.f32.mrf.mxu0
    %v8467 = vpop.f32.mrf.mxu0
    %v8468 = vadd.f32 0.0, %v8467
    %v8469 = vpop.f32.mrf.mxu0
    %8470 = vdwg.mxu0
    %8471 = vrot.lane.b32.xlu0 %v5827, 64
    %v8472 = vpop.permute.xlu0 %8471
    %v8475 = vsel %vm2224, %v8163, 0
    %8477 = vmatprep.subr.bf16.mxu0 0
    %8478 = vmatpush1.bf16.msra.mxu0 0
    %8479 = vmatprep.subr.bf16.mxu0 0
    %8480 = vmatpush1.bf16.msra.mxu0 0
    %8481 = vmatprep.subr.bf16.mxu0 0
    %8482 = vmatpush1.bf16.msra.mxu0 0
    %8483 = vmatprep.subr.bf16.mxu0 0
    %8484 = vmatpush1.bf16.msra.mxu0 0
    %8485 = vmatprep.subr.bf16.mxu0 0
    %8486 = vmatpush1.bf16.msra.mxu0 0
    %8487 = vmatprep.subr.bf16.mxu0 0
    %8488 = vmatpush1.bf16.msra.mxu0 0
    %8489 = vmatprep.subr.bf16.mxu0 0
    %8490 = vmatpush1.bf16.msra.mxu0 0
    %8491 = vmatprep.subr.bf16.mxu0 0
    %8492 = vmatpush1.bf16.msra.mxu0 %v8472
    %8493 = vmatprep.subr.bf16.mxu0 0
    %8494 = vmatpush2.bf16.msra.mxu0 0
    %8495 = vmatprep.subr.bf16.mxu0 0
    %8496 = vmatpush2.bf16.msra.mxu0 0
    %8497 = vmatprep.subr.bf16.mxu0 0
    %8498 = vmatpush2.bf16.msra.mxu0 0
    %8499 = vmatprep.subr.bf16.mxu0 0
    %8500 = vmatpush2.bf16.msra.mxu0 0
    %8501 = vmatprep.subr.bf16.mxu0 0
    %8502 = vmatpush2.bf16.msra.mxu0 0
    %8503 = vmatprep.subr.bf16.mxu0 0
    %8504 = vmatpush2.bf16.msra.mxu0 0
    %8505 = vmatprep.subr.bf16.mxu0 0
    %8506 = vmatpush2.bf16.msra.mxu0 0
    %8507 = vmatprep.subr.bf16.mxu0 0
    %8508 = vmatpush2.bf16.msra.mxu0 0
    %8509 = vmatprep.mubr.bf16.mxu0 0
    %8510 = vmatmul.mubr.bf16.gmra.mxu0 %v8475
    %v8511 = vpop.f32.mrf.mxu0
    %v8512 = vadd.f32 0.0, %v8511
    %v8513 = vpop.f32.mrf.mxu0
    %v8514 = vpop.f32.mrf.mxu0
    %v8515 = vadd.f32 0.0, %v8514
    %v8516 = vpop.f32.mrf.mxu0
    %8517 = vdwg.mxu0
    %8518 = vrot.lane.b32.xlu0 %v5828, 64
    %v8519 = vpop.permute.xlu0 %8518
    %v8522 = vsel %vm2224, %v8164, 0
    %8524 = vmatprep.subr.bf16.mxu0 0
    %8525 = vmatpush1.bf16.msra.mxu0 0
    %8526 = vmatprep.subr.bf16.mxu0 0
    %8527 = vmatpush1.bf16.msra.mxu0 0
    %8528 = vmatprep.subr.bf16.mxu0 0
    %8529 = vmatpush1.bf16.msra.mxu0 0
    %8530 = vmatprep.subr.bf16.mxu0 0
    %8531 = vmatpush1.bf16.msra.mxu0 0
    %8532 = vmatprep.subr.bf16.mxu0 0
    %8533 = vmatpush1.bf16.msra.mxu0 0
    %8534 = vmatprep.subr.bf16.mxu0 0
    %8535 = vmatpush1.bf16.msra.mxu0 0
    %8536 = vmatprep.subr.bf16.mxu0 0
    %8537 = vmatpush1.bf16.msra.mxu0 0
    %8538 = vmatprep.subr.bf16.mxu0 0
    %8539 = vmatpush1.bf16.msra.mxu0 %v8519
    %8540 = vmatprep.subr.bf16.mxu0 0
    %8541 = vmatpush2.bf16.msra.mxu0 0
    %8542 = vmatprep.subr.bf16.mxu0 0
    %8543 = vmatpush2.bf16.msra.mxu0 0
    %8544 = vmatprep.subr.bf16.mxu0 0
    %8545 = vmatpush2.bf16.msra.mxu0 0
    %8546 = vmatprep.subr.bf16.mxu0 0
    %8547 = vmatpush2.bf16.msra.mxu0 0
    %8548 = vmatprep.subr.bf16.mxu0 0
    %8549 = vmatpush2.bf16.msra.mxu0 0
    %8550 = vmatprep.subr.bf16.mxu0 0
    %8551 = vmatpush2.bf16.msra.mxu0 0
    %8552 = vmatprep.subr.bf16.mxu0 0
    %8553 = vmatpush2.bf16.msra.mxu0 0
    %8554 = vmatprep.subr.bf16.mxu0 0
    %8555 = vmatpush2.bf16.msra.mxu0 0
    %8556 = vmatprep.mubr.bf16.mxu0 0
    %8557 = vmatmul.mubr.bf16.gmra.mxu0 %v8522
    %v8558 = vpop.f32.mrf.mxu0
    %v8559 = vadd.f32 0.0, %v8558
    %v8560 = vpop.f32.mrf.mxu0
    %v8561 = vpop.f32.mrf.mxu0
    %v8562 = vadd.f32 0.0, %v8561
    %v8563 = vpop.f32.mrf.mxu0
    %8564 = vdwg.mxu0
    %8565 = vrot.lane.b32.xlu0 %v5838, 64
    %v8566 = vpop.permute.xlu0 %8565
    %v8569 = vsel %vm2224, %v8165, 0
    %8571 = vmatprep.subr.bf16.mxu0 0
    %8572 = vmatpush1.bf16.msra.mxu0 0
    %8573 = vmatprep.subr.bf16.mxu0 0
    %8574 = vmatpush1.bf16.msra.mxu0 0
    %8575 = vmatprep.subr.bf16.mxu0 0
    %8576 = vmatpush1.bf16.msra.mxu0 0
    %8577 = vmatprep.subr.bf16.mxu0 0
    %8578 = vmatpush1.bf16.msra.mxu0 0
    %8579 = vmatprep.subr.bf16.mxu0 0
    %8580 = vmatpush1.bf16.msra.mxu0 0
    %8581 = vmatprep.subr.bf16.mxu0 0
    %8582 = vmatpush1.bf16.msra.mxu0 0
    %8583 = vmatprep.subr.bf16.mxu0 0
    %8584 = vmatpush1.bf16.msra.mxu0 0
    %8585 = vmatprep.subr.bf16.mxu0 0
    %8586 = vmatpush1.bf16.msra.mxu0 %v8566
    %8587 = vmatprep.subr.bf16.mxu0 0
    %8588 = vmatpush2.bf16.msra.mxu0 0
    %8589 = vmatprep.subr.bf16.mxu0 0
    %8590 = vmatpush2.bf16.msra.mxu0 0
    %8591 = vmatprep.subr.bf16.mxu0 0
    %8592 = vmatpush2.bf16.msra.mxu0 0
    %8593 = vmatprep.subr.bf16.mxu0 0
    %8594 = vmatpush2.bf16.msra.mxu0 0
    %8595 = vmatprep.subr.bf16.mxu0 0
    %8596 = vmatpush2.bf16.msra.mxu0 0
    %8597 = vmatprep.subr.bf16.mxu0 0
    %8598 = vmatpush2.bf16.msra.mxu0 0
    %8599 = vmatprep.subr.bf16.mxu0 0
    %8600 = vmatpush2.bf16.msra.mxu0 0
    %8601 = vmatprep.subr.bf16.mxu0 0
    %8602 = vmatpush2.bf16.msra.mxu0 0
    %8603 = vmatprep.mubr.bf16.mxu0 0
    %8604 = vmatmul.mubr.bf16.gmra.mxu0 %v8569
    %v8605 = vpop.f32.mrf.mxu0
    %v8606 = vadd.f32 0.0, %v8605
    %v8607 = vpop.f32.mrf.mxu0
    %v8608 = vpop.f32.mrf.mxu0
    %v8609 = vadd.f32 0.0, %v8608
    %v8610 = vpop.f32.mrf.mxu0
    %8611 = vdwg.mxu0
    %8612 = vrot.lane.b32.xlu0 %v5840, 64
    %v8613 = vpop.permute.xlu0 %8612
    %v8616 = vsel %vm2224, %v8166, 0
    %8618 = vmatprep.subr.bf16.mxu0 0
    %8619 = vmatpush1.bf16.msra.mxu0 0
    %8620 = vmatprep.subr.bf16.mxu0 0
    %8621 = vmatpush1.bf16.msra.mxu0 0
    %8622 = vmatprep.subr.bf16.mxu0 0
    %8623 = vmatpush1.bf16.msra.mxu0 0
    %8624 = vmatprep.subr.bf16.mxu0 0
    %8625 = vmatpush1.bf16.msra.mxu0 0
    %8626 = vmatprep.subr.bf16.mxu0 0
    %8627 = vmatpush1.bf16.msra.mxu0 0
    %8628 = vmatprep.subr.bf16.mxu0 0
    %8629 = vmatpush1.bf16.msra.mxu0 0
    %8630 = vmatprep.subr.bf16.mxu0 0
    %8631 = vmatpush1.bf16.msra.mxu0 0
    %8632 = vmatprep.subr.bf16.mxu0 0
    %8633 = vmatpush1.bf16.msra.mxu0 %v8613
    %8634 = vmatprep.subr.bf16.mxu0 0
    %8635 = vmatpush2.bf16.msra.mxu0 0
    %8636 = vmatprep.subr.bf16.mxu0 0
    %8637 = vmatpush2.bf16.msra.mxu0 0
    %8638 = vmatprep.subr.bf16.mxu0 0
    %8639 = vmatpush2.bf16.msra.mxu0 0
    %8640 = vmatprep.subr.bf16.mxu0 0
    %8641 = vmatpush2.bf16.msra.mxu0 0
    %8642 = vmatprep.subr.bf16.mxu0 0
    %8643 = vmatpush2.bf16.msra.mxu0 0
    %8644 = vmatprep.subr.bf16.mxu0 0
    %8645 = vmatpush2.bf16.msra.mxu0 0
    %8646 = vmatprep.subr.bf16.mxu0 0
    %8647 = vmatpush2.bf16.msra.mxu0 0
    %8648 = vmatprep.subr.bf16.mxu0 0
    %8649 = vmatpush2.bf16.msra.mxu0 0
    %8650 = vmatprep.mubr.bf16.mxu0 0
    %8651 = vmatmul.mubr.bf16.gmra.mxu0 %v8616
    %v8652 = vpop.f32.mrf.mxu0
    %v8653 = vadd.f32 0.0, %v8652
    %v8654 = vpop.f32.mrf.mxu0
    %v8655 = vpop.f32.mrf.mxu0
    %v8656 = vadd.f32 0.0, %v8655
    %v8657 = vpop.f32.mrf.mxu0
    %8658 = vdwg.mxu0
    %8659 = vrot.lane.b32.xlu0 %v5842, 64
    %v8660 = vpop.permute.xlu0 %8659
    %v8663 = vsel %vm2224, %v8167, 0
    %8665 = vmatprep.subr.bf16.mxu0 0
    %8666 = vmatpush1.bf16.msra.mxu0 0
    %8667 = vmatprep.subr.bf16.mxu0 0
    %8668 = vmatpush1.bf16.msra.mxu0 0
    %8669 = vmatprep.subr.bf16.mxu0 0
    %8670 = vmatpush1.bf16.msra.mxu0 0
    %8671 = vmatprep.subr.bf16.mxu0 0
    %8672 = vmatpush1.bf16.msra.mxu0 0
    %8673 = vmatprep.subr.bf16.mxu0 0
    %8674 = vmatpush1.bf16.msra.mxu0 0
    %8675 = vmatprep.subr.bf16.mxu0 0
    %8676 = vmatpush1.bf16.msra.mxu0 0
    %8677 = vmatprep.subr.bf16.mxu0 0
    %8678 = vmatpush1.bf16.msra.mxu0 0
    %8679 = vmatprep.subr.bf16.mxu0 0
    %8680 = vmatpush1.bf16.msra.mxu0 %v8660
    %8681 = vmatprep.subr.bf16.mxu0 0
    %8682 = vmatpush2.bf16.msra.mxu0 0
    %8683 = vmatprep.subr.bf16.mxu0 0
    %8684 = vmatpush2.bf16.msra.mxu0 0
    %8685 = vmatprep.subr.bf16.mxu0 0
    %8686 = vmatpush2.bf16.msra.mxu0 0
    %8687 = vmatprep.subr.bf16.mxu0 0
    %8688 = vmatpush2.bf16.msra.mxu0 0
    %8689 = vmatprep.subr.bf16.mxu0 0
    %8690 = vmatpush2.bf16.msra.mxu0 0
    %8691 = vmatprep.subr.bf16.mxu0 0
    %8692 = vmatpush2.bf16.msra.mxu0 0
    %8693 = vmatprep.subr.bf16.mxu0 0
    %8694 = vmatpush2.bf16.msra.mxu0 0
    %8695 = vmatprep.subr.bf16.mxu0 0
    %8696 = vmatpush2.bf16.msra.mxu0 0
    %8697 = vmatprep.mubr.bf16.mxu0 0
    %8698 = vmatmul.mubr.bf16.gmra.mxu0 %v8663
    %v8699 = vpop.f32.mrf.mxu0
    %v8700 = vadd.f32 0.0, %v8699
    %v8701 = vpop.f32.mrf.mxu0
    %v8702 = vpop.f32.mrf.mxu0
    %v8703 = vadd.f32 0.0, %v8702
    %v8704 = vpop.f32.mrf.mxu0
    %8705 = vdwg.mxu0
    %8706 = vrot.lane.b32.xlu0 %v5844, 64
    %v8707 = vpop.permute.xlu0 %8706
    %v8710 = vsel %vm2224, %v8168, 0
    %8712 = vmatprep.subr.bf16.mxu0 0
    %8713 = vmatpush1.bf16.msra.mxu0 0
    %8714 = vmatprep.subr.bf16.mxu0 0
    %8715 = vmatpush1.bf16.msra.mxu0 0
    %8716 = vmatprep.subr.bf16.mxu0 0
    %8717 = vmatpush1.bf16.msra.mxu0 0
    %8718 = vmatprep.subr.bf16.mxu0 0
    %8719 = vmatpush1.bf16.msra.mxu0 0
    %8720 = vmatprep.subr.bf16.mxu0 0
    %8721 = vmatpush1.bf16.msra.mxu0 0
    %8722 = vmatprep.subr.bf16.mxu0 0
    %8723 = vmatpush1.bf16.msra.mxu0 0
    %8724 = vmatprep.subr.bf16.mxu0 0
    %8725 = vmatpush1.bf16.msra.mxu0 0
    %8726 = vmatprep.subr.bf16.mxu0 0
    %8727 = vmatpush1.bf16.msra.mxu0 %v8707
    %8728 = vmatprep.subr.bf16.mxu0 0
    %8729 = vmatpush2.bf16.msra.mxu0 0
    %8730 = vmatprep.subr.bf16.mxu0 0
    %8731 = vmatpush2.bf16.msra.mxu0 0
    %8732 = vmatprep.subr.bf16.mxu0 0
    %8733 = vmatpush2.bf16.msra.mxu0 0
    %8734 = vmatprep.subr.bf16.mxu0 0
    %8735 = vmatpush2.bf16.msra.mxu0 0
    %8736 = vmatprep.subr.bf16.mxu0 0
    %8737 = vmatpush2.bf16.msra.mxu0 0
    %8738 = vmatprep.subr.bf16.mxu0 0
    %8739 = vmatpush2.bf16.msra.mxu0 0
    %8740 = vmatprep.subr.bf16.mxu0 0
    %8741 = vmatpush2.bf16.msra.mxu0 0
    %8742 = vmatprep.subr.bf16.mxu0 0
    %8743 = vmatpush2.bf16.msra.mxu0 0
    %8744 = vmatprep.mubr.bf16.mxu0 0
    %8745 = vmatmul.mubr.bf16.gmra.mxu0 %v8710
    %v8746 = vpop.f32.mrf.mxu0
    %v8747 = vadd.f32 0.0, %v8746
    %v8748 = vpop.f32.mrf.mxu0
    %v8749 = vpop.f32.mrf.mxu0
    %v8750 = vadd.f32 0.0, %v8749
    %v8751 = vpop.f32.mrf.mxu0
    %8752 = vdwg.mxu0
    %8753 = vrot.lane.b32.xlu0 %v5846, 64
    %v8754 = vpop.permute.xlu0 %8753
    %v8757 = vsel %vm2224, %v8169, 0
    %8759 = vmatprep.subr.bf16.mxu0 0
    %8760 = vmatpush1.bf16.msra.mxu0 0
    %8761 = vmatprep.subr.bf16.mxu0 0
    %8762 = vmatpush1.bf16.msra.mxu0 0
    %8763 = vmatprep.subr.bf16.mxu0 0
    %8764 = vmatpush1.bf16.msra.mxu0 0
    %8765 = vmatprep.subr.bf16.mxu0 0
    %8766 = vmatpush1.bf16.msra.mxu0 0
    %8767 = vmatprep.subr.bf16.mxu0 0
    %8768 = vmatpush1.bf16.msra.mxu0 0
    %8769 = vmatprep.subr.bf16.mxu0 0
    %8770 = vmatpush1.bf16.msra.mxu0 0
    %8771 = vmatprep.subr.bf16.mxu0 0
    %8772 = vmatpush1.bf16.msra.mxu0 0
    %8773 = vmatprep.subr.bf16.mxu0 0
    %8774 = vmatpush1.bf16.msra.mxu0 %v8754
    %8775 = vmatprep.subr.bf16.mxu0 0
    %8776 = vmatpush2.bf16.msra.mxu0 0
    %8777 = vmatprep.subr.bf16.mxu0 0
    %8778 = vmatpush2.bf16.msra.mxu0 0
    %8779 = vmatprep.subr.bf16.mxu0 0
    %8780 = vmatpush2.bf16.msra.mxu0 0
    %8781 = vmatprep.subr.bf16.mxu0 0
    %8782 = vmatpush2.bf16.msra.mxu0 0
    %8783 = vmatprep.subr.bf16.mxu0 0
    %8784 = vmatpush2.bf16.msra.mxu0 0
    %8785 = vmatprep.subr.bf16.mxu0 0
    %8786 = vmatpush2.bf16.msra.mxu0 0
    %8787 = vmatprep.subr.bf16.mxu0 0
    %8788 = vmatpush2.bf16.msra.mxu0 0
    %8789 = vmatprep.subr.bf16.mxu0 0
    %8790 = vmatpush2.bf16.msra.mxu0 0
    %8791 = vmatprep.mubr.bf16.mxu0 0
    %8792 = vmatmul.mubr.bf16.gmra.mxu0 %v8757
    %v8793 = vpop.f32.mrf.mxu0
    %v8794 = vadd.f32 0.0, %v8793
    %v8795 = vpop.f32.mrf.mxu0
    %v8796 = vpop.f32.mrf.mxu0
    %v8797 = vadd.f32 0.0, %v8796
    %v8798 = vpop.f32.mrf.mxu0
    %8799 = vdwg.mxu0
    %8800 = vrot.lane.b32.xlu0 %v5848, 64
    %v8801 = vpop.permute.xlu0 %8800
    %v8804 = vsel %vm2224, %v8170, 0
    %8806 = vmatprep.subr.bf16.mxu0 0
    %8807 = vmatpush1.bf16.msra.mxu0 0
    %8808 = vmatprep.subr.bf16.mxu0 0
    %8809 = vmatpush1.bf16.msra.mxu0 0
    %8810 = vmatprep.subr.bf16.mxu0 0
    %8811 = vmatpush1.bf16.msra.mxu0 0
    %8812 = vmatprep.subr.bf16.mxu0 0
    %8813 = vmatpush1.bf16.msra.mxu0 0
    %8814 = vmatprep.subr.bf16.mxu0 0
    %8815 = vmatpush1.bf16.msra.mxu0 0
    %8816 = vmatprep.subr.bf16.mxu0 0
    %8817 = vmatpush1.bf16.msra.mxu0 0
    %8818 = vmatprep.subr.bf16.mxu0 0
    %8819 = vmatpush1.bf16.msra.mxu0 0
    %8820 = vmatprep.subr.bf16.mxu0 0
    %8821 = vmatpush1.bf16.msra.mxu0 %v8801
    %8822 = vmatprep.subr.bf16.mxu0 0
    %8823 = vmatpush2.bf16.msra.mxu0 0
    %8824 = vmatprep.subr.bf16.mxu0 0
    %8825 = vmatpush2.bf16.msra.mxu0 0
    %8826 = vmatprep.subr.bf16.mxu0 0
    %8827 = vmatpush2.bf16.msra.mxu0 0
    %8828 = vmatprep.subr.bf16.mxu0 0
    %8829 = vmatpush2.bf16.msra.mxu0 0
    %8830 = vmatprep.subr.bf16.mxu0 0
    %8831 = vmatpush2.bf16.msra.mxu0 0
    %8832 = vmatprep.subr.bf16.mxu0 0
    %8833 = vmatpush2.bf16.msra.mxu0 0
    %8834 = vmatprep.subr.bf16.mxu0 0
    %8835 = vmatpush2.bf16.msra.mxu0 0
    %8836 = vmatprep.subr.bf16.mxu0 0
    %8837 = vmatpush2.bf16.msra.mxu0 0
    %8838 = vmatprep.mubr.bf16.mxu0 0
    %8839 = vmatmul.mubr.bf16.gmra.mxu0 %v8804
    %v8840 = vpop.f32.mrf.mxu0
    %v8841 = vadd.f32 0.0, %v8840
    %v8842 = vpop.f32.mrf.mxu0
    %v8843 = vpop.f32.mrf.mxu0
    %v8844 = vadd.f32 0.0, %v8843
    %v8845 = vpop.f32.mrf.mxu0
    %8846 = vdwg.mxu0
    %8847 = vrot.lane.b32.xlu0 %v5850, 64
    %v8848 = vpop.permute.xlu0 %8847
    %v8851 = vsel %vm2224, %v8171, 0
    %8853 = vmatprep.subr.bf16.mxu0 0
    %8854 = vmatpush1.bf16.msra.mxu0 0
    %8855 = vmatprep.subr.bf16.mxu0 0
    %8856 = vmatpush1.bf16.msra.mxu0 0
    %8857 = vmatprep.subr.bf16.mxu0 0
    %8858 = vmatpush1.bf16.msra.mxu0 0
    %8859 = vmatprep.subr.bf16.mxu0 0
    %8860 = vmatpush1.bf16.msra.mxu0 0
    %8861 = vmatprep.subr.bf16.mxu0 0
    %8862 = vmatpush1.bf16.msra.mxu0 0
    %8863 = vmatprep.subr.bf16.mxu0 0
    %8864 = vmatpush1.bf16.msra.mxu0 0
    %8865 = vmatprep.subr.bf16.mxu0 0
    %8866 = vmatpush1.bf16.msra.mxu0 0
    %8867 = vmatprep.subr.bf16.mxu0 0
    %8868 = vmatpush1.bf16.msra.mxu0 %v8848
    %8869 = vmatprep.subr.bf16.mxu0 0
    %8870 = vmatpush2.bf16.msra.mxu0 0
    %8871 = vmatprep.subr.bf16.mxu0 0
    %8872 = vmatpush2.bf16.msra.mxu0 0
    %8873 = vmatprep.subr.bf16.mxu0 0
    %8874 = vmatpush2.bf16.msra.mxu0 0
    %8875 = vmatprep.subr.bf16.mxu0 0
    %8876 = vmatpush2.bf16.msra.mxu0 0
    %8877 = vmatprep.subr.bf16.mxu0 0
    %8878 = vmatpush2.bf16.msra.mxu0 0
    %8879 = vmatprep.subr.bf16.mxu0 0
    %8880 = vmatpush2.bf16.msra.mxu0 0
    %8881 = vmatprep.subr.bf16.mxu0 0
    %8882 = vmatpush2.bf16.msra.mxu0 0
    %8883 = vmatprep.subr.bf16.mxu0 0
    %8884 = vmatpush2.bf16.msra.mxu0 0
    %8885 = vmatprep.mubr.bf16.mxu0 0
    %8886 = vmatmul.mubr.bf16.gmra.mxu0 %v8851
    %v8887 = vpop.f32.mrf.mxu0
    %v8888 = vadd.f32 0.0, %v8887
    %v8889 = vpop.f32.mrf.mxu0
    %v8890 = vpop.f32.mrf.mxu0
    %v8891 = vadd.f32 0.0, %v8890
    %v8892 = vpop.f32.mrf.mxu0
    %8893 = vdwg.mxu0
    %8894 = vrot.lane.b32.xlu0 %v5852, 64
    %v8895 = vpop.permute.xlu0 %8894
    %v8898 = vsel %vm2224, %v8172, 0
    %8900 = vmatprep.subr.bf16.mxu0 0
    %8901 = vmatpush1.bf16.msra.mxu0 0
    %8902 = vmatprep.subr.bf16.mxu0 0
    %8903 = vmatpush1.bf16.msra.mxu0 0
    %8904 = vmatprep.subr.bf16.mxu0 0
    %8905 = vmatpush1.bf16.msra.mxu0 0
    %8906 = vmatprep.subr.bf16.mxu0 0
    %8907 = vmatpush1.bf16.msra.mxu0 0
    %8908 = vmatprep.subr.bf16.mxu0 0
    %8909 = vmatpush1.bf16.msra.mxu0 0
    %8910 = vmatprep.subr.bf16.mxu0 0
    %8911 = vmatpush1.bf16.msra.mxu0 0
    %8912 = vmatprep.subr.bf16.mxu0 0
    %8913 = vmatpush1.bf16.msra.mxu0 0
    %8914 = vmatprep.subr.bf16.mxu0 0
    %8915 = vmatpush1.bf16.msra.mxu0 %v8895
    %8916 = vmatprep.subr.bf16.mxu0 0
    %8917 = vmatpush2.bf16.msra.mxu0 0
    %8918 = vmatprep.subr.bf16.mxu0 0
    %8919 = vmatpush2.bf16.msra.mxu0 0
    %8920 = vmatprep.subr.bf16.mxu0 0
    %8921 = vmatpush2.bf16.msra.mxu0 0
    %8922 = vmatprep.subr.bf16.mxu0 0
    %8923 = vmatpush2.bf16.msra.mxu0 0
    %8924 = vmatprep.subr.bf16.mxu0 0
    %8925 = vmatpush2.bf16.msra.mxu0 0
    %8926 = vmatprep.subr.bf16.mxu0 0
    %8927 = vmatpush2.bf16.msra.mxu0 0
    %8928 = vmatprep.subr.bf16.mxu0 0
    %8929 = vmatpush2.bf16.msra.mxu0 0
    %8930 = vmatprep.subr.bf16.mxu0 0
    %8931 = vmatpush2.bf16.msra.mxu0 0
    %8932 = vmatprep.mubr.bf16.mxu0 0
    %8933 = vmatmul.mubr.bf16.gmra.mxu0 %v8898
    %v8934 = vpop.f32.mrf.mxu0
    %v8935 = vadd.f32 0.0, %v8934
    %v8936 = vpop.f32.mrf.mxu0
    %v8937 = vpop.f32.mrf.mxu0
    %v8938 = vadd.f32 0.0, %v8937
    %v8939 = vpop.f32.mrf.mxu0
    %8940 = vdwg.mxu0
    %8941 = vrot.lane.b32.xlu0 %v5854, 64
    %v8942 = vpop.permute.xlu0 %8941
    %v8945 = vsel %vm2224, %v8173, 0
    %8947 = vmatprep.subr.bf16.mxu0 0
    %8948 = vmatpush1.bf16.msra.mxu0 0
    %8949 = vmatprep.subr.bf16.mxu0 0
    %8950 = vmatpush1.bf16.msra.mxu0 0
    %8951 = vmatprep.subr.bf16.mxu0 0
    %8952 = vmatpush1.bf16.msra.mxu0 0
    %8953 = vmatprep.subr.bf16.mxu0 0
    %8954 = vmatpush1.bf16.msra.mxu0 0
    %8955 = vmatprep.subr.bf16.mxu0 0
    %8956 = vmatpush1.bf16.msra.mxu0 0
    %8957 = vmatprep.subr.bf16.mxu0 0
    %8958 = vmatpush1.bf16.msra.mxu0 0
    %8959 = vmatprep.subr.bf16.mxu0 0
    %8960 = vmatpush1.bf16.msra.mxu0 0
    %8961 = vmatprep.subr.bf16.mxu0 0
    %8962 = vmatpush1.bf16.msra.mxu0 %v8942
    %8963 = vmatprep.subr.bf16.mxu0 0
    %8964 = vmatpush2.bf16.msra.mxu0 0
    %8965 = vmatprep.subr.bf16.mxu0 0
    %8966 = vmatpush2.bf16.msra.mxu0 0
    %8967 = vmatprep.subr.bf16.mxu0 0
    %8968 = vmatpush2.bf16.msra.mxu0 0
    %8969 = vmatprep.subr.bf16.mxu0 0
    %8970 = vmatpush2.bf16.msra.mxu0 0
    %8971 = vmatprep.subr.bf16.mxu0 0
    %8972 = vmatpush2.bf16.msra.mxu0 0
    %8973 = vmatprep.subr.bf16.mxu0 0
    %8974 = vmatpush2.bf16.msra.mxu0 0
    %8975 = vmatprep.subr.bf16.mxu0 0
    %8976 = vmatpush2.bf16.msra.mxu0 0
    %8977 = vmatprep.subr.bf16.mxu0 0
    %8978 = vmatpush2.bf16.msra.mxu0 0
    %8979 = vmatprep.mubr.bf16.mxu0 0
    %8980 = vmatmul.mubr.bf16.gmra.mxu0 %v8945
    %v8981 = vpop.f32.mrf.mxu0
    %v8982 = vadd.f32 0.0, %v8981
    %v8983 = vpop.f32.mrf.mxu0
    %v8984 = vpop.f32.mrf.mxu0
    %v8985 = vadd.f32 0.0, %v8984
    %v8986 = vpop.f32.mrf.mxu0
    %8987 = vdwg.mxu0
    %8988 = vrot.lane.b32.xlu0 %v5856, 64
    %v8989 = vpop.permute.xlu0 %8988
    %v8992 = vsel %vm2224, %v8174, 0
    %8994 = vmatprep.subr.bf16.mxu0 0
    %8995 = vmatpush1.bf16.msra.mxu0 0
    %8996 = vmatprep.subr.bf16.mxu0 0
    %8997 = vmatpush1.bf16.msra.mxu0 0
    %8998 = vmatprep.subr.bf16.mxu0 0
    %8999 = vmatpush1.bf16.msra.mxu0 0
    %9000 = vmatprep.subr.bf16.mxu0 0
    %9001 = vmatpush1.bf16.msra.mxu0 0
    %9002 = vmatprep.subr.bf16.mxu0 0
    %9003 = vmatpush1.bf16.msra.mxu0 0
    %9004 = vmatprep.subr.bf16.mxu0 0
    %9005 = vmatpush1.bf16.msra.mxu0 0
    %9006 = vmatprep.subr.bf16.mxu0 0
    %9007 = vmatpush1.bf16.msra.mxu0 0
    %9008 = vmatprep.subr.bf16.mxu0 0
    %9009 = vmatpush1.bf16.msra.mxu0 %v8989
    %9010 = vmatprep.subr.bf16.mxu0 0
    %9011 = vmatpush2.bf16.msra.mxu0 0
    %9012 = vmatprep.subr.bf16.mxu0 0
    %9013 = vmatpush2.bf16.msra.mxu0 0
    %9014 = vmatprep.subr.bf16.mxu0 0
    %9015 = vmatpush2.bf16.msra.mxu0 0
    %9016 = vmatprep.subr.bf16.mxu0 0
    %9017 = vmatpush2.bf16.msra.mxu0 0
    %9018 = vmatprep.subr.bf16.mxu0 0
    %9019 = vmatpush2.bf16.msra.mxu0 0
    %9020 = vmatprep.subr.bf16.mxu0 0
    %9021 = vmatpush2.bf16.msra.mxu0 0
    %9022 = vmatprep.subr.bf16.mxu0 0
    %9023 = vmatpush2.bf16.msra.mxu0 0
    %9024 = vmatprep.subr.bf16.mxu0 0
    %9025 = vmatpush2.bf16.msra.mxu0 0
    %9026 = vmatprep.mubr.bf16.mxu0 0
    %9027 = vmatmul.mubr.bf16.gmra.mxu0 %v8992
    %v9028 = vpop.f32.mrf.mxu0
    %v9029 = vadd.f32 0.0, %v9028
    %v9030 = vpop.f32.mrf.mxu0
    %v9031 = vpop.f32.mrf.mxu0
    %v9032 = vadd.f32 0.0, %v9031
    %v9033 = vpop.f32.mrf.mxu0
    %9034 = vdwg.mxu0
    %9035 = vrot.lane.b32.xlu0 %v5858, 64
    %v9036 = vpop.permute.xlu0 %9035
    %v9039 = vsel %vm2224, %v8175, 0
    %9041 = vmatprep.subr.bf16.mxu0 0
    %9042 = vmatpush1.bf16.msra.mxu0 0
    %9043 = vmatprep.subr.bf16.mxu0 0
    %9044 = vmatpush1.bf16.msra.mxu0 0
    %9045 = vmatprep.subr.bf16.mxu0 0
    %9046 = vmatpush1.bf16.msra.mxu0 0
    %9047 = vmatprep.subr.bf16.mxu0 0
    %9048 = vmatpush1.bf16.msra.mxu0 0
    %9049 = vmatprep.subr.bf16.mxu0 0
    %9050 = vmatpush1.bf16.msra.mxu0 0
    %9051 = vmatprep.subr.bf16.mxu0 0
    %9052 = vmatpush1.bf16.msra.mxu0 0
    %9053 = vmatprep.subr.bf16.mxu0 0
    %9054 = vmatpush1.bf16.msra.mxu0 0
    %9055 = vmatprep.subr.bf16.mxu0 0
    %9056 = vmatpush1.bf16.msra.mxu0 %v9036
    %9057 = vmatprep.subr.bf16.mxu0 0
    %9058 = vmatpush2.bf16.msra.mxu0 0
    %9059 = vmatprep.subr.bf16.mxu0 0
    %9060 = vmatpush2.bf16.msra.mxu0 0
    %9061 = vmatprep.subr.bf16.mxu0 0
    %9062 = vmatpush2.bf16.msra.mxu0 0
    %9063 = vmatprep.subr.bf16.mxu0 0
    %9064 = vmatpush2.bf16.msra.mxu0 0
    %9065 = vmatprep.subr.bf16.mxu0 0
    %9066 = vmatpush2.bf16.msra.mxu0 0
    %9067 = vmatprep.subr.bf16.mxu0 0
    %9068 = vmatpush2.bf16.msra.mxu0 0
    %9069 = vmatprep.subr.bf16.mxu0 0
    %9070 = vmatpush2.bf16.msra.mxu0 0
    %9071 = vmatprep.subr.bf16.mxu0 0
    %9072 = vmatpush2.bf16.msra.mxu0 0
    %9073 = vmatprep.mubr.bf16.mxu0 0
    %9074 = vmatmul.mubr.bf16.gmra.mxu0 %v9039
    %v9075 = vpop.f32.mrf.mxu0
    %v9076 = vadd.f32 0.0, %v9075
    %v9077 = vpop.f32.mrf.mxu0
    %v9078 = vpop.f32.mrf.mxu0
    %v9079 = vadd.f32 0.0, %v9078
    %v9080 = vpop.f32.mrf.mxu0
    %9081 = vdwg.mxu0
    %9082 = vrot.lane.b32.xlu0 %v5860, 64
    %v9083 = vpop.permute.xlu0 %9082
    %v9086 = vsel %vm2224, %v8176, 0
    %9088 = vmatprep.subr.bf16.mxu0 0
    %9089 = vmatpush1.bf16.msra.mxu0 0
    %9090 = vmatprep.subr.bf16.mxu0 0
    %9091 = vmatpush1.bf16.msra.mxu0 0
    %9092 = vmatprep.subr.bf16.mxu0 0
    %9093 = vmatpush1.bf16.msra.mxu0 0
    %9094 = vmatprep.subr.bf16.mxu0 0
    %9095 = vmatpush1.bf16.msra.mxu0 0
    %9096 = vmatprep.subr.bf16.mxu0 0
    %9097 = vmatpush1.bf16.msra.mxu0 0
    %9098 = vmatprep.subr.bf16.mxu0 0
    %9099 = vmatpush1.bf16.msra.mxu0 0
    %9100 = vmatprep.subr.bf16.mxu0 0
    %9101 = vmatpush1.bf16.msra.mxu0 0
    %9102 = vmatprep.subr.bf16.mxu0 0
    %9103 = vmatpush1.bf16.msra.mxu0 %v9083
    %9104 = vmatprep.subr.bf16.mxu0 0
    %9105 = vmatpush2.bf16.msra.mxu0 0
    %9106 = vmatprep.subr.bf16.mxu0 0
    %9107 = vmatpush2.bf16.msra.mxu0 0
    %9108 = vmatprep.subr.bf16.mxu0 0
    %9109 = vmatpush2.bf16.msra.mxu0 0
    %9110 = vmatprep.subr.bf16.mxu0 0
    %9111 = vmatpush2.bf16.msra.mxu0 0
    %9112 = vmatprep.subr.bf16.mxu0 0
    %9113 = vmatpush2.bf16.msra.mxu0 0
    %9114 = vmatprep.subr.bf16.mxu0 0
    %9115 = vmatpush2.bf16.msra.mxu0 0
    %9116 = vmatprep.subr.bf16.mxu0 0
    %9117 = vmatpush2.bf16.msra.mxu0 0
    %9118 = vmatprep.subr.bf16.mxu0 0
    %9119 = vmatpush2.bf16.msra.mxu0 0
    %9120 = vmatprep.mubr.bf16.mxu0 0
    %9121 = vmatmul.mubr.bf16.gmra.mxu0 %v9086
    %v9122 = vpop.f32.mrf.mxu0
    %v9123 = vadd.f32 0.0, %v9122
    %v9124 = vpop.f32.mrf.mxu0
    %v9125 = vpop.f32.mrf.mxu0
    %v9126 = vadd.f32 0.0, %v9125
    %v9127 = vpop.f32.mrf.mxu0
    %9128 = vdwg.mxu0
    %9129 = vrot.lane.b32.xlu0 %v5862, 64
    %v9130 = vpop.permute.xlu0 %9129
    %v9133 = vsel %vm2224, %v8177, 0
    %9135 = vmatprep.subr.bf16.mxu0 0
    %9136 = vmatpush1.bf16.msra.mxu0 0
    %9137 = vmatprep.subr.bf16.mxu0 0
    %9138 = vmatpush1.bf16.msra.mxu0 0
    %9139 = vmatprep.subr.bf16.mxu0 0
    %9140 = vmatpush1.bf16.msra.mxu0 0
    %9141 = vmatprep.subr.bf16.mxu0 0
    %9142 = vmatpush1.bf16.msra.mxu0 0
    %9143 = vmatprep.subr.bf16.mxu0 0
    %9144 = vmatpush1.bf16.msra.mxu0 0
    %9145 = vmatprep.subr.bf16.mxu0 0
    %9146 = vmatpush1.bf16.msra.mxu0 0
    %9147 = vmatprep.subr.bf16.mxu0 0
    %9148 = vmatpush1.bf16.msra.mxu0 0
    %9149 = vmatprep.subr.bf16.mxu0 0
    %9150 = vmatpush1.bf16.msra.mxu0 %v9130
    %9151 = vmatprep.subr.bf16.mxu0 0
    %9152 = vmatpush2.bf16.msra.mxu0 0
    %9153 = vmatprep.subr.bf16.mxu0 0
    %9154 = vmatpush2.bf16.msra.mxu0 0
    %9155 = vmatprep.subr.bf16.mxu0 0
    %9156 = vmatpush2.bf16.msra.mxu0 0
    %9157 = vmatprep.subr.bf16.mxu0 0
    %9158 = vmatpush2.bf16.msra.mxu0 0
    %9159 = vmatprep.subr.bf16.mxu0 0
    %9160 = vmatpush2.bf16.msra.mxu0 0
    %9161 = vmatprep.subr.bf16.mxu0 0
    %9162 = vmatpush2.bf16.msra.mxu0 0
    %9163 = vmatprep.subr.bf16.mxu0 0
    %9164 = vmatpush2.bf16.msra.mxu0 0
    %9165 = vmatprep.subr.bf16.mxu0 0
    %9166 = vmatpush2.bf16.msra.mxu0 0
    %9167 = vmatprep.mubr.bf16.mxu0 0
    %9168 = vmatmul.mubr.bf16.gmra.mxu0 %v9133
    %v9169 = vpop.f32.mrf.mxu0
    %v9170 = vadd.f32 0.0, %v9169
    %v9171 = vpop.f32.mrf.mxu0
    %v9172 = vpop.f32.mrf.mxu0
    %v9173 = vadd.f32 0.0, %v9172
    %v9174 = vpop.f32.mrf.mxu0
    %9175 = vdwg.mxu0
    %9176 = vrot.lane.b32.xlu0 %v5864, 64
    %v9177 = vpop.permute.xlu0 %9176
    %v9180 = vsel %vm2224, %v8178, 0
    %9182 = vmatprep.subr.bf16.mxu0 0
    %9183 = vmatpush1.bf16.msra.mxu0 0
    %9184 = vmatprep.subr.bf16.mxu0 0
    %9185 = vmatpush1.bf16.msra.mxu0 0
    %9186 = vmatprep.subr.bf16.mxu0 0
    %9187 = vmatpush1.bf16.msra.mxu0 0
    %9188 = vmatprep.subr.bf16.mxu0 0
    %9189 = vmatpush1.bf16.msra.mxu0 0
    %9190 = vmatprep.subr.bf16.mxu0 0
    %9191 = vmatpush1.bf16.msra.mxu0 0
    %9192 = vmatprep.subr.bf16.mxu0 0
    %9193 = vmatpush1.bf16.msra.mxu0 0
    %9194 = vmatprep.subr.bf16.mxu0 0
    %9195 = vmatpush1.bf16.msra.mxu0 0
    %9196 = vmatprep.subr.bf16.mxu0 0
    %9197 = vmatpush1.bf16.msra.mxu0 %v9177
    %9198 = vmatprep.subr.bf16.mxu0 0
    %9199 = vmatpush2.bf16.msra.mxu0 0
    %9200 = vmatprep.subr.bf16.mxu0 0
    %9201 = vmatpush2.bf16.msra.mxu0 0
    %9202 = vmatprep.subr.bf16.mxu0 0
    %9203 = vmatpush2.bf16.msra.mxu0 0
    %9204 = vmatprep.subr.bf16.mxu0 0
    %9205 = vmatpush2.bf16.msra.mxu0 0
    %9206 = vmatprep.subr.bf16.mxu0 0
    %9207 = vmatpush2.bf16.msra.mxu0 0
    %9208 = vmatprep.subr.bf16.mxu0 0
    %9209 = vmatpush2.bf16.msra.mxu0 0
    %9210 = vmatprep.subr.bf16.mxu0 0
    %9211 = vmatpush2.bf16.msra.mxu0 0
    %9212 = vmatprep.subr.bf16.mxu0 0
    %9213 = vmatpush2.bf16.msra.mxu0 0
    %9214 = vmatprep.mubr.bf16.mxu0 0
    %9215 = vmatmul.mubr.bf16.gmra.mxu0 %v9180
    %v9216 = vpop.f32.mrf.mxu0
    %v9217 = vadd.f32 0.0, %v9216
    %v9218 = vpop.f32.mrf.mxu0
    %v9219 = vpop.f32.mrf.mxu0
    %v9220 = vadd.f32 0.0, %v9219
    %v9221 = vpop.f32.mrf.mxu0
    %9222 = vdwg.mxu0
    %9223 = vrot.lane.b32.xlu0 %v5866, 64
    %v9224 = vpop.permute.xlu0 %9223
    %v9227 = vsel %vm2224, %v8179, 0
    %9229 = vmatprep.subr.bf16.mxu0 0
    %9230 = vmatpush1.bf16.msra.mxu0 0
    %9231 = vmatprep.subr.bf16.mxu0 0
    %9232 = vmatpush1.bf16.msra.mxu0 0
    %9233 = vmatprep.subr.bf16.mxu0 0
    %9234 = vmatpush1.bf16.msra.mxu0 0
    %9235 = vmatprep.subr.bf16.mxu0 0
    %9236 = vmatpush1.bf16.msra.mxu0 0
    %9237 = vmatprep.subr.bf16.mxu0 0
    %9238 = vmatpush1.bf16.msra.mxu0 0
    %9239 = vmatprep.subr.bf16.mxu0 0
    %9240 = vmatpush1.bf16.msra.mxu0 0
    %9241 = vmatprep.subr.bf16.mxu0 0
    %9242 = vmatpush1.bf16.msra.mxu0 0
    %9243 = vmatprep.subr.bf16.mxu0 0
    %9244 = vmatpush1.bf16.msra.mxu0 %v9224
    %9245 = vmatprep.subr.bf16.mxu0 0
    %9246 = vmatpush2.bf16.msra.mxu0 0
    %9247 = vmatprep.subr.bf16.mxu0 0
    %9248 = vmatpush2.bf16.msra.mxu0 0
    %9249 = vmatprep.subr.bf16.mxu0 0
    %9250 = vmatpush2.bf16.msra.mxu0 0
    %9251 = vmatprep.subr.bf16.mxu0 0
    %9252 = vmatpush2.bf16.msra.mxu0 0
    %9253 = vmatprep.subr.bf16.mxu0 0
    %9254 = vmatpush2.bf16.msra.mxu0 0
    %9255 = vmatprep.subr.bf16.mxu0 0
    %9256 = vmatpush2.bf16.msra.mxu0 0
    %9257 = vmatprep.subr.bf16.mxu0 0
    %9258 = vmatpush2.bf16.msra.mxu0 0
    %9259 = vmatprep.subr.bf16.mxu0 0
    %9260 = vmatpush2.bf16.msra.mxu0 0
    %9261 = vmatprep.mubr.bf16.mxu0 0
    %9262 = vmatmul.mubr.bf16.gmra.mxu0 %v9227
    %v9263 = vpop.f32.mrf.mxu0
    %v9264 = vadd.f32 0.0, %v9263
    %v9265 = vpop.f32.mrf.mxu0
    %v9266 = vpop.f32.mrf.mxu0
    %v9267 = vadd.f32 0.0, %v9266
    %v9268 = vpop.f32.mrf.mxu0
    %9269 = vdwg.mxu0
    %9270 = vrot.lane.b32.xlu0 %v5868, 64
    %v9271 = vpop.permute.xlu0 %9270
    %v9274 = vsel %vm2224, %v8180, 0
    %9276 = vmatprep.subr.bf16.mxu0 0
    %9277 = vmatpush1.bf16.msra.mxu0 0
    %9278 = vmatprep.subr.bf16.mxu0 0
    %9279 = vmatpush1.bf16.msra.mxu0 0
    %9280 = vmatprep.subr.bf16.mxu0 0
    %9281 = vmatpush1.bf16.msra.mxu0 0
    %9282 = vmatprep.subr.bf16.mxu0 0
    %9283 = vmatpush1.bf16.msra.mxu0 0
    %9284 = vmatprep.subr.bf16.mxu0 0
    %9285 = vmatpush1.bf16.msra.mxu0 0
    %9286 = vmatprep.subr.bf16.mxu0 0
    %9287 = vmatpush1.bf16.msra.mxu0 0
    %9288 = vmatprep.subr.bf16.mxu0 0
    %9289 = vmatpush1.bf16.msra.mxu0 0
    %9290 = vmatprep.subr.bf16.mxu0 0
    %9291 = vmatpush1.bf16.msra.mxu0 %v9271
    %9292 = vmatprep.subr.bf16.mxu0 0
    %9293 = vmatpush2.bf16.msra.mxu0 0
    %9294 = vmatprep.subr.bf16.mxu0 0
    %9295 = vmatpush2.bf16.msra.mxu0 0
    %9296 = vmatprep.subr.bf16.mxu0 0
    %9297 = vmatpush2.bf16.msra.mxu0 0
    %9298 = vmatprep.subr.bf16.mxu0 0
    %9299 = vmatpush2.bf16.msra.mxu0 0
    %9300 = vmatprep.subr.bf16.mxu0 0
    %9301 = vmatpush2.bf16.msra.mxu0 0
    %9302 = vmatprep.subr.bf16.mxu0 0
    %9303 = vmatpush2.bf16.msra.mxu0 0
    %9304 = vmatprep.subr.bf16.mxu0 0
    %9305 = vmatpush2.bf16.msra.mxu0 0
    %9306 = vmatprep.subr.bf16.mxu0 0
    %9307 = vmatpush2.bf16.msra.mxu0 0
    %9308 = vmatprep.mubr.bf16.mxu0 0
    %9309 = vmatmul.mubr.bf16.gmra.mxu0 %v9274
    %v9310 = vpop.f32.mrf.mxu0
    %v9311 = vadd.f32 0.0, %v9310
    %v9312 = vpop.f32.mrf.mxu0
    %v9313 = vpop.f32.mrf.mxu0
    %v9314 = vadd.f32 0.0, %v9313
    %v9315 = vpop.f32.mrf.mxu0
    %9316 = vdwg.mxu0
    %9317 = vrot.lane.b32.xlu0 %v5870, 64
    %v9318 = vpop.permute.xlu0 %9317
    %v9321 = vsel %vm2224, %v8181, 0
    %9323 = vmatprep.subr.bf16.mxu0 0
    %9324 = vmatpush1.bf16.msra.mxu0 0
    %9325 = vmatprep.subr.bf16.mxu0 0
    %9326 = vmatpush1.bf16.msra.mxu0 0
    %9327 = vmatprep.subr.bf16.mxu0 0
    %9328 = vmatpush1.bf16.msra.mxu0 0
    %9329 = vmatprep.subr.bf16.mxu0 0
    %9330 = vmatpush1.bf16.msra.mxu0 0
    %9331 = vmatprep.subr.bf16.mxu0 0
    %9332 = vmatpush1.bf16.msra.mxu0 0
    %9333 = vmatprep.subr.bf16.mxu0 0
    %9334 = vmatpush1.bf16.msra.mxu0 0
    %9335 = vmatprep.subr.bf16.mxu0 0
    %9336 = vmatpush1.bf16.msra.mxu0 0
    %9337 = vmatprep.subr.bf16.mxu0 0
    %9338 = vmatpush1.bf16.msra.mxu0 %v9318
    %9339 = vmatprep.subr.bf16.mxu0 0
    %9340 = vmatpush2.bf16.msra.mxu0 0
    %9341 = vmatprep.subr.bf16.mxu0 0
    %9342 = vmatpush2.bf16.msra.mxu0 0
    %9343 = vmatprep.subr.bf16.mxu0 0
    %9344 = vmatpush2.bf16.msra.mxu0 0
    %9345 = vmatprep.subr.bf16.mxu0 0
    %9346 = vmatpush2.bf16.msra.mxu0 0
    %9347 = vmatprep.subr.bf16.mxu0 0
    %9348 = vmatpush2.bf16.msra.mxu0 0
    %9349 = vmatprep.subr.bf16.mxu0 0
    %9350 = vmatpush2.bf16.msra.mxu0 0
    %9351 = vmatprep.subr.bf16.mxu0 0
    %9352 = vmatpush2.bf16.msra.mxu0 0
    %9353 = vmatprep.subr.bf16.mxu0 0
    %9354 = vmatpush2.bf16.msra.mxu0 0
    %9355 = vmatprep.mubr.bf16.mxu0 0
    %9356 = vmatmul.mubr.bf16.gmra.mxu0 %v9321
    %v9357 = vpop.f32.mrf.mxu0
    %v9358 = vadd.f32 0.0, %v9357
    %v9359 = vpop.f32.mrf.mxu0
    %v9360 = vpop.f32.mrf.mxu0
    %v9361 = vadd.f32 0.0, %v9360
    %v9362 = vpop.f32.mrf.mxu0
    %9363 = vdwg.mxu0
    %9364 = vrot.lane.b32.xlu0 %v5872, 64
    %v9365 = vpop.permute.xlu0 %9364
    %v9368 = vsel %vm2224, %v8182, 0
    %9370 = vmatprep.subr.bf16.mxu0 0
    %9371 = vmatpush1.bf16.msra.mxu0 0
    %9372 = vmatprep.subr.bf16.mxu0 0
    %9373 = vmatpush1.bf16.msra.mxu0 0
    %9374 = vmatprep.subr.bf16.mxu0 0
    %9375 = vmatpush1.bf16.msra.mxu0 0
    %9376 = vmatprep.subr.bf16.mxu0 0
    %9377 = vmatpush1.bf16.msra.mxu0 0
    %9378 = vmatprep.subr.bf16.mxu0 0
    %9379 = vmatpush1.bf16.msra.mxu0 0
    %9380 = vmatprep.subr.bf16.mxu0 0
    %9381 = vmatpush1.bf16.msra.mxu0 0
    %9382 = vmatprep.subr.bf16.mxu0 0
    %9383 = vmatpush1.bf16.msra.mxu0 0
    %9384 = vmatprep.subr.bf16.mxu0 0
    %9385 = vmatpush1.bf16.msra.mxu0 %v9365
    %9386 = vmatprep.subr.bf16.mxu0 0
    %9387 = vmatpush2.bf16.msra.mxu0 0
    %9388 = vmatprep.subr.bf16.mxu0 0
    %9389 = vmatpush2.bf16.msra.mxu0 0
    %9390 = vmatprep.subr.bf16.mxu0 0
    %9391 = vmatpush2.bf16.msra.mxu0 0
    %9392 = vmatprep.subr.bf16.mxu0 0
    %9393 = vmatpush2.bf16.msra.mxu0 0
    %9394 = vmatprep.subr.bf16.mxu0 0
    %9395 = vmatpush2.bf16.msra.mxu0 0
    %9396 = vmatprep.subr.bf16.mxu0 0
    %9397 = vmatpush2.bf16.msra.mxu0 0
    %9398 = vmatprep.subr.bf16.mxu0 0
    %9399 = vmatpush2.bf16.msra.mxu0 0
    %9400 = vmatprep.subr.bf16.mxu0 0
    %9401 = vmatpush2.bf16.msra.mxu0 0
    %9402 = vmatprep.mubr.bf16.mxu0 0
    %9403 = vmatmul.mubr.bf16.gmra.mxu0 %v9368
    %v9404 = vpop.f32.mrf.mxu0
    %v9405 = vadd.f32 0.0, %v9404
    %v9406 = vpop.f32.mrf.mxu0
    %v9407 = vpop.f32.mrf.mxu0
    %v9408 = vadd.f32 0.0, %v9407
    %v9409 = vpop.f32.mrf.mxu0
    %9410 = vdwg.mxu0
    %9411 = vrot.lane.b32.xlu0 %v5874, 64
    %v9412 = vpop.permute.xlu0 %9411
    %v9415 = vsel %vm2224, %v8183, 0
    %9417 = vmatprep.subr.bf16.mxu0 0
    %9418 = vmatpush1.bf16.msra.mxu0 0
    %9419 = vmatprep.subr.bf16.mxu0 0
    %9420 = vmatpush1.bf16.msra.mxu0 0
    %9421 = vmatprep.subr.bf16.mxu0 0
    %9422 = vmatpush1.bf16.msra.mxu0 0
    %9423 = vmatprep.subr.bf16.mxu0 0
    %9424 = vmatpush1.bf16.msra.mxu0 0
    %9425 = vmatprep.subr.bf16.mxu0 0
    %9426 = vmatpush1.bf16.msra.mxu0 0
    %9427 = vmatprep.subr.bf16.mxu0 0
    %9428 = vmatpush1.bf16.msra.mxu0 0
    %9429 = vmatprep.subr.bf16.mxu0 0
    %9430 = vmatpush1.bf16.msra.mxu0 0
    %9431 = vmatprep.subr.bf16.mxu0 0
    %9432 = vmatpush1.bf16.msra.mxu0 %v9412
    %9433 = vmatprep.subr.bf16.mxu0 0
    %9434 = vmatpush2.bf16.msra.mxu0 0
    %9435 = vmatprep.subr.bf16.mxu0 0
    %9436 = vmatpush2.bf16.msra.mxu0 0
    %9437 = vmatprep.subr.bf16.mxu0 0
    %9438 = vmatpush2.bf16.msra.mxu0 0
    %9439 = vmatprep.subr.bf16.mxu0 0
    %9440 = vmatpush2.bf16.msra.mxu0 0
    %9441 = vmatprep.subr.bf16.mxu0 0
    %9442 = vmatpush2.bf16.msra.mxu0 0
    %9443 = vmatprep.subr.bf16.mxu0 0
    %9444 = vmatpush2.bf16.msra.mxu0 0
    %9445 = vmatprep.subr.bf16.mxu0 0
    %9446 = vmatpush2.bf16.msra.mxu0 0
    %9447 = vmatprep.subr.bf16.mxu0 0
    %9448 = vmatpush2.bf16.msra.mxu0 0
    %9449 = vmatprep.mubr.bf16.mxu0 0
    %9450 = vmatmul.mubr.bf16.gmra.mxu0 %v9415
    %v9451 = vpop.f32.mrf.mxu0
    %v9452 = vadd.f32 0.0, %v9451
    %v9453 = vpop.f32.mrf.mxu0
    %v9454 = vpop.f32.mrf.mxu0
    %v9455 = vadd.f32 0.0, %v9454
    %v9456 = vpop.f32.mrf.mxu0
    %9457 = vdwg.mxu0
    %9458 = vrot.lane.b32.xlu0 %v5876, 64
    %v9459 = vpop.permute.xlu0 %9458
    %v9462 = vsel %vm2224, %v8184, 0
    %9464 = vmatprep.subr.bf16.mxu0 0
    %9465 = vmatpush1.bf16.msra.mxu0 0
    %9466 = vmatprep.subr.bf16.mxu0 0
    %9467 = vmatpush1.bf16.msra.mxu0 0
    %9468 = vmatprep.subr.bf16.mxu0 0
    %9469 = vmatpush1.bf16.msra.mxu0 0
    %9470 = vmatprep.subr.bf16.mxu0 0
    %9471 = vmatpush1.bf16.msra.mxu0 0
    %9472 = vmatprep.subr.bf16.mxu0 0
    %9473 = vmatpush1.bf16.msra.mxu0 0
    %9474 = vmatprep.subr.bf16.mxu0 0
    %9475 = vmatpush1.bf16.msra.mxu0 0
    %9476 = vmatprep.subr.bf16.mxu0 0
    %9477 = vmatpush1.bf16.msra.mxu0 0
    %9478 = vmatprep.subr.bf16.mxu0 0
    %9479 = vmatpush1.bf16.msra.mxu0 %v9459
    %9480 = vmatprep.subr.bf16.mxu0 0
    %9481 = vmatpush2.bf16.msra.mxu0 0
    %9482 = vmatprep.subr.bf16.mxu0 0
    %9483 = vmatpush2.bf16.msra.mxu0 0
    %9484 = vmatprep.subr.bf16.mxu0 0
    %9485 = vmatpush2.bf16.msra.mxu0 0
    %9486 = vmatprep.subr.bf16.mxu0 0
    %9487 = vmatpush2.bf16.msra.mxu0 0
    %9488 = vmatprep.subr.bf16.mxu0 0
    %9489 = vmatpush2.bf16.msra.mxu0 0
    %9490 = vmatprep.subr.bf16.mxu0 0
    %9491 = vmatpush2.bf16.msra.mxu0 0
    %9492 = vmatprep.subr.bf16.mxu0 0
    %9493 = vmatpush2.bf16.msra.mxu0 0
    %9494 = vmatprep.subr.bf16.mxu0 0
    %9495 = vmatpush2.bf16.msra.mxu0 0
    %9496 = vmatprep.mubr.bf16.mxu0 0
    %9497 = vmatmul.mubr.bf16.gmra.mxu0 %v9462
    %v9498 = vpop.f32.mrf.mxu0
    %v9499 = vadd.f32 0.0, %v9498
    %v9500 = vpop.f32.mrf.mxu0
    %v9501 = vpop.f32.mrf.mxu0
    %v9502 = vadd.f32 0.0, %v9501
    %v9503 = vpop.f32.mrf.mxu0
    %9504 = vdwg.mxu0
    %9505 = vrot.lane.b32.xlu0 %v5878, 64
    %v9506 = vpop.permute.xlu0 %9505
    %v9509 = vsel %vm2224, %v8185, 0
    %9511 = vmatprep.subr.bf16.mxu0 0
    %9512 = vmatpush1.bf16.msra.mxu0 0
    %9513 = vmatprep.subr.bf16.mxu0 0
    %9514 = vmatpush1.bf16.msra.mxu0 0
    %9515 = vmatprep.subr.bf16.mxu0 0
    %9516 = vmatpush1.bf16.msra.mxu0 0
    %9517 = vmatprep.subr.bf16.mxu0 0
    %9518 = vmatpush1.bf16.msra.mxu0 0
    %9519 = vmatprep.subr.bf16.mxu0 0
    %9520 = vmatpush1.bf16.msra.mxu0 0
    %9521 = vmatprep.subr.bf16.mxu0 0
    %9522 = vmatpush1.bf16.msra.mxu0 0
    %9523 = vmatprep.subr.bf16.mxu0 0
    %9524 = vmatpush1.bf16.msra.mxu0 0
    %9525 = vmatprep.subr.bf16.mxu0 0
    %9526 = vmatpush1.bf16.msra.mxu0 %v9506
    %9527 = vmatprep.subr.bf16.mxu0 0
    %9528 = vmatpush2.bf16.msra.mxu0 0
    %9529 = vmatprep.subr.bf16.mxu0 0
    %9530 = vmatpush2.bf16.msra.mxu0 0
    %9531 = vmatprep.subr.bf16.mxu0 0
    %9532 = vmatpush2.bf16.msra.mxu0 0
    %9533 = vmatprep.subr.bf16.mxu0 0
    %9534 = vmatpush2.bf16.msra.mxu0 0
    %9535 = vmatprep.subr.bf16.mxu0 0
    %9536 = vmatpush2.bf16.msra.mxu0 0
    %9537 = vmatprep.subr.bf16.mxu0 0
    %9538 = vmatpush2.bf16.msra.mxu0 0
    %9539 = vmatprep.subr.bf16.mxu0 0
    %9540 = vmatpush2.bf16.msra.mxu0 0
    %9541 = vmatprep.subr.bf16.mxu0 0
    %9542 = vmatpush2.bf16.msra.mxu0 0
    %9543 = vmatprep.mubr.bf16.mxu0 0
    %9544 = vmatmul.mubr.bf16.gmra.mxu0 %v9509
    %v9545 = vpop.f32.mrf.mxu0
    %v9546 = vadd.f32 0.0, %v9545
    %v9547 = vpop.f32.mrf.mxu0
    %v9548 = vpop.f32.mrf.mxu0
    %v9549 = vadd.f32 0.0, %v9548
    %v9550 = vpop.f32.mrf.mxu0
    %9551 = vdwg.mxu0
    %9552 = vrot.lane.b32.xlu0 %v5880, 64
    %v9553 = vpop.permute.xlu0 %9552
    %v9556 = vsel %vm2224, %v8186, 0
    %9558 = vmatprep.subr.bf16.mxu0 0
    %9559 = vmatpush1.bf16.msra.mxu0 0
    %9560 = vmatprep.subr.bf16.mxu0 0
    %9561 = vmatpush1.bf16.msra.mxu0 0
    %9562 = vmatprep.subr.bf16.mxu0 0
    %9563 = vmatpush1.bf16.msra.mxu0 0
    %9564 = vmatprep.subr.bf16.mxu0 0
    %9565 = vmatpush1.bf16.msra.mxu0 0
    %9566 = vmatprep.subr.bf16.mxu0 0
    %9567 = vmatpush1.bf16.msra.mxu0 0
    %9568 = vmatprep.subr.bf16.mxu0 0
    %9569 = vmatpush1.bf16.msra.mxu0 0
    %9570 = vmatprep.subr.bf16.mxu0 0
    %9571 = vmatpush1.bf16.msra.mxu0 0
    %9572 = vmatprep.subr.bf16.mxu0 0
    %9573 = vmatpush1.bf16.msra.mxu0 %v9553
    %9574 = vmatprep.subr.bf16.mxu0 0
    %9575 = vmatpush2.bf16.msra.mxu0 0
    %9576 = vmatprep.subr.bf16.mxu0 0
    %9577 = vmatpush2.bf16.msra.mxu0 0
    %9578 = vmatprep.subr.bf16.mxu0 0
    %9579 = vmatpush2.bf16.msra.mxu0 0
    %9580 = vmatprep.subr.bf16.mxu0 0
    %9581 = vmatpush2.bf16.msra.mxu0 0
    %9582 = vmatprep.subr.bf16.mxu0 0
    %9583 = vmatpush2.bf16.msra.mxu0 0
    %9584 = vmatprep.subr.bf16.mxu0 0
    %9585 = vmatpush2.bf16.msra.mxu0 0
    %9586 = vmatprep.subr.bf16.mxu0 0
    %9587 = vmatpush2.bf16.msra.mxu0 0
    %9588 = vmatprep.subr.bf16.mxu0 0
    %9589 = vmatpush2.bf16.msra.mxu0 0
    %9590 = vmatprep.mubr.bf16.mxu0 0
    %9591 = vmatmul.mubr.bf16.gmra.mxu0 %v9556
    %v9592 = vpop.f32.mrf.mxu0
    %v9593 = vadd.f32 0.0, %v9592
    %v9594 = vpop.f32.mrf.mxu0
    %v9595 = vpop.f32.mrf.mxu0
    %v9596 = vadd.f32 0.0, %v9595
    %v9597 = vpop.f32.mrf.mxu0
    %9598 = vdwg.mxu0
    %9599 = vrot.lane.b32.xlu0 %v5882, 64
    %v9600 = vpop.permute.xlu0 %9599
    %v9603 = vsel %vm2224, %v8187, 0
    %9605 = vmatprep.subr.bf16.mxu0 0
    %9606 = vmatpush1.bf16.msra.mxu0 0
    %9607 = vmatprep.subr.bf16.mxu0 0
    %9608 = vmatpush1.bf16.msra.mxu0 0
    %9609 = vmatprep.subr.bf16.mxu0 0
    %9610 = vmatpush1.bf16.msra.mxu0 0
    %9611 = vmatprep.subr.bf16.mxu0 0
    %9612 = vmatpush1.bf16.msra.mxu0 0
    %9613 = vmatprep.subr.bf16.mxu0 0
    %9614 = vmatpush1.bf16.msra.mxu0 0
    %9615 = vmatprep.subr.bf16.mxu0 0
    %9616 = vmatpush1.bf16.msra.mxu0 0
    %9617 = vmatprep.subr.bf16.mxu0 0
    %9618 = vmatpush1.bf16.msra.mxu0 0
    %9619 = vmatprep.subr.bf16.mxu0 0
    %9620 = vmatpush1.bf16.msra.mxu0 %v9600
    %9621 = vmatprep.subr.bf16.mxu0 0
    %9622 = vmatpush2.bf16.msra.mxu0 0
    %9623 = vmatprep.subr.bf16.mxu0 0
    %9624 = vmatpush2.bf16.msra.mxu0 0
    %9625 = vmatprep.subr.bf16.mxu0 0
    %9626 = vmatpush2.bf16.msra.mxu0 0
    %9627 = vmatprep.subr.bf16.mxu0 0
    %9628 = vmatpush2.bf16.msra.mxu0 0
    %9629 = vmatprep.subr.bf16.mxu0 0
    %9630 = vmatpush2.bf16.msra.mxu0 0
    %9631 = vmatprep.subr.bf16.mxu0 0
    %9632 = vmatpush2.bf16.msra.mxu0 0
    %9633 = vmatprep.subr.bf16.mxu0 0
    %9634 = vmatpush2.bf16.msra.mxu0 0
    %9635 = vmatprep.subr.bf16.mxu0 0
    %9636 = vmatpush2.bf16.msra.mxu0 0
    %9637 = vmatprep.mubr.bf16.mxu0 0
    %9638 = vmatmul.mubr.bf16.gmra.mxu0 %v9603
    %v9639 = vpop.f32.mrf.mxu0
    %v9640 = vadd.f32 0.0, %v9639
    %v9641 = vpop.f32.mrf.mxu0
    %v9642 = vpop.f32.mrf.mxu0
    %v9643 = vadd.f32 0.0, %v9642
    %v9644 = vpop.f32.mrf.mxu0
    %9645 = vdwg.mxu0
    %9646 = vrot.lane.b32.xlu0 %v5884, 64
    %v9647 = vpop.permute.xlu0 %9646
    %v9650 = vsel %vm2224, %v8188, 0
    %9652 = vmatprep.subr.bf16.mxu0 0
    %9653 = vmatpush1.bf16.msra.mxu0 0
    %9654 = vmatprep.subr.bf16.mxu0 0
    %9655 = vmatpush1.bf16.msra.mxu0 0
    %9656 = vmatprep.subr.bf16.mxu0 0
    %9657 = vmatpush1.bf16.msra.mxu0 0
    %9658 = vmatprep.subr.bf16.mxu0 0
    %9659 = vmatpush1.bf16.msra.mxu0 0
    %9660 = vmatprep.subr.bf16.mxu0 0
    %9661 = vmatpush1.bf16.msra.mxu0 0
    %9662 = vmatprep.subr.bf16.mxu0 0
    %9663 = vmatpush1.bf16.msra.mxu0 0
    %9664 = vmatprep.subr.bf16.mxu0 0
    %9665 = vmatpush1.bf16.msra.mxu0 0
    %9666 = vmatprep.subr.bf16.mxu0 0
    %9667 = vmatpush1.bf16.msra.mxu0 %v9647
    %9668 = vmatprep.subr.bf16.mxu0 0
    %9669 = vmatpush2.bf16.msra.mxu0 0
    %9670 = vmatprep.subr.bf16.mxu0 0
    %9671 = vmatpush2.bf16.msra.mxu0 0
    %9672 = vmatprep.subr.bf16.mxu0 0
    %9673 = vmatpush2.bf16.msra.mxu0 0
    %9674 = vmatprep.subr.bf16.mxu0 0
    %9675 = vmatpush2.bf16.msra.mxu0 0
    %9676 = vmatprep.subr.bf16.mxu0 0
    %9677 = vmatpush2.bf16.msra.mxu0 0
    %9678 = vmatprep.subr.bf16.mxu0 0
    %9679 = vmatpush2.bf16.msra.mxu0 0
    %9680 = vmatprep.subr.bf16.mxu0 0
    %9681 = vmatpush2.bf16.msra.mxu0 0
    %9682 = vmatprep.subr.bf16.mxu0 0
    %9683 = vmatpush2.bf16.msra.mxu0 0
    %9684 = vmatprep.mubr.bf16.mxu0 0
    %9685 = vmatmul.mubr.bf16.gmra.mxu0 %v9650
    %v9686 = vpop.f32.mrf.mxu0
    %v9687 = vadd.f32 0.0, %v9686
    %v9688 = vpop.f32.mrf.mxu0
    %v9689 = vpop.f32.mrf.mxu0
    %v9690 = vadd.f32 0.0, %v9689
    %v9691 = vpop.f32.mrf.mxu0
    %9692 = vdwg.mxu0
    %9709 = vrot.lane.b32.xlu0 %v8606, 8
    %v9710 = vpop.permute.xlu0 %9709
    %9711 = vrot.lane.b32.xlu0 %v8609, 8
    %v9712 = vpop.permute.xlu0 %9711
    %9713 = vrot.lane.b32.xlu0 %v8653, 8
    %v9714 = vpop.permute.xlu0 %9713
    %9715 = vrot.lane.b32.xlu0 %v8656, 8
    %v9716 = vpop.permute.xlu0 %9715
    %9717 = vrot.lane.b32.xlu0 %v8700, 8
    %v9718 = vpop.permute.xlu0 %9717
    %9719 = vrot.lane.b32.xlu0 %v8703, 8
    %v9720 = vpop.permute.xlu0 %9719
    %9721 = vrot.lane.b32.xlu0 %v8747, 8
    %v9722 = vpop.permute.xlu0 %9721
    %9723 = vrot.lane.b32.xlu0 %v8750, 8
    %v9724 = vpop.permute.xlu0 %9723
    %9725 = vrot.lane.b32.xlu0 %v8794, 8
    %v9726 = vpop.permute.xlu0 %9725
    %9727 = vrot.lane.b32.xlu0 %v8797, 8
    %v9728 = vpop.permute.xlu0 %9727
    %9729 = vrot.lane.b32.xlu0 %v8841, 8
    %v9730 = vpop.permute.xlu0 %9729
    %9731 = vrot.lane.b32.xlu0 %v8844, 8
    %v9732 = vpop.permute.xlu0 %9731
    %9733 = vrot.lane.b32.xlu0 %v8888, 8
    %v9734 = vpop.permute.xlu0 %9733
    %9735 = vrot.lane.b32.xlu0 %v8891, 8
    %v9736 = vpop.permute.xlu0 %9735
    %9737 = vrot.lane.b32.xlu0 %v8935, 8
    %v9738 = vpop.permute.xlu0 %9737
    %9739 = vrot.lane.b32.xlu0 %v8938, 8
    %v9740 = vpop.permute.xlu0 %9739
    %9773 = vrot.lane.b32.xlu0 %v8982, 16
    %v9774 = vpop.permute.xlu0 %9773
    %9775 = vrot.lane.b32.xlu0 %v8985, 16
    %v9776 = vpop.permute.xlu0 %9775
    %9777 = vrot.lane.b32.xlu0 %v9029, 16
    %v9778 = vpop.permute.xlu0 %9777
    %9779 = vrot.lane.b32.xlu0 %v9032, 16
    %v9780 = vpop.permute.xlu0 %9779
    %9781 = vrot.lane.b32.xlu0 %v9076, 16
    %v9782 = vpop.permute.xlu0 %9781
    %9783 = vrot.lane.b32.xlu0 %v9079, 16
    %v9784 = vpop.permute.xlu0 %9783
    %9785 = vrot.lane.b32.xlu0 %v9123, 16
    %v9786 = vpop.permute.xlu0 %9785
    %9787 = vrot.lane.b32.xlu0 %v9126, 16
    %v9788 = vpop.permute.xlu0 %9787
    %9789 = vrot.lane.b32.xlu0 %v9170, 16
    %v9790 = vpop.permute.xlu0 %9789
    %9791 = vrot.lane.b32.xlu0 %v9173, 16
    %v9792 = vpop.permute.xlu0 %9791
    %9793 = vrot.lane.b32.xlu0 %v9217, 16
    %v9794 = vpop.permute.xlu0 %9793
    %9795 = vrot.lane.b32.xlu0 %v9220, 16
    %v9796 = vpop.permute.xlu0 %9795
    %9797 = vrot.lane.b32.xlu0 %v9264, 16
    %v9798 = vpop.permute.xlu0 %9797
    %9799 = vrot.lane.b32.xlu0 %v9267, 16
    %v9800 = vpop.permute.xlu0 %9799
    %9801 = vrot.lane.b32.xlu0 %v9311, 16
    %v9802 = vpop.permute.xlu0 %9801
    %9803 = vrot.lane.b32.xlu0 %v9314, 16
    %v9804 = vpop.permute.xlu0 %9803
    %9837 = vrot.lane.b32.xlu0 %v9358, 24
    %v9838 = vpop.permute.xlu0 %9837
    %9839 = vrot.lane.b32.xlu0 %v9361, 24
    %v9840 = vpop.permute.xlu0 %9839
    %9841 = vrot.lane.b32.xlu0 %v9405, 24
    %v9842 = vpop.permute.xlu0 %9841
    %9843 = vrot.lane.b32.xlu0 %v9408, 24
    %v9844 = vpop.permute.xlu0 %9843
    %9845 = vrot.lane.b32.xlu0 %v9452, 24
    %v9846 = vpop.permute.xlu0 %9845
    %9847 = vrot.lane.b32.xlu0 %v9455, 24
    %v9848 = vpop.permute.xlu0 %9847
    %9849 = vrot.lane.b32.xlu0 %v9499, 24
    %v9850 = vpop.permute.xlu0 %9849
    %9851 = vrot.lane.b32.xlu0 %v9502, 24
    %v9852 = vpop.permute.xlu0 %9851
    %9853 = vrot.lane.b32.xlu0 %v9546, 24
    %v9854 = vpop.permute.xlu0 %9853
    %9855 = vrot.lane.b32.xlu0 %v9549, 24
    %v9856 = vpop.permute.xlu0 %9855
    %9857 = vrot.lane.b32.xlu0 %v9593, 24
    %v9858 = vpop.permute.xlu0 %9857
    %9859 = vrot.lane.b32.xlu0 %v9596, 24
    %v9860 = vpop.permute.xlu0 %9859
    %9861 = vrot.lane.b32.xlu0 %v9640, 24
    %v9862 = vpop.permute.xlu0 %9861
    %9863 = vrot.lane.b32.xlu0 %v9643, 24
    %v9864 = vpop.permute.xlu0 %9863
    %9865 = vrot.lane.b32.xlu0 %v9687, 24
    %v9866 = vpop.permute.xlu0 %9865
    %9867 = vrot.lane.b32.xlu0 %v9690, 24
    %v9868 = vpop.permute.xlu0 %9867
    %v9885 = vsel %vm162, %v8230, %v9710
    %v9886 = vsel %vm162, %v8233, %v9712
    %v9887 = vsel %vm162, %v8277, %v9714
    %v9888 = vsel %vm162, %v8280, %v9716
    %v9889 = vsel %vm162, %v8324, %v9718
    %v9890 = vsel %vm162, %v8327, %v9720
    %v9891 = vsel %vm162, %v8371, %v9722
    %v9892 = vsel %vm162, %v8374, %v9724
    %v9893 = vsel %vm162, %v8418, %v9726
    %v9894 = vsel %vm162, %v8421, %v9728
    %v9895 = vsel %vm162, %v8465, %v9730
    %v9896 = vsel %vm162, %v8468, %v9732
    %v9897 = vsel %vm162, %v8512, %v9734
    %v9898 = vsel %vm162, %v8515, %v9736
    %v9899 = vsel %vm162, %v8559, %v9738
    %v9900 = vsel %vm162, %v8562, %v9740
    %v9901 = vsel %vm2224, %v9885, %v9774
    %v9902 = vsel %vm2224, %v9886, %v9776
    %v9903 = vsel %vm2224, %v9887, %v9778
    %v9904 = vsel %vm2224, %v9888, %v9780
    %v9905 = vsel %vm2224, %v9889, %v9782
    %v9906 = vsel %vm2224, %v9890, %v9784
    %v9907 = vsel %vm2224, %v9891, %v9786
    %v9908 = vsel %vm2224, %v9892, %v9788
    %v9909 = vsel %vm2224, %v9893, %v9790
    %v9910 = vsel %vm2224, %v9894, %v9792
    %v9911 = vsel %vm2224, %v9895, %v9794
    %v9912 = vsel %vm2224, %v9896, %v9796
    %v9913 = vsel %vm2224, %v9897, %v9798
    %v9914 = vsel %vm2224, %v9898, %v9800
    %v9915 = vsel %vm2224, %v9899, %v9802
    %v9916 = vsel %vm2224, %v9900, %v9804
    %v9917 = vsel %vm4689, %v9901, %v9838
    %v9918 = vsel %vm4689, %v9902, %v9840
    %v9919 = vsel %vm4689, %v9903, %v9842
    %v9920 = vsel %vm4689, %v9904, %v9844
    %v9921 = vsel %vm4689, %v9905, %v9846
    %v9922 = vsel %vm4689, %v9906, %v9848
    %v9923 = vsel %vm4689, %v9907, %v9850
    %v9924 = vsel %vm4689, %v9908, %v9852
    %v9925 = vsel %vm4689, %v9909, %v9854
    %v9926 = vsel %vm4689, %v9910, %v9856
    %v9927 = vsel %vm4689, %v9911, %v9858
    %v9928 = vsel %vm4689, %v9912, %v9860
    %v9929 = vsel %vm4689, %v9913, %v9862
    %v9930 = vsel %vm4689, %v9914, %v9864
    %v9931 = vsel %vm4689, %v9915, %v9866
    %v9932 = vsel %vm4689, %v9916, %v9868
    %v9933 = vpack.c.bf16 %v9918, %v9917
    %v9934 = vpack.c.bf16 %v9920, %v9919
    %v9935 = vpack.c.bf16 %v9922, %v9921
    %v9936 = vpack.c.bf16 %v9924, %v9923
    %v9937 = vpack.c.bf16 %v9926, %v9925
    %v9938 = vpack.c.bf16 %v9928, %v9927
    %v9939 = vpack.c.bf16 %v9930, %v9929
    %v9940 = vpack.c.bf16 %v9932, %v9931
    %v9941 = vld [vmem:[#allocation4 + $0x248] sm:$0xff]
    %v9942 = vld [vmem:[#allocation4 + $0x250] sm:$0xff]
    %v9943 = vld [vmem:[#allocation4 + $0x258] sm:$0xff]
    %v9944 = vld [vmem:[#allocation4 + $0x260] sm:$0xff]
    %v9945 = vpack.c.bf16 %v9942, %v9941
    %v9946 = vpack.c.bf16 %v9944, %v9943
    %v9947 = vld [vmem:[#allocation4 + $0x268] sm:$0x1]
    %v9948 = vlaneseq
    %v9949 = vshrl.u32 %v9948, 7
    %v9950 = vsub.s32 0, %v9949
    %v9951 = vrot.slane %v9947, %v9950
    %v9953 = vsel %vm470, %v9933, 0
    %v9956 = vsel %vm470, %v9934, 0
    %v9959 = vsel %vm470, %v9935, 0
    %v9962 = vsel %vm470, %v9936, 0
    %v9965 = vsel %vm470, %v9937, 0
    %v9968 = vsel %vm470, %v9938, 0
    %v9971 = vsel %vm470, %v9939, 0
    %v9974 = vsel %vm470, %v9940, 0
    %9976 = vmatprep.subr.bf16.mxu0 0
    %9977 = vmatpush1.bf16.msra.mxu0 0
    %9978 = vmatprep.subr.bf16.mxu0 0
    %9979 = vmatpush1.bf16.msra.mxu0 0
    %9980 = vmatprep.subr.bf16.mxu0 0
    %9981 = vmatpush1.bf16.msra.mxu0 0
    %9982 = vmatprep.subr.bf16.mxu0 0
    %9983 = vmatpush1.bf16.msra.mxu0 0
    %9984 = vmatprep.subr.bf16.mxu0 0
    %9985 = vmatpush1.bf16.msra.mxu0 0
    %9986 = vmatprep.subr.bf16.mxu0 0
    %9987 = vmatpush1.bf16.msra.mxu0 0
    %9988 = vmatprep.subr.bf16.mxu0 0
    %9989 = vmatpush1.bf16.msra.mxu0 %v9946
    %9990 = vmatprep.subr.bf16.mxu0 0
    %9991 = vmatpush1.bf16.msra.mxu0 %v9945
    %9992 = vmatprep.subr.bf16.mxu0 0
    %9993 = vmatpush2.bf16.msra.mxu0 0
    %9994 = vmatprep.subr.bf16.mxu0 0
    %9995 = vmatpush2.bf16.msra.mxu0 0
    %9996 = vmatprep.subr.bf16.mxu0 0
    %9997 = vmatpush2.bf16.msra.mxu0 0
    %9998 = vmatprep.subr.bf16.mxu0 0
    %9999 = vmatpush2.bf16.msra.mxu0 0
    %10000 = vmatprep.subr.bf16.mxu0 0
    %10001 = vmatpush2.bf16.msra.mxu0 0
    %10002 = vmatprep.subr.bf16.mxu0 0
    %10003 = vmatpush2.bf16.msra.mxu0 0
    %10004 = vmatprep.subr.bf16.mxu0 0
    %10005 = vmatpush2.bf16.msra.mxu0 0
    %10006 = vmatprep.subr.bf16.mxu0 0
    %10007 = vmatpush2.bf16.msra.mxu0 0
    %10008 = vmatprep.mubr.bf16.mxu0 0
    %10009 = vmatmul.mubr.bf16.gmra.mxu0 %v9953
    %v10010 = vpop.f32.mrf.mxu0
    %v10011 = vadd.f32 %v9951, %v10010
    %v10012 = vpop.f32.mrf.mxu0
    %v10013 = vpop.f32.mrf.mxu0
    %v10014 = vadd.f32 %v9951, %v10013
    %v10015 = vpop.f32.mrf.mxu0
    %10016 = vmatprep.mubr.bf16.mxu0 0
    %10017 = vmatmul.mubr.bf16.gmra.mxu0 %v9956
    %v10018 = vpop.f32.mrf.mxu0
    %v10019 = vadd.f32 %v9951, %v10018
    %v10020 = vpop.f32.mrf.mxu0
    %v10021 = vpop.f32.mrf.mxu0
    %v10022 = vadd.f32 %v9951, %v10021
    %v10023 = vpop.f32.mrf.mxu0
    %10024 = vmatprep.mubr.bf16.mxu0 0
    %10025 = vmatmul.mubr.bf16.gmra.mxu0 %v9959
    %v10026 = vpop.f32.mrf.mxu0
    %v10027 = vadd.f32 %v9951, %v10026
    %v10028 = vpop.f32.mrf.mxu0
    %v10029 = vpop.f32.mrf.mxu0
    %v10030 = vadd.f32 %v9951, %v10029
    %v10031 = vpop.f32.mrf.mxu0
    %10032 = vmatprep.mubr.bf16.mxu0 0
    %10033 = vmatmul.mubr.bf16.gmra.mxu0 %v9962
    %v10034 = vpop.f32.mrf.mxu0
    %v10035 = vadd.f32 %v9951, %v10034
    %v10036 = vpop.f32.mrf.mxu0
    %v10037 = vpop.f32.mrf.mxu0
    %v10038 = vadd.f32 %v9951, %v10037
    %v10039 = vpop.f32.mrf.mxu0
    %10040 = vmatprep.mubr.bf16.mxu0 0
    %10041 = vmatmul.mubr.bf16.gmra.mxu0 %v9965
    %v10042 = vpop.f32.mrf.mxu0
    %v10043 = vadd.f32 %v9951, %v10042
    %v10044 = vpop.f32.mrf.mxu0
    %v10045 = vpop.f32.mrf.mxu0
    %v10046 = vadd.f32 %v9951, %v10045
    %v10047 = vpop.f32.mrf.mxu0
    %10048 = vmatprep.mubr.bf16.mxu0 0
    %10049 = vmatmul.mubr.bf16.gmra.mxu0 %v9968
    %v10050 = vpop.f32.mrf.mxu0
    %v10051 = vadd.f32 %v9951, %v10050
    %v10052 = vpop.f32.mrf.mxu0
    %v10053 = vpop.f32.mrf.mxu0
    %v10054 = vadd.f32 %v9951, %v10053
    %v10055 = vpop.f32.mrf.mxu0
    %10056 = vmatprep.mubr.bf16.mxu0 0
    %10057 = vmatmul.mubr.bf16.gmra.mxu0 %v9971
    %v10058 = vpop.f32.mrf.mxu0
    %v10059 = vadd.f32 %v9951, %v10058
    %v10060 = vpop.f32.mrf.mxu0
    %v10061 = vpop.f32.mrf.mxu0
    %v10062 = vadd.f32 %v9951, %v10061
    %v10063 = vpop.f32.mrf.mxu0
    %10064 = vmatprep.mubr.bf16.mxu0 0
    %10065 = vmatmul.mubr.bf16.gmra.mxu0 %v9974
    %v10066 = vpop.f32.mrf.mxu0
    %v10067 = vadd.f32 %v9951, %v10066
    %v10068 = vpop.f32.mrf.mxu0
    %v10069 = vpop.f32.mrf.mxu0
    %v10070 = vadd.f32 %v9951, %v10069
    %v10071 = vpop.f32.mrf.mxu0
    %10072 = vdwg.mxu0
    %v10073 = vadd.f32 %v5665, %v10011
    %v10074 = vadd.f32 %v5666, %v10014
    %v10075 = vadd.f32 %v5667, %v10019
    %v10076 = vadd.f32 %v5668, %v10022
    %v10077 = vadd.f32 %v5669, %v10027
    %v10078 = vadd.f32 %v5670, %v10030
    %v10079 = vadd.f32 %v5671, %v10035
    %v10080 = vadd.f32 %v5672, %v10038
    %v10081 = vadd.f32 %v5673, %v10043
    %v10082 = vadd.f32 %v5674, %v10046
    %v10083 = vadd.f32 %v5675, %v10051
    %v10084 = vadd.f32 %v5676, %v10054
    %v10085 = vadd.f32 %v5677, %v10059
    %v10086 = vadd.f32 %v5678, %v10062
    %v10087 = vadd.f32 %v5679, %v10067
    %v10088 = vadd.f32 %v5680, %v10070
    %v10089 = vld [vmem:[#allocation4 + $0x270] sm:$0x1]
    %v10090 = vld [vmem:[#allocation4 + $0x278] sm:$0x1]
    %v10091 = vsel %vm470, %v10073, 0.0
    %10092 = vadd.xlane.f32.xlu0 %v10091
    %v10093 = vpop.xlane.xlu0 %10092
    %v10094 = vsel %vm470, %v10074, 0.0
    %10095 = vadd.xlane.f32.xlu0 %v10094
    %v10096 = vpop.xlane.xlu0 %10095
    %v10097 = vsel %vm470, %v10075, 0.0
    %10098 = vadd.xlane.f32.xlu0 %v10097
    %v10099 = vpop.xlane.xlu0 %10098
    %v10100 = vsel %vm470, %v10076, 0.0
    %10101 = vadd.xlane.f32.xlu0 %v10100
    %v10102 = vpop.xlane.xlu0 %10101
    %v10103 = vsel %vm470, %v10077, 0.0
    %10104 = vadd.xlane.f32.xlu0 %v10103
    %v10105 = vpop.xlane.xlu0 %10104
    %v10106 = vsel %vm470, %v10078, 0.0
    %10107 = vadd.xlane.f32.xlu0 %v10106
    %v10108 = vpop.xlane.xlu0 %10107
    %v10109 = vsel %vm470, %v10079, 0.0
    %10110 = vadd.xlane.f32.xlu0 %v10109
    %v10111 = vpop.xlane.xlu0 %10110
    %v10112 = vsel %vm470, %v10080, 0.0
    %10113 = vadd.xlane.f32.xlu0 %v10112
    %v10114 = vpop.xlane.xlu0 %10113
    %v10115 = vsel %vm470, %v10081, 0.0
    %10116 = vadd.xlane.f32.xlu0 %v10115
    %v10117 = vpop.xlane.xlu0 %10116
    %v10118 = vsel %vm470, %v10082, 0.0
    %10119 = vadd.xlane.f32.xlu0 %v10118
    %v10120 = vpop.xlane.xlu0 %10119
    %v10121 = vsel %vm470, %v10083, 0.0
    %10122 = vadd.xlane.f32.xlu0 %v10121
    %v10123 = vpop.xlane.xlu0 %10122
    %v10124 = vsel %vm470, %v10084, 0.0
    %10125 = vadd.xlane.f32.xlu0 %v10124
    %v10126 = vpop.xlane.xlu0 %10125
    %v10127 = vsel %vm470, %v10085, 0.0
    %10128 = vadd.xlane.f32.xlu0 %v10127
    %v10129 = vpop.xlane.xlu0 %10128
    %v10130 = vsel %vm470, %v10086, 0.0
    %10131 = vadd.xlane.f32.xlu0 %v10130
    %v10132 = vpop.xlane.xlu0 %10131
    %v10133 = vsel %vm470, %v10087, 0.0
    %10134 = vadd.xlane.f32.xlu0 %v10133
    %v10135 = vpop.xlane.xlu0 %10134
    %v10136 = vsel %vm470, %v10088, 0.0
    %10137 = vadd.xlane.f32.xlu0 %v10136
    %v10138 = vpop.xlane.xlu0 %10137
    %v10139 = vmul.f32 %v10093, %v4912
    %v10140 = vmul.f32 %v10096, %v4912
    %v10141 = vmul.f32 %v10099, %v4912
    %v10142 = vmul.f32 %v10102, %v4912
    %v10143 = vmul.f32 %v10105, %v4912
    %v10144 = vmul.f32 %v10108, %v4912
    %v10145 = vmul.f32 %v10111, %v4912
    %v10146 = vmul.f32 %v10114, %v4912
    %v10147 = vmul.f32 %v10117, %v4912
    %v10148 = vmul.f32 %v10120, %v4912
    %v10149 = vmul.f32 %v10123, %v4912
    %v10150 = vmul.f32 %v10126, %v4912
    %v10151 = vmul.f32 %v10129, %v4912
    %v10152 = vmul.f32 %v10132, %v4912
    %v10153 = vmul.f32 %v10135, %v4912
    %v10154 = vmul.f32 %v10138, %v4912
    %v10155 = vsub.f32 %v10073, %v10139
    %v10156 = vsub.f32 %v10074, %v10140
    %v10157 = vsub.f32 %v10075, %v10141
    %v10158 = vsub.f32 %v10076, %v10142
    %v10159 = vsub.f32 %v10077, %v10143
    %v10160 = vsub.f32 %v10078, %v10144
    %v10161 = vsub.f32 %v10079, %v10145
    %v10162 = vsub.f32 %v10080, %v10146
    %v10163 = vsub.f32 %v10081, %v10147
    %v10164 = vsub.f32 %v10082, %v10148
    %v10165 = vsub.f32 %v10083, %v10149
    %v10166 = vsub.f32 %v10084, %v10150
    %v10167 = vsub.f32 %v10085, %v10151
    %v10168 = vsub.f32 %v10086, %v10152
    %v10169 = vsub.f32 %v10087, %v10153
    %v10170 = vsub.f32 %v10088, %v10154
    %v10171 = vmul.f32 %v10155, %v10155
    %v10172 = vmul.f32 %v10156, %v10156
    %v10173 = vmul.f32 %v10157, %v10157
    %v10174 = vmul.f32 %v10158, %v10158
    %v10175 = vmul.f32 %v10159, %v10159
    %v10176 = vmul.f32 %v10160, %v10160
    %v10177 = vmul.f32 %v10161, %v10161
    %v10178 = vmul.f32 %v10162, %v10162
    %v10179 = vmul.f32 %v10163, %v10163
    %v10180 = vmul.f32 %v10164, %v10164
    %v10181 = vmul.f32 %v10165, %v10165
    %v10182 = vmul.f32 %v10166, %v10166
    %v10183 = vmul.f32 %v10167, %v10167
    %v10184 = vmul.f32 %v10168, %v10168
    %v10185 = vmul.f32 %v10169, %v10169
    %v10186 = vmul.f32 %v10170, %v10170
    %v10187 = vsel %vm470, %v10171, 0.0
    %10188 = vadd.xlane.f32.xlu0 %v10187
    %v10189 = vpop.xlane.xlu0 %10188
    %v10190 = vsel %vm470, %v10172, 0.0
    %10191 = vadd.xlane.f32.xlu0 %v10190
    %v10192 = vpop.xlane.xlu0 %10191
    %v10193 = vsel %vm470, %v10173, 0.0
    %10194 = vadd.xlane.f32.xlu0 %v10193
    %v10195 = vpop.xlane.xlu0 %10194
    %v10196 = vsel %vm470, %v10174, 0.0
    %10197 = vadd.xlane.f32.xlu0 %v10196
    %v10198 = vpop.xlane.xlu0 %10197
    %v10199 = vsel %vm470, %v10175, 0.0
    %10200 = vadd.xlane.f32.xlu0 %v10199
    %v10201 = vpop.xlane.xlu0 %10200
    %v10202 = vsel %vm470, %v10176, 0.0
    %10203 = vadd.xlane.f32.xlu0 %v10202
    %v10204 = vpop.xlane.xlu0 %10203
    %v10205 = vsel %vm470, %v10177, 0.0
    %10206 = vadd.xlane.f32.xlu0 %v10205
    %v10207 = vpop.xlane.xlu0 %10206
    %v10208 = vsel %vm470, %v10178, 0.0
    %10209 = vadd.xlane.f32.xlu0 %v10208
    %v10210 = vpop.xlane.xlu0 %10209
    %v10211 = vsel %vm470, %v10179, 0.0
    %10212 = vadd.xlane.f32.xlu0 %v10211
    %v10213 = vpop.xlane.xlu0 %10212
    %v10214 = vsel %vm470, %v10180, 0.0
    %10215 = vadd.xlane.f32.xlu0 %v10214
    %v10216 = vpop.xlane.xlu0 %10215
    %v10217 = vsel %vm470, %v10181, 0.0
    %10218 = vadd.xlane.f32.xlu0 %v10217
    %v10219 = vpop.xlane.xlu0 %10218
    %v10220 = vsel %vm470, %v10182, 0.0
    %10221 = vadd.xlane.f32.xlu0 %v10220
    %v10222 = vpop.xlane.xlu0 %10221
    %v10223 = vsel %vm470, %v10183, 0.0
    %10224 = vadd.xlane.f32.xlu0 %v10223
    %v10225 = vpop.xlane.xlu0 %10224
    %v10226 = vsel %vm470, %v10184, 0.0
    %10227 = vadd.xlane.f32.xlu0 %v10226
    %v10228 = vpop.xlane.xlu0 %10227
    %v10229 = vsel %vm470, %v10185, 0.0
    %10230 = vadd.xlane.f32.xlu0 %v10229
    %v10231 = vpop.xlane.xlu0 %10230
    %v10232 = vsel %vm470, %v10186, 0.0
    %10233 = vadd.xlane.f32.xlu0 %v10232
    %v10234 = vpop.xlane.xlu0 %10233
    %v10235 = vmul.f32 %v10189, %v4912
    %v10236 = vmul.f32 %v10192, %v4912
    %v10237 = vmul.f32 %v10195, %v4912
    %v10238 = vmul.f32 %v10198, %v4912
    %v10239 = vmul.f32 %v10201, %v4912
    %v10240 = vmul.f32 %v10204, %v4912
    %v10241 = vmul.f32 %v10207, %v4912
    %v10242 = vmul.f32 %v10210, %v4912
    %v10243 = vmul.f32 %v10213, %v4912
    %v10244 = vmul.f32 %v10216, %v4912
    %v10245 = vmul.f32 %v10219, %v4912
    %v10246 = vmul.f32 %v10222, %v4912
    %v10247 = vmul.f32 %v10225, %v4912
    %v10248 = vmul.f32 %v10228, %v4912
    %v10249 = vmul.f32 %v10231, %v4912
    %v10250 = vmul.f32 %v10234, %v4912
    %v10251 = vadd.f32 %v10235, 1e-05
    %v10252 = vadd.f32 %v10236, 1e-05
    %v10253 = vadd.f32 %v10237, 1e-05
    %v10254 = vadd.f32 %v10238, 1e-05
    %v10255 = vadd.f32 %v10239, 1e-05
    %v10256 = vadd.f32 %v10240, 1e-05
    %v10257 = vadd.f32 %v10241, 1e-05
    %v10258 = vadd.f32 %v10242, 1e-05
    %v10259 = vadd.f32 %v10243, 1e-05
    %v10260 = vadd.f32 %v10244, 1e-05
    %v10261 = vadd.f32 %v10245, 1e-05
    %v10262 = vadd.f32 %v10246, 1e-05
    %v10263 = vadd.f32 %v10247, 1e-05
    %v10264 = vadd.f32 %v10248, 1e-05
    %v10265 = vadd.f32 %v10249, 1e-05
    %v10266 = vadd.f32 %v10250, 1e-05
    %v10267 = vrsqrt.pop %v10251
    %v10268 = vrsqrt.pop %v10252
    %v10269 = vrsqrt.pop %v10253
    %v10270 = vrsqrt.pop %v10254
    %v10271 = vrsqrt.pop %v10255
    %v10272 = vrsqrt.pop %v10256
    %v10273 = vrsqrt.pop %v10257
    %v10274 = vrsqrt.pop %v10258
    %v10275 = vrsqrt.pop %v10259
    %v10276 = vrsqrt.pop %v10260
    %v10277 = vrsqrt.pop %v10261
    %v10278 = vrsqrt.pop %v10262
    %v10279 = vrsqrt.pop %v10263
    %v10280 = vrsqrt.pop %v10264
    %v10281 = vrsqrt.pop %v10265
    %v10282 = vrsqrt.pop %v10266
    %v10283 = vmul.f32 %v10155, %v10267
    %v10284 = vmul.f32 %v10156, %v10268
    %v10285 = vmul.f32 %v10157, %v10269
    %v10286 = vmul.f32 %v10158, %v10270
    %v10287 = vmul.f32 %v10159, %v10271
    %v10288 = vmul.f32 %v10160, %v10272
    %v10289 = vmul.f32 %v10161, %v10273
    %v10290 = vmul.f32 %v10162, %v10274
    %v10291 = vmul.f32 %v10163, %v10275
    %v10292 = vmul.f32 %v10164, %v10276
    %v10293 = vmul.f32 %v10165, %v10277
    %v10294 = vmul.f32 %v10166, %v10278
    %v10295 = vmul.f32 %v10167, %v10279
    %v10296 = vmul.f32 %v10168, %v10280
    %v10297 = vmul.f32 %v10169, %v10281
    %v10298 = vmul.f32 %v10170, %v10282
    %v10299 = vlaneseq
    %v10300 = vshrl.u32 %v10299, 7
    %v10301 = vsub.s32 0, %v10300
    %v10302 = vrot.slane %v10089, %v10301
    %v10303 = vmul.f32 %v10283, %v10302
    %v10304 = vmul.f32 %v10284, %v10302
    %v10305 = vmul.f32 %v10285, %v10302
    %v10306 = vmul.f32 %v10286, %v10302
    %v10307 = vmul.f32 %v10287, %v10302
    %v10308 = vmul.f32 %v10288, %v10302
    %v10309 = vmul.f32 %v10289, %v10302
    %v10310 = vmul.f32 %v10290, %v10302
    %v10311 = vmul.f32 %v10291, %v10302
    %v10312 = vmul.f32 %v10292, %v10302
    %v10313 = vmul.f32 %v10293, %v10302
    %v10314 = vmul.f32 %v10294, %v10302
    %v10315 = vmul.f32 %v10295, %v10302
    %v10316 = vmul.f32 %v10296, %v10302
    %v10317 = vmul.f32 %v10297, %v10302
    %v10318 = vmul.f32 %v10298, %v10302
    %v10319 = vlaneseq
    %v10320 = vshrl.u32 %v10319, 7
    %v10321 = vsub.s32 0, %v10320
    %v10322 = vrot.slane %v10090, %v10321
    %v10323 = vadd.f32 %v10303, %v10322
    %v10324 = vadd.f32 %v10304, %v10322
    %v10325 = vadd.f32 %v10305, %v10322
    %v10326 = vadd.f32 %v10306, %v10322
    %v10327 = vadd.f32 %v10307, %v10322
    %v10328 = vadd.f32 %v10308, %v10322
    %v10329 = vadd.f32 %v10309, %v10322
    %v10330 = vadd.f32 %v10310, %v10322
    %v10331 = vadd.f32 %v10311, %v10322
    %v10332 = vadd.f32 %v10312, %v10322
    %v10333 = vadd.f32 %v10313, %v10322
    %v10334 = vadd.f32 %v10314, %v10322
    %v10335 = vadd.f32 %v10315, %v10322
    %v10336 = vadd.f32 %v10316, %v10322
    %v10337 = vadd.f32 %v10317, %v10322
    %v10338 = vadd.f32 %v10318, %v10322
    %v10339 = vpack.c.bf16 %v10324, %v10323
    %v10340 = vpack.c.bf16 %v10326, %v10325
    %v10341 = vpack.c.bf16 %v10328, %v10327
    %v10342 = vpack.c.bf16 %v10330, %v10329
    %v10343 = vpack.c.bf16 %v10332, %v10331
    %v10344 = vpack.c.bf16 %v10334, %v10333
    %v10345 = vpack.c.bf16 %v10336, %v10335
    %v10346 = vpack.c.bf16 %v10338, %v10337
    %v10347 = vld [vmem:[#allocation4 + $0x280] sm:$0xff]
    %v10348 = vld [vmem:[#allocation4 + $0x288] sm:$0xff]
    %v10349 = vld [vmem:[#allocation4 + $0x290] sm:$0xff]
    %v10350 = vld [vmem:[#allocation4 + $0x298] sm:$0xff]
    %v10351 = vpack.c.bf16 %v10348, %v10347
    %v10352 = vpack.c.bf16 %v10350, %v10349
    %v10353 = vld [vmem:[#allocation4 + $0x2a0] sm:$0x1]
    %v10354 = vlaneseq
    %v10355 = vshrl.u32 %v10354, 7
    %v10356 = vsub.s32 0, %v10355
    %v10357 = vrot.slane %v10353, %v10356
    %v10359 = vsel %vm470, %v10339, 0
    %v10362 = vsel %vm470, %v10340, 0
    %v10365 = vsel %vm470, %v10341, 0
    %v10368 = vsel %vm470, %v10342, 0
    %v10371 = vsel %vm470, %v10343, 0
    %v10374 = vsel %vm470, %v10344, 0
    %v10377 = vsel %vm470, %v10345, 0
    %v10380 = vsel %vm470, %v10346, 0
    %10382 = vmatprep.subr.bf16.mxu0 0
    %10383 = vmatpush1.bf16.msra.mxu0 0
    %10384 = vmatprep.subr.bf16.mxu0 0
    %10385 = vmatpush1.bf16.msra.mxu0 0
    %10386 = vmatprep.subr.bf16.mxu0 0
    %10387 = vmatpush1.bf16.msra.mxu0 0
    %10388 = vmatprep.subr.bf16.mxu0 0
    %10389 = vmatpush1.bf16.msra.mxu0 0
    %10390 = vmatprep.subr.bf16.mxu0 0
    %10391 = vmatpush1.bf16.msra.mxu0 0
    %10392 = vmatprep.subr.bf16.mxu0 0
    %10393 = vmatpush1.bf16.msra.mxu0 0
    %10394 = vmatprep.subr.bf16.mxu0 0
    %10395 = vmatpush1.bf16.msra.mxu0 %v10352
    %10396 = vmatprep.subr.bf16.mxu0 0
    %10397 = vmatpush1.bf16.msra.mxu0 %v10351
    %10398 = vmatprep.subr.bf16.mxu0 0
    %10399 = vmatpush2.bf16.msra.mxu0 0
    %10400 = vmatprep.subr.bf16.mxu0 0
    %10401 = vmatpush2.bf16.msra.mxu0 0
    %10402 = vmatprep.subr.bf16.mxu0 0
    %10403 = vmatpush2.bf16.msra.mxu0 0
    %10404 = vmatprep.subr.bf16.mxu0 0
    %10405 = vmatpush2.bf16.msra.mxu0 0
    %10406 = vmatprep.subr.bf16.mxu0 0
    %10407 = vmatpush2.bf16.msra.mxu0 0
    %10408 = vmatprep.subr.bf16.mxu0 0
    %10409 = vmatpush2.bf16.msra.mxu0 0
    %10410 = vmatprep.subr.bf16.mxu0 0
    %10411 = vmatpush2.bf16.msra.mxu0 0
    %10412 = vmatprep.subr.bf16.mxu0 0
    %10413 = vmatpush2.bf16.msra.mxu0 0
    %10414 = vmatprep.mubr.bf16.mxu0 0
    %10415 = vmatmul.mubr.bf16.gmra.mxu0 %v10359
    %v10416 = vpop.f32.mrf.mxu0
    %v10417 = vadd.f32 %v10357, %v10416
    %v10418 = vpop.f32.mrf.mxu0
    %v10419 = vpop.f32.mrf.mxu0
    %v10420 = vadd.f32 %v10357, %v10419
    %v10421 = vpop.f32.mrf.mxu0
    %10422 = vmatprep.mubr.bf16.mxu0 0
    %10423 = vmatmul.mubr.bf16.gmra.mxu0 %v10362
    %v10424 = vpop.f32.mrf.mxu0
    %v10425 = vadd.f32 %v10357, %v10424
    %v10426 = vpop.f32.mrf.mxu0
    %v10427 = vpop.f32.mrf.mxu0
    %v10428 = vadd.f32 %v10357, %v10427
    %v10429 = vpop.f32.mrf.mxu0
    %10430 = vmatprep.mubr.bf16.mxu0 0
    %10431 = vmatmul.mubr.bf16.gmra.mxu0 %v10365
    %v10432 = vpop.f32.mrf.mxu0
    %v10433 = vadd.f32 %v10357, %v10432
    %v10434 = vpop.f32.mrf.mxu0
    %v10435 = vpop.f32.mrf.mxu0
    %v10436 = vadd.f32 %v10357, %v10435
    %v10437 = vpop.f32.mrf.mxu0
    %10438 = vmatprep.mubr.bf16.mxu0 0
    %10439 = vmatmul.mubr.bf16.gmra.mxu0 %v10368
    %v10440 = vpop.f32.mrf.mxu0
    %v10441 = vadd.f32 %v10357, %v10440
    %v10442 = vpop.f32.mrf.mxu0
    %v10443 = vpop.f32.mrf.mxu0
    %v10444 = vadd.f32 %v10357, %v10443
    %v10445 = vpop.f32.mrf.mxu0
    %10446 = vmatprep.mubr.bf16.mxu0 0
    %10447 = vmatmul.mubr.bf16.gmra.mxu0 %v10371
    %v10448 = vpop.f32.mrf.mxu0
    %v10449 = vadd.f32 %v10357, %v10448
    %v10450 = vpop.f32.mrf.mxu0
    %v10451 = vpop.f32.mrf.mxu0
    %v10452 = vadd.f32 %v10357, %v10451
    %v10453 = vpop.f32.mrf.mxu0
    %10454 = vmatprep.mubr.bf16.mxu0 0
    %10455 = vmatmul.mubr.bf16.gmra.mxu0 %v10374
    %v10456 = vpop.f32.mrf.mxu0
    %v10457 = vadd.f32 %v10357, %v10456
    %v10458 = vpop.f32.mrf.mxu0
    %v10459 = vpop.f32.mrf.mxu0
    %v10460 = vadd.f32 %v10357, %v10459
    %v10461 = vpop.f32.mrf.mxu0
    %10462 = vmatprep.mubr.bf16.mxu0 0
    %10463 = vmatmul.mubr.bf16.gmra.mxu0 %v10377
    %v10464 = vpop.f32.mrf.mxu0
    %v10465 = vadd.f32 %v10357, %v10464
    %v10466 = vpop.f32.mrf.mxu0
    %v10467 = vpop.f32.mrf.mxu0
    %v10468 = vadd.f32 %v10357, %v10467
    %v10469 = vpop.f32.mrf.mxu0
    %10470 = vmatprep.mubr.bf16.mxu0 0
    %10471 = vmatmul.mubr.bf16.gmra.mxu0 %v10380
    %v10472 = vpop.f32.mrf.mxu0
    %v10473 = vadd.f32 %v10357, %v10472
    %v10474 = vpop.f32.mrf.mxu0
    %v10475 = vpop.f32.mrf.mxu0
    %v10476 = vadd.f32 %v10357, %v10475
    %v10477 = vpop.f32.mrf.mxu0
    %10478 = vdwg.mxu0
    %v10479 = vmax.f32 %v10417, 0.0
    %v10480 = vmax.f32 %v10420, 0.0
    %v10481 = vmax.f32 %v10425, 0.0
    %v10482 = vmax.f32 %v10428, 0.0
    %v10483 = vmax.f32 %v10433, 0.0
    %v10484 = vmax.f32 %v10436, 0.0
    %v10485 = vmax.f32 %v10441, 0.0
    %v10486 = vmax.f32 %v10444, 0.0
    %v10487 = vmax.f32 %v10449, 0.0
    %v10488 = vmax.f32 %v10452, 0.0
    %v10489 = vmax.f32 %v10457, 0.0
    %v10490 = vmax.f32 %v10460, 0.0
    %v10491 = vmax.f32 %v10465, 0.0
    %v10492 = vmax.f32 %v10468, 0.0
    %v10493 = vmax.f32 %v10473, 0.0
    %v10494 = vmax.f32 %v10476, 0.0
    %v10495 = vpack.c.bf16 %v10480, %v10479
    %v10496 = vpack.c.bf16 %v10482, %v10481
    %v10497 = vpack.c.bf16 %v10484, %v10483
    %v10498 = vpack.c.bf16 %v10486, %v10485
    %v10499 = vpack.c.bf16 %v10488, %v10487
    %v10500 = vpack.c.bf16 %v10490, %v10489
    %v10501 = vpack.c.bf16 %v10492, %v10491
    %v10502 = vpack.c.bf16 %v10494, %v10493
    %v10503 = vld [vmem:[#allocation4 + $0x2a8] sm:$0xff]
    %v10504 = vld [vmem:[#allocation4 + $0x2b0] sm:$0xff]
    %v10505 = vld [vmem:[#allocation4 + $0x2b8] sm:$0xff]
    %v10506 = vld [vmem:[#allocation4 + $0x2c0] sm:$0xff]
    %v10507 = vld [vmem:[#allocation4 + $0x2c8] sm:$0xff]
    %v10508 = vld [vmem:[#allocation4 + $0x2d0] sm:$0xff]
    %v10509 = vld [vmem:[#allocation4 + $0x2d8] sm:$0xff]
    %v10510 = vld [vmem:[#allocation4 + $0x2e0] sm:$0xff]
    %v10511 = vpack.c.bf16 %v10504, %v10503
    %v10512 = vpack.c.bf16 %v10506, %v10505
    %v10513 = vpack.c.bf16 %v10508, %v10507
    %v10514 = vpack.c.bf16 %v10510, %v10509
    %v10515 = vld [vmem:[#allocation4 + $0x2e8] sm:$0x1]
    %v10516 = vlaneseq
    %v10517 = vshrl.u32 %v10516, 7
    %v10518 = vsub.s32 0, %v10517
    %v10519 = vrot.slane %v10515, %v10518
    %v10521 = vsel %vm329, %v10495, 0
    %v10524 = vsel %vm329, %v10496, 0
    %v10527 = vsel %vm329, %v10497, 0
    %v10530 = vsel %vm329, %v10498, 0
    %v10533 = vsel %vm329, %v10499, 0
    %v10536 = vsel %vm329, %v10500, 0
    %v10539 = vsel %vm329, %v10501, 0
    %v10542 = vsel %vm329, %v10502, 0
    %10544 = vmatprep.subr.bf16.mxu0 0
    %10545 = vmatpush1.bf16.msra.mxu0 0
    %10546 = vmatprep.subr.bf16.mxu0 0
    %10547 = vmatpush1.bf16.msra.mxu0 0
    %10548 = vmatprep.subr.bf16.mxu0 0
    %10549 = vmatpush1.bf16.msra.mxu0 0
    %10550 = vmatprep.subr.bf16.mxu0 0
    %10551 = vmatpush1.bf16.msra.mxu0 0
    %10552 = vmatprep.subr.bf16.mxu0 0
    %10553 = vmatpush1.bf16.msra.mxu0 %v10514
    %10554 = vmatprep.subr.bf16.mxu0 0
    %10555 = vmatpush1.bf16.msra.mxu0 %v10513
    %10556 = vmatprep.subr.bf16.mxu0 0
    %10557 = vmatpush1.bf16.msra.mxu0 %v10512
    %10558 = vmatprep.subr.bf16.mxu0 0
    %10559 = vmatpush1.bf16.msra.mxu0 %v10511
    %10560 = vmatprep.subr.bf16.mxu0 0
    %10561 = vmatpush2.bf16.msra.mxu0 0
    %10562 = vmatprep.subr.bf16.mxu0 0
    %10563 = vmatpush2.bf16.msra.mxu0 0
    %10564 = vmatprep.subr.bf16.mxu0 0
    %10565 = vmatpush2.bf16.msra.mxu0 0
    %10566 = vmatprep.subr.bf16.mxu0 0
    %10567 = vmatpush2.bf16.msra.mxu0 0
    %10568 = vmatprep.subr.bf16.mxu0 0
    %10569 = vmatpush2.bf16.msra.mxu0 0
    %10570 = vmatprep.subr.bf16.mxu0 0
    %10571 = vmatpush2.bf16.msra.mxu0 0
    %10572 = vmatprep.subr.bf16.mxu0 0
    %10573 = vmatpush2.bf16.msra.mxu0 0
    %10574 = vmatprep.subr.bf16.mxu0 0
    %10575 = vmatpush2.bf16.msra.mxu0 0
    %10576 = vmatprep.mubr.bf16.mxu0 0
    %10577 = vmatmul.mubr.bf16.gmra.mxu0 %v10521
    %v10578 = vpop.f32.mrf.mxu0
    %v10579 = vadd.f32 %v10519, %v10578
    %v10580 = vpop.f32.mrf.mxu0
    %v10581 = vpop.f32.mrf.mxu0
    %v10582 = vadd.f32 %v10519, %v10581
    %v10583 = vpop.f32.mrf.mxu0
    %10584 = vmatprep.mubr.bf16.mxu0 0
    %10585 = vmatmul.mubr.bf16.gmra.mxu0 %v10524
    %v10586 = vpop.f32.mrf.mxu0
    %v10587 = vadd.f32 %v10519, %v10586
    %v10588 = vpop.f32.mrf.mxu0
    %v10589 = vpop.f32.mrf.mxu0
    %v10590 = vadd.f32 %v10519, %v10589
    %v10591 = vpop.f32.mrf.mxu0
    %10592 = vmatprep.mubr.bf16.mxu0 0
    %10593 = vmatmul.mubr.bf16.gmra.mxu0 %v10527
    %v10594 = vpop.f32.mrf.mxu0
    %v10595 = vadd.f32 %v10519, %v10594
    %v10596 = vpop.f32.mrf.mxu0
    %v10597 = vpop.f32.mrf.mxu0
    %v10598 = vadd.f32 %v10519, %v10597
    %v10599 = vpop.f32.mrf.mxu0
    %10600 = vmatprep.mubr.bf16.mxu0 0
    %10601 = vmatmul.mubr.bf16.gmra.mxu0 %v10530
    %v10602 = vpop.f32.mrf.mxu0
    %v10603 = vadd.f32 %v10519, %v10602
    %v10604 = vpop.f32.mrf.mxu0
    %v10605 = vpop.f32.mrf.mxu0
    %v10606 = vadd.f32 %v10519, %v10605
    %v10607 = vpop.f32.mrf.mxu0
    %10608 = vmatprep.mubr.bf16.mxu0 0
    %10609 = vmatmul.mubr.bf16.gmra.mxu0 %v10533
    %v10610 = vpop.f32.mrf.mxu0
    %v10611 = vadd.f32 %v10519, %v10610
    %v10612 = vpop.f32.mrf.mxu0
    %v10613 = vpop.f32.mrf.mxu0
    %v10614 = vadd.f32 %v10519, %v10613
    %v10615 = vpop.f32.mrf.mxu0
    %10616 = vmatprep.mubr.bf16.mxu0 0
    %10617 = vmatmul.mubr.bf16.gmra.mxu0 %v10536
    %v10618 = vpop.f32.mrf.mxu0
    %v10619 = vadd.f32 %v10519, %v10618
    %v10620 = vpop.f32.mrf.mxu0
    %v10621 = vpop.f32.mrf.mxu0
    %v10622 = vadd.f32 %v10519, %v10621
    %v10623 = vpop.f32.mrf.mxu0
    %10624 = vmatprep.mubr.bf16.mxu0 0
    %10625 = vmatmul.mubr.bf16.gmra.mxu0 %v10539
    %v10626 = vpop.f32.mrf.mxu0
    %v10627 = vadd.f32 %v10519, %v10626
    %v10628 = vpop.f32.mrf.mxu0
    %v10629 = vpop.f32.mrf.mxu0
    %v10630 = vadd.f32 %v10519, %v10629
    %v10631 = vpop.f32.mrf.mxu0
    %10632 = vmatprep.mubr.bf16.mxu0 0
    %10633 = vmatmul.mubr.bf16.gmra.mxu0 %v10542
    %v10634 = vpop.f32.mrf.mxu0
    %v10635 = vadd.f32 %v10519, %v10634
    %v10636 = vpop.f32.mrf.mxu0
    %v10637 = vpop.f32.mrf.mxu0
    %v10638 = vadd.f32 %v10519, %v10637
    %v10639 = vpop.f32.mrf.mxu0
    %10640 = vdwg.mxu0
    %v10641 = vadd.f32 %v10323, %v10579
    %v10642 = vadd.f32 %v10324, %v10582
    %v10643 = vadd.f32 %v10325, %v10587
    %v10644 = vadd.f32 %v10326, %v10590
    %v10645 = vadd.f32 %v10327, %v10595
    %v10646 = vadd.f32 %v10328, %v10598
    %v10647 = vadd.f32 %v10329, %v10603
    %v10648 = vadd.f32 %v10330, %v10606
    %v10649 = vadd.f32 %v10331, %v10611
    %v10650 = vadd.f32 %v10332, %v10614
    %v10651 = vadd.f32 %v10333, %v10619
    %v10652 = vadd.f32 %v10334, %v10622
    %v10653 = vadd.f32 %v10335, %v10627
    %v10654 = vadd.f32 %v10336, %v10630
    %v10655 = vadd.f32 %v10337, %v10635
    %v10656 = vadd.f32 %v10338, %v10638
    %v10657 = vld [vmem:[#allocation4 + $0x2f0] sm:$0x1]
    %v10658 = vld [vmem:[#allocation4 + $0x2f8] sm:$0x1]
    %v10659 = vsel %vm470, %v10641, 0.0
    %10660 = vadd.xlane.f32.xlu0 %v10659
    %v10661 = vpop.xlane.xlu0 %10660
    %v10662 = vsel %vm470, %v10642, 0.0
    %10663 = vadd.xlane.f32.xlu0 %v10662
    %v10664 = vpop.xlane.xlu0 %10663
    %v10665 = vsel %vm470, %v10643, 0.0
    %10666 = vadd.xlane.f32.xlu0 %v10665
    %v10667 = vpop.xlane.xlu0 %10666
    %v10668 = vsel %vm470, %v10644, 0.0
    %10669 = vadd.xlane.f32.xlu0 %v10668
    %v10670 = vpop.xlane.xlu0 %10669
    %v10671 = vsel %vm470, %v10645, 0.0
    %10672 = vadd.xlane.f32.xlu0 %v10671
    %v10673 = vpop.xlane.xlu0 %10672
    %v10674 = vsel %vm470, %v10646, 0.0
    %10675 = vadd.xlane.f32.xlu0 %v10674
    %v10676 = vpop.xlane.xlu0 %10675
    %v10677 = vsel %vm470, %v10647, 0.0
    %10678 = vadd.xlane.f32.xlu0 %v10677
    %v10679 = vpop.xlane.xlu0 %10678
    %v10680 = vsel %vm470, %v10648, 0.0
    %10681 = vadd.xlane.f32.xlu0 %v10680
    %v10682 = vpop.xlane.xlu0 %10681
    %v10683 = vsel %vm470, %v10649, 0.0
    %10684 = vadd.xlane.f32.xlu0 %v10683
    %v10685 = vpop.xlane.xlu0 %10684
    %v10686 = vsel %vm470, %v10650, 0.0
    %10687 = vadd.xlane.f32.xlu0 %v10686
    %v10688 = vpop.xlane.xlu0 %10687
    %v10689 = vsel %vm470, %v10651, 0.0
    %10690 = vadd.xlane.f32.xlu0 %v10689
    %v10691 = vpop.xlane.xlu0 %10690
    %v10692 = vsel %vm470, %v10652, 0.0
    %10693 = vadd.xlane.f32.xlu0 %v10692
    %v10694 = vpop.xlane.xlu0 %10693
    %v10695 = vsel %vm470, %v10653, 0.0
    %10696 = vadd.xlane.f32.xlu0 %v10695
    %v10697 = vpop.xlane.xlu0 %10696
    %v10698 = vsel %vm470, %v10654, 0.0
    %10699 = vadd.xlane.f32.xlu0 %v10698
    %v10700 = vpop.xlane.xlu0 %10699
    %v10701 = vsel %vm470, %v10655, 0.0
    %10702 = vadd.xlane.f32.xlu0 %v10701
    %v10703 = vpop.xlane.xlu0 %10702
    %v10704 = vsel %vm470, %v10656, 0.0
    %10705 = vadd.xlane.f32.xlu0 %v10704
    %v10706 = vpop.xlane.xlu0 %10705
    %v10707 = vmul.f32 %v10661, %v4912
    %v10708 = vmul.f32 %v10664, %v4912
    %v10709 = vmul.f32 %v10667, %v4912
    %v10710 = vmul.f32 %v10670, %v4912
    %v10711 = vmul.f32 %v10673, %v4912
    %v10712 = vmul.f32 %v10676, %v4912
    %v10713 = vmul.f32 %v10679, %v4912
    %v10714 = vmul.f32 %v10682, %v4912
    %v10715 = vmul.f32 %v10685, %v4912
    %v10716 = vmul.f32 %v10688, %v4912
    %v10717 = vmul.f32 %v10691, %v4912
    %v10718 = vmul.f32 %v10694, %v4912
    %v10719 = vmul.f32 %v10697, %v4912
    %v10720 = vmul.f32 %v10700, %v4912
    %v10721 = vmul.f32 %v10703, %v4912
    %v10722 = vmul.f32 %v10706, %v4912
    %v10723 = vsub.f32 %v10641, %v10707
    %v10724 = vsub.f32 %v10642, %v10708
    %v10725 = vsub.f32 %v10643, %v10709
    %v10726 = vsub.f32 %v10644, %v10710
    %v10727 = vsub.f32 %v10645, %v10711
    %v10728 = vsub.f32 %v10646, %v10712
    %v10729 = vsub.f32 %v10647, %v10713
    %v10730 = vsub.f32 %v10648, %v10714
    %v10731 = vsub.f32 %v10649, %v10715
    %v10732 = vsub.f32 %v10650, %v10716
    %v10733 = vsub.f32 %v10651, %v10717
    %v10734 = vsub.f32 %v10652, %v10718
    %v10735 = vsub.f32 %v10653, %v10719
    %v10736 = vsub.f32 %v10654, %v10720
    %v10737 = vsub.f32 %v10655, %v10721
    %v10738 = vsub.f32 %v10656, %v10722
    %v10739 = vmul.f32 %v10723, %v10723
    %v10740 = vmul.f32 %v10724, %v10724
    %v10741 = vmul.f32 %v10725, %v10725
    %v10742 = vmul.f32 %v10726, %v10726
    %v10743 = vmul.f32 %v10727, %v10727
    %v10744 = vmul.f32 %v10728, %v10728
    %v10745 = vmul.f32 %v10729, %v10729
    %v10746 = vmul.f32 %v10730, %v10730
    %v10747 = vmul.f32 %v10731, %v10731
    %v10748 = vmul.f32 %v10732, %v10732
    %v10749 = vmul.f32 %v10733, %v10733
    %v10750 = vmul.f32 %v10734, %v10734
    %v10751 = vmul.f32 %v10735, %v10735
    %v10752 = vmul.f32 %v10736, %v10736
    %v10753 = vmul.f32 %v10737, %v10737
    %v10754 = vmul.f32 %v10738, %v10738
    %v10755 = vsel %vm470, %v10739, 0.0
    %10756 = vadd.xlane.f32.xlu0 %v10755
    %v10757 = vpop.xlane.xlu0 %10756
    %v10758 = vsel %vm470, %v10740, 0.0
    %10759 = vadd.xlane.f32.xlu0 %v10758
    %v10760 = vpop.xlane.xlu0 %10759
    %v10761 = vsel %vm470, %v10741, 0.0
    %10762 = vadd.xlane.f32.xlu0 %v10761
    %v10763 = vpop.xlane.xlu0 %10762
    %v10764 = vsel %vm470, %v10742, 0.0
    %10765 = vadd.xlane.f32.xlu0 %v10764
    %v10766 = vpop.xlane.xlu0 %10765
    %v10767 = vsel %vm470, %v10743, 0.0
    %10768 = vadd.xlane.f32.xlu0 %v10767
    %v10769 = vpop.xlane.xlu0 %10768
    %v10770 = vsel %vm470, %v10744, 0.0
    %10771 = vadd.xlane.f32.xlu0 %v10770
    %v10772 = vpop.xlane.xlu0 %10771
    %v10773 = vsel %vm470, %v10745, 0.0
    %10774 = vadd.xlane.f32.xlu0 %v10773
    %v10775 = vpop.xlane.xlu0 %10774
    %v10776 = vsel %vm470, %v10746, 0.0
    %10777 = vadd.xlane.f32.xlu0 %v10776
    %v10778 = vpop.xlane.xlu0 %10777
    %v10779 = vsel %vm470, %v10747, 0.0
    %10780 = vadd.xlane.f32.xlu0 %v10779
    %v10781 = vpop.xlane.xlu0 %10780
    %v10782 = vsel %vm470, %v10748, 0.0
    %10783 = vadd.xlane.f32.xlu0 %v10782
    %v10784 = vpop.xlane.xlu0 %10783
    %v10785 = vsel %vm470, %v10749, 0.0
    %10786 = vadd.xlane.f32.xlu0 %v10785
    %v10787 = vpop.xlane.xlu0 %10786
    %v10788 = vsel %vm470, %v10750, 0.0
    %10789 = vadd.xlane.f32.xlu0 %v10788
    %v10790 = vpop.xlane.xlu0 %10789
    %v10791 = vsel %vm470, %v10751, 0.0
    %10792 = vadd.xlane.f32.xlu0 %v10791
    %v10793 = vpop.xlane.xlu0 %10792
    %v10794 = vsel %vm470, %v10752, 0.0
    %10795 = vadd.xlane.f32.xlu0 %v10794
    %v10796 = vpop.xlane.xlu0 %10795
    %v10797 = vsel %vm470, %v10753, 0.0
    %10798 = vadd.xlane.f32.xlu0 %v10797
    %v10799 = vpop.xlane.xlu0 %10798
    %v10800 = vsel %vm470, %v10754, 0.0
    %10801 = vadd.xlane.f32.xlu0 %v10800
    %v10802 = vpop.xlane.xlu0 %10801
    %v10803 = vmul.f32 %v10757, %v4912
    %v10804 = vmul.f32 %v10760, %v4912
    %v10805 = vmul.f32 %v10763, %v4912
    %v10806 = vmul.f32 %v10766, %v4912
    %v10807 = vmul.f32 %v10769, %v4912
    %v10808 = vmul.f32 %v10772, %v4912
    %v10809 = vmul.f32 %v10775, %v4912
    %v10810 = vmul.f32 %v10778, %v4912
    %v10811 = vmul.f32 %v10781, %v4912
    %v10812 = vmul.f32 %v10784, %v4912
    %v10813 = vmul.f32 %v10787, %v4912
    %v10814 = vmul.f32 %v10790, %v4912
    %v10815 = vmul.f32 %v10793, %v4912
    %v10816 = vmul.f32 %v10796, %v4912
    %v10817 = vmul.f32 %v10799, %v4912
    %v10818 = vmul.f32 %v10802, %v4912
    %v10819 = vadd.f32 %v10803, 1e-05
    %v10820 = vadd.f32 %v10804, 1e-05
    %v10821 = vadd.f32 %v10805, 1e-05
    %v10822 = vadd.f32 %v10806, 1e-05
    %v10823 = vadd.f32 %v10807, 1e-05
    %v10824 = vadd.f32 %v10808, 1e-05
    %v10825 = vadd.f32 %v10809, 1e-05
    %v10826 = vadd.f32 %v10810, 1e-05
    %v10827 = vadd.f32 %v10811, 1e-05
    %v10828 = vadd.f32 %v10812, 1e-05
    %v10829 = vadd.f32 %v10813, 1e-05
    %v10830 = vadd.f32 %v10814, 1e-05
    %v10831 = vadd.f32 %v10815, 1e-05
    %v10832 = vadd.f32 %v10816, 1e-05
    %v10833 = vadd.f32 %v10817, 1e-05
    %v10834 = vadd.f32 %v10818, 1e-05
    %v10835 = vrsqrt.pop %v10819
    %v10836 = vrsqrt.pop %v10820
    %v10837 = vrsqrt.pop %v10821
    %v10838 = vrsqrt.pop %v10822
    %v10839 = vrsqrt.pop %v10823
    %v10840 = vrsqrt.pop %v10824
    %v10841 = vrsqrt.pop %v10825
    %v10842 = vrsqrt.pop %v10826
    %v10843 = vrsqrt.pop %v10827
    %v10844 = vrsqrt.pop %v10828
    %v10845 = vrsqrt.pop %v10829
    %v10846 = vrsqrt.pop %v10830
    %v10847 = vrsqrt.pop %v10831
    %v10848 = vrsqrt.pop %v10832
    %v10849 = vrsqrt.pop %v10833
    %v10850 = vrsqrt.pop %v10834
    %v10851 = vmul.f32 %v10723, %v10835
    %v10852 = vmul.f32 %v10724, %v10836
    %v10853 = vmul.f32 %v10725, %v10837
    %v10854 = vmul.f32 %v10726, %v10838
    %v10855 = vmul.f32 %v10727, %v10839
    %v10856 = vmul.f32 %v10728, %v10840
    %v10857 = vmul.f32 %v10729, %v10841
    %v10858 = vmul.f32 %v10730, %v10842
    %v10859 = vmul.f32 %v10731, %v10843
    %v10860 = vmul.f32 %v10732, %v10844
    %v10861 = vmul.f32 %v10733, %v10845
    %v10862 = vmul.f32 %v10734, %v10846
    %v10863 = vmul.f32 %v10735, %v10847
    %v10864 = vmul.f32 %v10736, %v10848
    %v10865 = vmul.f32 %v10737, %v10849
    %v10866 = vmul.f32 %v10738, %v10850
    %v10867 = vlaneseq
    %v10868 = vshrl.u32 %v10867, 7
    %v10869 = vsub.s32 0, %v10868
    %v10870 = vrot.slane %v10657, %v10869
    %v10871 = vmul.f32 %v10851, %v10870
    %v10872 = vmul.f32 %v10852, %v10870
    %v10873 = vmul.f32 %v10853, %v10870
    %v10874 = vmul.f32 %v10854, %v10870
    %v10875 = vmul.f32 %v10855, %v10870
    %v10876 = vmul.f32 %v10856, %v10870
    %v10877 = vmul.f32 %v10857, %v10870
    %v10878 = vmul.f32 %v10858, %v10870
    %v10879 = vmul.f32 %v10859, %v10870
    %v10880 = vmul.f32 %v10860, %v10870
    %v10881 = vmul.f32 %v10861, %v10870
    %v10882 = vmul.f32 %v10862, %v10870
    %v10883 = vmul.f32 %v10863, %v10870
    %v10884 = vmul.f32 %v10864, %v10870
    %v10885 = vmul.f32 %v10865, %v10870
    %v10886 = vmul.f32 %v10866, %v10870
    %v10887 = vlaneseq
    %v10888 = vshrl.u32 %v10887, 7
    %v10889 = vsub.s32 0, %v10888
    %v10890 = vrot.slane %v10658, %v10889
    %v10891 = vadd.f32 %v10871, %v10890
    %v10892 = vadd.f32 %v10872, %v10890
    %v10893 = vadd.f32 %v10873, %v10890
    %v10894 = vadd.f32 %v10874, %v10890
    %v10895 = vadd.f32 %v10875, %v10890
    %v10896 = vadd.f32 %v10876, %v10890
    %v10897 = vadd.f32 %v10877, %v10890
    %v10898 = vadd.f32 %v10878, %v10890
    %v10899 = vadd.f32 %v10879, %v10890
    %v10900 = vadd.f32 %v10880, %v10890
    %v10901 = vadd.f32 %v10881, %v10890
    %v10902 = vadd.f32 %v10882, %v10890
    %v10903 = vadd.f32 %v10883, %v10890
    %v10904 = vadd.f32 %v10884, %v10890
    %v10905 = vadd.f32 %v10885, %v10890
    %v10906 = vadd.f32 %v10886, %v10890
    %v10907 = vpack.c.bf16 %v38, %v38
    %v10908 = vld [vmem:[#allocation4 + $0xe8] sm:$0xff]
    %v10909 = vpack.c.bf16 %v10908, %v10908
    %v10910 = vld [vmem:[#allocation4 + $0xf0] sm:$0x1]
    %v10911 = vlaneseq
    %v10912 = vshrl.u32 %v10911, 7
    %v10913 = vsub.s32 0, %v10912
    %v10914 = vrot.slane %v10910, %v10913
    %v10916 = vsel %vm162, %v10907, 0
    %v10919 = vsel %vm187, %v10909, 0
    %10921 = vmatprep.subr.bf16.mxu0 0
    %10922 = vmatpush1.bf16.msra.mxu0 0
    %10923 = vmatprep.subr.bf16.mxu0 0
    %10924 = vmatpush1.bf16.msra.mxu0 0
    %10925 = vmatprep.subr.bf16.mxu0 0
    %10926 = vmatpush1.bf16.msra.mxu0 0
    %10927 = vmatprep.subr.bf16.mxu0 0
    %10928 = vmatpush1.bf16.msra.mxu0 0
    %10929 = vmatprep.subr.bf16.mxu0 0
    %10930 = vmatpush1.bf16.msra.mxu0 0
    %10931 = vmatprep.subr.bf16.mxu0 0
    %10932 = vmatpush1.bf16.msra.mxu0 0
    %10933 = vmatprep.subr.bf16.mxu0 0
    %10934 = vmatpush1.bf16.msra.mxu0 0
    %10935 = vmatprep.subr.bf16.mxu0 0
    %10936 = vmatpush1.bf16.msra.mxu0 %v10919
    %10937 = vmatprep.subr.bf16.mxu0 0
    %10938 = vmatpush2.bf16.msra.mxu0 0
    %10939 = vmatprep.subr.bf16.mxu0 0
    %10940 = vmatpush2.bf16.msra.mxu0 0
    %10941 = vmatprep.subr.bf16.mxu0 0
    %10942 = vmatpush2.bf16.msra.mxu0 0
    %10943 = vmatprep.subr.bf16.mxu0 0
    %10944 = vmatpush2.bf16.msra.mxu0 0
    %10945 = vmatprep.subr.bf16.mxu0 0
    %10946 = vmatpush2.bf16.msra.mxu0 0
    %10947 = vmatprep.subr.bf16.mxu0 0
    %10948 = vmatpush2.bf16.msra.mxu0 0
    %10949 = vmatprep.subr.bf16.mxu0 0
    %10950 = vmatpush2.bf16.msra.mxu0 0
    %10951 = vmatprep.subr.bf16.mxu0 0
    %10952 = vmatpush2.bf16.msra.mxu0 0
    %10953 = vmatprep.mubr.bf16.mxu0 0
    %10954 = vmatmul.mubr.bf16.gmra.mxu0 %v10916
    %v10955 = vpop.f32.mrf.mxu0
    %v10956 = vadd.f32 %v10914, %v10955
    %v10957 = vpop.f32.mrf.mxu0
    %v10958 = vpop.f32.mrf.mxu0
    %v10959 = vpop.f32.mrf.mxu0
    %10960 = vdwg.mxu0
    %v10961 = vmax.f32 %v10956, 0.0
    %v10962 = vpack.c.bf16 %v10961, %v10961
    %v10963 = vld [vmem:[#allocation4 + $0xf8] sm:$0xff]
    %v10964 = vld [vmem:[#allocation4 + $0x100] sm:$0xff]
    %v10965 = vld [vmem:[#allocation4 + $0x108] sm:$0xff]
    %v10966 = vld [vmem:[#allocation4 + $0x110] sm:$0xff]
    %v10967 = vld [vmem:[#allocation4 + $0x118] sm:$0xff]
    %v10968 = vld [vmem:[#allocation4 + $0x120] sm:$0xff]
    %v10969 = vld [vmem:[#allocation4 + $0x128] sm:$0xff]
    %v10970 = vld [vmem:[#allocation4 + $0x130] sm:$0xff]
    %v10971 = vpack.c.bf16 %v10964, %v10963
    %v10972 = vpack.c.bf16 %v10966, %v10965
    %v10973 = vpack.c.bf16 %v10968, %v10967
    %v10974 = vpack.c.bf16 %v10970, %v10969
    %v10975 = vld [vmem:[#allocation4 + $0x138] sm:$0x1]
    %v10976 = vlaneseq
    %v10977 = vshrl.u32 %v10976, 7
    %v10978 = vsub.s32 0, %v10977
    %v10979 = vrot.slane %v10975, %v10978
    %v10981 = vsel %vm329, %v10962, 0
    %10983 = vmatprep.subr.bf16.mxu0 0
    %10984 = vmatpush1.bf16.msra.mxu0 0
    %10985 = vmatprep.subr.bf16.mxu0 0
    %10986 = vmatpush1.bf16.msra.mxu0 0
    %10987 = vmatprep.subr.bf16.mxu0 0
    %10988 = vmatpush1.bf16.msra.mxu0 0
    %10989 = vmatprep.subr.bf16.mxu0 0
    %10990 = vmatpush1.bf16.msra.mxu0 0
    %10991 = vmatprep.subr.bf16.mxu0 0
    %10992 = vmatpush1.bf16.msra.mxu0 %v10974
    %10993 = vmatprep.subr.bf16.mxu0 0
    %10994 = vmatpush1.bf16.msra.mxu0 %v10973
    %10995 = vmatprep.subr.bf16.mxu0 0
    %10996 = vmatpush1.bf16.msra.mxu0 %v10972
    %10997 = vmatprep.subr.bf16.mxu0 0
    %10998 = vmatpush1.bf16.msra.mxu0 %v10971
    %10999 = vmatprep.subr.bf16.mxu0 0
    %11000 = vmatpush2.bf16.msra.mxu0 0
    %11001 = vmatprep.subr.bf16.mxu0 0
    %11002 = vmatpush2.bf16.msra.mxu0 0
    %11003 = vmatprep.subr.bf16.mxu0 0
    %11004 = vmatpush2.bf16.msra.mxu0 0
    %11005 = vmatprep.subr.bf16.mxu0 0
    %11006 = vmatpush2.bf16.msra.mxu0 0
    %11007 = vmatprep.subr.bf16.mxu0 0
    %11008 = vmatpush2.bf16.msra.mxu0 0
    %11009 = vmatprep.subr.bf16.mxu0 0
    %11010 = vmatpush2.bf16.msra.mxu0 0
    %11011 = vmatprep.subr.bf16.mxu0 0
    %11012 = vmatpush2.bf16.msra.mxu0 0
    %11013 = vmatprep.subr.bf16.mxu0 0
    %11014 = vmatpush2.bf16.msra.mxu0 0
    %11015 = vmatprep.mubr.bf16.mxu0 0
    %11016 = vmatmul.mubr.bf16.gmra.mxu0 %v10981
    %v11017 = vpop.f32.mrf.mxu0
    %v11018 = vadd.f32 %v10979, %v11017
    %v11019 = vpop.f32.mrf.mxu0
    %v11020 = vpop.f32.mrf.mxu0
    %v11021 = vpop.f32.mrf.mxu0
    %11022 = vdwg.mxu0
    %v11023 = vmax.f32 %v11018, 0.0
    %v11024 = vand.u32 2147483647, %v11018
    %v11025 = vsub.f32 0.0, %v11024
    %v11026 = vmul.f32 %v11025, 1.442695
    %v11027 = vpow.pop %v11026
    %v11028 = vadd.f32 %v11027, 1.0
    %v11029 = vlog2.pop %v11028
    %v11030 = vmul.f32 %v11029, 0.6931472
    %v11031 = vadd.f32 %v11023, %v11030
    %v11033 = vcombine.high %v11018, %v11018
    %v11035 = vunpack.c.l.s4 1966171168
    %v11036 = vunpack.c.0.s8 %v11035
    %v11037 = vlaneseq
    %v11038 = vshrl.u32 %v11037, 7
    %v11039 = vsub.s32 %v11036, %v11038
    %v11040 = vrot.slane %v11018, %v11039
    %v11042 = vunpack.c.l.s4 1966171168
    %v11043 = vunpack.c.0.s8 %v11042
    %v11044 = vlaneseq
    %v11045 = vshrl.u32 %v11044, 7
    %v11046 = vsub.s32 %v11043, %v11045
    %v11047 = vrot.slane %v11033, %v11046
    %v11048 = vcombine.high %v11040, %v11040
    %v11049 = vcombine.high %v11047, %v11047
    %v11051 = vunpack.c.l.s4 1966171168
    %v11052 = vunpack.c.0.s8 %v11051
    %v11053 = vlaneseq
    %v11054 = vshrl.u32 %v11053, 7
    %v11055 = vsub.s32 %v11052, %v11054
    %v11056 = vrot.slane %v11040, %v11055
    %v11058 = vunpack.c.l.s4 1966171168
    %v11059 = vunpack.c.0.s8 %v11058
    %v11060 = vlaneseq
    %v11061 = vshrl.u32 %v11060, 7
    %v11062 = vsub.s32 %v11059, %v11061
    %v11063 = vrot.slane %v11047, %v11062
    %v11065 = vunpack.c.l.s4 1966171168
    %v11066 = vunpack.c.0.s8 %v11065
    %v11067 = vlaneseq
    %v11068 = vshrl.u32 %v11067, 7
    %v11069 = vsub.s32 %v11066, %v11068
    %v11070 = vrot.slane %v11048, %v11069
    %v11072 = vunpack.c.l.s4 1966171168
    %v11073 = vunpack.c.0.s8 %v11072
    %v11074 = vlaneseq
    %v11075 = vshrl.u32 %v11074, 7
    %v11076 = vsub.s32 %v11073, %v11075
    %v11077 = vrot.slane %v11049, %v11076
    %v11078 = vcombine.high %v11056, %v11056
    %v11079 = vcombine.high %v11063, %v11063
    %v11080 = vcombine.high %v11070, %v11070
    %v11081 = vcombine.high %v11077, %v11077
    %v11082 = vlaneseq
    %v11083 = vshrl.u32 %v11082, 7
    %v11084 = vsub.s32 0, %v11083
    %v11085 = vrot.slane %v11056, %v11084
    %v11086 = vlaneseq
    %v11087 = vshrl.u32 %v11086, 7
    %v11088 = vsub.s32 0, %v11087
    %v11089 = vrot.slane %v11070, %v11088
    %v11090 = vlaneseq
    %v11091 = vshrl.u32 %v11090, 7
    %v11092 = vsub.s32 0, %v11091
    %v11093 = vrot.slane %v11078, %v11092
    %v11094 = vlaneseq
    %v11095 = vshrl.u32 %v11094, 7
    %v11096 = vsub.s32 0, %v11095
    %v11097 = vrot.slane %v11080, %v11096
    %v11098 = vlaneseq
    %v11099 = vshrl.u32 %v11098, 7
    %v11100 = vsub.s32 0, %v11099
    %v11101 = vrot.slane %v11063, %v11100
    %v11102 = vlaneseq
    %v11103 = vshrl.u32 %v11102, 7
    %v11104 = vsub.s32 0, %v11103
    %v11105 = vrot.slane %v11077, %v11104
    %v11106 = vlaneseq
    %v11107 = vshrl.u32 %v11106, 7
    %v11108 = vsub.s32 0, %v11107
    %v11109 = vrot.slane %v11079, %v11108
    %v11110 = vlaneseq
    %v11111 = vshrl.u32 %v11110, 7
    %v11112 = vsub.s32 0, %v11111
    %v11113 = vrot.slane %v11081, %v11112
    %v11123 = vcombine.high %v11031, %v11031
    %v11125 = vunpack.c.l.s4 1966171168
    %v11126 = vunpack.c.0.s8 %v11125
    %v11127 = vlaneseq
    %v11128 = vshrl.u32 %v11127, 7
    %v11129 = vsub.s32 %v11126, %v11128
    %v11130 = vrot.slane %v11031, %v11129
    %v11132 = vunpack.c.l.s4 1966171168
    %v11133 = vunpack.c.0.s8 %v11132
    %v11134 = vlaneseq
    %v11135 = vshrl.u32 %v11134, 7
    %v11136 = vsub.s32 %v11133, %v11135
    %v11137 = vrot.slane %v11123, %v11136
    %v11138 = vcombine.high %v11130, %v11130
    %v11139 = vcombine.high %v11137, %v11137
    %v11141 = vunpack.c.l.s4 1966171168
    %v11142 = vunpack.c.0.s8 %v11141
    %v11143 = vlaneseq
    %v11144 = vshrl.u32 %v11143, 7
    %v11145 = vsub.s32 %v11142, %v11144
    %v11146 = vrot.slane %v11130, %v11145
    %v11148 = vunpack.c.l.s4 1966171168
    %v11149 = vunpack.c.0.s8 %v11148
    %v11150 = vlaneseq
    %v11151 = vshrl.u32 %v11150, 7
    %v11152 = vsub.s32 %v11149, %v11151
    %v11153 = vrot.slane %v11137, %v11152
    %v11155 = vunpack.c.l.s4 1966171168
    %v11156 = vunpack.c.0.s8 %v11155
    %v11157 = vlaneseq
    %v11158 = vshrl.u32 %v11157, 7
    %v11159 = vsub.s32 %v11156, %v11158
    %v11160 = vrot.slane %v11138, %v11159
    %v11162 = vunpack.c.l.s4 1966171168
    %v11163 = vunpack.c.0.s8 %v11162
    %v11164 = vlaneseq
    %v11165 = vshrl.u32 %v11164, 7
    %v11166 = vsub.s32 %v11163, %v11165
    %v11167 = vrot.slane %v11139, %v11166
    %v11168 = vcombine.high %v11146, %v11146
    %v11169 = vcombine.high %v11153, %v11153
    %v11170 = vcombine.high %v11160, %v11160
    %v11171 = vcombine.high %v11167, %v11167
    %v11172 = vlaneseq
    %v11173 = vshrl.u32 %v11172, 7
    %v11174 = vsub.s32 0, %v11173
    %v11175 = vrot.slane %v11146, %v11174
    %v11176 = vlaneseq
    %v11177 = vshrl.u32 %v11176, 7
    %v11178 = vsub.s32 0, %v11177
    %v11179 = vrot.slane %v11160, %v11178
    %v11180 = vlaneseq
    %v11181 = vshrl.u32 %v11180, 7
    %v11182 = vsub.s32 0, %v11181
    %v11183 = vrot.slane %v11168, %v11182
    %v11184 = vlaneseq
    %v11185 = vshrl.u32 %v11184, 7
    %v11186 = vsub.s32 0, %v11185
    %v11187 = vrot.slane %v11170, %v11186
    %v11188 = vlaneseq
    %v11189 = vshrl.u32 %v11188, 7
    %v11190 = vsub.s32 0, %v11189
    %v11191 = vrot.slane %v11153, %v11190
    %v11192 = vlaneseq
    %v11193 = vshrl.u32 %v11192, 7
    %v11194 = vsub.s32 0, %v11193
    %v11195 = vrot.slane %v11167, %v11194
    %v11196 = vlaneseq
    %v11197 = vshrl.u32 %v11196, 7
    %v11198 = vsub.s32 0, %v11197
    %v11199 = vrot.slane %v11169, %v11198
    %v11200 = vlaneseq
    %v11201 = vshrl.u32 %v11200, 7
    %v11202 = vsub.s32 0, %v11201
    %v11203 = vrot.slane %v11171, %v11202
    %v11212 = vld [vmem:[#allocation4 + $0x10] sm:$0xff]
    %v11213 = vld [vmem:[#allocation4 + $0x18] sm:$0xff]
    %v11214 = vld [vmem:[#allocation4 + $0x20] sm:$0xff]
    %v11215 = vld [vmem:[#allocation4 + $0x28] sm:$0xff]
    %v11216 = vld [vmem:[#allocation4 + $0x30] sm:$0xff]
    %v11217 = vld [vmem:[#allocation4 + $0x38] sm:$0xff]
    %v11218 = vld [vmem:[#allocation4 + $0x40] sm:$0xff]
    %v11219 = vld [vmem:[#allocation4 + $0x48] sm:$0xff]
    %v11220 = vld [vmem:[#allocation4 + $0x50] sm:$0xff]
    %v11221 = vld [vmem:[#allocation4 + $0x58] sm:$0xff]
    %v11222 = vld [vmem:[#allocation4 + $0x60] sm:$0xff]
    %v11223 = vld [vmem:[#allocation4 + $0x68] sm:$0xff]
    %v11224 = vld [vmem:[#allocation4 + $0x70] sm:$0xff]
    %v11225 = vld [vmem:[#allocation4 + $0x78] sm:$0xff]
    %v11226 = vld [vmem:[#allocation4 + $0x80] sm:$0xff]
    %v11227 = vld [vmem:[#allocation4 + $0x88] sm:$0xff]
    %11244 = vrot.lane.b32.xlu0 %v11212, 1
    %v11245 = vpop.permute.xlu0 %11244
    %11246 = vrot.lane.b32.xlu0 %v11213, 1
    %v11247 = vpop.permute.xlu0 %11246
    %11248 = vrot.lane.b32.xlu0 %v11214, 1
    %v11249 = vpop.permute.xlu0 %11248
    %11250 = vrot.lane.b32.xlu0 %v11215, 1
    %v11251 = vpop.permute.xlu0 %11250
    %11252 = vrot.lane.b32.xlu0 %v11216, 1
    %v11253 = vpop.permute.xlu0 %11252
    %11254 = vrot.lane.b32.xlu0 %v11217, 1
    %v11255 = vpop.permute.xlu0 %11254
    %11256 = vrot.lane.b32.xlu0 %v11218, 1
    %v11257 = vpop.permute.xlu0 %11256
    %11258 = vrot.lane.b32.xlu0 %v11219, 1
    %v11259 = vpop.permute.xlu0 %11258
    %11260 = vrot.lane.b32.xlu0 %v11220, 1
    %v11261 = vpop.permute.xlu0 %11260
    %11262 = vrot.lane.b32.xlu0 %v11221, 1
    %v11263 = vpop.permute.xlu0 %11262
    %11264 = vrot.lane.b32.xlu0 %v11222, 1
    %v11265 = vpop.permute.xlu0 %11264
    %11266 = vrot.lane.b32.xlu0 %v11223, 1
    %v11267 = vpop.permute.xlu0 %11266
    %11268 = vrot.lane.b32.xlu0 %v11224, 1
    %v11269 = vpop.permute.xlu0 %11268
    %11270 = vrot.lane.b32.xlu0 %v11225, 1
    %v11271 = vpop.permute.xlu0 %11270
    %11272 = vrot.lane.b32.xlu0 %v11226, 1
    %v11273 = vpop.permute.xlu0 %11272
    %11274 = vrot.lane.b32.xlu0 %v11227, 1
    %v11275 = vpop.permute.xlu0 %11274
    %v11292 = vmul.f32 %v11175, %v11245
    %v11293 = vmul.f32 %v11175, %v11247
    %v11294 = vmul.f32 %v11179, %v11249
    %v11295 = vmul.f32 %v11179, %v11251
    %v11296 = vmul.f32 %v11183, %v11253
    %v11297 = vmul.f32 %v11183, %v11255
    %v11298 = vmul.f32 %v11187, %v11257
    %v11299 = vmul.f32 %v11187, %v11259
    %v11300 = vmul.f32 %v11191, %v11261
    %v11301 = vmul.f32 %v11191, %v11263
    %v11302 = vmul.f32 %v11195, %v11265
    %v11303 = vmul.f32 %v11195, %v11267
    %v11304 = vmul.f32 %v11199, %v11269
    %v11305 = vmul.f32 %v11199, %v11271
    %v11306 = vmul.f32 %v11203, %v11273
    %v11307 = vmul.f32 %v11203, %v11275
    %11324 = vrot.lane.b32.xlu0 %v11292, 127
    %v11325 = vpop.permute.xlu0 %11324
    %11326 = vrot.lane.b32.xlu0 %v11293, 127
    %v11327 = vpop.permute.xlu0 %11326
    %11328 = vrot.lane.b32.xlu0 %v11294, 127
    %v11329 = vpop.permute.xlu0 %11328
    %11330 = vrot.lane.b32.xlu0 %v11295, 127
    %v11331 = vpop.permute.xlu0 %11330
    %11332 = vrot.lane.b32.xlu0 %v11296, 127
    %v11333 = vpop.permute.xlu0 %11332
    %11334 = vrot.lane.b32.xlu0 %v11297, 127
    %v11335 = vpop.permute.xlu0 %11334
    %11336 = vrot.lane.b32.xlu0 %v11298, 127
    %v11337 = vpop.permute.xlu0 %11336
    %11338 = vrot.lane.b32.xlu0 %v11299, 127
    %v11339 = vpop.permute.xlu0 %11338
    %11340 = vrot.lane.b32.xlu0 %v11300, 127
    %v11341 = vpop.permute.xlu0 %11340
    %11342 = vrot.lane.b32.xlu0 %v11301, 127
    %v11343 = vpop.permute.xlu0 %11342
    %11344 = vrot.lane.b32.xlu0 %v11302, 127
    %v11345 = vpop.permute.xlu0 %11344
    %11346 = vrot.lane.b32.xlu0 %v11303, 127
    %v11347 = vpop.permute.xlu0 %11346
    %11348 = vrot.lane.b32.xlu0 %v11304, 127
    %v11349 = vpop.permute.xlu0 %11348
    %11350 = vrot.lane.b32.xlu0 %v11305, 127
    %v11351 = vpop.permute.xlu0 %11350
    %11352 = vrot.lane.b32.xlu0 %v11306, 127
    %v11353 = vpop.permute.xlu0 %11352
    %11354 = vrot.lane.b32.xlu0 %v11307, 127
    %v11355 = vpop.permute.xlu0 %11354
    %v11372 = vsub.f32 %v11085, %v11325
    %v11373 = vsub.f32 %v11085, %v11327
    %v11374 = vsub.f32 %v11089, %v11329
    %v11375 = vsub.f32 %v11089, %v11331
    %v11376 = vsub.f32 %v11093, %v11333
    %v11377 = vsub.f32 %v11093, %v11335
    %v11378 = vsub.f32 %v11097, %v11337
    %v11379 = vsub.f32 %v11097, %v11339
    %v11380 = vsub.f32 %v11101, %v11341
    %v11381 = vsub.f32 %v11101, %v11343
    %v11382 = vsub.f32 %v11105, %v11345
    %v11383 = vsub.f32 %v11105, %v11347
    %v11384 = vsub.f32 %v11109, %v11349
    %v11385 = vsub.f32 %v11109, %v11351
    %v11386 = vsub.f32 %v11113, %v11353
    %v11387 = vsub.f32 %v11113, %v11355
    %vm11388 = vcmask 7168
    %v11389 = vsel %vm11388, %v11372, -inf
    %v11390 = vsel %vm11388, %v11376, -inf
    %v11391 = vmax.f32 %v11389, %v11390
    %v11392 = vsel %vm11388, %v11380, -inf
    %v11393 = vmax.f32 %v11391, %v11392
    %v11394 = vsel %vm11388, %v11384, -inf
    %v11395 = vmax.f32 %v11393, %v11394
    %v11396 = vsel %vm11388, %v11373, -inf
    %v11397 = vsel %vm11388, %v11377, -inf
    %v11398 = vmax.f32 %v11396, %v11397
    %v11399 = vsel %vm11388, %v11381, -inf
    %v11400 = vmax.f32 %v11398, %v11399
    %v11401 = vsel %vm11388, %v11385, -inf
    %v11402 = vmax.f32 %v11400, %v11401
    %v11403 = vsel %vm11388, %v11374, -inf
    %v11404 = vsel %vm11388, %v11378, -inf
    %v11405 = vmax.f32 %v11403, %v11404
    %v11406 = vsel %vm11388, %v11382, -inf
    %v11407 = vmax.f32 %v11405, %v11406
    %v11408 = vsel %vm11388, %v11386, -inf
    %v11409 = vmax.f32 %v11407, %v11408
    %v11410 = vsel %vm11388, %v11375, -inf
    %v11411 = vsel %vm11388, %v11379, -inf
    %v11412 = vmax.f32 %v11410, %v11411
    %v11413 = vsel %vm11388, %v11383, -inf
    %v11414 = vmax.f32 %v11412, %v11413
    %v11415 = vsel %vm11388, %v11387, -inf
    %v11416 = vmax.f32 %v11414, %v11415
    %v11417 = vsub.f32 %v11372, %v11395
    %v11418 = vsub.f32 %v11373, %v11402
    %v11419 = vsub.f32 %v11374, %v11409
    %v11420 = vsub.f32 %v11375, %v11416
    %v11421 = vsub.f32 %v11376, %v11395
    %v11422 = vsub.f32 %v11377, %v11402
    %v11423 = vsub.f32 %v11378, %v11409
    %v11424 = vsub.f32 %v11379, %v11416
    %v11425 = vsub.f32 %v11380, %v11395
    %v11426 = vsub.f32 %v11381, %v11402
    %v11427 = vsub.f32 %v11382, %v11409
    %v11428 = vsub.f32 %v11383, %v11416
    %v11429 = vsub.f32 %v11384, %v11395
    %v11430 = vsub.f32 %v11385, %v11402
    %v11431 = vsub.f32 %v11386, %v11409
    %v11432 = vsub.f32 %v11387, %v11416
    %v11433 = vmul.f32 %v11417, 1.442695
    %v11434 = vpow.pop %v11433
    %v11435 = vmul.f32 %v11418, 1.442695
    %v11436 = vpow.pop %v11435
    %v11437 = vmul.f32 %v11419, 1.442695
    %v11438 = vpow.pop %v11437
    %v11439 = vmul.f32 %v11420, 1.442695
    %v11440 = vpow.pop %v11439
    %v11441 = vmul.f32 %v11421, 1.442695
    %v11442 = vpow.pop %v11441
    %v11443 = vmul.f32 %v11422, 1.442695
    %v11444 = vpow.pop %v11443
    %v11445 = vmul.f32 %v11423, 1.442695
    %v11446 = vpow.pop %v11445
    %v11447 = vmul.f32 %v11424, 1.442695
    %v11448 = vpow.pop %v11447
    %v11449 = vmul.f32 %v11425, 1.442695
    %v11450 = vpow.pop %v11449
    %v11451 = vmul.f32 %v11426, 1.442695
    %v11452 = vpow.pop %v11451
    %v11453 = vmul.f32 %v11427, 1.442695
    %v11454 = vpow.pop %v11453
    %v11455 = vmul.f32 %v11428, 1.442695
    %v11456 = vpow.pop %v11455
    %v11457 = vmul.f32 %v11429, 1.442695
    %v11458 = vpow.pop %v11457
    %v11459 = vmul.f32 %v11430, 1.442695
    %v11460 = vpow.pop %v11459
    %v11461 = vmul.f32 %v11431, 1.442695
    %v11462 = vpow.pop %v11461
    %v11463 = vmul.f32 %v11432, 1.442695
    %v11464 = vpow.pop %v11463
    %v11465 = vsel %vm11388, %v11434, 0.0
    %v11466 = vsel %vm11388, %v11442, 0.0
    %v11467 = vadd.f32 %v11465, %v11466
    %v11468 = vsel %vm11388, %v11450, 0.0
    %v11469 = vadd.f32 %v11467, %v11468
    %v11470 = vsel %vm11388, %v11458, 0.0
    %v11471 = vadd.f32 %v11469, %v11470
    %v11472 = vsel %vm11388, %v11436, 0.0
    %v11473 = vsel %vm11388, %v11444, 0.0
    %v11474 = vadd.f32 %v11472, %v11473
    %v11475 = vsel %vm11388, %v11452, 0.0
    %v11476 = vadd.f32 %v11474, %v11475
    %v11477 = vsel %vm11388, %v11460, 0.0
    %v11478 = vadd.f32 %v11476, %v11477
    %v11479 = vsel %vm11388, %v11438, 0.0
    %v11480 = vsel %vm11388, %v11446, 0.0
    %v11481 = vadd.f32 %v11479, %v11480
    %v11482 = vsel %vm11388, %v11454, 0.0
    %v11483 = vadd.f32 %v11481, %v11482
    %v11484 = vsel %vm11388, %v11462, 0.0
    %v11485 = vadd.f32 %v11483, %v11484
    %v11486 = vsel %vm11388, %v11440, 0.0
    %v11487 = vsel %vm11388, %v11448, 0.0
    %v11488 = vadd.f32 %v11486, %v11487
    %v11489 = vsel %vm11388, %v11456, 0.0
    %v11490 = vadd.f32 %v11488, %v11489
    %v11491 = vsel %vm11388, %v11464, 0.0
    %v11492 = vadd.f32 %v11490, %v11491
    %v11493 = vrcp.pop %v11471
    %v11494 = vrcp.pop %v11478
    %v11495 = vrcp.pop %v11485
    %v11496 = vrcp.pop %v11492
    %v11497 = vmul.f32 %v11434, %v11493
    %v11498 = vmul.f32 %v11436, %v11494
    %v11499 = vmul.f32 %v11438, %v11495
    %v11500 = vmul.f32 %v11440, %v11496
    %v11501 = vmul.f32 %v11442, %v11493
    %v11502 = vmul.f32 %v11444, %v11494
    %v11503 = vmul.f32 %v11446, %v11495
    %v11504 = vmul.f32 %v11448, %v11496
    %v11505 = vmul.f32 %v11450, %v11493
    %v11506 = vmul.f32 %v11452, %v11494
    %v11507 = vmul.f32 %v11454, %v11495
    %v11508 = vmul.f32 %v11456, %v11496
    %v11509 = vmul.f32 %v11458, %v11493
    %v11510 = vmul.f32 %v11460, %v11494
    %v11511 = vmul.f32 %v11462, %v11495
    %v11512 = vmul.f32 %v11464, %v11496
    %11514 = vset.pattern.permute.xlu0 0
    %11515 = vperm.xlu0 %11514, %v11497
    %v11516 = vpop.permute.xlu0 %11515
    %11519 = vset.pattern.permute.xlu0 0
    %11520 = vperm.xlu0 %11519, %v11498
    %v11521 = vpop.permute.xlu0 %11520
    %11524 = vset.pattern.permute.xlu0 0
    %11525 = vperm.xlu0 %11524, %v11499
    %v11526 = vpop.permute.xlu0 %11525
    %11529 = vset.pattern.permute.xlu0 0
    %11530 = vperm.xlu0 %11529, %v11500
    %v11531 = vpop.permute.xlu0 %11530
    %11534 = vset.pattern.permute.xlu0 0
    %11535 = vperm.xlu0 %11534, %v11501
    %v11536 = vpop.permute.xlu0 %11535
    %11539 = vset.pattern.permute.xlu0 0
    %11540 = vperm.xlu0 %11539, %v11502
    %v11541 = vpop.permute.xlu0 %11540
    %11544 = vset.pattern.permute.xlu0 0
    %11545 = vperm.xlu0 %11544, %v11503
    %v11546 = vpop.permute.xlu0 %11545
    %11549 = vset.pattern.permute.xlu0 0
    %11550 = vperm.xlu0 %11549, %v11504
    %v11551 = vpop.permute.xlu0 %11550
    %11554 = vset.pattern.permute.xlu0 0
    %11555 = vperm.xlu0 %11554, %v11505
    %v11556 = vpop.permute.xlu0 %11555
    %11559 = vset.pattern.permute.xlu0 0
    %11560 = vperm.xlu0 %11559, %v11506
    %v11561 = vpop.permute.xlu0 %11560
    %11564 = vset.pattern.permute.xlu0 0
    %11565 = vperm.xlu0 %11564, %v11507
    %v11566 = vpop.permute.xlu0 %11565
    %11569 = vset.pattern.permute.xlu0 0
    %11570 = vperm.xlu0 %11569, %v11508
    %v11571 = vpop.permute.xlu0 %11570
    %11574 = vset.pattern.permute.xlu0 0
    %11575 = vperm.xlu0 %11574, %v11509
    %v11576 = vpop.permute.xlu0 %11575
    %11579 = vset.pattern.permute.xlu0 0
    %11580 = vperm.xlu0 %11579, %v11510
    %v11581 = vpop.permute.xlu0 %11580
    %11584 = vset.pattern.permute.xlu0 0
    %11585 = vperm.xlu0 %11584, %v11511
    %v11586 = vpop.permute.xlu0 %11585
    %11589 = vset.pattern.permute.xlu0 0
    %11590 = vperm.xlu0 %11589, %v11512
    %v11591 = vpop.permute.xlu0 %11590
    %v11593 = vmul.f32 %v11516, %v10891
    %v11594 = vmul.f32 %v11521, %v10892
    %v11595 = vmul.f32 %v11526, %v10893
    %v11596 = vmul.f32 %v11531, %v10894
    %v11597 = vmul.f32 %v11536, %v10895
    %v11598 = vmul.f32 %v11541, %v10896
    %v11599 = vmul.f32 %v11546, %v10897
    %v11600 = vmul.f32 %v11551, %v10898
    %v11601 = vmul.f32 %v11556, %v10899
    %v11602 = vmul.f32 %v11561, %v10900
    %v11603 = vmul.f32 %v11566, %v10901
    %v11604 = vmul.f32 %v11571, %v10902
    %v11605 = vmul.f32 %v11576, %v10903
    %v11606 = vmul.f32 %v11581, %v10904
    %v11607 = vmul.f32 %v11586, %v10905
    %v11608 = vmul.f32 %v11591, %v10906
    %v11609 = vsel %vm470, %v11593, 0.0
    %v11610 = vsel %vm470, %v11597, 0.0
    %v11611 = vadd.f32 %v11609, %v11610
    %v11612 = vsel %vm470, %v11601, 0.0
    %v11613 = vadd.f32 %v11611, %v11612
    %v11614 = vsel %vm470, %v11605, 0.0
    %v11615 = vadd.f32 %v11613, %v11614
    %v11616 = vsel %vm470, %v11594, 0.0
    %v11617 = vsel %vm470, %v11598, 0.0
    %v11618 = vadd.f32 %v11616, %v11617
    %v11619 = vsel %vm470, %v11602, 0.0
    %v11620 = vadd.f32 %v11618, %v11619
    %v11621 = vsel %vm470, %v11606, 0.0
    %v11622 = vadd.f32 %v11620, %v11621
    %v11623 = vsel %vm470, %v11595, 0.0
    %v11624 = vsel %vm470, %v11599, 0.0
    %v11625 = vadd.f32 %v11623, %v11624
    %v11626 = vsel %vm470, %v11603, 0.0
    %v11627 = vadd.f32 %v11625, %v11626
    %v11628 = vsel %vm470, %v11607, 0.0
    %v11629 = vadd.f32 %v11627, %v11628
    %v11630 = vsel %vm470, %v11596, 0.0
    %v11631 = vsel %vm470, %v11600, 0.0
    %v11632 = vadd.f32 %v11630, %v11631
    %v11633 = vsel %vm470, %v11604, 0.0
    %v11634 = vadd.f32 %v11632, %v11633
    %v11635 = vsel %vm470, %v11608, 0.0
    %v11636 = vadd.f32 %v11634, %v11635
    %11639 = vrot.lane.b32.xlu0 %v11629, 32
    %v11640 = vpop.permute.xlu0 %11639
    %11641 = vrot.lane.b32.xlu0 %v11636, 32
    %v11642 = vpop.permute.xlu0 %11641
    %v11645 = vsel %vm470, %v11615, %v11640
    %v11646 = vsel %vm470, %v11622, %v11642
    %11647 = vst.msk [vmem:[%s2] sm:$0xff] %vm329, %v11645
    %11648 = vst.msk [vmem:[%s2 + $0x8] sm:$0xff] %vm329, %v11646
    // Predicated region
    $region18: #{forward.1} parent=1 // pred_check
      _
    $region19: #{forward.1} parent=1 // pred_check_branch
      %11650 = sbr.rel (0) target = $region21
    $region20: #{forward.1} parent=1 // pred_region
      _
    $region21: #{forward.1} parent=1 // pred_fallthru
      _
    // Predicated region
    $region22: #{forward.1} parent=1 // pred_check
      _
    $region23: #{forward.1} parent=1 // pred_check_branch
      %11652 = sbr.rel (0) target = $region25
    $region24: #{forward.1} parent=1 // pred_region
      _
    $region25: #{forward.1} parent=1 // pred_fallthru
      _
    %11653 = vsyncpa [#allocation3], 1
    %11654 = vsyncpa [#allocation5], 1

</llo_original>
